<compile_context>
chip_gen: v5e
topology: v5e:2x2
jax: 0.10.0
libtpu: 0.0.40
codegen_flags: <defaults>
</compile_context>

<pallas_src>
import jax
import jax.numpy as jnp
from jax import lax
from jax.experimental import pallas as pl
from jax.experimental.pallas import tpu as pltpu

# Architecture constants (fixed by the PyTorch module: fc1 expects
# 1600 = 50*8*4 features, which pins the input spatial size to 44 x 28).
_KH = _KW = 5
_C1, _C2 = 20, 50            # conv1 / conv2 output channels
_H0, _W0 = 44, 28            # input spatial size
_H1, _W1 = 20, 12            # pooled conv1 spatial size
_H2, _W2 = 8, 4              # pooled conv2 spatial size
_NPOS1 = _H1 * _W1           # 240 pooled conv1 positions per image
_M2 = 192                    # conv2 flat-grid rows (>= 16*12 - 4 = 188 valid)
_NPAD = 128                  # fc2 output lanes padded to a full lane tile
# flat row shifts implementing conv2's 5x5 im2col on the (20,12) grid
_SHIFTS = tuple(ky * _W1 + kx for ky in range(_KH) for kx in range(_KW))
# flat rows of the conv2 output grid holding the 2x2-pooled positions
_POOL_ROWS = tuple(2 * _W1 * oh + 2 * ow
                   for oh in range(_H2) for ow in range(_W2))


# ----------------------------------------------------------------------------
# Fused Pallas kernel
# ----------------------------------------------------------------------------
def _dqn_fused_kernel(p1_ref, w1_ref, b1_ref, w2_ref, b2_ref,
                      wf1_ref, bf1_ref, wf2_ref, bf2_ref, o_ref):
    f32 = jnp.float32
    bf16 = jnp.bfloat16
    B = o_ref.shape[0]
    n = B * _NPOS1                      # rows per pool-offset block of conv1

    # ---- conv1: one MXU dot over all (pool_offset, batch) patch rows -------
    a1 = jnp.dot(p1_ref[...], w1_ref[...], preferred_element_type=f32)
    # 2x2 max-pool = max over the 4 offset blocks (commutes with bias + ReLU)
    h1 = jnp.maximum(jnp.maximum(a1[0:n], a1[n:2 * n]),
                     jnp.maximum(a1[2 * n:3 * n], a1[3 * n:4 * n]))
    h1 = jnp.maximum(h1 + b1_ref[...], 0.0)        # (B*240, 20) NHWC rows
    # zero rows so the shifted conv2 windows below never run out of bounds
    h1p = jnp.concatenate([h1, jnp.zeros((8, _C1), f32)], axis=0).astype(bf16)

    # ---- conv2: in-kernel im2col via flat row shifts, one MXU dot ----------
    blocks = []
    for b in range(B):
        base = b * _NPOS1
        cols = [h1p[base + d:base + d + _M2, :] for d in _SHIFTS]
        blocks.append(jnp.concatenate(cols, axis=1))        # (192, 500)
    patches = jnp.concatenate(blocks, axis=0)               # (B*192, 500)
    o2 = jnp.dot(patches, w2_ref[...],
                 preferred_element_type=f32)                # (B*192, 50)

    # ---- 2x2 max-pool + bias + ReLU, flatten straight into fc1 rows --------
    npool = _M2 - (_W1 + 1)                                 # 179 rows
    rows = []
    for b in range(B):
        ob = o2[b * _M2:(b + 1) * _M2]
        m = jnp.maximum(
            jnp.maximum(ob[0:npool], ob[1:npool + 1]),
            jnp.maximum(ob[_W1:npool + _W1], ob[_W1 + 1:npool + _W1 + 1]))
        m = jnp.maximum(m + b2_ref[...], 0.0).astype(bf16)
        # fc1's weight rows were pre-permuted to (pos, c2) order, so the
        # flatten is just a lane-concat of the 32 pooled rows (no transpose).
        rows.append(jnp.concatenate([m[r:r + 1, :] for r in _POOL_ROWS],
                                    axis=1))                # (1, 1600)
    xf = jnp.concatenate(rows, axis=0)                      # (B, 1600) bf16

    # ---- fc1 + ReLU, fc2 (lane-padded to 128) -------------------------------
    z1 = jnp.dot(xf, wf1_ref[...], preferred_element_type=f32) + bf1_ref[...]
    z1 = jnp.maximum(z1, 0.0).astype(bf16)
    z2 = jnp.dot(z1, wf2_ref[...], preferred_element_type=f32) + bf2_ref[...]
    o_ref[...] = z2.astype(o_ref.dtype)


# ----------------------------------------------------------------------------
# Wrapper: operand preparation (cheap XLA glue on tiny tensors) + pallas_call
# ----------------------------------------------------------------------------
def _full_spec(shape):
    nd = len(shape)
    return pl.BlockSpec(shape, lambda i, _n=nd: (0,) * _n)


def _prep_operands(x_nchw, params):
    B = x_nchw.shape[0]
    bf16 = jnp.bfloat16
    x = x_nchw[:, 0, :, :]                                  # (B, 44, 28), C=1

    # conv1 im2col patches: rows ordered (pool_offset, batch, ph, pw),
    # columns (ky, kx).  ~100 KB of bf16 -> negligible HBM traffic.
    ho, wo = _H0 - _KH + 1, _W0 - _KW + 1                   # 40, 24
    cols = [x[:, ky:ky + ho, kx:kx + wo]
            for ky in range(_KH) for kx in range(_KW)]
    pat = jnp.stack(cols, axis=-1)                          # (B, 40, 24, 25)
    pat = pat.reshape(B, _H1, 2, _W1, 2, _KH * _KW)         # h=2ph+p, w=2pw+q
    pat = pat.transpose(2, 4, 0, 1, 3, 5)                   # (p, q, b, ph, pw, k)
    p1 = pat.reshape(4 * B * _NPOS1, _KH * _KW).astype(bf16)

    # conv weights as (K, C_out) matmul operands matching the patch layouts
    w1m = params["w1"].transpose(2, 3, 1, 0).reshape(
        _KH * _KW, _C1).astype(bf16)
    w2m = params["w2"].transpose(2, 3, 1, 0).reshape(
        _KH * _KW * _C1, _C2).astype(bf16)

    # fc1: transpose to (in, out) and permute the 1600 input rows from
    # PyTorch's NCHW flatten order (c2*32 + pos) to (pos*50 + c2) order.
    nhid = params["w_fc1"].shape[0]                         # 500
    wf1 = (params["w_fc1"].T.reshape(_C2, _H2 * _W2, nhid)
           .transpose(1, 0, 2).reshape(_C2 * _H2 * _W2, nhid).astype(bf16))

    # fc2: pad the tiny n_actions output to 128 lanes (dense store)
    nact = params["w_fc2"].shape[0]
    wf2 = jnp.zeros((nhid, _NPAD), bf16).at[:, :nact].set(
        params["w_fc2"].T.astype(bf16))
    bf2 = jnp.zeros((1, _NPAD), jnp.float32).at[0, :nact].set(
        params["b_fc2"].astype(jnp.float32))

    return (p1, w1m,
            params["b1"].reshape(1, _C1).astype(jnp.float32),
            w2m,
            params["b2"].reshape(1, _C2).astype(jnp.float32),
            wf1,
            params["b_fc1"].reshape(1, nhid).astype(jnp.float32),
            wf2, bf2)


def dqn_forward(x_nchw, params):
    B = x_nchw.shape[0]
    n_actions = params["w_fc2"].shape[0]
    operands = _prep_operands(x_nchw, params)
    out = pl.pallas_call(
        _dqn_fused_kernel,
        out_shape=jax.ShapeDtypeStruct((B, _NPAD), jnp.float32),
        grid=(1,),
        in_specs=[_full_spec(op.shape) for op in operands],
        out_specs=_full_spec((B, _NPAD)),
        compiler_params=pltpu.CompilerParams(
            dimension_semantics=("arbitrary",),
            vmem_limit_bytes=32 * 1024 * 1024),
    )(*operands)
    return out[:, :n_actions]


# ----------------------------------------------------------------------------
# Pure-JAX f32 reference (mirrors the PyTorch forward exactly)
# ----------------------------------------------------------------------------
def reference_forward(x_nchw, params):
    dn = ("NCHW", "OIHW", "NCHW")

    def conv_relu_pool_ref(y, w, b):
        y = lax.conv_general_dilated(y, w, (1, 1), "VALID",
                                     dimension_numbers=dn)
        y = y + b.reshape(1, -1, 1, 1)
        y = jnp.maximum(y, 0.0)
        return lax.reduce_window(y, -jnp.inf, lax.max,
                                 (1, 1, 2, 2), (1, 1, 2, 2), "VALID")

    y = conv_relu_pool_ref(x_nchw, params["w1"], params["b1"])
    y = conv_relu_pool_ref(y, params["w2"], params["b2"])
    y = y.reshape(y.shape[0], -1)
    y = jnp.maximum(y @ params["w_fc1"].T + params["b_fc1"], 0.0)
    return y @ params["w_fc2"].T + params["b_fc2"]


# ----------------------------------------------------------------------------
# Main
# ----------------------------------------------------------------------------
if __name__ == "__main__":
    key = jax.random.PRNGKey(0)
    n_actions = 6
    B = 2
    k_x, k1, k2, k3, k4, k5, k6, k7, k8 = jax.random.split(key, 9)

    # Input spatial size (44, 28) makes the flattened feature size
    # 50 * 8 * 4 = 1600, matching fc1's in_features.
    x = jax.random.normal(k_x, (B, 1, 44, 28), dtype=jnp.float32)

    params = {
        "w1": 0.05 * jax.random.normal(k1, (20, 1, 5, 5), dtype=jnp.float32),
        "b1": 0.05 * jax.random.normal(k2, (20,), dtype=jnp.float32),
        "w2": 0.05 * jax.random.normal(k3, (50, 20, 5, 5), dtype=jnp.float32),
        "b2": 0.05 * jax.random.normal(k4, (50,), dtype=jnp.float32),
        "w_fc1": 0.02 * jax.random.normal(k5, (500, 1600), dtype=jnp.float32),
        "b_fc1": 0.02 * jax.random.normal(k6, (500,), dtype=jnp.float32),
        "w_fc2": 0.02 * jax.random.normal(k7, (n_actions, 500),
                                          dtype=jnp.float32),
        "b_fc2": 0.02 * jax.random.normal(k8, (n_actions,), dtype=jnp.float32),
    }

    out = jax.jit(dqn_forward)(x, params)
    out = jax.block_until_ready(out)

    ref = jax.block_until_ready(reference_forward(x, params))
    assert out.shape == (B, n_actions)
    max_diff = jnp.max(jnp.abs(out - ref))
    # bf16 matmul operands with f32 accumulation -> ~1% relative error budget.
    assert jnp.allclose(out, ref, rtol=2e-2, atol=2e-2), (
        f"mismatch: max abs diff {max_diff}")

    print("KERNEL_OK")
</pallas_src>

<mosaic_0001>
module attributes {stable_mosaic.version = 11 : i64} {
  func.func @_dqn_fused_kernel(%arg0: i32, %arg1: memref<1920x25xbf16, #tpu.memory_space<vmem>>, %arg2: memref<25x20xbf16, #tpu.memory_space<vmem>>, %arg3: memref<1x20xf32, #tpu.memory_space<vmem>>, %arg4: memref<500x50xbf16, #tpu.memory_space<vmem>>, %arg5: memref<1x50xf32, #tpu.memory_space<vmem>>, %arg6: memref<1600x500xbf16, #tpu.memory_space<vmem>>, %arg7: memref<1x500xf32, #tpu.memory_space<vmem>>, %arg8: memref<500x128xbf16, #tpu.memory_space<vmem>>, %arg9: memref<1x128xf32, #tpu.memory_space<vmem>>, %arg10: memref<2x128xf32, #tpu.memory_space<vmem>>) attributes {dimension_semantics = [#tpu.dimension_semantics<arbitrary>], iteration_bounds = array<i64: 1>, scalar_prefetch = 0 : i64, scratch_operands = 0 : i64, tpu.core_type = #tpu.core_type<tc>, window_params = [{pipeline_mode = #tpu.pipeline_mode<synchronous>, transform_indices = @transform_0, window_bounds = array<i64: 1920, 25>}, {pipeline_mode = #tpu.pipeline_mode<synchronous>, transform_indices = @transform_1, window_bounds = array<i64: 25, 20>}, {pipeline_mode = #tpu.pipeline_mode<synchronous>, transform_indices = @transform_2, window_bounds = array<i64: 1, 20>}, {pipeline_mode = #tpu.pipeline_mode<synchronous>, transform_indices = @transform_3, window_bounds = array<i64: 500, 50>}, {pipeline_mode = #tpu.pipeline_mode<synchronous>, transform_indices = @transform_4, window_bounds = array<i64: 1, 50>}, {pipeline_mode = #tpu.pipeline_mode<synchronous>, transform_indices = @transform_5, window_bounds = array<i64: 1600, 500>}, {pipeline_mode = #tpu.pipeline_mode<synchronous>, transform_indices = @transform_6, window_bounds = array<i64: 1, 500>}, {pipeline_mode = #tpu.pipeline_mode<synchronous>, transform_indices = @transform_7, window_bounds = array<i64: 500, 128>}, {pipeline_mode = #tpu.pipeline_mode<synchronous>, transform_indices = @transform_8, window_bounds = array<i64: 1, 128>}, {pipeline_mode = #tpu.pipeline_mode<synchronous>, transform_indices = @transform_9, window_bounds = array<i64: 2, 128>}]} {
    %c0 = arith.constant 0 : index
    %c0_0 = arith.constant 0 : index
    %0 = vector.load %arg1[%c0, %c0_0] : memref<1920x25xbf16, #tpu.memory_space<vmem>>, vector<1920x25xbf16>
    %c0_1 = arith.constant 0 : index
    %c0_2 = arith.constant 0 : index
    %1 = vector.load %arg2[%c0_1, %c0_2] : memref<25x20xbf16, #tpu.memory_space<vmem>>, vector<25x20xbf16>
    %cst = arith.constant dense<0.000000e+00> : vector<1920x20xf32>
    %2 = tpu.matmul %0, %1, %cst {dimension_numbers = #tpu.dot_dimension_numbers<[1], [0], [0], [1], [0, 0, 1, 1], [], []>} : vector<1920x25xbf16>, vector<25x20xbf16>, vector<1920x20xf32> -> vector<1920x20xf32>
    %3 = vector.extract_strided_slice %2 {offsets = [0, 0], sizes = [480, 20], strides = [1, 1]} : vector<1920x20xf32> to vector<480x20xf32>
    %4 = vector.extract_strided_slice %2 {offsets = [480, 0], sizes = [480, 20], strides = [1, 1]} : vector<1920x20xf32> to vector<480x20xf32>
    %5 = arith.maximumf %3, %4 : vector<480x20xf32>
    %6 = vector.extract_strided_slice %2 {offsets = [960, 0], sizes = [480, 20], strides = [1, 1]} : vector<1920x20xf32> to vector<480x20xf32>
    %7 = vector.extract_strided_slice %2 {offsets = [1440, 0], sizes = [480, 20], strides = [1, 1]} : vector<1920x20xf32> to vector<480x20xf32>
    %8 = arith.maximumf %6, %7 : vector<480x20xf32>
    %9 = arith.maximumf %5, %8 : vector<480x20xf32>
    %c0_3 = arith.constant 0 : index
    %c0_4 = arith.constant 0 : index
    %10 = vector.load %arg3[%c0_3, %c0_4] : memref<1x20xf32, #tpu.memory_space<vmem>>, vector<1x20xf32>
    %11 = vector.broadcast %10 : vector<1x20xf32> to vector<480x20xf32>
    %12 = arith.addf %9, %11 : vector<480x20xf32>
    %cst_5 = arith.constant 0.000000e+00 : f32
    %13 = vector.broadcast %cst_5 : f32 to vector<480x20xf32>
    %14 = arith.maximumf %12, %13 : vector<480x20xf32>
    %cst_6 = arith.constant 0.000000e+00 : f32
    %15 = vector.broadcast %cst_6 : f32 to vector<8x20xf32>
    %16 = tpu.concatenate %14, %15 in 0 : vector<480x20xf32>, vector<8x20xf32> -> vector<488x20xf32>
    %17 = arith.truncf %16 : vector<488x20xf32> to vector<488x20xbf16>
    %18 = vector.extract_strided_slice %17 {offsets = [0, 0], sizes = [192, 20], strides = [1, 1]} : vector<488x20xbf16> to vector<192x20xbf16>
    %19 = vector.extract_strided_slice %17 {offsets = [1, 0], sizes = [192, 20], strides = [1, 1]} : vector<488x20xbf16> to vector<192x20xbf16>
    %20 = vector.extract_strided_slice %17 {offsets = [2, 0], sizes = [192, 20], strides = [1, 1]} : vector<488x20xbf16> to vector<192x20xbf16>
    %21 = vector.extract_strided_slice %17 {offsets = [3, 0], sizes = [192, 20], strides = [1, 1]} : vector<488x20xbf16> to vector<192x20xbf16>
    %22 = vector.extract_strided_slice %17 {offsets = [4, 0], sizes = [192, 20], strides = [1, 1]} : vector<488x20xbf16> to vector<192x20xbf16>
    %23 = vector.extract_strided_slice %17 {offsets = [12, 0], sizes = [192, 20], strides = [1, 1]} : vector<488x20xbf16> to vector<192x20xbf16>
    %24 = vector.extract_strided_slice %17 {offsets = [13, 0], sizes = [192, 20], strides = [1, 1]} : vector<488x20xbf16> to vector<192x20xbf16>
    %25 = vector.extract_strided_slice %17 {offsets = [14, 0], sizes = [192, 20], strides = [1, 1]} : vector<488x20xbf16> to vector<192x20xbf16>
    %26 = vector.extract_strided_slice %17 {offsets = [15, 0], sizes = [192, 20], strides = [1, 1]} : vector<488x20xbf16> to vector<192x20xbf16>
    %27 = vector.extract_strided_slice %17 {offsets = [16, 0], sizes = [192, 20], strides = [1, 1]} : vector<488x20xbf16> to vector<192x20xbf16>
    %28 = vector.extract_strided_slice %17 {offsets = [24, 0], sizes = [192, 20], strides = [1, 1]} : vector<488x20xbf16> to vector<192x20xbf16>
    %29 = vector.extract_strided_slice %17 {offsets = [25, 0], sizes = [192, 20], strides = [1, 1]} : vector<488x20xbf16> to vector<192x20xbf16>
    %30 = vector.extract_strided_slice %17 {offsets = [26, 0], sizes = [192, 20], strides = [1, 1]} : vector<488x20xbf16> to vector<192x20xbf16>
    %31 = vector.extract_strided_slice %17 {offsets = [27, 0], sizes = [192, 20], strides = [1, 1]} : vector<488x20xbf16> to vector<192x20xbf16>
    %32 = vector.extract_strided_slice %17 {offsets = [28, 0], sizes = [192, 20], strides = [1, 1]} : vector<488x20xbf16> to vector<192x20xbf16>
    %33 = vector.extract_strided_slice %17 {offsets = [36, 0], sizes = [192, 20], strides = [1, 1]} : vector<488x20xbf16> to vector<192x20xbf16>
    %34 = vector.extract_strided_slice %17 {offsets = [37, 0], sizes = [192, 20], strides = [1, 1]} : vector<488x20xbf16> to vector<192x20xbf16>
    %35 = vector.extract_strided_slice %17 {offsets = [38, 0], sizes = [192, 20], strides = [1, 1]} : vector<488x20xbf16> to vector<192x20xbf16>
    %36 = vector.extract_strided_slice %17 {offsets = [39, 0], sizes = [192, 20], strides = [1, 1]} : vector<488x20xbf16> to vector<192x20xbf16>
    %37 = vector.extract_strided_slice %17 {offsets = [40, 0], sizes = [192, 20], strides = [1, 1]} : vector<488x20xbf16> to vector<192x20xbf16>
    %38 = vector.extract_strided_slice %17 {offsets = [48, 0], sizes = [192, 20], strides = [1, 1]} : vector<488x20xbf16> to vector<192x20xbf16>
    %39 = vector.extract_strided_slice %17 {offsets = [49, 0], sizes = [192, 20], strides = [1, 1]} : vector<488x20xbf16> to vector<192x20xbf16>
    %40 = vector.extract_strided_slice %17 {offsets = [50, 0], sizes = [192, 20], strides = [1, 1]} : vector<488x20xbf16> to vector<192x20xbf16>
    %41 = vector.extract_strided_slice %17 {offsets = [51, 0], sizes = [192, 20], strides = [1, 1]} : vector<488x20xbf16> to vector<192x20xbf16>
    %42 = vector.extract_strided_slice %17 {offsets = [52, 0], sizes = [192, 20], strides = [1, 1]} : vector<488x20xbf16> to vector<192x20xbf16>
    %43 = tpu.concatenate %18, %19, %20, %21, %22, %23, %24, %25, %26, %27, %28, %29, %30, %31, %32, %33 in 1 : vector<192x20xbf16>, vector<192x20xbf16>, vector<192x20xbf16>, vector<192x20xbf16>, vector<192x20xbf16>, vector<192x20xbf16>, vector<192x20xbf16>, vector<192x20xbf16>, vector<192x20xbf16>, vector<192x20xbf16>, vector<192x20xbf16>, vector<192x20xbf16>, vector<192x20xbf16>, vector<192x20xbf16>, vector<192x20xbf16>, vector<192x20xbf16> -> vector<192x320xbf16>
    %44 = tpu.concatenate %34, %35, %36, %37, %38, %39, %40, %41, %42 in 1 : vector<192x20xbf16>, vector<192x20xbf16>, vector<192x20xbf16>, vector<192x20xbf16>, vector<192x20xbf16>, vector<192x20xbf16>, vector<192x20xbf16>, vector<192x20xbf16>, vector<192x20xbf16> -> vector<192x180xbf16>
    %45 = tpu.concatenate %43, %44 in 1 : vector<192x320xbf16>, vector<192x180xbf16> -> vector<192x500xbf16>
    %46 = vector.extract_strided_slice %17 {offsets = [240, 0], sizes = [192, 20], strides = [1, 1]} : vector<488x20xbf16> to vector<192x20xbf16>
    %47 = vector.extract_strided_slice %17 {offsets = [241, 0], sizes = [192, 20], strides = [1, 1]} : vector<488x20xbf16> to vector<192x20xbf16>
    %48 = vector.extract_strided_slice %17 {offsets = [242, 0], sizes = [192, 20], strides = [1, 1]} : vector<488x20xbf16> to vector<192x20xbf16>
    %49 = vector.extract_strided_slice %17 {offsets = [243, 0], sizes = [192, 20], strides = [1, 1]} : vector<488x20xbf16> to vector<192x20xbf16>
    %50 = vector.extract_strided_slice %17 {offsets = [244, 0], sizes = [192, 20], strides = [1, 1]} : vector<488x20xbf16> to vector<192x20xbf16>
    %51 = vector.extract_strided_slice %17 {offsets = [252, 0], sizes = [192, 20], strides = [1, 1]} : vector<488x20xbf16> to vector<192x20xbf16>
    %52 = vector.extract_strided_slice %17 {offsets = [253, 0], sizes = [192, 20], strides = [1, 1]} : vector<488x20xbf16> to vector<192x20xbf16>
    %53 = vector.extract_strided_slice %17 {offsets = [254, 0], sizes = [192, 20], strides = [1, 1]} : vector<488x20xbf16> to vector<192x20xbf16>
    %54 = vector.extract_strided_slice %17 {offsets = [255, 0], sizes = [192, 20], strides = [1, 1]} : vector<488x20xbf16> to vector<192x20xbf16>
    %55 = vector.extract_strided_slice %17 {offsets = [256, 0], sizes = [192, 20], strides = [1, 1]} : vector<488x20xbf16> to vector<192x20xbf16>
    %56 = vector.extract_strided_slice %17 {offsets = [264, 0], sizes = [192, 20], strides = [1, 1]} : vector<488x20xbf16> to vector<192x20xbf16>
    %57 = vector.extract_strided_slice %17 {offsets = [265, 0], sizes = [192, 20], strides = [1, 1]} : vector<488x20xbf16> to vector<192x20xbf16>
    %58 = vector.extract_strided_slice %17 {offsets = [266, 0], sizes = [192, 20], strides = [1, 1]} : vector<488x20xbf16> to vector<192x20xbf16>
    %59 = vector.extract_strided_slice %17 {offsets = [267, 0], sizes = [192, 20], strides = [1, 1]} : vector<488x20xbf16> to vector<192x20xbf16>
    %60 = vector.extract_strided_slice %17 {offsets = [268, 0], sizes = [192, 20], strides = [1, 1]} : vector<488x20xbf16> to vector<192x20xbf16>
    %61 = vector.extract_strided_slice %17 {offsets = [276, 0], sizes = [192, 20], strides = [1, 1]} : vector<488x20xbf16> to vector<192x20xbf16>
    %62 = vector.extract_strided_slice %17 {offsets = [277, 0], sizes = [192, 20], strides = [1, 1]} : vector<488x20xbf16> to vector<192x20xbf16>
    %63 = vector.extract_strided_slice %17 {offsets = [278, 0], sizes = [192, 20], strides = [1, 1]} : vector<488x20xbf16> to vector<192x20xbf16>
    %64 = vector.extract_strided_slice %17 {offsets = [279, 0], sizes = [192, 20], strides = [1, 1]} : vector<488x20xbf16> to vector<192x20xbf16>
    %65 = vector.extract_strided_slice %17 {offsets = [280, 0], sizes = [192, 20], strides = [1, 1]} : vector<488x20xbf16> to vector<192x20xbf16>
    %66 = vector.extract_strided_slice %17 {offsets = [288, 0], sizes = [192, 20], strides = [1, 1]} : vector<488x20xbf16> to vector<192x20xbf16>
    %67 = vector.extract_strided_slice %17 {offsets = [289, 0], sizes = [192, 20], strides = [1, 1]} : vector<488x20xbf16> to vector<192x20xbf16>
    %68 = vector.extract_strided_slice %17 {offsets = [290, 0], sizes = [192, 20], strides = [1, 1]} : vector<488x20xbf16> to vector<192x20xbf16>
    %69 = vector.extract_strided_slice %17 {offsets = [291, 0], sizes = [192, 20], strides = [1, 1]} : vector<488x20xbf16> to vector<192x20xbf16>
    %70 = vector.extract_strided_slice %17 {offsets = [292, 0], sizes = [192, 20], strides = [1, 1]} : vector<488x20xbf16> to vector<192x20xbf16>
    %71 = tpu.concatenate %46, %47, %48, %49, %50, %51, %52, %53, %54, %55, %56, %57, %58, %59, %60, %61 in 1 : vector<192x20xbf16>, vector<192x20xbf16>, vector<192x20xbf16>, vector<192x20xbf16>, vector<192x20xbf16>, vector<192x20xbf16>, vector<192x20xbf16>, vector<192x20xbf16>, vector<192x20xbf16>, vector<192x20xbf16>, vector<192x20xbf16>, vector<192x20xbf16>, vector<192x20xbf16>, vector<192x20xbf16>, vector<192x20xbf16>, vector<192x20xbf16> -> vector<192x320xbf16>
    %72 = tpu.concatenate %62, %63, %64, %65, %66, %67, %68, %69, %70 in 1 : vector<192x20xbf16>, vector<192x20xbf16>, vector<192x20xbf16>, vector<192x20xbf16>, vector<192x20xbf16>, vector<192x20xbf16>, vector<192x20xbf16>, vector<192x20xbf16>, vector<192x20xbf16> -> vector<192x180xbf16>
    %73 = tpu.concatenate %71, %72 in 1 : vector<192x320xbf16>, vector<192x180xbf16> -> vector<192x500xbf16>
    %74 = tpu.concatenate %45, %73 in 0 : vector<192x500xbf16>, vector<192x500xbf16> -> vector<384x500xbf16>
    %c0_7 = arith.constant 0 : index
    %c0_8 = arith.constant 0 : index
    %75 = vector.load %arg4[%c0_7, %c0_8] : memref<500x50xbf16, #tpu.memory_space<vmem>>, vector<500x50xbf16>
    %cst_9 = arith.constant dense<0.000000e+00> : vector<384x50xf32>
    %76 = tpu.matmul %74, %75, %cst_9 {dimension_numbers = #tpu.dot_dimension_numbers<[1], [0], [0], [1], [0, 0, 1, 1], [], []>} : vector<384x500xbf16>, vector<500x50xbf16>, vector<384x50xf32> -> vector<384x50xf32>
    %77 = vector.extract_strided_slice %76 {offsets = [0, 0], sizes = [192, 50], strides = [1, 1]} : vector<384x50xf32> to vector<192x50xf32>
    %78 = vector.extract_strided_slice %77 {offsets = [0, 0], sizes = [179, 50], strides = [1, 1]} : vector<192x50xf32> to vector<179x50xf32>
    %79 = vector.extract_strided_slice %77 {offsets = [1, 0], sizes = [179, 50], strides = [1, 1]} : vector<192x50xf32> to vector<179x50xf32>
    %80 = arith.maximumf %78, %79 : vector<179x50xf32>
    %81 = vector.extract_strided_slice %77 {offsets = [12, 0], sizes = [179, 50], strides = [1, 1]} : vector<192x50xf32> to vector<179x50xf32>
    %82 = vector.extract_strided_slice %77 {offsets = [13, 0], sizes = [179, 50], strides = [1, 1]} : vector<192x50xf32> to vector<179x50xf32>
    %83 = arith.maximumf %81, %82 : vector<179x50xf32>
    %84 = arith.maximumf %80, %83 : vector<179x50xf32>
    %c0_10 = arith.constant 0 : index
    %c0_11 = arith.constant 0 : index
    %85 = vector.load %arg5[%c0_10, %c0_11] : memref<1x50xf32, #tpu.memory_space<vmem>>, vector<1x50xf32>
    %86 = vector.broadcast %85 : vector<1x50xf32> to vector<179x50xf32>
    %87 = arith.addf %84, %86 : vector<179x50xf32>
    %cst_12 = arith.constant 0.000000e+00 : f32
    %88 = vector.broadcast %cst_12 : f32 to vector<179x50xf32>
    %89 = arith.maximumf %87, %88 : vector<179x50xf32>
    %90 = arith.truncf %89 : vector<179x50xf32> to vector<179x50xbf16>
    %91 = vector.extract_strided_slice %90 {offsets = [0, 0], sizes = [1, 50], strides = [1, 1]} : vector<179x50xbf16> to vector<1x50xbf16>
    %92 = vector.extract_strided_slice %90 {offsets = [2, 0], sizes = [1, 50], strides = [1, 1]} : vector<179x50xbf16> to vector<1x50xbf16>
    %93 = vector.extract_strided_slice %90 {offsets = [4, 0], sizes = [1, 50], strides = [1, 1]} : vector<179x50xbf16> to vector<1x50xbf16>
    %94 = vector.extract_strided_slice %90 {offsets = [6, 0], sizes = [1, 50], strides = [1, 1]} : vector<179x50xbf16> to vector<1x50xbf16>
    %95 = vector.extract_strided_slice %90 {offsets = [24, 0], sizes = [1, 50], strides = [1, 1]} : vector<179x50xbf16> to vector<1x50xbf16>
    %96 = vector.extract_strided_slice %90 {offsets = [26, 0], sizes = [1, 50], strides = [1, 1]} : vector<179x50xbf16> to vector<1x50xbf16>
    %97 = vector.extract_strided_slice %90 {offsets = [28, 0], sizes = [1, 50], strides = [1, 1]} : vector<179x50xbf16> to vector<1x50xbf16>
    %98 = vector.extract_strided_slice %90 {offsets = [30, 0], sizes = [1, 50], strides = [1, 1]} : vector<179x50xbf16> to vector<1x50xbf16>
    %99 = vector.extract_strided_slice %90 {offsets = [48, 0], sizes = [1, 50], strides = [1, 1]} : vector<179x50xbf16> to vector<1x50xbf16>
    %100 = vector.extract_strided_slice %90 {offsets = [50, 0], sizes = [1, 50], strides = [1, 1]} : vector<179x50xbf16> to vector<1x50xbf16>
    %101 = vector.extract_strided_slice %90 {offsets = [52, 0], sizes = [1, 50], strides = [1, 1]} : vector<179x50xbf16> to vector<1x50xbf16>
    %102 = vector.extract_strided_slice %90 {offsets = [54, 0], sizes = [1, 50], strides = [1, 1]} : vector<179x50xbf16> to vector<1x50xbf16>
    %103 = vector.extract_strided_slice %90 {offsets = [72, 0], sizes = [1, 50], strides = [1, 1]} : vector<179x50xbf16> to vector<1x50xbf16>
    %104 = vector.extract_strided_slice %90 {offsets = [74, 0], sizes = [1, 50], strides = [1, 1]} : vector<179x50xbf16> to vector<1x50xbf16>
    %105 = vector.extract_strided_slice %90 {offsets = [76, 0], sizes = [1, 50], strides = [1, 1]} : vector<179x50xbf16> to vector<1x50xbf16>
    %106 = vector.extract_strided_slice %90 {offsets = [78, 0], sizes = [1, 50], strides = [1, 1]} : vector<179x50xbf16> to vector<1x50xbf16>
    %107 = vector.extract_strided_slice %90 {offsets = [96, 0], sizes = [1, 50], strides = [1, 1]} : vector<179x50xbf16> to vector<1x50xbf16>
    %108 = vector.extract_strided_slice %90 {offsets = [98, 0], sizes = [1, 50], strides = [1, 1]} : vector<179x50xbf16> to vector<1x50xbf16>
    %109 = vector.extract_strided_slice %90 {offsets = [100, 0], sizes = [1, 50], strides = [1, 1]} : vector<179x50xbf16> to vector<1x50xbf16>
    %110 = vector.extract_strided_slice %90 {offsets = [102, 0], sizes = [1, 50], strides = [1, 1]} : vector<179x50xbf16> to vector<1x50xbf16>
    %111 = vector.extract_strided_slice %90 {offsets = [120, 0], sizes = [1, 50], strides = [1, 1]} : vector<179x50xbf16> to vector<1x50xbf16>
    %112 = vector.extract_strided_slice %90 {offsets = [122, 0], sizes = [1, 50], strides = [1, 1]} : vector<179x50xbf16> to vector<1x50xbf16>
    %113 = vector.extract_strided_slice %90 {offsets = [124, 0], sizes = [1, 50], strides = [1, 1]} : vector<179x50xbf16> to vector<1x50xbf16>
    %114 = vector.extract_strided_slice %90 {offsets = [126, 0], sizes = [1, 50], strides = [1, 1]} : vector<179x50xbf16> to vector<1x50xbf16>
    %115 = vector.extract_strided_slice %90 {offsets = [144, 0], sizes = [1, 50], strides = [1, 1]} : vector<179x50xbf16> to vector<1x50xbf16>
    %116 = vector.extract_strided_slice %90 {offsets = [146, 0], sizes = [1, 50], strides = [1, 1]} : vector<179x50xbf16> to vector<1x50xbf16>
    %117 = vector.extract_strided_slice %90 {offsets = [148, 0], sizes = [1, 50], strides = [1, 1]} : vector<179x50xbf16> to vector<1x50xbf16>
    %118 = vector.extract_strided_slice %90 {offsets = [150, 0], sizes = [1, 50], strides = [1, 1]} : vector<179x50xbf16> to vector<1x50xbf16>
    %119 = vector.extract_strided_slice %90 {offsets = [168, 0], sizes = [1, 50], strides = [1, 1]} : vector<179x50xbf16> to vector<1x50xbf16>
    %120 = vector.extract_strided_slice %90 {offsets = [170, 0], sizes = [1, 50], strides = [1, 1]} : vector<179x50xbf16> to vector<1x50xbf16>
    %121 = vector.extract_strided_slice %90 {offsets = [172, 0], sizes = [1, 50], strides = [1, 1]} : vector<179x50xbf16> to vector<1x50xbf16>
    %122 = vector.extract_strided_slice %90 {offsets = [174, 0], sizes = [1, 50], strides = [1, 1]} : vector<179x50xbf16> to vector<1x50xbf16>
    %123 = tpu.concatenate %91, %92, %93, %94, %95, %96, %97, %98, %99, %100, %101, %102, %103, %104, %105, %106 in 1 : vector<1x50xbf16>, vector<1x50xbf16>, vector<1x50xbf16>, vector<1x50xbf16>, vector<1x50xbf16>, vector<1x50xbf16>, vector<1x50xbf16>, vector<1x50xbf16>, vector<1x50xbf16>, vector<1x50xbf16>, vector<1x50xbf16>, vector<1x50xbf16>, vector<1x50xbf16>, vector<1x50xbf16>, vector<1x50xbf16>, vector<1x50xbf16> -> vector<1x800xbf16>
    %124 = tpu.concatenate %107, %108, %109, %110, %111, %112, %113, %114, %115, %116, %117, %118, %119, %120, %121, %122 in 1 : vector<1x50xbf16>, vector<1x50xbf16>, vector<1x50xbf16>, vector<1x50xbf16>, vector<1x50xbf16>, vector<1x50xbf16>, vector<1x50xbf16>, vector<1x50xbf16>, vector<1x50xbf16>, vector<1x50xbf16>, vector<1x50xbf16>, vector<1x50xbf16>, vector<1x50xbf16>, vector<1x50xbf16>, vector<1x50xbf16>, vector<1x50xbf16> -> vector<1x800xbf16>
    %125 = tpu.concatenate %123, %124 in 1 : vector<1x800xbf16>, vector<1x800xbf16> -> vector<1x1600xbf16>
    %126 = vector.extract_strided_slice %76 {offsets = [192, 0], sizes = [192, 50], strides = [1, 1]} : vector<384x50xf32> to vector<192x50xf32>
    %127 = vector.extract_strided_slice %126 {offsets = [0, 0], sizes = [179, 50], strides = [1, 1]} : vector<192x50xf32> to vector<179x50xf32>
    %128 = vector.extract_strided_slice %126 {offsets = [1, 0], sizes = [179, 50], strides = [1, 1]} : vector<192x50xf32> to vector<179x50xf32>
    %129 = arith.maximumf %127, %128 : vector<179x50xf32>
    %130 = vector.extract_strided_slice %126 {offsets = [12, 0], sizes = [179, 50], strides = [1, 1]} : vector<192x50xf32> to vector<179x50xf32>
    %131 = vector.extract_strided_slice %126 {offsets = [13, 0], sizes = [179, 50], strides = [1, 1]} : vector<192x50xf32> to vector<179x50xf32>
    %132 = arith.maximumf %130, %131 : vector<179x50xf32>
    %133 = arith.maximumf %129, %132 : vector<179x50xf32>
    %c0_13 = arith.constant 0 : index
    %c0_14 = arith.constant 0 : index
    %134 = vector.load %arg5[%c0_13, %c0_14] : memref<1x50xf32, #tpu.memory_space<vmem>>, vector<1x50xf32>
    %135 = vector.broadcast %134 : vector<1x50xf32> to vector<179x50xf32>
    %136 = arith.addf %133, %135 : vector<179x50xf32>
    %cst_15 = arith.constant 0.000000e+00 : f32
    %137 = vector.broadcast %cst_15 : f32 to vector<179x50xf32>
    %138 = arith.maximumf %136, %137 : vector<179x50xf32>
    %139 = arith.truncf %138 : vector<179x50xf32> to vector<179x50xbf16>
    %140 = vector.extract_strided_slice %139 {offsets = [0, 0], sizes = [1, 50], strides = [1, 1]} : vector<179x50xbf16> to vector<1x50xbf16>
    %141 = vector.extract_strided_slice %139 {offsets = [2, 0], sizes = [1, 50], strides = [1, 1]} : vector<179x50xbf16> to vector<1x50xbf16>
    %142 = vector.extract_strided_slice %139 {offsets = [4, 0], sizes = [1, 50], strides = [1, 1]} : vector<179x50xbf16> to vector<1x50xbf16>
    %143 = vector.extract_strided_slice %139 {offsets = [6, 0], sizes = [1, 50], strides = [1, 1]} : vector<179x50xbf16> to vector<1x50xbf16>
    %144 = vector.extract_strided_slice %139 {offsets = [24, 0], sizes = [1, 50], strides = [1, 1]} : vector<179x50xbf16> to vector<1x50xbf16>
    %145 = vector.extract_strided_slice %139 {offsets = [26, 0], sizes = [1, 50], strides = [1, 1]} : vector<179x50xbf16> to vector<1x50xbf16>
    %146 = vector.extract_strided_slice %139 {offsets = [28, 0], sizes = [1, 50], strides = [1, 1]} : vector<179x50xbf16> to vector<1x50xbf16>
    %147 = vector.extract_strided_slice %139 {offsets = [30, 0], sizes = [1, 50], strides = [1, 1]} : vector<179x50xbf16> to vector<1x50xbf16>
    %148 = vector.extract_strided_slice %139 {offsets = [48, 0], sizes = [1, 50], strides = [1, 1]} : vector<179x50xbf16> to vector<1x50xbf16>
    %149 = vector.extract_strided_slice %139 {offsets = [50, 0], sizes = [1, 50], strides = [1, 1]} : vector<179x50xbf16> to vector<1x50xbf16>
    %150 = vector.extract_strided_slice %139 {offsets = [52, 0], sizes = [1, 50], strides = [1, 1]} : vector<179x50xbf16> to vector<1x50xbf16>
    %151 = vector.extract_strided_slice %139 {offsets = [54, 0], sizes = [1, 50], strides = [1, 1]} : vector<179x50xbf16> to vector<1x50xbf16>
    %152 = vector.extract_strided_slice %139 {offsets = [72, 0], sizes = [1, 50], strides = [1, 1]} : vector<179x50xbf16> to vector<1x50xbf16>
    %153 = vector.extract_strided_slice %139 {offsets = [74, 0], sizes = [1, 50], strides = [1, 1]} : vector<179x50xbf16> to vector<1x50xbf16>
    %154 = vector.extract_strided_slice %139 {offsets = [76, 0], sizes = [1, 50], strides = [1, 1]} : vector<179x50xbf16> to vector<1x50xbf16>
    %155 = vector.extract_strided_slice %139 {offsets = [78, 0], sizes = [1, 50], strides = [1, 1]} : vector<179x50xbf16> to vector<1x50xbf16>
    %156 = vector.extract_strided_slice %139 {offsets = [96, 0], sizes = [1, 50], strides = [1, 1]} : vector<179x50xbf16> to vector<1x50xbf16>
    %157 = vector.extract_strided_slice %139 {offsets = [98, 0], sizes = [1, 50], strides = [1, 1]} : vector<179x50xbf16> to vector<1x50xbf16>
    %158 = vector.extract_strided_slice %139 {offsets = [100, 0], sizes = [1, 50], strides = [1, 1]} : vector<179x50xbf16> to vector<1x50xbf16>
    %159 = vector.extract_strided_slice %139 {offsets = [102, 0], sizes = [1, 50], strides = [1, 1]} : vector<179x50xbf16> to vector<1x50xbf16>
    %160 = vector.extract_strided_slice %139 {offsets = [120, 0], sizes = [1, 50], strides = [1, 1]} : vector<179x50xbf16> to vector<1x50xbf16>
    %161 = vector.extract_strided_slice %139 {offsets = [122, 0], sizes = [1, 50], strides = [1, 1]} : vector<179x50xbf16> to vector<1x50xbf16>
    %162 = vector.extract_strided_slice %139 {offsets = [124, 0], sizes = [1, 50], strides = [1, 1]} : vector<179x50xbf16> to vector<1x50xbf16>
    %163 = vector.extract_strided_slice %139 {offsets = [126, 0], sizes = [1, 50], strides = [1, 1]} : vector<179x50xbf16> to vector<1x50xbf16>
    %164 = vector.extract_strided_slice %139 {offsets = [144, 0], sizes = [1, 50], strides = [1, 1]} : vector<179x50xbf16> to vector<1x50xbf16>
    %165 = vector.extract_strided_slice %139 {offsets = [146, 0], sizes = [1, 50], strides = [1, 1]} : vector<179x50xbf16> to vector<1x50xbf16>
    %166 = vector.extract_strided_slice %139 {offsets = [148, 0], sizes = [1, 50], strides = [1, 1]} : vector<179x50xbf16> to vector<1x50xbf16>
    %167 = vector.extract_strided_slice %139 {offsets = [150, 0], sizes = [1, 50], strides = [1, 1]} : vector<179x50xbf16> to vector<1x50xbf16>
    %168 = vector.extract_strided_slice %139 {offsets = [168, 0], sizes = [1, 50], strides = [1, 1]} : vector<179x50xbf16> to vector<1x50xbf16>
    %169 = vector.extract_strided_slice %139 {offsets = [170, 0], sizes = [1, 50], strides = [1, 1]} : vector<179x50xbf16> to vector<1x50xbf16>
    %170 = vector.extract_strided_slice %139 {offsets = [172, 0], sizes = [1, 50], strides = [1, 1]} : vector<179x50xbf16> to vector<1x50xbf16>
    %171 = vector.extract_strided_slice %139 {offsets = [174, 0], sizes = [1, 50], strides = [1, 1]} : vector<179x50xbf16> to vector<1x50xbf16>
    %172 = tpu.concatenate %140, %141, %142, %143, %144, %145, %146, %147, %148, %149, %150, %151, %152, %153, %154, %155 in 1 : vector<1x50xbf16>, vector<1x50xbf16>, vector<1x50xbf16>, vector<1x50xbf16>, vector<1x50xbf16>, vector<1x50xbf16>, vector<1x50xbf16>, vector<1x50xbf16>, vector<1x50xbf16>, vector<1x50xbf16>, vector<1x50xbf16>, vector<1x50xbf16>, vector<1x50xbf16>, vector<1x50xbf16>, vector<1x50xbf16>, vector<1x50xbf16> -> vector<1x800xbf16>
    %173 = tpu.concatenate %156, %157, %158, %159, %160, %161, %162, %163, %164, %165, %166, %167, %168, %169, %170, %171 in 1 : vector<1x50xbf16>, vector<1x50xbf16>, vector<1x50xbf16>, vector<1x50xbf16>, vector<1x50xbf16>, vector<1x50xbf16>, vector<1x50xbf16>, vector<1x50xbf16>, vector<1x50xbf16>, vector<1x50xbf16>, vector<1x50xbf16>, vector<1x50xbf16>, vector<1x50xbf16>, vector<1x50xbf16>, vector<1x50xbf16>, vector<1x50xbf16> -> vector<1x800xbf16>
    %174 = tpu.concatenate %172, %173 in 1 : vector<1x800xbf16>, vector<1x800xbf16> -> vector<1x1600xbf16>
    %175 = tpu.concatenate %125, %174 in 0 : vector<1x1600xbf16>, vector<1x1600xbf16> -> vector<2x1600xbf16>
    %c0_16 = arith.constant 0 : index
    %c0_17 = arith.constant 0 : index
    %176 = vector.load %arg6[%c0_16, %c0_17] : memref<1600x500xbf16, #tpu.memory_space<vmem>>, vector<1600x500xbf16>
    %cst_18 = arith.constant dense<0.000000e+00> : vector<2x500xf32>
    %177 = tpu.matmul %175, %176, %cst_18 {dimension_numbers = #tpu.dot_dimension_numbers<[1], [0], [0], [1], [0, 0, 1, 1], [], []>} : vector<2x1600xbf16>, vector<1600x500xbf16>, vector<2x500xf32> -> vector<2x500xf32>
    %c0_19 = arith.constant 0 : index
    %c0_20 = arith.constant 0 : index
    %178 = vector.load %arg7[%c0_19, %c0_20] : memref<1x500xf32, #tpu.memory_space<vmem>>, vector<1x500xf32>
    %179 = vector.broadcast %178 : vector<1x500xf32> to vector<2x500xf32>
    %180 = arith.addf %177, %179 : vector<2x500xf32>
    %cst_21 = arith.constant 0.000000e+00 : f32
    %181 = vector.broadcast %cst_21 : f32 to vector<2x500xf32>
    %182 = arith.maximumf %180, %181 : vector<2x500xf32>
    %183 = arith.truncf %182 : vector<2x500xf32> to vector<2x500xbf16>
    %c0_22 = arith.constant 0 : index
    %c0_23 = arith.constant 0 : index
    %184 = vector.load %arg8[%c0_22, %c0_23] : memref<500x128xbf16, #tpu.memory_space<vmem>>, vector<500x128xbf16>
    %cst_24 = arith.constant dense<0.000000e+00> : vector<2x128xf32>
    %185 = tpu.matmul %183, %184, %cst_24 {dimension_numbers = #tpu.dot_dimension_numbers<[1], [0], [0], [1], [0, 0, 1, 1], [], []>} : vector<2x500xbf16>, vector<500x128xbf16>, vector<2x128xf32> -> vector<2x128xf32>
    %c0_25 = arith.constant 0 : index
    %c0_26 = arith.constant 0 : index
    %186 = vector.load %arg9[%c0_25, %c0_26] : memref<1x128xf32, #tpu.memory_space<vmem>>, vector<1x128xf32>
    %187 = vector.broadcast %186 : vector<1x128xf32> to vector<2x128xf32>
    %188 = arith.addf %185, %187 : vector<2x128xf32>
    %c0_27 = arith.constant 0 : index
    %c0_28 = arith.constant 0 : index
    %189 = vector.load %arg10[%c0_27, %c0_28] : memref<2x128xf32, #tpu.memory_space<vmem>>, vector<2x128xf32>
    tpu.vector_store %arg10[%c0_27, %c0_28], %188 {strides = array<i32>} : memref<2x128xf32, #tpu.memory_space<vmem>>, vector<2x128xf32>,
    return
  }
  func.func @transform_0(%arg0: i32) -> (i32, i32) {
    %c0_i32 = arith.constant 0 : i32
    %c0_i32_0 = arith.constant 0 : i32
    %c0_i32_1 = arith.constant 0 : i32
    return %c0_i32, %c0_i32_0 : i32, i32
  }
  func.func @transform_1(%arg0: i32) -> (i32, i32) {
    %c0_i32 = arith.constant 0 : i32
    %c0_i32_0 = arith.constant 0 : i32
    %c0_i32_1 = arith.constant 0 : i32
    return %c0_i32, %c0_i32_0 : i32, i32
  }
  func.func @transform_2(%arg0: i32) -> (i32, i32) {
    %c0_i32 = arith.constant 0 : i32
    %c0_i32_0 = arith.constant 0 : i32
    %c0_i32_1 = arith.constant 0 : i32
    return %c0_i32, %c0_i32_0 : i32, i32
  }
  func.func @transform_3(%arg0: i32) -> (i32, i32) {
    %c0_i32 = arith.constant 0 : i32
    %c0_i32_0 = arith.constant 0 : i32
    %c0_i32_1 = arith.constant 0 : i32
    return %c0_i32, %c0_i32_0 : i32, i32
  }
  func.func @transform_4(%arg0: i32) -> (i32, i32) {
    %c0_i32 = arith.constant 0 : i32
    %c0_i32_0 = arith.constant 0 : i32
    %c0_i32_1 = arith.constant 0 : i32
    return %c0_i32, %c0_i32_0 : i32, i32
  }
  func.func @transform_5(%arg0: i32) -> (i32, i32) {
    %c0_i32 = arith.constant 0 : i32
    %c0_i32_0 = arith.constant 0 : i32
    %c0_i32_1 = arith.constant 0 : i32
    return %c0_i32, %c0_i32_0 : i32, i32
  }
  func.func @transform_6(%arg0: i32) -> (i32, i32) {
    %c0_i32 = arith.constant 0 : i32
    %c0_i32_0 = arith.constant 0 : i32
    %c0_i32_1 = arith.constant 0 : i32
    return %c0_i32, %c0_i32_0 : i32, i32
  }
  func.func @transform_7(%arg0: i32) -> (i32, i32) {
    %c0_i32 = arith.constant 0 : i32
    %c0_i32_0 = arith.constant 0 : i32
    %c0_i32_1 = arith.constant 0 : i32
    return %c0_i32, %c0_i32_0 : i32, i32
  }
  func.func @transform_8(%arg0: i32) -> (i32, i32) {
    %c0_i32 = arith.constant 0 : i32
    %c0_i32_0 = arith.constant 0 : i32
    %c0_i32_1 = arith.constant 0 : i32
    return %c0_i32, %c0_i32_0 : i32, i32
  }
  func.func @transform_9(%arg0: i32) -> (i32, i32) {
    %c0_i32 = arith.constant 0 : i32
    %c0_i32_0 = arith.constant 0 : i32
    %c0_i32_1 = arith.constant 0 : i32
    return %c0_i32, %c0_i32_0 : i32, i32
  }
}

</mosaic_0001>

<llo_original>
// kernel: dqn_forward.1
$region0: #{dqn_forward.1}
  #allocation0 [shape = 'u32[]', space=smem, size = 0x4, offset = 0x4, fixed_abs, tag = 'smem constant byte address 0x4 - core index']
  #allocation1 [shape = 'u32[72,128]{1,0:T(1,128)}', space=vmem, size = 0x9000, scoped, tag = 'internal scratch']
  %s0 = inlined_call_operand.vmem [shape: bf16[1920,25], index: 0, kind: input, shape index: {}]
  %s1 = inlined_call_operand.vmem [shape: bf16[25,20], index: 1, kind: input, shape index: {}]
  %s2 = inlined_call_operand.vmem [shape: f32[1,20], index: 2, kind: input, shape index: {}]
  %s3 = inlined_call_operand.vmem [shape: bf16[500,50], index: 3, kind: input, shape index: {}]
  %s4 = inlined_call_operand.vmem [shape: f32[1,50], index: 4, kind: input, shape index: {}]
  %s5 = inlined_call_operand.vmem [shape: bf16[1600,500], index: 5, kind: input, shape index: {}]
  %s6 = inlined_call_operand.vmem [shape: f32[1,500], index: 6, kind: input, shape index: {}]
  %s7 = inlined_call_operand.vmem [shape: bf16[500,128], index: 7, kind: input, shape index: {}]
  %s8 = inlined_call_operand.vmem [shape: f32[1,128], index: 8, kind: input, shape index: {}]
  %s9 = inlined_call_operand.hbm [shape: f32[2,128], index: 9, kind: output, shape index: {}]
  %s10 = sld [smem:[#allocation0]]
  $region46: #{dqn_forward.1} parent=0
    _
  %s12 = ssub.s32 1, %s10
  %s13 = scalar_select 0, %s12, %s10
  $region1: #{dqn_forward.1} parent=0
    #allocation2 [shape = 'u8[1024]{0}', space=vmem, size = 0x400, scoped, tag = 'output window, operand 0, single buffered']
    #allocation3 [shape = 's32[1]{0}', space=sflag, size = 0x4, scoped, tag = 'scoped memory for dqn_forward.1']
    %14 = vsyncpa [#allocation3], 0
    // Predicated region
    $region2: #{dqn_forward.1} parent=1 // pred_check
      _
    $region3: #{dqn_forward.1} parent=1 // pred_check_branch
      %16 = sbr.rel (0) target = $region5
    $region4: #{dqn_forward.1} parent=1 // pred_region
      _
    $region5: #{dqn_forward.1} parent=1 // pred_fallthru
      _
    // Predicated region
    $region6: #{dqn_forward.1} parent=1 // pred_check
      _
    $region7: #{dqn_forward.1} parent=1 // pred_check_branch
      %18 = sbr.rel (0) target = $region9
    $region8: #{dqn_forward.1} parent=1 // pred_region
      _
    $region9: #{dqn_forward.1} parent=1 // pred_fallthru
      _
    // Predicated region
    $region10: #{dqn_forward.1} parent=1 // pred_check
      _
    $region11: #{dqn_forward.1} parent=1 // pred_check_branch
      %20 = sbr.rel (0) target = $region13
    $region12: #{dqn_forward.1} parent=1 // pred_region
      _
    $region13: #{dqn_forward.1} parent=1 // pred_fallthru
      _
    // Predicated region
    $region14: #{dqn_forward.1} parent=1 // pred_check
      _
    $region15: #{dqn_forward.1} parent=1 // pred_check_branch
      %22 = sbr.rel (0) target = $region17
    $region16: #{dqn_forward.1} parent=1 // pred_region
      _
    $region17: #{dqn_forward.1} parent=1 // pred_fallthru
      _
    // Predicated region
    $region18: #{dqn_forward.1} parent=1 // pred_check
      _
    $region19: #{dqn_forward.1} parent=1 // pred_check_branch
      %24 = sbr.rel (0) target = $region21
    $region20: #{dqn_forward.1} parent=1 // pred_region
      _
    $region21: #{dqn_forward.1} parent=1 // pred_fallthru
      _
    // Predicated region
    $region22: #{dqn_forward.1} parent=1 // pred_check
      _
    $region23: #{dqn_forward.1} parent=1 // pred_check_branch
      %26 = sbr.rel (0) target = $region25
    $region24: #{dqn_forward.1} parent=1 // pred_region
      _
    $region25: #{dqn_forward.1} parent=1 // pred_fallthru
      _
    // Predicated region
    $region26: #{dqn_forward.1} parent=1 // pred_check
      _
    $region27: #{dqn_forward.1} parent=1 // pred_check_branch
      %28 = sbr.rel (0) target = $region29
    $region28: #{dqn_forward.1} parent=1 // pred_region
      _
    $region29: #{dqn_forward.1} parent=1 // pred_fallthru
      _
    // Predicated region
    $region30: #{dqn_forward.1} parent=1 // pred_check
      _
    $region31: #{dqn_forward.1} parent=1 // pred_check_branch
      %30 = sbr.rel (0) target = $region33
    $region32: #{dqn_forward.1} parent=1 // pred_region
      _
    $region33: #{dqn_forward.1} parent=1 // pred_fallthru
      _
    // Predicated region
    $region34: #{dqn_forward.1} parent=1 // pred_check
      _
    $region35: #{dqn_forward.1} parent=1 // pred_check_branch
      %32 = sbr.rel (0) target = $region37
    $region36: #{dqn_forward.1} parent=1 // pred_region
      _
    $region37: #{dqn_forward.1} parent=1 // pred_fallthru
      _
    %v34 = vld [vmem:[%s0] sm:$0xf]
    %v35 = vld [vmem:[%s0 + $0x4] sm:$0xf]
    %v36 = vld [vmem:[%s0 + $0x8] sm:$0xf]
    %v37 = vld [vmem:[%s0 + $0xc] sm:$0xf]
    %v38 = vld [vmem:[%s0 + $0x10] sm:$0xf]
    %v39 = vld [vmem:[%s0 + $0x14] sm:$0xf]
    %v40 = vld [vmem:[%s0 + $0x18] sm:$0xf]
    %v41 = vld [vmem:[%s0 + $0x1c] sm:$0xf]
    %v42 = vld [vmem:[%s0 + $0x20] sm:$0xf]
    %v43 = vld [vmem:[%s0 + $0x24] sm:$0xf]
    %v44 = vld [vmem:[%s0 + $0x28] sm:$0xf]
    %v45 = vld [vmem:[%s0 + $0x2c] sm:$0xf]
    %v46 = vld [vmem:[%s0 + $0x30] sm:$0xf]
    %v47 = vld [vmem:[%s0 + $0x34] sm:$0xf]
    %v48 = vld [vmem:[%s0 + $0x38] sm:$0xf]
    %v49 = vld [vmem:[%s0 + $0x3c] sm:$0xf]
    %v50 = vld [vmem:[%s0 + $0x40] sm:$0xf]
    %v51 = vld [vmem:[%s0 + $0x44] sm:$0xf]
    %v52 = vld [vmem:[%s0 + $0x48] sm:$0xf]
    %v53 = vld [vmem:[%s0 + $0x4c] sm:$0xf]
    %v54 = vld [vmem:[%s0 + $0x50] sm:$0xf]
    %v55 = vld [vmem:[%s0 + $0x54] sm:$0xf]
    %v56 = vld [vmem:[%s0 + $0x58] sm:$0xf]
    %v57 = vld [vmem:[%s0 + $0x5c] sm:$0xf]
    %v58 = vld [vmem:[%s0 + $0x60] sm:$0xf]
    %v59 = vld [vmem:[%s0 + $0x64] sm:$0xf]
    %v60 = vld [vmem:[%s0 + $0x68] sm:$0xf]
    %v61 = vld [vmem:[%s0 + $0x6c] sm:$0xf]
    %v62 = vld [vmem:[%s0 + $0x70] sm:$0xf]
    %v63 = vld [vmem:[%s0 + $0x74] sm:$0xf]
    %v64 = vld [vmem:[%s0 + $0x78] sm:$0xf]
    %v65 = vld [vmem:[%s0 + $0x7c] sm:$0xf]
    %v66 = vld [vmem:[%s0 + $0x80] sm:$0xf]
    %v67 = vld [vmem:[%s0 + $0x84] sm:$0xf]
    %v68 = vld [vmem:[%s0 + $0x88] sm:$0xf]
    %v69 = vld [vmem:[%s0 + $0x8c] sm:$0xf]
    %v70 = vld [vmem:[%s0 + $0x90] sm:$0xf]
    %v71 = vld [vmem:[%s0 + $0x94] sm:$0xf]
    %v72 = vld [vmem:[%s0 + $0x98] sm:$0xf]
    %v73 = vld [vmem:[%s0 + $0x9c] sm:$0xf]
    %v74 = vld [vmem:[%s0 + $0xa0] sm:$0xf]
    %v75 = vld [vmem:[%s0 + $0xa4] sm:$0xf]
    %v76 = vld [vmem:[%s0 + $0xa8] sm:$0xf]
    %v77 = vld [vmem:[%s0 + $0xac] sm:$0xf]
    %v78 = vld [vmem:[%s0 + $0xb0] sm:$0xf]
    %v79 = vld [vmem:[%s0 + $0xb4] sm:$0xf]
    %v80 = vld [vmem:[%s0 + $0xb8] sm:$0xf]
    %v81 = vld [vmem:[%s0 + $0xbc] sm:$0xf]
    %v82 = vld [vmem:[%s0 + $0xc0] sm:$0xf]
    %v83 = vld [vmem:[%s0 + $0xc4] sm:$0xf]
    %v84 = vld [vmem:[%s0 + $0xc8] sm:$0xf]
    %v85 = vld [vmem:[%s0 + $0xcc] sm:$0xf]
    %v86 = vld [vmem:[%s0 + $0xd0] sm:$0xf]
    %v87 = vld [vmem:[%s0 + $0xd4] sm:$0xf]
    %v88 = vld [vmem:[%s0 + $0xd8] sm:$0xf]
    %v89 = vld [vmem:[%s0 + $0xdc] sm:$0xf]
    %v90 = vld [vmem:[%s0 + $0xe0] sm:$0xf]
    %v91 = vld [vmem:[%s0 + $0xe4] sm:$0xf]
    %v92 = vld [vmem:[%s0 + $0xe8] sm:$0xf]
    %v93 = vld [vmem:[%s0 + $0xec] sm:$0xf]
    %v94 = vld [vmem:[%s0 + $0xf0] sm:$0xf]
    %v95 = vld [vmem:[%s0 + $0xf4] sm:$0xf]
    %v96 = vld [vmem:[%s0 + $0xf8] sm:$0xf]
    %v97 = vld [vmem:[%s0 + $0xfc] sm:$0xf]
    %v98 = vld [vmem:[%s0 + $0x100] sm:$0xf]
    %v99 = vld [vmem:[%s0 + $0x104] sm:$0xf]
    %v100 = vld [vmem:[%s0 + $0x108] sm:$0xf]
    %v101 = vld [vmem:[%s0 + $0x10c] sm:$0xf]
    %v102 = vld [vmem:[%s0 + $0x110] sm:$0xf]
    %v103 = vld [vmem:[%s0 + $0x114] sm:$0xf]
    %v104 = vld [vmem:[%s0 + $0x118] sm:$0xf]
    %v105 = vld [vmem:[%s0 + $0x11c] sm:$0xf]
    %v106 = vld [vmem:[%s0 + $0x120] sm:$0xf]
    %v107 = vld [vmem:[%s0 + $0x124] sm:$0xf]
    %v108 = vld [vmem:[%s0 + $0x128] sm:$0xf]
    %v109 = vld [vmem:[%s0 + $0x12c] sm:$0xf]
    %v110 = vld [vmem:[%s0 + $0x130] sm:$0xf]
    %v111 = vld [vmem:[%s0 + $0x134] sm:$0xf]
    %v112 = vld [vmem:[%s0 + $0x138] sm:$0xf]
    %v113 = vld [vmem:[%s0 + $0x13c] sm:$0xf]
    %v114 = vld [vmem:[%s0 + $0x140] sm:$0xf]
    %v115 = vld [vmem:[%s0 + $0x144] sm:$0xf]
    %v116 = vld [vmem:[%s0 + $0x148] sm:$0xf]
    %v117 = vld [vmem:[%s0 + $0x14c] sm:$0xf]
    %v118 = vld [vmem:[%s0 + $0x150] sm:$0xf]
    %v119 = vld [vmem:[%s0 + $0x154] sm:$0xf]
    %v120 = vld [vmem:[%s0 + $0x158] sm:$0xf]
    %v121 = vld [vmem:[%s0 + $0x15c] sm:$0xf]
    %v122 = vld [vmem:[%s0 + $0x160] sm:$0xf]
    %v123 = vld [vmem:[%s0 + $0x164] sm:$0xf]
    %v124 = vld [vmem:[%s0 + $0x168] sm:$0xf]
    %v125 = vld [vmem:[%s0 + $0x16c] sm:$0xf]
    %v126 = vld [vmem:[%s0 + $0x170] sm:$0xf]
    %v127 = vld [vmem:[%s0 + $0x174] sm:$0xf]
    %v128 = vld [vmem:[%s0 + $0x178] sm:$0xf]
    %v129 = vld [vmem:[%s0 + $0x17c] sm:$0xf]
    %v130 = vld [vmem:[%s0 + $0x180] sm:$0xf]
    %v131 = vld [vmem:[%s0 + $0x184] sm:$0xf]
    %v132 = vld [vmem:[%s0 + $0x188] sm:$0xf]
    %v133 = vld [vmem:[%s0 + $0x18c] sm:$0xf]
    %v134 = vld [vmem:[%s0 + $0x190] sm:$0xf]
    %v135 = vld [vmem:[%s0 + $0x194] sm:$0xf]
    %v136 = vld [vmem:[%s0 + $0x198] sm:$0xf]
    %v137 = vld [vmem:[%s0 + $0x19c] sm:$0xf]
    %v138 = vld [vmem:[%s0 + $0x1a0] sm:$0xf]
    %v139 = vld [vmem:[%s0 + $0x1a4] sm:$0xf]
    %v140 = vld [vmem:[%s0 + $0x1a8] sm:$0xf]
    %v141 = vld [vmem:[%s0 + $0x1ac] sm:$0xf]
    %v142 = vld [vmem:[%s0 + $0x1b0] sm:$0xf]
    %v143 = vld [vmem:[%s0 + $0x1b4] sm:$0xf]
    %v144 = vld [vmem:[%s0 + $0x1b8] sm:$0xf]
    %v145 = vld [vmem:[%s0 + $0x1bc] sm:$0xf]
    %v146 = vld [vmem:[%s0 + $0x1c0] sm:$0xf]
    %v147 = vld [vmem:[%s0 + $0x1c4] sm:$0xf]
    %v148 = vld [vmem:[%s0 + $0x1c8] sm:$0xf]
    %v149 = vld [vmem:[%s0 + $0x1cc] sm:$0xf]
    %v150 = vld [vmem:[%s0 + $0x1d0] sm:$0xf]
    %v151 = vld [vmem:[%s0 + $0x1d4] sm:$0xf]
    %v152 = vld [vmem:[%s0 + $0x1d8] sm:$0xf]
    %v153 = vld [vmem:[%s0 + $0x1dc] sm:$0xf]
    %v154 = vld [vmem:[%s0 + $0x1e0] sm:$0xf]
    %v155 = vld [vmem:[%s0 + $0x1e4] sm:$0xf]
    %v156 = vld [vmem:[%s0 + $0x1e8] sm:$0xf]
    %v157 = vld [vmem:[%s0 + $0x1ec] sm:$0xf]
    %v158 = vld [vmem:[%s0 + $0x1f0] sm:$0xf]
    %v159 = vld [vmem:[%s0 + $0x1f4] sm:$0xf]
    %v160 = vld [vmem:[%s0 + $0x1f8] sm:$0xf]
    %v161 = vld [vmem:[%s0 + $0x1fc] sm:$0xf]
    %v162 = vld [vmem:[%s0 + $0x200] sm:$0xf]
    %v163 = vld [vmem:[%s0 + $0x204] sm:$0xf]
    %v164 = vld [vmem:[%s0 + $0x208] sm:$0xf]
    %v165 = vld [vmem:[%s0 + $0x20c] sm:$0xf]
    %v166 = vld [vmem:[%s0 + $0x210] sm:$0xf]
    %v167 = vld [vmem:[%s0 + $0x214] sm:$0xf]
    %v168 = vld [vmem:[%s0 + $0x218] sm:$0xf]
    %v169 = vld [vmem:[%s0 + $0x21c] sm:$0xf]
    %v170 = vld [vmem:[%s0 + $0x220] sm:$0xf]
    %v171 = vld [vmem:[%s0 + $0x224] sm:$0xf]
    %v172 = vld [vmem:[%s0 + $0x228] sm:$0xf]
    %v173 = vld [vmem:[%s0 + $0x22c] sm:$0xf]
    %v174 = vld [vmem:[%s0 + $0x230] sm:$0xf]
    %v175 = vld [vmem:[%s0 + $0x234] sm:$0xf]
    %v176 = vld [vmem:[%s0 + $0x238] sm:$0xf]
    %v177 = vld [vmem:[%s0 + $0x23c] sm:$0xf]
    %v178 = vld [vmem:[%s0 + $0x240] sm:$0xf]
    %v179 = vld [vmem:[%s0 + $0x244] sm:$0xf]
    %v180 = vld [vmem:[%s0 + $0x248] sm:$0xf]
    %v181 = vld [vmem:[%s0 + $0x24c] sm:$0xf]
    %v182 = vld [vmem:[%s0 + $0x250] sm:$0xf]
    %v183 = vld [vmem:[%s0 + $0x254] sm:$0xf]
    %v184 = vld [vmem:[%s0 + $0x258] sm:$0xf]
    %v185 = vld [vmem:[%s0 + $0x25c] sm:$0xf]
    %v186 = vld [vmem:[%s0 + $0x260] sm:$0xf]
    %v187 = vld [vmem:[%s0 + $0x264] sm:$0xf]
    %v188 = vld [vmem:[%s0 + $0x268] sm:$0xf]
    %v189 = vld [vmem:[%s0 + $0x26c] sm:$0xf]
    %v190 = vld [vmem:[%s0 + $0x270] sm:$0xf]
    %v191 = vld [vmem:[%s0 + $0x274] sm:$0xf]
    %v192 = vld [vmem:[%s0 + $0x278] sm:$0xf]
    %v193 = vld [vmem:[%s0 + $0x27c] sm:$0xf]
    %v194 = vld [vmem:[%s0 + $0x280] sm:$0xf]
    %v195 = vld [vmem:[%s0 + $0x284] sm:$0xf]
    %v196 = vld [vmem:[%s0 + $0x288] sm:$0xf]
    %v197 = vld [vmem:[%s0 + $0x28c] sm:$0xf]
    %v198 = vld [vmem:[%s0 + $0x290] sm:$0xf]
    %v199 = vld [vmem:[%s0 + $0x294] sm:$0xf]
    %v200 = vld [vmem:[%s0 + $0x298] sm:$0xf]
    %v201 = vld [vmem:[%s0 + $0x29c] sm:$0xf]
    %v202 = vld [vmem:[%s0 + $0x2a0] sm:$0xf]
    %v203 = vld [vmem:[%s0 + $0x2a4] sm:$0xf]
    %v204 = vld [vmem:[%s0 + $0x2a8] sm:$0xf]
    %v205 = vld [vmem:[%s0 + $0x2ac] sm:$0xf]
    %v206 = vld [vmem:[%s0 + $0x2b0] sm:$0xf]
    %v207 = vld [vmem:[%s0 + $0x2b4] sm:$0xf]
    %v208 = vld [vmem:[%s0 + $0x2b8] sm:$0xf]
    %v209 = vld [vmem:[%s0 + $0x2bc] sm:$0xf]
    %v210 = vld [vmem:[%s0 + $0x2c0] sm:$0xf]
    %v211 = vld [vmem:[%s0 + $0x2c4] sm:$0xf]
    %v212 = vld [vmem:[%s0 + $0x2c8] sm:$0xf]
    %v213 = vld [vmem:[%s0 + $0x2cc] sm:$0xf]
    %v214 = vld [vmem:[%s0 + $0x2d0] sm:$0xf]
    %v215 = vld [vmem:[%s0 + $0x2d4] sm:$0xf]
    %v216 = vld [vmem:[%s0 + $0x2d8] sm:$0xf]
    %v217 = vld [vmem:[%s0 + $0x2dc] sm:$0xf]
    %v218 = vld [vmem:[%s0 + $0x2e0] sm:$0xf]
    %v219 = vld [vmem:[%s0 + $0x2e4] sm:$0xf]
    %v220 = vld [vmem:[%s0 + $0x2e8] sm:$0xf]
    %v221 = vld [vmem:[%s0 + $0x2ec] sm:$0xf]
    %v222 = vld [vmem:[%s0 + $0x2f0] sm:$0xf]
    %v223 = vld [vmem:[%s0 + $0x2f4] sm:$0xf]
    %v224 = vld [vmem:[%s0 + $0x2f8] sm:$0xf]
    %v225 = vld [vmem:[%s0 + $0x2fc] sm:$0xf]
    %v226 = vld [vmem:[%s0 + $0x300] sm:$0xf]
    %v227 = vld [vmem:[%s0 + $0x304] sm:$0xf]
    %v228 = vld [vmem:[%s0 + $0x308] sm:$0xf]
    %v229 = vld [vmem:[%s0 + $0x30c] sm:$0xf]
    %v230 = vld [vmem:[%s0 + $0x310] sm:$0xf]
    %v231 = vld [vmem:[%s0 + $0x314] sm:$0xf]
    %v232 = vld [vmem:[%s0 + $0x318] sm:$0xf]
    %v233 = vld [vmem:[%s0 + $0x31c] sm:$0xf]
    %v234 = vld [vmem:[%s0 + $0x320] sm:$0xf]
    %v235 = vld [vmem:[%s0 + $0x324] sm:$0xf]
    %v236 = vld [vmem:[%s0 + $0x328] sm:$0xf]
    %v237 = vld [vmem:[%s0 + $0x32c] sm:$0xf]
    %v238 = vld [vmem:[%s0 + $0x330] sm:$0xf]
    %v239 = vld [vmem:[%s0 + $0x334] sm:$0xf]
    %v240 = vld [vmem:[%s0 + $0x338] sm:$0xf]
    %v241 = vld [vmem:[%s0 + $0x33c] sm:$0xf]
    %v242 = vld [vmem:[%s0 + $0x340] sm:$0xf]
    %v243 = vld [vmem:[%s0 + $0x344] sm:$0xf]
    %v244 = vld [vmem:[%s0 + $0x348] sm:$0xf]
    %v245 = vld [vmem:[%s0 + $0x34c] sm:$0xf]
    %v246 = vld [vmem:[%s0 + $0x350] sm:$0xf]
    %v247 = vld [vmem:[%s0 + $0x354] sm:$0xf]
    %v248 = vld [vmem:[%s0 + $0x358] sm:$0xf]
    %v249 = vld [vmem:[%s0 + $0x35c] sm:$0xf]
    %v250 = vld [vmem:[%s0 + $0x360] sm:$0xf]
    %v251 = vld [vmem:[%s0 + $0x364] sm:$0xf]
    %v252 = vld [vmem:[%s0 + $0x368] sm:$0xf]
    %v253 = vld [vmem:[%s0 + $0x36c] sm:$0xf]
    %v254 = vld [vmem:[%s0 + $0x370] sm:$0xf]
    %v255 = vld [vmem:[%s0 + $0x374] sm:$0xf]
    %v256 = vld [vmem:[%s0 + $0x378] sm:$0xf]
    %v257 = vld [vmem:[%s0 + $0x37c] sm:$0xf]
    %v258 = vld [vmem:[%s0 + $0x380] sm:$0xf]
    %v259 = vld [vmem:[%s0 + $0x384] sm:$0xf]
    %v260 = vld [vmem:[%s0 + $0x388] sm:$0xf]
    %v261 = vld [vmem:[%s0 + $0x38c] sm:$0xf]
    %v262 = vld [vmem:[%s0 + $0x390] sm:$0xf]
    %v263 = vld [vmem:[%s0 + $0x394] sm:$0xf]
    %v264 = vld [vmem:[%s0 + $0x398] sm:$0xf]
    %v265 = vld [vmem:[%s0 + $0x39c] sm:$0xf]
    %v266 = vld [vmem:[%s0 + $0x3a0] sm:$0xf]
    %v267 = vld [vmem:[%s0 + $0x3a4] sm:$0xf]
    %v268 = vld [vmem:[%s0 + $0x3a8] sm:$0xf]
    %v269 = vld [vmem:[%s0 + $0x3ac] sm:$0xf]
    %v270 = vld [vmem:[%s0 + $0x3b0] sm:$0xf]
    %v271 = vld [vmem:[%s0 + $0x3b4] sm:$0xf]
    %v272 = vld [vmem:[%s0 + $0x3b8] sm:$0xf]
    %v273 = vld [vmem:[%s0 + $0x3bc] sm:$0xf]
    %v274 = vld [vmem:[%s1] sm:$0xf]
    %v275 = vld [vmem:[%s1 + $0x4] sm:$0xf]
    %v276 = vld [vmem:[%s1 + $0x8] sm:$0xf]
    %v277 = vld [vmem:[%s1 + $0xc] sm:$0x1]
    %v518 = vunpack.c.l.b16 %v34
    %v519 = vunpack.c.l.b16 %v35
    %v520 = vunpack.c.l.b16 %v36
    %v521 = vunpack.c.l.b16 %v37
    %v522 = vunpack.c.l.b16 %v38
    %v523 = vunpack.c.l.b16 %v39
    %v524 = vunpack.c.l.b16 %v40
    %v525 = vunpack.c.l.b16 %v41
    %v526 = vunpack.c.l.b16 %v42
    %v527 = vunpack.c.l.b16 %v43
    %v528 = vunpack.c.l.b16 %v44
    %v529 = vunpack.c.l.b16 %v45
    %v530 = vunpack.c.l.b16 %v46
    %v531 = vunpack.c.l.b16 %v47
    %v532 = vunpack.c.l.b16 %v48
    %v533 = vunpack.c.l.b16 %v49
    %v534 = vunpack.c.l.b16 %v50
    %v535 = vunpack.c.l.b16 %v51
    %v536 = vunpack.c.l.b16 %v52
    %v537 = vunpack.c.l.b16 %v53
    %v538 = vunpack.c.l.b16 %v54
    %v539 = vunpack.c.l.b16 %v55
    %v540 = vunpack.c.l.b16 %v56
    %v541 = vunpack.c.l.b16 %v57
    %v542 = vunpack.c.l.b16 %v58
    %v543 = vunpack.c.l.b16 %v59
    %v544 = vunpack.c.l.b16 %v60
    %v545 = vunpack.c.l.b16 %v61
    %v546 = vunpack.c.l.b16 %v62
    %v547 = vunpack.c.l.b16 %v63
    %v548 = vunpack.c.l.b16 %v64
    %v549 = vunpack.c.l.b16 %v65
    %v550 = vunpack.c.l.b16 %v66
    %v551 = vunpack.c.l.b16 %v67
    %v552 = vunpack.c.l.b16 %v68
    %v553 = vunpack.c.l.b16 %v69
    %v554 = vunpack.c.l.b16 %v70
    %v555 = vunpack.c.l.b16 %v71
    %v556 = vunpack.c.l.b16 %v72
    %v557 = vunpack.c.l.b16 %v73
    %v558 = vunpack.c.l.b16 %v74
    %v559 = vunpack.c.l.b16 %v75
    %v560 = vunpack.c.l.b16 %v76
    %v561 = vunpack.c.l.b16 %v77
    %v562 = vunpack.c.l.b16 %v78
    %v563 = vunpack.c.l.b16 %v79
    %v564 = vunpack.c.l.b16 %v80
    %v565 = vunpack.c.l.b16 %v81
    %v566 = vunpack.c.l.b16 %v82
    %v567 = vunpack.c.l.b16 %v83
    %v568 = vunpack.c.l.b16 %v84
    %v569 = vunpack.c.l.b16 %v85
    %v570 = vunpack.c.l.b16 %v86
    %v571 = vunpack.c.l.b16 %v87
    %v572 = vunpack.c.l.b16 %v88
    %v573 = vunpack.c.l.b16 %v89
    %v574 = vunpack.c.l.b16 %v90
    %v575 = vunpack.c.l.b16 %v91
    %v576 = vunpack.c.l.b16 %v92
    %v577 = vunpack.c.l.b16 %v93
    %v578 = vunpack.c.l.b16 %v94
    %v579 = vunpack.c.l.b16 %v95
    %v580 = vunpack.c.l.b16 %v96
    %v581 = vunpack.c.l.b16 %v97
    %v582 = vunpack.c.l.b16 %v98
    %v583 = vunpack.c.l.b16 %v99
    %v584 = vunpack.c.l.b16 %v100
    %v585 = vunpack.c.l.b16 %v101
    %v586 = vunpack.c.l.b16 %v102
    %v587 = vunpack.c.l.b16 %v103
    %v588 = vunpack.c.l.b16 %v104
    %v589 = vunpack.c.l.b16 %v105
    %v590 = vunpack.c.l.b16 %v106
    %v591 = vunpack.c.l.b16 %v107
    %v592 = vunpack.c.l.b16 %v108
    %v593 = vunpack.c.l.b16 %v109
    %v594 = vunpack.c.l.b16 %v110
    %v595 = vunpack.c.l.b16 %v111
    %v596 = vunpack.c.l.b16 %v112
    %v597 = vunpack.c.l.b16 %v113
    %v598 = vunpack.c.l.b16 %v114
    %v599 = vunpack.c.l.b16 %v115
    %v600 = vunpack.c.l.b16 %v116
    %v601 = vunpack.c.l.b16 %v117
    %v602 = vunpack.c.l.b16 %v118
    %v603 = vunpack.c.l.b16 %v119
    %v604 = vunpack.c.l.b16 %v120
    %v605 = vunpack.c.l.b16 %v121
    %v606 = vunpack.c.l.b16 %v122
    %v607 = vunpack.c.l.b16 %v123
    %v608 = vunpack.c.l.b16 %v124
    %v609 = vunpack.c.l.b16 %v125
    %v610 = vunpack.c.l.b16 %v126
    %v611 = vunpack.c.l.b16 %v127
    %v612 = vunpack.c.l.b16 %v128
    %v613 = vunpack.c.l.b16 %v129
    %v614 = vunpack.c.l.b16 %v130
    %v615 = vunpack.c.l.b16 %v131
    %v616 = vunpack.c.l.b16 %v132
    %v617 = vunpack.c.l.b16 %v133
    %v618 = vunpack.c.l.b16 %v134
    %v619 = vunpack.c.l.b16 %v135
    %v620 = vunpack.c.l.b16 %v136
    %v621 = vunpack.c.l.b16 %v137
    %v622 = vunpack.c.l.b16 %v138
    %v623 = vunpack.c.l.b16 %v139
    %v624 = vunpack.c.l.b16 %v140
    %v625 = vunpack.c.l.b16 %v141
    %v626 = vunpack.c.l.b16 %v142
    %v627 = vunpack.c.l.b16 %v143
    %v628 = vunpack.c.l.b16 %v144
    %v629 = vunpack.c.l.b16 %v145
    %v630 = vunpack.c.l.b16 %v146
    %v631 = vunpack.c.l.b16 %v147
    %v632 = vunpack.c.l.b16 %v148
    %v633 = vunpack.c.l.b16 %v149
    %v634 = vunpack.c.l.b16 %v150
    %v635 = vunpack.c.l.b16 %v151
    %v636 = vunpack.c.l.b16 %v152
    %v637 = vunpack.c.l.b16 %v153
    %v638 = vunpack.c.l.b16 %v154
    %v639 = vunpack.c.l.b16 %v155
    %v640 = vunpack.c.l.b16 %v156
    %v641 = vunpack.c.l.b16 %v157
    %v642 = vunpack.c.l.b16 %v158
    %v643 = vunpack.c.l.b16 %v159
    %v644 = vunpack.c.l.b16 %v160
    %v645 = vunpack.c.l.b16 %v161
    %v646 = vunpack.c.l.b16 %v162
    %v647 = vunpack.c.l.b16 %v163
    %v648 = vunpack.c.l.b16 %v164
    %v649 = vunpack.c.l.b16 %v165
    %v650 = vunpack.c.l.b16 %v166
    %v651 = vunpack.c.l.b16 %v167
    %v652 = vunpack.c.l.b16 %v168
    %v653 = vunpack.c.l.b16 %v169
    %v654 = vunpack.c.l.b16 %v170
    %v655 = vunpack.c.l.b16 %v171
    %v656 = vunpack.c.l.b16 %v172
    %v657 = vunpack.c.l.b16 %v173
    %v658 = vunpack.c.l.b16 %v174
    %v659 = vunpack.c.l.b16 %v175
    %v660 = vunpack.c.l.b16 %v176
    %v661 = vunpack.c.l.b16 %v177
    %v662 = vunpack.c.l.b16 %v178
    %v663 = vunpack.c.l.b16 %v179
    %v664 = vunpack.c.l.b16 %v180
    %v665 = vunpack.c.l.b16 %v181
    %v666 = vunpack.c.l.b16 %v182
    %v667 = vunpack.c.l.b16 %v183
    %v668 = vunpack.c.l.b16 %v184
    %v669 = vunpack.c.l.b16 %v185
    %v670 = vunpack.c.l.b16 %v186
    %v671 = vunpack.c.l.b16 %v187
    %v672 = vunpack.c.l.b16 %v188
    %v673 = vunpack.c.l.b16 %v189
    %v674 = vunpack.c.l.b16 %v190
    %v675 = vunpack.c.l.b16 %v191
    %v676 = vunpack.c.l.b16 %v192
    %v677 = vunpack.c.l.b16 %v193
    %v678 = vunpack.c.l.b16 %v194
    %v679 = vunpack.c.l.b16 %v195
    %v680 = vunpack.c.l.b16 %v196
    %v681 = vunpack.c.l.b16 %v197
    %v682 = vunpack.c.l.b16 %v198
    %v683 = vunpack.c.l.b16 %v199
    %v684 = vunpack.c.l.b16 %v200
    %v685 = vunpack.c.l.b16 %v201
    %v686 = vunpack.c.l.b16 %v202
    %v687 = vunpack.c.l.b16 %v203
    %v688 = vunpack.c.l.b16 %v204
    %v689 = vunpack.c.l.b16 %v205
    %v690 = vunpack.c.l.b16 %v206
    %v691 = vunpack.c.l.b16 %v207
    %v692 = vunpack.c.l.b16 %v208
    %v693 = vunpack.c.l.b16 %v209
    %v694 = vunpack.c.l.b16 %v210
    %v695 = vunpack.c.l.b16 %v211
    %v696 = vunpack.c.l.b16 %v212
    %v697 = vunpack.c.l.b16 %v213
    %v698 = vunpack.c.l.b16 %v214
    %v699 = vunpack.c.l.b16 %v215
    %v700 = vunpack.c.l.b16 %v216
    %v701 = vunpack.c.l.b16 %v217
    %v702 = vunpack.c.l.b16 %v218
    %v703 = vunpack.c.l.b16 %v219
    %v704 = vunpack.c.l.b16 %v220
    %v705 = vunpack.c.l.b16 %v221
    %v706 = vunpack.c.l.b16 %v222
    %v707 = vunpack.c.l.b16 %v223
    %v708 = vunpack.c.l.b16 %v224
    %v709 = vunpack.c.l.b16 %v225
    %v710 = vunpack.c.l.b16 %v226
    %v711 = vunpack.c.l.b16 %v227
    %v712 = vunpack.c.l.b16 %v228
    %v713 = vunpack.c.l.b16 %v229
    %v714 = vunpack.c.l.b16 %v230
    %v715 = vunpack.c.l.b16 %v231
    %v716 = vunpack.c.l.b16 %v232
    %v717 = vunpack.c.l.b16 %v233
    %v718 = vunpack.c.l.b16 %v234
    %v719 = vunpack.c.l.b16 %v235
    %v720 = vunpack.c.l.b16 %v236
    %v721 = vunpack.c.l.b16 %v237
    %v722 = vunpack.c.l.b16 %v238
    %v723 = vunpack.c.l.b16 %v239
    %v724 = vunpack.c.l.b16 %v240
    %v725 = vunpack.c.l.b16 %v241
    %v726 = vunpack.c.l.b16 %v242
    %v727 = vunpack.c.l.b16 %v243
    %v728 = vunpack.c.l.b16 %v244
    %v729 = vunpack.c.l.b16 %v245
    %v730 = vunpack.c.l.b16 %v246
    %v731 = vunpack.c.l.b16 %v247
    %v732 = vunpack.c.l.b16 %v248
    %v733 = vunpack.c.l.b16 %v249
    %v734 = vunpack.c.l.b16 %v250
    %v735 = vunpack.c.l.b16 %v251
    %v736 = vunpack.c.l.b16 %v252
    %v737 = vunpack.c.l.b16 %v253
    %v738 = vunpack.c.l.b16 %v254
    %v739 = vunpack.c.l.b16 %v255
    %v740 = vunpack.c.l.b16 %v256
    %v741 = vunpack.c.l.b16 %v257
    %v742 = vunpack.c.l.b16 %v258
    %v743 = vunpack.c.l.b16 %v259
    %v744 = vunpack.c.l.b16 %v260
    %v745 = vunpack.c.l.b16 %v261
    %v746 = vunpack.c.l.b16 %v262
    %v747 = vunpack.c.l.b16 %v263
    %v748 = vunpack.c.l.b16 %v264
    %v749 = vunpack.c.l.b16 %v265
    %v750 = vunpack.c.l.b16 %v266
    %v751 = vunpack.c.l.b16 %v267
    %v752 = vunpack.c.l.b16 %v268
    %v753 = vunpack.c.l.b16 %v269
    %v754 = vunpack.c.l.b16 %v270
    %v755 = vunpack.c.l.b16 %v271
    %v756 = vunpack.c.l.b16 %v272
    %v757 = vunpack.c.l.b16 %v273
    %v758 = vpack.c.b16 %v519, %v518
    %v759 = vpack.c.b16 %v521, %v520
    %v760 = vpack.c.b16 %v523, %v522
    %v761 = vpack.c.b16 %v525, %v524
    %v762 = vpack.c.b16 %v527, %v526
    %v763 = vpack.c.b16 %v529, %v528
    %v764 = vpack.c.b16 %v531, %v530
    %v765 = vpack.c.b16 %v533, %v532
    %v766 = vpack.c.b16 %v535, %v534
    %v767 = vpack.c.b16 %v537, %v536
    %v768 = vpack.c.b16 %v539, %v538
    %v769 = vpack.c.b16 %v541, %v540
    %v770 = vpack.c.b16 %v543, %v542
    %v771 = vpack.c.b16 %v545, %v544
    %v772 = vpack.c.b16 %v547, %v546
    %v773 = vpack.c.b16 %v549, %v548
    %v774 = vpack.c.b16 %v551, %v550
    %v775 = vpack.c.b16 %v553, %v552
    %v776 = vpack.c.b16 %v555, %v554
    %v777 = vpack.c.b16 %v557, %v556
    %v778 = vpack.c.b16 %v559, %v558
    %v779 = vpack.c.b16 %v561, %v560
    %v780 = vpack.c.b16 %v563, %v562
    %v781 = vpack.c.b16 %v565, %v564
    %v782 = vpack.c.b16 %v567, %v566
    %v783 = vpack.c.b16 %v569, %v568
    %v784 = vpack.c.b16 %v571, %v570
    %v785 = vpack.c.b16 %v573, %v572
    %v786 = vpack.c.b16 %v575, %v574
    %v787 = vpack.c.b16 %v577, %v576
    %v788 = vpack.c.b16 %v579, %v578
    %v789 = vpack.c.b16 %v581, %v580
    %v790 = vpack.c.b16 %v583, %v582
    %v791 = vpack.c.b16 %v585, %v584
    %v792 = vpack.c.b16 %v587, %v586
    %v793 = vpack.c.b16 %v589, %v588
    %v794 = vpack.c.b16 %v591, %v590
    %v795 = vpack.c.b16 %v593, %v592
    %v796 = vpack.c.b16 %v595, %v594
    %v797 = vpack.c.b16 %v597, %v596
    %v798 = vpack.c.b16 %v599, %v598
    %v799 = vpack.c.b16 %v601, %v600
    %v800 = vpack.c.b16 %v603, %v602
    %v801 = vpack.c.b16 %v605, %v604
    %v802 = vpack.c.b16 %v607, %v606
    %v803 = vpack.c.b16 %v609, %v608
    %v804 = vpack.c.b16 %v611, %v610
    %v805 = vpack.c.b16 %v613, %v612
    %v806 = vpack.c.b16 %v615, %v614
    %v807 = vpack.c.b16 %v617, %v616
    %v808 = vpack.c.b16 %v619, %v618
    %v809 = vpack.c.b16 %v621, %v620
    %v810 = vpack.c.b16 %v623, %v622
    %v811 = vpack.c.b16 %v625, %v624
    %v812 = vpack.c.b16 %v627, %v626
    %v813 = vpack.c.b16 %v629, %v628
    %v814 = vpack.c.b16 %v631, %v630
    %v815 = vpack.c.b16 %v633, %v632
    %v816 = vpack.c.b16 %v635, %v634
    %v817 = vpack.c.b16 %v637, %v636
    %v818 = vpack.c.b16 %v639, %v638
    %v819 = vpack.c.b16 %v641, %v640
    %v820 = vpack.c.b16 %v643, %v642
    %v821 = vpack.c.b16 %v645, %v644
    %v822 = vpack.c.b16 %v647, %v646
    %v823 = vpack.c.b16 %v649, %v648
    %v824 = vpack.c.b16 %v651, %v650
    %v825 = vpack.c.b16 %v653, %v652
    %v826 = vpack.c.b16 %v655, %v654
    %v827 = vpack.c.b16 %v657, %v656
    %v828 = vpack.c.b16 %v659, %v658
    %v829 = vpack.c.b16 %v661, %v660
    %v830 = vpack.c.b16 %v663, %v662
    %v831 = vpack.c.b16 %v665, %v664
    %v832 = vpack.c.b16 %v667, %v666
    %v833 = vpack.c.b16 %v669, %v668
    %v834 = vpack.c.b16 %v671, %v670
    %v835 = vpack.c.b16 %v673, %v672
    %v836 = vpack.c.b16 %v675, %v674
    %v837 = vpack.c.b16 %v677, %v676
    %v838 = vpack.c.b16 %v679, %v678
    %v839 = vpack.c.b16 %v681, %v680
    %v840 = vpack.c.b16 %v683, %v682
    %v841 = vpack.c.b16 %v685, %v684
    %v842 = vpack.c.b16 %v687, %v686
    %v843 = vpack.c.b16 %v689, %v688
    %v844 = vpack.c.b16 %v691, %v690
    %v845 = vpack.c.b16 %v693, %v692
    %v846 = vpack.c.b16 %v695, %v694
    %v847 = vpack.c.b16 %v697, %v696
    %v848 = vpack.c.b16 %v699, %v698
    %v849 = vpack.c.b16 %v701, %v700
    %v850 = vpack.c.b16 %v703, %v702
    %v851 = vpack.c.b16 %v705, %v704
    %v852 = vpack.c.b16 %v707, %v706
    %v853 = vpack.c.b16 %v709, %v708
    %v854 = vpack.c.b16 %v711, %v710
    %v855 = vpack.c.b16 %v713, %v712
    %v856 = vpack.c.b16 %v715, %v714
    %v857 = vpack.c.b16 %v717, %v716
    %v858 = vpack.c.b16 %v719, %v718
    %v859 = vpack.c.b16 %v721, %v720
    %v860 = vpack.c.b16 %v723, %v722
    %v861 = vpack.c.b16 %v725, %v724
    %v862 = vpack.c.b16 %v727, %v726
    %v863 = vpack.c.b16 %v729, %v728
    %v864 = vpack.c.b16 %v731, %v730
    %v865 = vpack.c.b16 %v733, %v732
    %v866 = vpack.c.b16 %v735, %v734
    %v867 = vpack.c.b16 %v737, %v736
    %v868 = vpack.c.b16 %v739, %v738
    %v869 = vpack.c.b16 %v741, %v740
    %v870 = vpack.c.b16 %v743, %v742
    %v871 = vpack.c.b16 %v745, %v744
    %v872 = vpack.c.b16 %v747, %v746
    %v873 = vpack.c.b16 %v749, %v748
    %v874 = vpack.c.b16 %v751, %v750
    %v875 = vpack.c.b16 %v753, %v752
    %v876 = vpack.c.b16 %v755, %v754
    %v877 = vpack.c.b16 %v757, %v756
    %v882 = vunpack.c.l.b16 %v274
    %v883 = vunpack.c.l.b16 %v275
    %v884 = vunpack.c.l.b16 %v276
    %v885 = vunpack.c.l.b16 %v277
    %v886 = vpack.c.b16 %v883, %v882
    %v887 = vpack.c.b16 %v885, %v884
    %vm889 = vcmask 203776
    %v891 = vsel %vm889, %v758, 0
    %v894 = vsel %vm889, %v759, 0
    %v897 = vsel %vm889, %v760, 0
    %v900 = vsel %vm889, %v761, 0
    %v903 = vsel %vm889, %v762, 0
    %v906 = vsel %vm889, %v763, 0
    %v909 = vsel %vm889, %v764, 0
    %v912 = vsel %vm889, %v765, 0
    %v915 = vsel %vm889, %v766, 0
    %v918 = vsel %vm889, %v767, 0
    %v921 = vsel %vm889, %v768, 0
    %v924 = vsel %vm889, %v769, 0
    %v927 = vsel %vm889, %v770, 0
    %v930 = vsel %vm889, %v771, 0
    %v933 = vsel %vm889, %v772, 0
    %v936 = vsel %vm889, %v773, 0
    %v939 = vsel %vm889, %v774, 0
    %v942 = vsel %vm889, %v775, 0
    %v945 = vsel %vm889, %v776, 0
    %v948 = vsel %vm889, %v777, 0
    %v951 = vsel %vm889, %v778, 0
    %v954 = vsel %vm889, %v779, 0
    %v957 = vsel %vm889, %v780, 0
    %v960 = vsel %vm889, %v781, 0
    %v963 = vsel %vm889, %v782, 0
    %v966 = vsel %vm889, %v783, 0
    %v969 = vsel %vm889, %v784, 0
    %v972 = vsel %vm889, %v785, 0
    %v975 = vsel %vm889, %v786, 0
    %v978 = vsel %vm889, %v787, 0
    %v981 = vsel %vm889, %v788, 0
    %v984 = vsel %vm889, %v789, 0
    %v987 = vsel %vm889, %v790, 0
    %v990 = vsel %vm889, %v791, 0
    %v993 = vsel %vm889, %v792, 0
    %v996 = vsel %vm889, %v793, 0
    %v999 = vsel %vm889, %v794, 0
    %v1002 = vsel %vm889, %v795, 0
    %v1005 = vsel %vm889, %v796, 0
    %v1008 = vsel %vm889, %v797, 0
    %v1011 = vsel %vm889, %v798, 0
    %v1014 = vsel %vm889, %v799, 0
    %v1017 = vsel %vm889, %v800, 0
    %v1020 = vsel %vm889, %v801, 0
    %v1023 = vsel %vm889, %v802, 0
    %v1026 = vsel %vm889, %v803, 0
    %v1029 = vsel %vm889, %v804, 0
    %v1032 = vsel %vm889, %v805, 0
    %v1035 = vsel %vm889, %v806, 0
    %v1038 = vsel %vm889, %v807, 0
    %v1041 = vsel %vm889, %v808, 0
    %v1044 = vsel %vm889, %v809, 0
    %v1047 = vsel %vm889, %v810, 0
    %v1050 = vsel %vm889, %v811, 0
    %v1053 = vsel %vm889, %v812, 0
    %v1056 = vsel %vm889, %v813, 0
    %v1059 = vsel %vm889, %v814, 0
    %v1062 = vsel %vm889, %v815, 0
    %v1065 = vsel %vm889, %v816, 0
    %v1068 = vsel %vm889, %v817, 0
    %v1071 = vsel %vm889, %v818, 0
    %v1074 = vsel %vm889, %v819, 0
    %v1077 = vsel %vm889, %v820, 0
    %v1080 = vsel %vm889, %v821, 0
    %v1083 = vsel %vm889, %v822, 0
    %v1086 = vsel %vm889, %v823, 0
    %v1089 = vsel %vm889, %v824, 0
    %v1092 = vsel %vm889, %v825, 0
    %v1095 = vsel %vm889, %v826, 0
    %v1098 = vsel %vm889, %v827, 0
    %v1101 = vsel %vm889, %v828, 0
    %v1104 = vsel %vm889, %v829, 0
    %v1107 = vsel %vm889, %v830, 0
    %v1110 = vsel %vm889, %v831, 0
    %v1113 = vsel %vm889, %v832, 0
    %v1116 = vsel %vm889, %v833, 0
    %v1119 = vsel %vm889, %v834, 0
    %v1122 = vsel %vm889, %v835, 0
    %v1125 = vsel %vm889, %v836, 0
    %v1128 = vsel %vm889, %v837, 0
    %v1131 = vsel %vm889, %v838, 0
    %v1134 = vsel %vm889, %v839, 0
    %v1137 = vsel %vm889, %v840, 0
    %v1140 = vsel %vm889, %v841, 0
    %v1143 = vsel %vm889, %v842, 0
    %v1146 = vsel %vm889, %v843, 0
    %v1149 = vsel %vm889, %v844, 0
    %v1152 = vsel %vm889, %v845, 0
    %v1155 = vsel %vm889, %v846, 0
    %v1158 = vsel %vm889, %v847, 0
    %v1161 = vsel %vm889, %v848, 0
    %v1164 = vsel %vm889, %v849, 0
    %v1167 = vsel %vm889, %v850, 0
    %v1170 = vsel %vm889, %v851, 0
    %v1173 = vsel %vm889, %v852, 0
    %v1176 = vsel %vm889, %v853, 0
    %v1179 = vsel %vm889, %v854, 0
    %v1182 = vsel %vm889, %v855, 0
    %v1185 = vsel %vm889, %v856, 0
    %v1188 = vsel %vm889, %v857, 0
    %v1191 = vsel %vm889, %v858, 0
    %v1194 = vsel %vm889, %v859, 0
    %v1197 = vsel %vm889, %v860, 0
    %v1200 = vsel %vm889, %v861, 0
    %v1203 = vsel %vm889, %v862, 0
    %v1206 = vsel %vm889, %v863, 0
    %v1209 = vsel %vm889, %v864, 0
    %v1212 = vsel %vm889, %v865, 0
    %v1215 = vsel %vm889, %v866, 0
    %v1218 = vsel %vm889, %v867, 0
    %v1221 = vsel %vm889, %v868, 0
    %v1224 = vsel %vm889, %v869, 0
    %v1227 = vsel %vm889, %v870, 0
    %v1230 = vsel %vm889, %v871, 0
    %v1233 = vsel %vm889, %v872, 0
    %v1236 = vsel %vm889, %v873, 0
    %v1239 = vsel %vm889, %v874, 0
    %v1242 = vsel %vm889, %v875, 0
    %v1245 = vsel %vm889, %v876, 0
    %v1248 = vsel %vm889, %v877, 0
    %vm1250 = vcmask 1043456
    %vm1251 = vcmask 1044480
    %v1252 = vsel %vm1250, 4294967295, 65535
    %v1253 = vsel %vm1251, %v1252, 0
    %v1255 = vand.u32 %v887, %v1253
    %1257 = vmatpush.bf16.msra.mxu0 0
    %1258 = vmatpush.bf16.msra.mxu0 0
    %1259 = vmatpush.bf16.msra.mxu0 0
    %1260 = vmatpush.bf16.msra.mxu0 0
    %1261 = vmatpush.bf16.msra.mxu0 0
    %1262 = vmatpush.bf16.msra.mxu0 0
    %1263 = vmatpush.bf16.msra.mxu0 %v1255
    %1264 = vmatpush.bf16.msra.mxu0 %v886
    %1265 = vmatmul.bf16.gmra.mxu0 %v891
    %v1266 = vpop.f32.mrf.mxu0
    %v1267 = vadd.f32 0.0, %v1266
    %v1268 = vpop.f32.mrf.mxu0
    %v1269 = vadd.f32 0.0, %v1268
    %1270 = vmatmul.bf16.gmra.mxu0 %v894
    %v1271 = vpop.f32.mrf.mxu0
    %v1272 = vadd.f32 0.0, %v1271
    %v1273 = vpop.f32.mrf.mxu0
    %v1274 = vadd.f32 0.0, %v1273
    %1275 = vmatmul.bf16.gmra.mxu0 %v897
    %v1276 = vpop.f32.mrf.mxu0
    %v1277 = vadd.f32 0.0, %v1276
    %v1278 = vpop.f32.mrf.mxu0
    %v1279 = vadd.f32 0.0, %v1278
    %1280 = vmatmul.bf16.gmra.mxu0 %v900
    %v1281 = vpop.f32.mrf.mxu0
    %v1282 = vadd.f32 0.0, %v1281
    %v1283 = vpop.f32.mrf.mxu0
    %v1284 = vadd.f32 0.0, %v1283
    %1285 = vmatmul.bf16.gmra.mxu0 %v903
    %v1286 = vpop.f32.mrf.mxu0
    %v1287 = vadd.f32 0.0, %v1286
    %v1288 = vpop.f32.mrf.mxu0
    %v1289 = vadd.f32 0.0, %v1288
    %1290 = vmatmul.bf16.gmra.mxu0 %v906
    %v1291 = vpop.f32.mrf.mxu0
    %v1292 = vadd.f32 0.0, %v1291
    %v1293 = vpop.f32.mrf.mxu0
    %v1294 = vadd.f32 0.0, %v1293
    %1295 = vmatmul.bf16.gmra.mxu0 %v909
    %v1296 = vpop.f32.mrf.mxu0
    %v1297 = vadd.f32 0.0, %v1296
    %v1298 = vpop.f32.mrf.mxu0
    %v1299 = vadd.f32 0.0, %v1298
    %1300 = vmatmul.bf16.gmra.mxu0 %v912
    %v1301 = vpop.f32.mrf.mxu0
    %v1302 = vadd.f32 0.0, %v1301
    %v1303 = vpop.f32.mrf.mxu0
    %v1304 = vadd.f32 0.0, %v1303
    %1305 = vmatmul.bf16.gmra.mxu0 %v915
    %v1306 = vpop.f32.mrf.mxu0
    %v1307 = vadd.f32 0.0, %v1306
    %v1308 = vpop.f32.mrf.mxu0
    %v1309 = vadd.f32 0.0, %v1308
    %1310 = vmatmul.bf16.gmra.mxu0 %v918
    %v1311 = vpop.f32.mrf.mxu0
    %v1312 = vadd.f32 0.0, %v1311
    %v1313 = vpop.f32.mrf.mxu0
    %v1314 = vadd.f32 0.0, %v1313
    %1315 = vmatmul.bf16.gmra.mxu0 %v921
    %v1316 = vpop.f32.mrf.mxu0
    %v1317 = vadd.f32 0.0, %v1316
    %v1318 = vpop.f32.mrf.mxu0
    %v1319 = vadd.f32 0.0, %v1318
    %1320 = vmatmul.bf16.gmra.mxu0 %v924
    %v1321 = vpop.f32.mrf.mxu0
    %v1322 = vadd.f32 0.0, %v1321
    %v1323 = vpop.f32.mrf.mxu0
    %v1324 = vadd.f32 0.0, %v1323
    %1325 = vmatmul.bf16.gmra.mxu0 %v927
    %v1326 = vpop.f32.mrf.mxu0
    %v1327 = vadd.f32 0.0, %v1326
    %v1328 = vpop.f32.mrf.mxu0
    %v1329 = vadd.f32 0.0, %v1328
    %1330 = vmatmul.bf16.gmra.mxu0 %v930
    %v1331 = vpop.f32.mrf.mxu0
    %v1332 = vadd.f32 0.0, %v1331
    %v1333 = vpop.f32.mrf.mxu0
    %v1334 = vadd.f32 0.0, %v1333
    %1335 = vmatmul.bf16.gmra.mxu0 %v933
    %v1336 = vpop.f32.mrf.mxu0
    %v1337 = vadd.f32 0.0, %v1336
    %v1338 = vpop.f32.mrf.mxu0
    %v1339 = vadd.f32 0.0, %v1338
    %1340 = vmatmul.bf16.gmra.mxu0 %v936
    %v1341 = vpop.f32.mrf.mxu0
    %v1342 = vadd.f32 0.0, %v1341
    %v1343 = vpop.f32.mrf.mxu0
    %v1344 = vadd.f32 0.0, %v1343
    %1345 = vmatmul.bf16.gmra.mxu0 %v939
    %v1346 = vpop.f32.mrf.mxu0
    %v1347 = vadd.f32 0.0, %v1346
    %v1348 = vpop.f32.mrf.mxu0
    %v1349 = vadd.f32 0.0, %v1348
    %1350 = vmatmul.bf16.gmra.mxu0 %v942
    %v1351 = vpop.f32.mrf.mxu0
    %v1352 = vadd.f32 0.0, %v1351
    %v1353 = vpop.f32.mrf.mxu0
    %v1354 = vadd.f32 0.0, %v1353
    %1355 = vmatmul.bf16.gmra.mxu0 %v945
    %v1356 = vpop.f32.mrf.mxu0
    %v1357 = vadd.f32 0.0, %v1356
    %v1358 = vpop.f32.mrf.mxu0
    %v1359 = vadd.f32 0.0, %v1358
    %1360 = vmatmul.bf16.gmra.mxu0 %v948
    %v1361 = vpop.f32.mrf.mxu0
    %v1362 = vadd.f32 0.0, %v1361
    %v1363 = vpop.f32.mrf.mxu0
    %v1364 = vadd.f32 0.0, %v1363
    %1365 = vmatmul.bf16.gmra.mxu0 %v951
    %v1366 = vpop.f32.mrf.mxu0
    %v1367 = vadd.f32 0.0, %v1366
    %v1368 = vpop.f32.mrf.mxu0
    %v1369 = vadd.f32 0.0, %v1368
    %1370 = vmatmul.bf16.gmra.mxu0 %v954
    %v1371 = vpop.f32.mrf.mxu0
    %v1372 = vadd.f32 0.0, %v1371
    %v1373 = vpop.f32.mrf.mxu0
    %v1374 = vadd.f32 0.0, %v1373
    %1375 = vmatmul.bf16.gmra.mxu0 %v957
    %v1376 = vpop.f32.mrf.mxu0
    %v1377 = vadd.f32 0.0, %v1376
    %v1378 = vpop.f32.mrf.mxu0
    %v1379 = vadd.f32 0.0, %v1378
    %1380 = vmatmul.bf16.gmra.mxu0 %v960
    %v1381 = vpop.f32.mrf.mxu0
    %v1382 = vadd.f32 0.0, %v1381
    %v1383 = vpop.f32.mrf.mxu0
    %v1384 = vadd.f32 0.0, %v1383
    %1385 = vmatmul.bf16.gmra.mxu0 %v963
    %v1386 = vpop.f32.mrf.mxu0
    %v1387 = vadd.f32 0.0, %v1386
    %v1388 = vpop.f32.mrf.mxu0
    %v1389 = vadd.f32 0.0, %v1388
    %1390 = vmatmul.bf16.gmra.mxu0 %v966
    %v1391 = vpop.f32.mrf.mxu0
    %v1392 = vadd.f32 0.0, %v1391
    %v1393 = vpop.f32.mrf.mxu0
    %v1394 = vadd.f32 0.0, %v1393
    %1395 = vmatmul.bf16.gmra.mxu0 %v969
    %v1396 = vpop.f32.mrf.mxu0
    %v1397 = vadd.f32 0.0, %v1396
    %v1398 = vpop.f32.mrf.mxu0
    %v1399 = vadd.f32 0.0, %v1398
    %1400 = vmatmul.bf16.gmra.mxu0 %v972
    %v1401 = vpop.f32.mrf.mxu0
    %v1402 = vadd.f32 0.0, %v1401
    %v1403 = vpop.f32.mrf.mxu0
    %v1404 = vadd.f32 0.0, %v1403
    %1405 = vmatmul.bf16.gmra.mxu0 %v975
    %v1406 = vpop.f32.mrf.mxu0
    %v1407 = vadd.f32 0.0, %v1406
    %v1408 = vpop.f32.mrf.mxu0
    %v1409 = vadd.f32 0.0, %v1408
    %1410 = vmatmul.bf16.gmra.mxu0 %v978
    %v1411 = vpop.f32.mrf.mxu0
    %v1412 = vadd.f32 0.0, %v1411
    %v1413 = vpop.f32.mrf.mxu0
    %v1414 = vadd.f32 0.0, %v1413
    %1415 = vmatmul.bf16.gmra.mxu0 %v981
    %v1416 = vpop.f32.mrf.mxu0
    %v1417 = vadd.f32 0.0, %v1416
    %v1418 = vpop.f32.mrf.mxu0
    %v1419 = vadd.f32 0.0, %v1418
    %1420 = vmatmul.bf16.gmra.mxu0 %v984
    %v1421 = vpop.f32.mrf.mxu0
    %v1422 = vadd.f32 0.0, %v1421
    %v1423 = vpop.f32.mrf.mxu0
    %v1424 = vadd.f32 0.0, %v1423
    %1425 = vmatmul.bf16.gmra.mxu0 %v987
    %v1426 = vpop.f32.mrf.mxu0
    %v1427 = vadd.f32 0.0, %v1426
    %v1428 = vpop.f32.mrf.mxu0
    %v1429 = vadd.f32 0.0, %v1428
    %1430 = vmatmul.bf16.gmra.mxu0 %v990
    %v1431 = vpop.f32.mrf.mxu0
    %v1432 = vadd.f32 0.0, %v1431
    %v1433 = vpop.f32.mrf.mxu0
    %v1434 = vadd.f32 0.0, %v1433
    %1435 = vmatmul.bf16.gmra.mxu0 %v993
    %v1436 = vpop.f32.mrf.mxu0
    %v1437 = vadd.f32 0.0, %v1436
    %v1438 = vpop.f32.mrf.mxu0
    %v1439 = vadd.f32 0.0, %v1438
    %1440 = vmatmul.bf16.gmra.mxu0 %v996
    %v1441 = vpop.f32.mrf.mxu0
    %v1442 = vadd.f32 0.0, %v1441
    %v1443 = vpop.f32.mrf.mxu0
    %v1444 = vadd.f32 0.0, %v1443
    %1445 = vmatmul.bf16.gmra.mxu0 %v999
    %v1446 = vpop.f32.mrf.mxu0
    %v1447 = vadd.f32 0.0, %v1446
    %v1448 = vpop.f32.mrf.mxu0
    %v1449 = vadd.f32 0.0, %v1448
    %1450 = vmatmul.bf16.gmra.mxu0 %v1002
    %v1451 = vpop.f32.mrf.mxu0
    %v1452 = vadd.f32 0.0, %v1451
    %v1453 = vpop.f32.mrf.mxu0
    %v1454 = vadd.f32 0.0, %v1453
    %1455 = vmatmul.bf16.gmra.mxu0 %v1005
    %v1456 = vpop.f32.mrf.mxu0
    %v1457 = vadd.f32 0.0, %v1456
    %v1458 = vpop.f32.mrf.mxu0
    %v1459 = vadd.f32 0.0, %v1458
    %1460 = vmatmul.bf16.gmra.mxu0 %v1008
    %v1461 = vpop.f32.mrf.mxu0
    %v1462 = vadd.f32 0.0, %v1461
    %v1463 = vpop.f32.mrf.mxu0
    %v1464 = vadd.f32 0.0, %v1463
    %1465 = vmatmul.bf16.gmra.mxu0 %v1011
    %v1466 = vpop.f32.mrf.mxu0
    %v1467 = vadd.f32 0.0, %v1466
    %v1468 = vpop.f32.mrf.mxu0
    %v1469 = vadd.f32 0.0, %v1468
    %1470 = vmatmul.bf16.gmra.mxu0 %v1014
    %v1471 = vpop.f32.mrf.mxu0
    %v1472 = vadd.f32 0.0, %v1471
    %v1473 = vpop.f32.mrf.mxu0
    %v1474 = vadd.f32 0.0, %v1473
    %1475 = vmatmul.bf16.gmra.mxu0 %v1017
    %v1476 = vpop.f32.mrf.mxu0
    %v1477 = vadd.f32 0.0, %v1476
    %v1478 = vpop.f32.mrf.mxu0
    %v1479 = vadd.f32 0.0, %v1478
    %1480 = vmatmul.bf16.gmra.mxu0 %v1020
    %v1481 = vpop.f32.mrf.mxu0
    %v1482 = vadd.f32 0.0, %v1481
    %v1483 = vpop.f32.mrf.mxu0
    %v1484 = vadd.f32 0.0, %v1483
    %1485 = vmatmul.bf16.gmra.mxu0 %v1023
    %v1486 = vpop.f32.mrf.mxu0
    %v1487 = vadd.f32 0.0, %v1486
    %v1488 = vpop.f32.mrf.mxu0
    %v1489 = vadd.f32 0.0, %v1488
    %1490 = vmatmul.bf16.gmra.mxu0 %v1026
    %v1491 = vpop.f32.mrf.mxu0
    %v1492 = vadd.f32 0.0, %v1491
    %v1493 = vpop.f32.mrf.mxu0
    %v1494 = vadd.f32 0.0, %v1493
    %1495 = vmatmul.bf16.gmra.mxu0 %v1029
    %v1496 = vpop.f32.mrf.mxu0
    %v1497 = vadd.f32 0.0, %v1496
    %v1498 = vpop.f32.mrf.mxu0
    %v1499 = vadd.f32 0.0, %v1498
    %1500 = vmatmul.bf16.gmra.mxu0 %v1032
    %v1501 = vpop.f32.mrf.mxu0
    %v1502 = vadd.f32 0.0, %v1501
    %v1503 = vpop.f32.mrf.mxu0
    %v1504 = vadd.f32 0.0, %v1503
    %1505 = vmatmul.bf16.gmra.mxu0 %v1035
    %v1506 = vpop.f32.mrf.mxu0
    %v1507 = vadd.f32 0.0, %v1506
    %v1508 = vpop.f32.mrf.mxu0
    %v1509 = vadd.f32 0.0, %v1508
    %1510 = vmatmul.bf16.gmra.mxu0 %v1038
    %v1511 = vpop.f32.mrf.mxu0
    %v1512 = vadd.f32 0.0, %v1511
    %v1513 = vpop.f32.mrf.mxu0
    %v1514 = vadd.f32 0.0, %v1513
    %1515 = vmatmul.bf16.gmra.mxu0 %v1041
    %v1516 = vpop.f32.mrf.mxu0
    %v1517 = vadd.f32 0.0, %v1516
    %v1518 = vpop.f32.mrf.mxu0
    %v1519 = vadd.f32 0.0, %v1518
    %1520 = vmatmul.bf16.gmra.mxu0 %v1044
    %v1521 = vpop.f32.mrf.mxu0
    %v1522 = vadd.f32 0.0, %v1521
    %v1523 = vpop.f32.mrf.mxu0
    %v1524 = vadd.f32 0.0, %v1523
    %1525 = vmatmul.bf16.gmra.mxu0 %v1047
    %v1526 = vpop.f32.mrf.mxu0
    %v1527 = vadd.f32 0.0, %v1526
    %v1528 = vpop.f32.mrf.mxu0
    %v1529 = vadd.f32 0.0, %v1528
    %1530 = vmatmul.bf16.gmra.mxu0 %v1050
    %v1531 = vpop.f32.mrf.mxu0
    %v1532 = vadd.f32 0.0, %v1531
    %v1533 = vpop.f32.mrf.mxu0
    %v1534 = vadd.f32 0.0, %v1533
    %1535 = vmatmul.bf16.gmra.mxu0 %v1053
    %v1536 = vpop.f32.mrf.mxu0
    %v1537 = vadd.f32 0.0, %v1536
    %v1538 = vpop.f32.mrf.mxu0
    %v1539 = vadd.f32 0.0, %v1538
    %1540 = vmatmul.bf16.gmra.mxu0 %v1056
    %v1541 = vpop.f32.mrf.mxu0
    %v1542 = vadd.f32 0.0, %v1541
    %v1543 = vpop.f32.mrf.mxu0
    %v1544 = vadd.f32 0.0, %v1543
    %1545 = vmatmul.bf16.gmra.mxu0 %v1059
    %v1546 = vpop.f32.mrf.mxu0
    %v1547 = vadd.f32 0.0, %v1546
    %v1548 = vpop.f32.mrf.mxu0
    %v1549 = vadd.f32 0.0, %v1548
    %1550 = vmatmul.bf16.gmra.mxu0 %v1062
    %v1551 = vpop.f32.mrf.mxu0
    %v1552 = vadd.f32 0.0, %v1551
    %v1553 = vpop.f32.mrf.mxu0
    %v1554 = vadd.f32 0.0, %v1553
    %1555 = vmatmul.bf16.gmra.mxu0 %v1065
    %v1556 = vpop.f32.mrf.mxu0
    %v1557 = vadd.f32 0.0, %v1556
    %v1558 = vpop.f32.mrf.mxu0
    %v1559 = vadd.f32 0.0, %v1558
    %1560 = vmatmul.bf16.gmra.mxu0 %v1068
    %v1561 = vpop.f32.mrf.mxu0
    %v1562 = vadd.f32 0.0, %v1561
    %v1563 = vpop.f32.mrf.mxu0
    %v1564 = vadd.f32 0.0, %v1563
    %1565 = vmatmul.bf16.gmra.mxu0 %v1071
    %v1566 = vpop.f32.mrf.mxu0
    %v1567 = vadd.f32 0.0, %v1566
    %v1568 = vpop.f32.mrf.mxu0
    %v1569 = vadd.f32 0.0, %v1568
    %1570 = vmatmul.bf16.gmra.mxu0 %v1074
    %v1571 = vpop.f32.mrf.mxu0
    %v1572 = vadd.f32 0.0, %v1571
    %v1573 = vpop.f32.mrf.mxu0
    %v1574 = vadd.f32 0.0, %v1573
    %1575 = vmatmul.bf16.gmra.mxu0 %v1077
    %v1576 = vpop.f32.mrf.mxu0
    %v1577 = vadd.f32 0.0, %v1576
    %v1578 = vpop.f32.mrf.mxu0
    %v1579 = vadd.f32 0.0, %v1578
    %1580 = vmatmul.bf16.gmra.mxu0 %v1080
    %v1581 = vpop.f32.mrf.mxu0
    %v1582 = vadd.f32 0.0, %v1581
    %v1583 = vpop.f32.mrf.mxu0
    %v1584 = vadd.f32 0.0, %v1583
    %1585 = vmatmul.bf16.gmra.mxu0 %v1083
    %v1586 = vpop.f32.mrf.mxu0
    %v1587 = vadd.f32 0.0, %v1586
    %v1588 = vpop.f32.mrf.mxu0
    %v1589 = vadd.f32 0.0, %v1588
    %1590 = vmatmul.bf16.gmra.mxu0 %v1086
    %v1591 = vpop.f32.mrf.mxu0
    %v1592 = vadd.f32 0.0, %v1591
    %v1593 = vpop.f32.mrf.mxu0
    %v1594 = vadd.f32 0.0, %v1593
    %1595 = vmatmul.bf16.gmra.mxu0 %v1089
    %v1596 = vpop.f32.mrf.mxu0
    %v1597 = vadd.f32 0.0, %v1596
    %v1598 = vpop.f32.mrf.mxu0
    %v1599 = vadd.f32 0.0, %v1598
    %1600 = vmatmul.bf16.gmra.mxu0 %v1092
    %v1601 = vpop.f32.mrf.mxu0
    %v1602 = vadd.f32 0.0, %v1601
    %v1603 = vpop.f32.mrf.mxu0
    %v1604 = vadd.f32 0.0, %v1603
    %1605 = vmatmul.bf16.gmra.mxu0 %v1095
    %v1606 = vpop.f32.mrf.mxu0
    %v1607 = vadd.f32 0.0, %v1606
    %v1608 = vpop.f32.mrf.mxu0
    %v1609 = vadd.f32 0.0, %v1608
    %1610 = vmatmul.bf16.gmra.mxu0 %v1098
    %v1611 = vpop.f32.mrf.mxu0
    %v1612 = vadd.f32 0.0, %v1611
    %v1613 = vpop.f32.mrf.mxu0
    %v1614 = vadd.f32 0.0, %v1613
    %1615 = vmatmul.bf16.gmra.mxu0 %v1101
    %v1616 = vpop.f32.mrf.mxu0
    %v1617 = vadd.f32 0.0, %v1616
    %v1618 = vpop.f32.mrf.mxu0
    %v1619 = vadd.f32 0.0, %v1618
    %1620 = vmatmul.bf16.gmra.mxu0 %v1104
    %v1621 = vpop.f32.mrf.mxu0
    %v1622 = vadd.f32 0.0, %v1621
    %v1623 = vpop.f32.mrf.mxu0
    %v1624 = vadd.f32 0.0, %v1623
    %1625 = vmatmul.bf16.gmra.mxu0 %v1107
    %v1626 = vpop.f32.mrf.mxu0
    %v1627 = vadd.f32 0.0, %v1626
    %v1628 = vpop.f32.mrf.mxu0
    %v1629 = vadd.f32 0.0, %v1628
    %1630 = vmatmul.bf16.gmra.mxu0 %v1110
    %v1631 = vpop.f32.mrf.mxu0
    %v1632 = vadd.f32 0.0, %v1631
    %v1633 = vpop.f32.mrf.mxu0
    %v1634 = vadd.f32 0.0, %v1633
    %1635 = vmatmul.bf16.gmra.mxu0 %v1113
    %v1636 = vpop.f32.mrf.mxu0
    %v1637 = vadd.f32 0.0, %v1636
    %v1638 = vpop.f32.mrf.mxu0
    %v1639 = vadd.f32 0.0, %v1638
    %1640 = vmatmul.bf16.gmra.mxu0 %v1116
    %v1641 = vpop.f32.mrf.mxu0
    %v1642 = vadd.f32 0.0, %v1641
    %v1643 = vpop.f32.mrf.mxu0
    %v1644 = vadd.f32 0.0, %v1643
    %1645 = vmatmul.bf16.gmra.mxu0 %v1119
    %v1646 = vpop.f32.mrf.mxu0
    %v1647 = vadd.f32 0.0, %v1646
    %v1648 = vpop.f32.mrf.mxu0
    %v1649 = vadd.f32 0.0, %v1648
    %1650 = vmatmul.bf16.gmra.mxu0 %v1122
    %v1651 = vpop.f32.mrf.mxu0
    %v1652 = vadd.f32 0.0, %v1651
    %v1653 = vpop.f32.mrf.mxu0
    %v1654 = vadd.f32 0.0, %v1653
    %1655 = vmatmul.bf16.gmra.mxu0 %v1125
    %v1656 = vpop.f32.mrf.mxu0
    %v1657 = vadd.f32 0.0, %v1656
    %v1658 = vpop.f32.mrf.mxu0
    %v1659 = vadd.f32 0.0, %v1658
    %1660 = vmatmul.bf16.gmra.mxu0 %v1128
    %v1661 = vpop.f32.mrf.mxu0
    %v1662 = vadd.f32 0.0, %v1661
    %v1663 = vpop.f32.mrf.mxu0
    %v1664 = vadd.f32 0.0, %v1663
    %1665 = vmatmul.bf16.gmra.mxu0 %v1131
    %v1666 = vpop.f32.mrf.mxu0
    %v1667 = vadd.f32 0.0, %v1666
    %v1668 = vpop.f32.mrf.mxu0
    %v1669 = vadd.f32 0.0, %v1668
    %1670 = vmatmul.bf16.gmra.mxu0 %v1134
    %v1671 = vpop.f32.mrf.mxu0
    %v1672 = vadd.f32 0.0, %v1671
    %v1673 = vpop.f32.mrf.mxu0
    %v1674 = vadd.f32 0.0, %v1673
    %1675 = vmatmul.bf16.gmra.mxu0 %v1137
    %v1676 = vpop.f32.mrf.mxu0
    %v1677 = vadd.f32 0.0, %v1676
    %v1678 = vpop.f32.mrf.mxu0
    %v1679 = vadd.f32 0.0, %v1678
    %1680 = vmatmul.bf16.gmra.mxu0 %v1140
    %v1681 = vpop.f32.mrf.mxu0
    %v1682 = vadd.f32 0.0, %v1681
    %v1683 = vpop.f32.mrf.mxu0
    %v1684 = vadd.f32 0.0, %v1683
    %1685 = vmatmul.bf16.gmra.mxu0 %v1143
    %v1686 = vpop.f32.mrf.mxu0
    %v1687 = vadd.f32 0.0, %v1686
    %v1688 = vpop.f32.mrf.mxu0
    %v1689 = vadd.f32 0.0, %v1688
    %1690 = vmatmul.bf16.gmra.mxu0 %v1146
    %v1691 = vpop.f32.mrf.mxu0
    %v1692 = vadd.f32 0.0, %v1691
    %v1693 = vpop.f32.mrf.mxu0
    %v1694 = vadd.f32 0.0, %v1693
    %1695 = vmatmul.bf16.gmra.mxu0 %v1149
    %v1696 = vpop.f32.mrf.mxu0
    %v1697 = vadd.f32 0.0, %v1696
    %v1698 = vpop.f32.mrf.mxu0
    %v1699 = vadd.f32 0.0, %v1698
    %1700 = vmatmul.bf16.gmra.mxu0 %v1152
    %v1701 = vpop.f32.mrf.mxu0
    %v1702 = vadd.f32 0.0, %v1701
    %v1703 = vpop.f32.mrf.mxu0
    %v1704 = vadd.f32 0.0, %v1703
    %1705 = vmatmul.bf16.gmra.mxu0 %v1155
    %v1706 = vpop.f32.mrf.mxu0
    %v1707 = vadd.f32 0.0, %v1706
    %v1708 = vpop.f32.mrf.mxu0
    %v1709 = vadd.f32 0.0, %v1708
    %1710 = vmatmul.bf16.gmra.mxu0 %v1158
    %v1711 = vpop.f32.mrf.mxu0
    %v1712 = vadd.f32 0.0, %v1711
    %v1713 = vpop.f32.mrf.mxu0
    %v1714 = vadd.f32 0.0, %v1713
    %1715 = vmatmul.bf16.gmra.mxu0 %v1161
    %v1716 = vpop.f32.mrf.mxu0
    %v1717 = vadd.f32 0.0, %v1716
    %v1718 = vpop.f32.mrf.mxu0
    %v1719 = vadd.f32 0.0, %v1718
    %1720 = vmatmul.bf16.gmra.mxu0 %v1164
    %v1721 = vpop.f32.mrf.mxu0
    %v1722 = vadd.f32 0.0, %v1721
    %v1723 = vpop.f32.mrf.mxu0
    %v1724 = vadd.f32 0.0, %v1723
    %1725 = vmatmul.bf16.gmra.mxu0 %v1167
    %v1726 = vpop.f32.mrf.mxu0
    %v1727 = vadd.f32 0.0, %v1726
    %v1728 = vpop.f32.mrf.mxu0
    %v1729 = vadd.f32 0.0, %v1728
    %1730 = vmatmul.bf16.gmra.mxu0 %v1170
    %v1731 = vpop.f32.mrf.mxu0
    %v1732 = vadd.f32 0.0, %v1731
    %v1733 = vpop.f32.mrf.mxu0
    %v1734 = vadd.f32 0.0, %v1733
    %1735 = vmatmul.bf16.gmra.mxu0 %v1173
    %v1736 = vpop.f32.mrf.mxu0
    %v1737 = vadd.f32 0.0, %v1736
    %v1738 = vpop.f32.mrf.mxu0
    %v1739 = vadd.f32 0.0, %v1738
    %1740 = vmatmul.bf16.gmra.mxu0 %v1176
    %v1741 = vpop.f32.mrf.mxu0
    %v1742 = vadd.f32 0.0, %v1741
    %v1743 = vpop.f32.mrf.mxu0
    %v1744 = vadd.f32 0.0, %v1743
    %1745 = vmatmul.bf16.gmra.mxu0 %v1179
    %v1746 = vpop.f32.mrf.mxu0
    %v1747 = vadd.f32 0.0, %v1746
    %v1748 = vpop.f32.mrf.mxu0
    %v1749 = vadd.f32 0.0, %v1748
    %1750 = vmatmul.bf16.gmra.mxu0 %v1182
    %v1751 = vpop.f32.mrf.mxu0
    %v1752 = vadd.f32 0.0, %v1751
    %v1753 = vpop.f32.mrf.mxu0
    %v1754 = vadd.f32 0.0, %v1753
    %1755 = vmatmul.bf16.gmra.mxu0 %v1185
    %v1756 = vpop.f32.mrf.mxu0
    %v1757 = vadd.f32 0.0, %v1756
    %v1758 = vpop.f32.mrf.mxu0
    %v1759 = vadd.f32 0.0, %v1758
    %1760 = vmatmul.bf16.gmra.mxu0 %v1188
    %v1761 = vpop.f32.mrf.mxu0
    %v1762 = vadd.f32 0.0, %v1761
    %v1763 = vpop.f32.mrf.mxu0
    %v1764 = vadd.f32 0.0, %v1763
    %1765 = vmatmul.bf16.gmra.mxu0 %v1191
    %v1766 = vpop.f32.mrf.mxu0
    %v1767 = vadd.f32 0.0, %v1766
    %v1768 = vpop.f32.mrf.mxu0
    %v1769 = vadd.f32 0.0, %v1768
    %1770 = vmatmul.bf16.gmra.mxu0 %v1194
    %v1771 = vpop.f32.mrf.mxu0
    %v1772 = vadd.f32 0.0, %v1771
    %v1773 = vpop.f32.mrf.mxu0
    %v1774 = vadd.f32 0.0, %v1773
    %1775 = vmatmul.bf16.gmra.mxu0 %v1197
    %v1776 = vpop.f32.mrf.mxu0
    %v1777 = vadd.f32 0.0, %v1776
    %v1778 = vpop.f32.mrf.mxu0
    %v1779 = vadd.f32 0.0, %v1778
    %1780 = vmatmul.bf16.gmra.mxu0 %v1200
    %v1781 = vpop.f32.mrf.mxu0
    %v1782 = vadd.f32 0.0, %v1781
    %v1783 = vpop.f32.mrf.mxu0
    %v1784 = vadd.f32 0.0, %v1783
    %1785 = vmatmul.bf16.gmra.mxu0 %v1203
    %v1786 = vpop.f32.mrf.mxu0
    %v1787 = vadd.f32 0.0, %v1786
    %v1788 = vpop.f32.mrf.mxu0
    %v1789 = vadd.f32 0.0, %v1788
    %1790 = vmatmul.bf16.gmra.mxu0 %v1206
    %v1791 = vpop.f32.mrf.mxu0
    %v1792 = vadd.f32 0.0, %v1791
    %v1793 = vpop.f32.mrf.mxu0
    %v1794 = vadd.f32 0.0, %v1793
    %1795 = vmatmul.bf16.gmra.mxu0 %v1209
    %v1796 = vpop.f32.mrf.mxu0
    %v1797 = vadd.f32 0.0, %v1796
    %v1798 = vpop.f32.mrf.mxu0
    %v1799 = vadd.f32 0.0, %v1798
    %1800 = vmatmul.bf16.gmra.mxu0 %v1212
    %v1801 = vpop.f32.mrf.mxu0
    %v1802 = vadd.f32 0.0, %v1801
    %v1803 = vpop.f32.mrf.mxu0
    %v1804 = vadd.f32 0.0, %v1803
    %1805 = vmatmul.bf16.gmra.mxu0 %v1215
    %v1806 = vpop.f32.mrf.mxu0
    %v1807 = vadd.f32 0.0, %v1806
    %v1808 = vpop.f32.mrf.mxu0
    %v1809 = vadd.f32 0.0, %v1808
    %1810 = vmatmul.bf16.gmra.mxu0 %v1218
    %v1811 = vpop.f32.mrf.mxu0
    %v1812 = vadd.f32 0.0, %v1811
    %v1813 = vpop.f32.mrf.mxu0
    %v1814 = vadd.f32 0.0, %v1813
    %1815 = vmatmul.bf16.gmra.mxu0 %v1221
    %v1816 = vpop.f32.mrf.mxu0
    %v1817 = vadd.f32 0.0, %v1816
    %v1818 = vpop.f32.mrf.mxu0
    %v1819 = vadd.f32 0.0, %v1818
    %1820 = vmatmul.bf16.gmra.mxu0 %v1224
    %v1821 = vpop.f32.mrf.mxu0
    %v1822 = vadd.f32 0.0, %v1821
    %v1823 = vpop.f32.mrf.mxu0
    %v1824 = vadd.f32 0.0, %v1823
    %1825 = vmatmul.bf16.gmra.mxu0 %v1227
    %v1826 = vpop.f32.mrf.mxu0
    %v1827 = vadd.f32 0.0, %v1826
    %v1828 = vpop.f32.mrf.mxu0
    %v1829 = vadd.f32 0.0, %v1828
    %1830 = vmatmul.bf16.gmra.mxu0 %v1230
    %v1831 = vpop.f32.mrf.mxu0
    %v1832 = vadd.f32 0.0, %v1831
    %v1833 = vpop.f32.mrf.mxu0
    %v1834 = vadd.f32 0.0, %v1833
    %1835 = vmatmul.bf16.gmra.mxu0 %v1233
    %v1836 = vpop.f32.mrf.mxu0
    %v1837 = vadd.f32 0.0, %v1836
    %v1838 = vpop.f32.mrf.mxu0
    %v1839 = vadd.f32 0.0, %v1838
    %1840 = vmatmul.bf16.gmra.mxu0 %v1236
    %v1841 = vpop.f32.mrf.mxu0
    %v1842 = vadd.f32 0.0, %v1841
    %v1843 = vpop.f32.mrf.mxu0
    %v1844 = vadd.f32 0.0, %v1843
    %1845 = vmatmul.bf16.gmra.mxu0 %v1239
    %v1846 = vpop.f32.mrf.mxu0
    %v1847 = vadd.f32 0.0, %v1846
    %v1848 = vpop.f32.mrf.mxu0
    %v1849 = vadd.f32 0.0, %v1848
    %1850 = vmatmul.bf16.gmra.mxu0 %v1242
    %v1851 = vpop.f32.mrf.mxu0
    %v1852 = vadd.f32 0.0, %v1851
    %v1853 = vpop.f32.mrf.mxu0
    %v1854 = vadd.f32 0.0, %v1853
    %1855 = vmatmul.bf16.gmra.mxu0 %v1245
    %v1856 = vpop.f32.mrf.mxu0
    %v1857 = vadd.f32 0.0, %v1856
    %v1858 = vpop.f32.mrf.mxu0
    %v1859 = vadd.f32 0.0, %v1858
    %1860 = vmatmul.bf16.gmra.mxu0 %v1248
    %v1861 = vpop.f32.mrf.mxu0
    %v1862 = vadd.f32 0.0, %v1861
    %v1863 = vpop.f32.mrf.mxu0
    %v1864 = vadd.f32 0.0, %v1863
    %1865 = vdwg.mxu0
    %v1866 = vmax.f32 %v1267, %v1417
    %v1867 = vmax.f32 %v1269, %v1419
    %v1868 = vmax.f32 %v1272, %v1422
    %v1869 = vmax.f32 %v1274, %v1424
    %v1870 = vmax.f32 %v1277, %v1427
    %v1871 = vmax.f32 %v1279, %v1429
    %v1872 = vmax.f32 %v1282, %v1432
    %v1873 = vmax.f32 %v1284, %v1434
    %v1874 = vmax.f32 %v1287, %v1437
    %v1875 = vmax.f32 %v1289, %v1439
    %v1876 = vmax.f32 %v1292, %v1442
    %v1877 = vmax.f32 %v1294, %v1444
    %v1878 = vmax.f32 %v1297, %v1447
    %v1879 = vmax.f32 %v1299, %v1449
    %v1880 = vmax.f32 %v1302, %v1452
    %v1881 = vmax.f32 %v1304, %v1454
    %v1882 = vmax.f32 %v1307, %v1457
    %v1883 = vmax.f32 %v1309, %v1459
    %v1884 = vmax.f32 %v1312, %v1462
    %v1885 = vmax.f32 %v1314, %v1464
    %v1886 = vmax.f32 %v1317, %v1467
    %v1887 = vmax.f32 %v1319, %v1469
    %v1888 = vmax.f32 %v1322, %v1472
    %v1889 = vmax.f32 %v1324, %v1474
    %v1890 = vmax.f32 %v1327, %v1477
    %v1891 = vmax.f32 %v1329, %v1479
    %v1892 = vmax.f32 %v1332, %v1482
    %v1893 = vmax.f32 %v1334, %v1484
    %v1894 = vmax.f32 %v1337, %v1487
    %v1895 = vmax.f32 %v1339, %v1489
    %v1896 = vmax.f32 %v1342, %v1492
    %v1897 = vmax.f32 %v1344, %v1494
    %v1898 = vmax.f32 %v1347, %v1497
    %v1899 = vmax.f32 %v1349, %v1499
    %v1900 = vmax.f32 %v1352, %v1502
    %v1901 = vmax.f32 %v1354, %v1504
    %v1902 = vmax.f32 %v1357, %v1507
    %v1903 = vmax.f32 %v1359, %v1509
    %v1904 = vmax.f32 %v1362, %v1512
    %v1905 = vmax.f32 %v1364, %v1514
    %v1906 = vmax.f32 %v1367, %v1517
    %v1907 = vmax.f32 %v1369, %v1519
    %v1908 = vmax.f32 %v1372, %v1522
    %v1909 = vmax.f32 %v1374, %v1524
    %v1910 = vmax.f32 %v1377, %v1527
    %v1911 = vmax.f32 %v1379, %v1529
    %v1912 = vmax.f32 %v1382, %v1532
    %v1913 = vmax.f32 %v1384, %v1534
    %v1914 = vmax.f32 %v1387, %v1537
    %v1915 = vmax.f32 %v1389, %v1539
    %v1916 = vmax.f32 %v1392, %v1542
    %v1917 = vmax.f32 %v1394, %v1544
    %v1918 = vmax.f32 %v1397, %v1547
    %v1919 = vmax.f32 %v1399, %v1549
    %v1920 = vmax.f32 %v1402, %v1552
    %v1921 = vmax.f32 %v1404, %v1554
    %v1922 = vmax.f32 %v1407, %v1557
    %v1923 = vmax.f32 %v1409, %v1559
    %v1924 = vmax.f32 %v1412, %v1562
    %v1925 = vmax.f32 %v1414, %v1564
    %v1926 = vmax.f32 %v1567, %v1717
    %v1927 = vmax.f32 %v1569, %v1719
    %v1928 = vmax.f32 %v1572, %v1722
    %v1929 = vmax.f32 %v1574, %v1724
    %v1930 = vmax.f32 %v1577, %v1727
    %v1931 = vmax.f32 %v1579, %v1729
    %v1932 = vmax.f32 %v1582, %v1732
    %v1933 = vmax.f32 %v1584, %v1734
    %v1934 = vmax.f32 %v1587, %v1737
    %v1935 = vmax.f32 %v1589, %v1739
    %v1936 = vmax.f32 %v1592, %v1742
    %v1937 = vmax.f32 %v1594, %v1744
    %v1938 = vmax.f32 %v1597, %v1747
    %v1939 = vmax.f32 %v1599, %v1749
    %v1940 = vmax.f32 %v1602, %v1752
    %v1941 = vmax.f32 %v1604, %v1754
    %v1942 = vmax.f32 %v1607, %v1757
    %v1943 = vmax.f32 %v1609, %v1759
    %v1944 = vmax.f32 %v1612, %v1762
    %v1945 = vmax.f32 %v1614, %v1764
    %v1946 = vmax.f32 %v1617, %v1767
    %v1947 = vmax.f32 %v1619, %v1769
    %v1948 = vmax.f32 %v1622, %v1772
    %v1949 = vmax.f32 %v1624, %v1774
    %v1950 = vmax.f32 %v1627, %v1777
    %v1951 = vmax.f32 %v1629, %v1779
    %v1952 = vmax.f32 %v1632, %v1782
    %v1953 = vmax.f32 %v1634, %v1784
    %v1954 = vmax.f32 %v1637, %v1787
    %v1955 = vmax.f32 %v1639, %v1789
    %v1956 = vmax.f32 %v1642, %v1792
    %v1957 = vmax.f32 %v1644, %v1794
    %v1958 = vmax.f32 %v1647, %v1797
    %v1959 = vmax.f32 %v1649, %v1799
    %v1960 = vmax.f32 %v1652, %v1802
    %v1961 = vmax.f32 %v1654, %v1804
    %v1962 = vmax.f32 %v1657, %v1807
    %v1963 = vmax.f32 %v1659, %v1809
    %v1964 = vmax.f32 %v1662, %v1812
    %v1965 = vmax.f32 %v1664, %v1814
    %v1966 = vmax.f32 %v1667, %v1817
    %v1967 = vmax.f32 %v1669, %v1819
    %v1968 = vmax.f32 %v1672, %v1822
    %v1969 = vmax.f32 %v1674, %v1824
    %v1970 = vmax.f32 %v1677, %v1827
    %v1971 = vmax.f32 %v1679, %v1829
    %v1972 = vmax.f32 %v1682, %v1832
    %v1973 = vmax.f32 %v1684, %v1834
    %v1974 = vmax.f32 %v1687, %v1837
    %v1975 = vmax.f32 %v1689, %v1839
    %v1976 = vmax.f32 %v1692, %v1842
    %v1977 = vmax.f32 %v1694, %v1844
    %v1978 = vmax.f32 %v1697, %v1847
    %v1979 = vmax.f32 %v1699, %v1849
    %v1980 = vmax.f32 %v1702, %v1852
    %v1981 = vmax.f32 %v1704, %v1854
    %v1982 = vmax.f32 %v1707, %v1857
    %v1983 = vmax.f32 %v1709, %v1859
    %v1984 = vmax.f32 %v1712, %v1862
    %v1985 = vmax.f32 %v1714, %v1864
    %v1986 = vmax.f32 %v1866, %v1926
    %v1987 = vmax.f32 %v1867, %v1927
    %v1988 = vmax.f32 %v1868, %v1928
    %v1989 = vmax.f32 %v1869, %v1929
    %v1990 = vmax.f32 %v1870, %v1930
    %v1991 = vmax.f32 %v1871, %v1931
    %v1992 = vmax.f32 %v1872, %v1932
    %v1993 = vmax.f32 %v1873, %v1933
    %v1994 = vmax.f32 %v1874, %v1934
    %v1995 = vmax.f32 %v1875, %v1935
    %v1996 = vmax.f32 %v1876, %v1936
    %v1997 = vmax.f32 %v1877, %v1937
    %v1998 = vmax.f32 %v1878, %v1938
    %v1999 = vmax.f32 %v1879, %v1939
    %v2000 = vmax.f32 %v1880, %v1940
    %v2001 = vmax.f32 %v1881, %v1941
    %v2002 = vmax.f32 %v1882, %v1942
    %v2003 = vmax.f32 %v1883, %v1943
    %v2004 = vmax.f32 %v1884, %v1944
    %v2005 = vmax.f32 %v1885, %v1945
    %v2006 = vmax.f32 %v1886, %v1946
    %v2007 = vmax.f32 %v1887, %v1947
    %v2008 = vmax.f32 %v1888, %v1948
    %v2009 = vmax.f32 %v1889, %v1949
    %v2010 = vmax.f32 %v1890, %v1950
    %v2011 = vmax.f32 %v1891, %v1951
    %v2012 = vmax.f32 %v1892, %v1952
    %v2013 = vmax.f32 %v1893, %v1953
    %v2014 = vmax.f32 %v1894, %v1954
    %v2015 = vmax.f32 %v1895, %v1955
    %v2016 = vmax.f32 %v1896, %v1956
    %v2017 = vmax.f32 %v1897, %v1957
    %v2018 = vmax.f32 %v1898, %v1958
    %v2019 = vmax.f32 %v1899, %v1959
    %v2020 = vmax.f32 %v1900, %v1960
    %v2021 = vmax.f32 %v1901, %v1961
    %v2022 = vmax.f32 %v1902, %v1962
    %v2023 = vmax.f32 %v1903, %v1963
    %v2024 = vmax.f32 %v1904, %v1964
    %v2025 = vmax.f32 %v1905, %v1965
    %v2026 = vmax.f32 %v1906, %v1966
    %v2027 = vmax.f32 %v1907, %v1967
    %v2028 = vmax.f32 %v1908, %v1968
    %v2029 = vmax.f32 %v1909, %v1969
    %v2030 = vmax.f32 %v1910, %v1970
    %v2031 = vmax.f32 %v1911, %v1971
    %v2032 = vmax.f32 %v1912, %v1972
    %v2033 = vmax.f32 %v1913, %v1973
    %v2034 = vmax.f32 %v1914, %v1974
    %v2035 = vmax.f32 %v1915, %v1975
    %v2036 = vmax.f32 %v1916, %v1976
    %v2037 = vmax.f32 %v1917, %v1977
    %v2038 = vmax.f32 %v1918, %v1978
    %v2039 = vmax.f32 %v1919, %v1979
    %v2040 = vmax.f32 %v1920, %v1980
    %v2041 = vmax.f32 %v1921, %v1981
    %v2042 = vmax.f32 %v1922, %v1982
    %v2043 = vmax.f32 %v1923, %v1983
    %v2044 = vmax.f32 %v1924, %v1984
    %v2045 = vmax.f32 %v1925, %v1985
    %v2046 = vld [vmem:[%s2] sm:$0x1]
    %v2048 = vperm.slane %v2046, 0
    %v2050 = vadd.f32 %v1986, %v2048
    %v2051 = vadd.f32 %v1987, %v2048
    %v2052 = vadd.f32 %v1988, %v2048
    %v2053 = vadd.f32 %v1989, %v2048
    %v2054 = vadd.f32 %v1990, %v2048
    %v2055 = vadd.f32 %v1991, %v2048
    %v2056 = vadd.f32 %v1992, %v2048
    %v2057 = vadd.f32 %v1993, %v2048
    %v2058 = vadd.f32 %v1994, %v2048
    %v2059 = vadd.f32 %v1995, %v2048
    %v2060 = vadd.f32 %v1996, %v2048
    %v2061 = vadd.f32 %v1997, %v2048
    %v2062 = vadd.f32 %v1998, %v2048
    %v2063 = vadd.f32 %v1999, %v2048
    %v2064 = vadd.f32 %v2000, %v2048
    %v2065 = vadd.f32 %v2001, %v2048
    %v2066 = vadd.f32 %v2002, %v2048
    %v2067 = vadd.f32 %v2003, %v2048
    %v2068 = vadd.f32 %v2004, %v2048
    %v2069 = vadd.f32 %v2005, %v2048
    %v2070 = vadd.f32 %v2006, %v2048
    %v2071 = vadd.f32 %v2007, %v2048
    %v2072 = vadd.f32 %v2008, %v2048
    %v2073 = vadd.f32 %v2009, %v2048
    %v2074 = vadd.f32 %v2010, %v2048
    %v2075 = vadd.f32 %v2011, %v2048
    %v2076 = vadd.f32 %v2012, %v2048
    %v2077 = vadd.f32 %v2013, %v2048
    %v2078 = vadd.f32 %v2014, %v2048
    %v2079 = vadd.f32 %v2015, %v2048
    %v2080 = vadd.f32 %v2016, %v2048
    %v2081 = vadd.f32 %v2017, %v2048
    %v2082 = vadd.f32 %v2018, %v2048
    %v2083 = vadd.f32 %v2019, %v2048
    %v2084 = vadd.f32 %v2020, %v2048
    %v2085 = vadd.f32 %v2021, %v2048
    %v2086 = vadd.f32 %v2022, %v2048
    %v2087 = vadd.f32 %v2023, %v2048
    %v2088 = vadd.f32 %v2024, %v2048
    %v2089 = vadd.f32 %v2025, %v2048
    %v2090 = vadd.f32 %v2026, %v2048
    %v2091 = vadd.f32 %v2027, %v2048
    %v2092 = vadd.f32 %v2028, %v2048
    %v2093 = vadd.f32 %v2029, %v2048
    %v2094 = vadd.f32 %v2030, %v2048
    %v2095 = vadd.f32 %v2031, %v2048
    %v2096 = vadd.f32 %v2032, %v2048
    %v2097 = vadd.f32 %v2033, %v2048
    %v2098 = vadd.f32 %v2034, %v2048
    %v2099 = vadd.f32 %v2035, %v2048
    %v2100 = vadd.f32 %v2036, %v2048
    %v2101 = vadd.f32 %v2037, %v2048
    %v2102 = vadd.f32 %v2038, %v2048
    %v2103 = vadd.f32 %v2039, %v2048
    %v2104 = vadd.f32 %v2040, %v2048
    %v2105 = vadd.f32 %v2041, %v2048
    %v2106 = vadd.f32 %v2042, %v2048
    %v2107 = vadd.f32 %v2043, %v2048
    %v2108 = vadd.f32 %v2044, %v2048
    %v2109 = vadd.f32 %v2045, %v2048
    %v2110 = vmax.f32 %v2050, 0.0
    %v2111 = vmax.f32 %v2051, 0.0
    %v2112 = vmax.f32 %v2052, 0.0
    %v2113 = vmax.f32 %v2053, 0.0
    %v2114 = vmax.f32 %v2054, 0.0
    %v2115 = vmax.f32 %v2055, 0.0
    %v2116 = vmax.f32 %v2056, 0.0
    %v2117 = vmax.f32 %v2057, 0.0
    %v2118 = vmax.f32 %v2058, 0.0
    %v2119 = vmax.f32 %v2059, 0.0
    %v2120 = vmax.f32 %v2060, 0.0
    %v2121 = vmax.f32 %v2061, 0.0
    %v2122 = vmax.f32 %v2062, 0.0
    %v2123 = vmax.f32 %v2063, 0.0
    %v2124 = vmax.f32 %v2064, 0.0
    %v2125 = vmax.f32 %v2065, 0.0
    %v2126 = vmax.f32 %v2066, 0.0
    %v2127 = vmax.f32 %v2067, 0.0
    %v2128 = vmax.f32 %v2068, 0.0
    %v2129 = vmax.f32 %v2069, 0.0
    %v2130 = vmax.f32 %v2070, 0.0
    %v2131 = vmax.f32 %v2071, 0.0
    %v2132 = vmax.f32 %v2072, 0.0
    %v2133 = vmax.f32 %v2073, 0.0
    %v2134 = vmax.f32 %v2074, 0.0
    %v2135 = vmax.f32 %v2075, 0.0
    %v2136 = vmax.f32 %v2076, 0.0
    %v2137 = vmax.f32 %v2077, 0.0
    %v2138 = vmax.f32 %v2078, 0.0
    %v2139 = vmax.f32 %v2079, 0.0
    %v2140 = vmax.f32 %v2080, 0.0
    %v2141 = vmax.f32 %v2081, 0.0
    %v2142 = vmax.f32 %v2082, 0.0
    %v2143 = vmax.f32 %v2083, 0.0
    %v2144 = vmax.f32 %v2084, 0.0
    %v2145 = vmax.f32 %v2085, 0.0
    %v2146 = vmax.f32 %v2086, 0.0
    %v2147 = vmax.f32 %v2087, 0.0
    %v2148 = vmax.f32 %v2088, 0.0
    %v2149 = vmax.f32 %v2089, 0.0
    %v2150 = vmax.f32 %v2090, 0.0
    %v2151 = vmax.f32 %v2091, 0.0
    %v2152 = vmax.f32 %v2092, 0.0
    %v2153 = vmax.f32 %v2093, 0.0
    %v2154 = vmax.f32 %v2094, 0.0
    %v2155 = vmax.f32 %v2095, 0.0
    %v2156 = vmax.f32 %v2096, 0.0
    %v2157 = vmax.f32 %v2097, 0.0
    %v2158 = vmax.f32 %v2098, 0.0
    %v2159 = vmax.f32 %v2099, 0.0
    %v2160 = vmax.f32 %v2100, 0.0
    %v2161 = vmax.f32 %v2101, 0.0
    %v2162 = vmax.f32 %v2102, 0.0
    %v2163 = vmax.f32 %v2103, 0.0
    %v2164 = vmax.f32 %v2104, 0.0
    %v2165 = vmax.f32 %v2105, 0.0
    %v2166 = vmax.f32 %v2106, 0.0
    %v2167 = vmax.f32 %v2107, 0.0
    %v2168 = vmax.f32 %v2108, 0.0
    %v2169 = vmax.f32 %v2109, 0.0
    %v2170 = vpack.c.bf16 %v2110, %v2110
    %v2171 = vpack.c.bf16 %v2111, %v2111
    %v2172 = vpack.c.bf16 %v2112, %v2112
    %v2173 = vpack.c.bf16 %v2113, %v2113
    %v2174 = vpack.c.bf16 %v2114, %v2114
    %v2175 = vpack.c.bf16 %v2115, %v2115
    %v2176 = vpack.c.bf16 %v2116, %v2116
    %v2177 = vpack.c.bf16 %v2117, %v2117
    %v2178 = vpack.c.bf16 %v2118, %v2118
    %v2179 = vpack.c.bf16 %v2119, %v2119
    %v2180 = vpack.c.bf16 %v2120, %v2120
    %v2181 = vpack.c.bf16 %v2121, %v2121
    %v2182 = vpack.c.bf16 %v2122, %v2122
    %v2183 = vpack.c.bf16 %v2123, %v2123
    %v2184 = vpack.c.bf16 %v2124, %v2124
    %v2185 = vpack.c.bf16 %v2125, %v2125
    %v2186 = vpack.c.bf16 %v2126, %v2126
    %v2187 = vpack.c.bf16 %v2127, %v2127
    %v2188 = vpack.c.bf16 %v2128, %v2128
    %v2189 = vpack.c.bf16 %v2129, %v2129
    %v2190 = vpack.c.bf16 %v2130, %v2130
    %v2191 = vpack.c.bf16 %v2131, %v2131
    %v2192 = vpack.c.bf16 %v2132, %v2132
    %v2193 = vpack.c.bf16 %v2133, %v2133
    %v2194 = vpack.c.bf16 %v2134, %v2134
    %v2195 = vpack.c.bf16 %v2135, %v2135
    %v2196 = vpack.c.bf16 %v2136, %v2136
    %v2197 = vpack.c.bf16 %v2137, %v2137
    %v2198 = vpack.c.bf16 %v2138, %v2138
    %v2199 = vpack.c.bf16 %v2139, %v2139
    %v2200 = vpack.c.bf16 %v2140, %v2140
    %v2201 = vpack.c.bf16 %v2141, %v2141
    %v2202 = vpack.c.bf16 %v2142, %v2142
    %v2203 = vpack.c.bf16 %v2143, %v2143
    %v2204 = vpack.c.bf16 %v2144, %v2144
    %v2205 = vpack.c.bf16 %v2145, %v2145
    %v2206 = vpack.c.bf16 %v2146, %v2146
    %v2207 = vpack.c.bf16 %v2147, %v2147
    %v2208 = vpack.c.bf16 %v2148, %v2148
    %v2209 = vpack.c.bf16 %v2149, %v2149
    %v2210 = vpack.c.bf16 %v2150, %v2150
    %v2211 = vpack.c.bf16 %v2151, %v2151
    %v2212 = vpack.c.bf16 %v2152, %v2152
    %v2213 = vpack.c.bf16 %v2153, %v2153
    %v2214 = vpack.c.bf16 %v2154, %v2154
    %v2215 = vpack.c.bf16 %v2155, %v2155
    %v2216 = vpack.c.bf16 %v2156, %v2156
    %v2217 = vpack.c.bf16 %v2157, %v2157
    %v2218 = vpack.c.bf16 %v2158, %v2158
    %v2219 = vpack.c.bf16 %v2159, %v2159
    %v2220 = vpack.c.bf16 %v2160, %v2160
    %v2221 = vpack.c.bf16 %v2161, %v2161
    %v2222 = vpack.c.bf16 %v2162, %v2162
    %v2223 = vpack.c.bf16 %v2163, %v2163
    %v2224 = vpack.c.bf16 %v2164, %v2164
    %v2225 = vpack.c.bf16 %v2165, %v2165
    %v2226 = vpack.c.bf16 %v2166, %v2166
    %v2227 = vpack.c.bf16 %v2167, %v2167
    %v2228 = vpack.c.bf16 %v2168, %v2168
    %v2229 = vpack.c.bf16 %v2169, %v2169
    %v2230 = vpack.c.bf16 0.0, 0.0
    %v2255 = vunpack.c.l.b16 %v2170
    %v2256 = vunpack.c.l.b16 %v2171
    %v2257 = vunpack.c.l.b16 %v2172
    %v2258 = vunpack.c.l.b16 %v2173
    %v2259 = vunpack.c.l.b16 %v2174
    %v2260 = vunpack.c.l.b16 %v2175
    %v2261 = vunpack.c.l.b16 %v2176
    %v2262 = vunpack.c.l.b16 %v2177
    %v2263 = vunpack.c.l.b16 %v2178
    %v2264 = vunpack.c.l.b16 %v2179
    %v2265 = vunpack.c.l.b16 %v2180
    %v2266 = vunpack.c.l.b16 %v2181
    %v2267 = vunpack.c.l.b16 %v2182
    %v2268 = vunpack.c.l.b16 %v2183
    %v2269 = vunpack.c.l.b16 %v2184
    %v2270 = vunpack.c.l.b16 %v2185
    %v2271 = vunpack.c.l.b16 %v2186
    %v2272 = vunpack.c.l.b16 %v2187
    %v2273 = vunpack.c.l.b16 %v2188
    %v2274 = vunpack.c.l.b16 %v2189
    %v2275 = vunpack.c.l.b16 %v2190
    %v2276 = vunpack.c.l.b16 %v2191
    %v2277 = vunpack.c.l.b16 %v2192
    %v2278 = vunpack.c.l.b16 %v2193
    %v2279 = vpack.c.b16 %v2256, %v2255
    %v2280 = vpack.c.b16 %v2258, %v2257
    %v2281 = vpack.c.b16 %v2260, %v2259
    %v2282 = vpack.c.b16 %v2262, %v2261
    %v2283 = vpack.c.b16 %v2264, %v2263
    %v2284 = vpack.c.b16 %v2266, %v2265
    %v2285 = vpack.c.b16 %v2268, %v2267
    %v2286 = vpack.c.b16 %v2270, %v2269
    %v2287 = vpack.c.b16 %v2272, %v2271
    %v2288 = vpack.c.b16 %v2274, %v2273
    %v2289 = vpack.c.b16 %v2276, %v2275
    %v2290 = vpack.c.b16 %v2278, %v2277
    %v2292 = vunpack.c.l.b16 %v2194
    %v2293 = vpack.c.b16 %v2292, %v2292
    %vm2294 = vsmask.f32 7424
    %v2296 = vshrl.u32 %v2279, 16
    %v2298 = vshll.u32 %v2279, 16
    %v2300 = vrot.slane %v2298, 1
    %v2301 = vor.u32 %v2296, %v2300
    %v2303 = vshll.u32 %v2280, 16
    %v2305 = vrot.slane %v2303, 1
    %v2306 = vsel %vm2294, %v2301, %v2305
    %v2307 = vshrl.u32 %v2280, 16
    %v2309 = vor.u32 %v2307, %v2305
    %v2311 = vshll.u32 %v2281, 16
    %v2313 = vrot.slane %v2311, 1
    %v2314 = vsel %vm2294, %v2309, %v2313
    %v2315 = vshrl.u32 %v2281, 16
    %v2317 = vor.u32 %v2315, %v2313
    %v2319 = vshll.u32 %v2282, 16
    %v2321 = vrot.slane %v2319, 1
    %v2322 = vsel %vm2294, %v2317, %v2321
    %v2323 = vshrl.u32 %v2282, 16
    %v2325 = vor.u32 %v2323, %v2321
    %v2327 = vshll.u32 %v2283, 16
    %v2329 = vrot.slane %v2327, 1
    %v2330 = vsel %vm2294, %v2325, %v2329
    %v2331 = vshrl.u32 %v2283, 16
    %v2333 = vor.u32 %v2331, %v2329
    %v2335 = vshll.u32 %v2284, 16
    %v2337 = vrot.slane %v2335, 1
    %v2338 = vsel %vm2294, %v2333, %v2337
    %v2339 = vshrl.u32 %v2284, 16
    %v2341 = vor.u32 %v2339, %v2337
    %v2343 = vshll.u32 %v2285, 16
    %v2345 = vrot.slane %v2343, 1
    %v2346 = vsel %vm2294, %v2341, %v2345
    %v2347 = vshrl.u32 %v2285, 16
    %v2349 = vor.u32 %v2347, %v2345
    %v2351 = vshll.u32 %v2286, 16
    %v2353 = vrot.slane %v2351, 1
    %v2354 = vsel %vm2294, %v2349, %v2353
    %v2355 = vshrl.u32 %v2286, 16
    %v2357 = vor.u32 %v2355, %v2353
    %v2359 = vshll.u32 %v2287, 16
    %v2361 = vrot.slane %v2359, 1
    %v2362 = vsel %vm2294, %v2357, %v2361
    %v2363 = vshrl.u32 %v2287, 16
    %v2365 = vor.u32 %v2363, %v2361
    %v2367 = vshll.u32 %v2288, 16
    %v2369 = vrot.slane %v2367, 1
    %v2370 = vsel %vm2294, %v2365, %v2369
    %v2371 = vshrl.u32 %v2288, 16
    %v2373 = vor.u32 %v2371, %v2369
    %v2375 = vshll.u32 %v2289, 16
    %v2377 = vrot.slane %v2375, 1
    %v2378 = vsel %vm2294, %v2373, %v2377
    %v2379 = vshrl.u32 %v2289, 16
    %v2381 = vor.u32 %v2379, %v2377
    %v2383 = vshll.u32 %v2290, 16
    %v2385 = vrot.slane %v2383, 1
    %v2386 = vsel %vm2294, %v2381, %v2385
    %v2387 = vshrl.u32 %v2290, 16
    %v2389 = vor.u32 %v2387, %v2385
    %v2391 = vshll.u32 %v2293, 16
    %v2393 = vrot.slane %v2391, 1
    %v2394 = vsel %vm2294, %v2389, %v2393
    %2395 = vrot.lane.b32.xlu0 %v2306, 20
    %v2396 = vpop.permute.xlu0 %2395
    %2397 = vrot.lane.b32.xlu0 %v2314, 20
    %v2398 = vpop.permute.xlu0 %2397
    %2399 = vrot.lane.b32.xlu0 %v2322, 20
    %v2400 = vpop.permute.xlu0 %2399
    %2401 = vrot.lane.b32.xlu0 %v2330, 20
    %v2402 = vpop.permute.xlu0 %2401
    %2403 = vrot.lane.b32.xlu0 %v2338, 20
    %v2404 = vpop.permute.xlu0 %2403
    %2405 = vrot.lane.b32.xlu0 %v2346, 20
    %v2406 = vpop.permute.xlu0 %2405
    %2407 = vrot.lane.b32.xlu0 %v2354, 20
    %v2408 = vpop.permute.xlu0 %2407
    %2409 = vrot.lane.b32.xlu0 %v2362, 20
    %v2410 = vpop.permute.xlu0 %2409
    %2411 = vrot.lane.b32.xlu0 %v2370, 20
    %v2412 = vpop.permute.xlu0 %2411
    %2413 = vrot.lane.b32.xlu0 %v2378, 20
    %v2414 = vpop.permute.xlu0 %2413
    %2415 = vrot.lane.b32.xlu0 %v2386, 20
    %v2416 = vpop.permute.xlu0 %2415
    %2417 = vrot.lane.b32.xlu0 %v2394, 20
    %v2418 = vpop.permute.xlu0 %2417
    %vm2419 = vcmask 1046528
    %v2420 = vrot.slane %v2279, 1
    %v2421 = vrot.slane %v2280, 1
    %v2422 = vsel %vm2419, %v2420, %v2421
    %v2423 = vrot.slane %v2281, 1
    %v2424 = vsel %vm2419, %v2421, %v2423
    %v2425 = vrot.slane %v2282, 1
    %v2426 = vsel %vm2419, %v2423, %v2425
    %v2427 = vrot.slane %v2283, 1
    %v2428 = vsel %vm2419, %v2425, %v2427
    %v2429 = vrot.slane %v2284, 1
    %v2430 = vsel %vm2419, %v2427, %v2429
    %v2431 = vrot.slane %v2285, 1
    %v2432 = vsel %vm2419, %v2429, %v2431
    %v2433 = vrot.slane %v2286, 1
    %v2434 = vsel %vm2419, %v2431, %v2433
    %v2435 = vrot.slane %v2287, 1
    %v2436 = vsel %vm2419, %v2433, %v2435
    %v2437 = vrot.slane %v2288, 1
    %v2438 = vsel %vm2419, %v2435, %v2437
    %v2439 = vrot.slane %v2289, 1
    %v2440 = vsel %vm2419, %v2437, %v2439
    %v2441 = vrot.slane %v2290, 1
    %v2442 = vsel %vm2419, %v2439, %v2441
    %v2443 = vrot.slane %v2293, 1
    %v2444 = vsel %vm2419, %v2441, %v2443
    %2445 = vrot.lane.b32.xlu0 %v2422, 40
    %v2446 = vpop.permute.xlu0 %2445
    %2447 = vrot.lane.b32.xlu0 %v2424, 40
    %v2448 = vpop.permute.xlu0 %2447
    %2449 = vrot.lane.b32.xlu0 %v2426, 40
    %v2450 = vpop.permute.xlu0 %2449
    %2451 = vrot.lane.b32.xlu0 %v2428, 40
    %v2452 = vpop.permute.xlu0 %2451
    %2453 = vrot.lane.b32.xlu0 %v2430, 40
    %v2454 = vpop.permute.xlu0 %2453
    %2455 = vrot.lane.b32.xlu0 %v2432, 40
    %v2456 = vpop.permute.xlu0 %2455
    %2457 = vrot.lane.b32.xlu0 %v2434, 40
    %v2458 = vpop.permute.xlu0 %2457
    %2459 = vrot.lane.b32.xlu0 %v2436, 40
    %v2460 = vpop.permute.xlu0 %2459
    %2461 = vrot.lane.b32.xlu0 %v2438, 40
    %v2462 = vpop.permute.xlu0 %2461
    %2463 = vrot.lane.b32.xlu0 %v2440, 40
    %v2464 = vpop.permute.xlu0 %2463
    %2465 = vrot.lane.b32.xlu0 %v2442, 40
    %v2466 = vpop.permute.xlu0 %2465
    %2467 = vrot.lane.b32.xlu0 %v2444, 40
    %v2468 = vpop.permute.xlu0 %2467
    %vm2469 = vsmask.f32 6400
    %v2470 = vrot.slane %v2296, 1
    %v2471 = vrot.slane %v2298, 2
    %v2472 = vor.u32 %v2470, %v2471
    %v2473 = vrot.slane %v2307, 1
    %v2474 = vrot.slane %v2303, 2
    %v2475 = vor.u32 %v2473, %v2474
    %v2476 = vsel %vm2469, %v2472, %v2475
    %v2477 = vrot.slane %v2315, 1
    %v2478 = vrot.slane %v2311, 2
    %v2479 = vor.u32 %v2477, %v2478
    %v2480 = vsel %vm2469, %v2475, %v2479
    %v2481 = vrot.slane %v2323, 1
    %v2482 = vrot.slane %v2319, 2
    %v2483 = vor.u32 %v2481, %v2482
    %v2484 = vsel %vm2469, %v2479, %v2483
    %v2485 = vrot.slane %v2331, 1
    %v2486 = vrot.slane %v2327, 2
    %v2487 = vor.u32 %v2485, %v2486
    %v2488 = vsel %vm2469, %v2483, %v2487
    %v2489 = vrot.slane %v2339, 1
    %v2490 = vrot.slane %v2335, 2
    %v2491 = vor.u32 %v2489, %v2490
    %v2492 = vsel %vm2469, %v2487, %v2491
    %v2493 = vrot.slane %v2347, 1
    %v2494 = vrot.slane %v2343, 2
    %v2495 = vor.u32 %v2493, %v2494
    %v2496 = vsel %vm2469, %v2491, %v2495
    %v2497 = vrot.slane %v2355, 1
    %v2498 = vrot.slane %v2351, 2
    %v2499 = vor.u32 %v2497, %v2498
    %v2500 = vsel %vm2469, %v2495, %v2499
    %v2501 = vrot.slane %v2363, 1
    %v2502 = vrot.slane %v2359, 2
    %v2503 = vor.u32 %v2501, %v2502
    %v2504 = vsel %vm2469, %v2499, %v2503
    %v2505 = vrot.slane %v2371, 1
    %v2506 = vrot.slane %v2367, 2
    %v2507 = vor.u32 %v2505, %v2506
    %v2508 = vsel %vm2469, %v2503, %v2507
    %v2509 = vrot.slane %v2379, 1
    %v2510 = vrot.slane %v2375, 2
    %v2511 = vor.u32 %v2509, %v2510
    %v2512 = vsel %vm2469, %v2507, %v2511
    %v2513 = vrot.slane %v2387, 1
    %v2514 = vrot.slane %v2383, 2
    %v2515 = vor.u32 %v2513, %v2514
    %v2516 = vsel %vm2469, %v2511, %v2515
    %v2517 = vshrl.u32 %v2293, 16
    %v2519 = vrot.slane %v2517, 1
    %v2520 = vrot.slane %v2391, 2
    %v2521 = vor.u32 %v2519, %v2520
    %v2522 = vsel %vm2469, %v2515, %v2521
    %2523 = vrot.lane.b32.xlu0 %v2476, 60
    %v2524 = vpop.permute.xlu0 %2523
    %2525 = vrot.lane.b32.xlu0 %v2480, 60
    %v2526 = vpop.permute.xlu0 %2525
    %2527 = vrot.lane.b32.xlu0 %v2484, 60
    %v2528 = vpop.permute.xlu0 %2527
    %2529 = vrot.lane.b32.xlu0 %v2488, 60
    %v2530 = vpop.permute.xlu0 %2529
    %2531 = vrot.lane.b32.xlu0 %v2492, 60
    %v2532 = vpop.permute.xlu0 %2531
    %2533 = vrot.lane.b32.xlu0 %v2496, 60
    %v2534 = vpop.permute.xlu0 %2533
    %2535 = vrot.lane.b32.xlu0 %v2500, 60
    %v2536 = vpop.permute.xlu0 %2535
    %2537 = vrot.lane.b32.xlu0 %v2504, 60
    %v2538 = vpop.permute.xlu0 %2537
    %2539 = vrot.lane.b32.xlu0 %v2508, 60
    %v2540 = vpop.permute.xlu0 %2539
    %2541 = vrot.lane.b32.xlu0 %v2512, 60
    %v2542 = vpop.permute.xlu0 %2541
    %2543 = vrot.lane.b32.xlu0 %v2516, 60
    %v2544 = vpop.permute.xlu0 %2543
    %2545 = vrot.lane.b32.xlu0 %v2522, 60
    %v2546 = vpop.permute.xlu0 %2545
    %vm2547 = vcmask 1045504
    %v2548 = vrot.slane %v2279, 2
    %v2549 = vrot.slane %v2280, 2
    %v2550 = vsel %vm2547, %v2548, %v2549
    %v2551 = vrot.slane %v2281, 2
    %v2552 = vsel %vm2547, %v2549, %v2551
    %v2553 = vrot.slane %v2282, 2
    %v2554 = vsel %vm2547, %v2551, %v2553
    %v2555 = vrot.slane %v2283, 2
    %v2556 = vsel %vm2547, %v2553, %v2555
    %v2557 = vrot.slane %v2284, 2
    %v2558 = vsel %vm2547, %v2555, %v2557
    %v2559 = vrot.slane %v2285, 2
    %v2560 = vsel %vm2547, %v2557, %v2559
    %v2561 = vrot.slane %v2286, 2
    %v2562 = vsel %vm2547, %v2559, %v2561
    %v2563 = vrot.slane %v2287, 2
    %v2564 = vsel %vm2547, %v2561, %v2563
    %v2565 = vrot.slane %v2288, 2
    %v2566 = vsel %vm2547, %v2563, %v2565
    %v2567 = vrot.slane %v2289, 2
    %v2568 = vsel %vm2547, %v2565, %v2567
    %v2569 = vrot.slane %v2290, 2
    %v2570 = vsel %vm2547, %v2567, %v2569
    %v2571 = vrot.slane %v2293, 2
    %v2572 = vsel %vm2547, %v2569, %v2571
    %2573 = vrot.lane.b32.xlu0 %v2550, 80
    %v2574 = vpop.permute.xlu0 %2573
    %2575 = vrot.lane.b32.xlu0 %v2552, 80
    %v2576 = vpop.permute.xlu0 %2575
    %2577 = vrot.lane.b32.xlu0 %v2554, 80
    %v2578 = vpop.permute.xlu0 %2577
    %2579 = vrot.lane.b32.xlu0 %v2556, 80
    %v2580 = vpop.permute.xlu0 %2579
    %2581 = vrot.lane.b32.xlu0 %v2558, 80
    %v2582 = vpop.permute.xlu0 %2581
    %2583 = vrot.lane.b32.xlu0 %v2560, 80
    %v2584 = vpop.permute.xlu0 %2583
    %2585 = vrot.lane.b32.xlu0 %v2562, 80
    %v2586 = vpop.permute.xlu0 %2585
    %2587 = vrot.lane.b32.xlu0 %v2564, 80
    %v2588 = vpop.permute.xlu0 %2587
    %2589 = vrot.lane.b32.xlu0 %v2566, 80
    %v2590 = vpop.permute.xlu0 %2589
    %2591 = vrot.lane.b32.xlu0 %v2568, 80
    %v2592 = vpop.permute.xlu0 %2591
    %2593 = vrot.lane.b32.xlu0 %v2570, 80
    %v2594 = vpop.permute.xlu0 %2593
    %2595 = vrot.lane.b32.xlu0 %v2572, 80
    %v2596 = vpop.permute.xlu0 %2595
    %v2598 = vunpack.c.l.b16 %v2195
    %v2599 = vpack.c.b16 %v2257, %v2256
    %v2600 = vpack.c.b16 %v2259, %v2258
    %v2601 = vpack.c.b16 %v2261, %v2260
    %v2602 = vpack.c.b16 %v2263, %v2262
    %v2603 = vpack.c.b16 %v2265, %v2264
    %v2604 = vpack.c.b16 %v2267, %v2266
    %v2605 = vpack.c.b16 %v2269, %v2268
    %v2606 = vpack.c.b16 %v2271, %v2270
    %v2607 = vpack.c.b16 %v2273, %v2272
    %v2608 = vpack.c.b16 %v2275, %v2274
    %v2609 = vpack.c.b16 %v2277, %v2276
    %v2610 = vpack.c.b16 %v2292, %v2278
    %v2611 = vpack.c.b16 %v2598, %v2598
    %v2612 = vrot.slane %v2599, 2
    %v2613 = vrot.slane %v2600, 2
    %v2614 = vsel %vm2547, %v2612, %v2613
    %v2615 = vrot.slane %v2601, 2
    %v2616 = vsel %vm2547, %v2613, %v2615
    %v2617 = vrot.slane %v2602, 2
    %v2618 = vsel %vm2547, %v2615, %v2617
    %v2619 = vrot.slane %v2603, 2
    %v2620 = vsel %vm2547, %v2617, %v2619
    %v2621 = vrot.slane %v2604, 2
    %v2622 = vsel %vm2547, %v2619, %v2621
    %v2623 = vrot.slane %v2605, 2
    %v2624 = vsel %vm2547, %v2621, %v2623
    %v2625 = vrot.slane %v2606, 2
    %v2626 = vsel %vm2547, %v2623, %v2625
    %v2627 = vrot.slane %v2607, 2
    %v2628 = vsel %vm2547, %v2625, %v2627
    %v2629 = vrot.slane %v2608, 2
    %v2630 = vsel %vm2547, %v2627, %v2629
    %v2631 = vrot.slane %v2609, 2
    %v2632 = vsel %vm2547, %v2629, %v2631
    %v2633 = vrot.slane %v2610, 2
    %v2634 = vsel %vm2547, %v2631, %v2633
    %v2635 = vrot.slane %v2611, 2
    %v2636 = vsel %vm2547, %v2633, %v2635
    %2637 = vrot.lane.b32.xlu0 %v2614, 100
    %v2638 = vpop.permute.xlu0 %2637
    %2639 = vrot.lane.b32.xlu0 %v2616, 100
    %v2640 = vpop.permute.xlu0 %2639
    %2641 = vrot.lane.b32.xlu0 %v2618, 100
    %v2642 = vpop.permute.xlu0 %2641
    %2643 = vrot.lane.b32.xlu0 %v2620, 100
    %v2644 = vpop.permute.xlu0 %2643
    %2645 = vrot.lane.b32.xlu0 %v2622, 100
    %v2646 = vpop.permute.xlu0 %2645
    %2647 = vrot.lane.b32.xlu0 %v2624, 100
    %v2648 = vpop.permute.xlu0 %2647
    %2649 = vrot.lane.b32.xlu0 %v2626, 100
    %v2650 = vpop.permute.xlu0 %2649
    %2651 = vrot.lane.b32.xlu0 %v2628, 100
    %v2652 = vpop.permute.xlu0 %2651
    %2653 = vrot.lane.b32.xlu0 %v2630, 100
    %v2654 = vpop.permute.xlu0 %2653
    %2655 = vrot.lane.b32.xlu0 %v2632, 100
    %v2656 = vpop.permute.xlu0 %2655
    %2657 = vrot.lane.b32.xlu0 %v2634, 100
    %v2658 = vpop.permute.xlu0 %2657
    %2659 = vrot.lane.b32.xlu0 %v2636, 100
    %v2660 = vpop.permute.xlu0 %2659
    %vm2661 = vsmask.f32 5376
    %v2663 = vshrl.u32 %v2599, 16
    %v2665 = vrot.slane %v2663, 2
    %v2666 = vshll.u32 %v2599, 16
    %v2668 = vrot.slane %v2666, 3
    %v2669 = vor.u32 %v2665, %v2668
    %v2671 = vshrl.u32 %v2600, 16
    %v2673 = vrot.slane %v2671, 2
    %v2674 = vshll.u32 %v2600, 16
    %v2676 = vrot.slane %v2674, 3
    %v2677 = vor.u32 %v2673, %v2676
    %v2678 = vsel %vm2661, %v2669, %v2677
    %v2680 = vshrl.u32 %v2601, 16
    %v2682 = vrot.slane %v2680, 2
    %v2683 = vshll.u32 %v2601, 16
    %v2685 = vrot.slane %v2683, 3
    %v2686 = vor.u32 %v2682, %v2685
    %v2687 = vsel %vm2661, %v2677, %v2686
    %v2689 = vshrl.u32 %v2602, 16
    %v2691 = vrot.slane %v2689, 2
    %v2692 = vshll.u32 %v2602, 16
    %v2694 = vrot.slane %v2692, 3
    %v2695 = vor.u32 %v2691, %v2694
    %v2696 = vsel %vm2661, %v2686, %v2695
    %v2698 = vshrl.u32 %v2603, 16
    %v2700 = vrot.slane %v2698, 2
    %v2701 = vshll.u32 %v2603, 16
    %v2703 = vrot.slane %v2701, 3
    %v2704 = vor.u32 %v2700, %v2703
    %v2705 = vsel %vm2661, %v2695, %v2704
    %v2707 = vshrl.u32 %v2604, 16
    %v2709 = vrot.slane %v2707, 2
    %v2710 = vshll.u32 %v2604, 16
    %v2712 = vrot.slane %v2710, 3
    %v2713 = vor.u32 %v2709, %v2712
    %v2714 = vsel %vm2661, %v2704, %v2713
    %v2716 = vshrl.u32 %v2605, 16
    %v2718 = vrot.slane %v2716, 2
    %v2719 = vshll.u32 %v2605, 16
    %v2721 = vrot.slane %v2719, 3
    %v2722 = vor.u32 %v2718, %v2721
    %v2723 = vsel %vm2661, %v2713, %v2722
    %v2725 = vshrl.u32 %v2606, 16
    %v2727 = vrot.slane %v2725, 2
    %v2728 = vshll.u32 %v2606, 16
    %v2730 = vrot.slane %v2728, 3
    %v2731 = vor.u32 %v2727, %v2730
    %v2732 = vsel %vm2661, %v2722, %v2731
    %v2734 = vshrl.u32 %v2607, 16
    %v2736 = vrot.slane %v2734, 2
    %v2737 = vshll.u32 %v2607, 16
    %v2739 = vrot.slane %v2737, 3
    %v2740 = vor.u32 %v2736, %v2739
    %v2741 = vsel %vm2661, %v2731, %v2740
    %v2743 = vshrl.u32 %v2608, 16
    %v2745 = vrot.slane %v2743, 2
    %v2746 = vshll.u32 %v2608, 16
    %v2748 = vrot.slane %v2746, 3
    %v2749 = vor.u32 %v2745, %v2748
    %v2750 = vsel %vm2661, %v2740, %v2749
    %v2752 = vshrl.u32 %v2609, 16
    %v2754 = vrot.slane %v2752, 2
    %v2755 = vshll.u32 %v2609, 16
    %v2757 = vrot.slane %v2755, 3
    %v2758 = vor.u32 %v2754, %v2757
    %v2759 = vsel %vm2661, %v2749, %v2758
    %v2761 = vshrl.u32 %v2610, 16
    %v2763 = vrot.slane %v2761, 2
    %v2764 = vshll.u32 %v2610, 16
    %v2766 = vrot.slane %v2764, 3
    %v2767 = vor.u32 %v2763, %v2766
    %v2768 = vsel %vm2661, %v2758, %v2767
    %v2770 = vshrl.u32 %v2611, 16
    %v2772 = vrot.slane %v2770, 2
    %v2773 = vshll.u32 %v2611, 16
    %v2775 = vrot.slane %v2773, 3
    %v2776 = vor.u32 %v2772, %v2775
    %v2777 = vsel %vm2661, %v2767, %v2776
    %2778 = vrot.lane.b32.xlu0 %v2678, 120
    %v2779 = vpop.permute.xlu0 %2778
    %2780 = vrot.lane.b32.xlu0 %v2687, 120
    %v2781 = vpop.permute.xlu0 %2780
    %2782 = vrot.lane.b32.xlu0 %v2696, 120
    %v2783 = vpop.permute.xlu0 %2782
    %2784 = vrot.lane.b32.xlu0 %v2705, 120
    %v2785 = vpop.permute.xlu0 %2784
    %2786 = vrot.lane.b32.xlu0 %v2714, 120
    %v2787 = vpop.permute.xlu0 %2786
    %2788 = vrot.lane.b32.xlu0 %v2723, 120
    %v2789 = vpop.permute.xlu0 %2788
    %2790 = vrot.lane.b32.xlu0 %v2732, 120
    %v2791 = vpop.permute.xlu0 %2790
    %2792 = vrot.lane.b32.xlu0 %v2741, 120
    %v2793 = vpop.permute.xlu0 %2792
    %2794 = vrot.lane.b32.xlu0 %v2750, 120
    %v2795 = vpop.permute.xlu0 %2794
    %2796 = vrot.lane.b32.xlu0 %v2759, 120
    %v2797 = vpop.permute.xlu0 %2796
    %2798 = vrot.lane.b32.xlu0 %v2768, 120
    %v2799 = vpop.permute.xlu0 %2798
    %2800 = vrot.lane.b32.xlu0 %v2777, 120
    %v2801 = vpop.permute.xlu0 %2800
    %vm2802 = vcmask 1044480
    %v2803 = vrot.slane %v2599, 3
    %v2804 = vrot.slane %v2600, 3
    %v2805 = vsel %vm2802, %v2803, %v2804
    %v2806 = vrot.slane %v2601, 3
    %v2807 = vsel %vm2802, %v2804, %v2806
    %v2808 = vrot.slane %v2602, 3
    %v2809 = vsel %vm2802, %v2806, %v2808
    %v2810 = vrot.slane %v2603, 3
    %v2811 = vsel %vm2802, %v2808, %v2810
    %v2812 = vrot.slane %v2604, 3
    %v2813 = vsel %vm2802, %v2810, %v2812
    %v2814 = vrot.slane %v2605, 3
    %v2815 = vsel %vm2802, %v2812, %v2814
    %v2816 = vrot.slane %v2606, 3
    %v2817 = vsel %vm2802, %v2814, %v2816
    %v2818 = vrot.slane %v2607, 3
    %v2819 = vsel %vm2802, %v2816, %v2818
    %v2820 = vrot.slane %v2608, 3
    %v2821 = vsel %vm2802, %v2818, %v2820
    %v2822 = vrot.slane %v2609, 3
    %v2823 = vsel %vm2802, %v2820, %v2822
    %v2824 = vrot.slane %v2610, 3
    %v2825 = vsel %vm2802, %v2822, %v2824
    %v2826 = vrot.slane %v2611, 3
    %v2827 = vsel %vm2802, %v2824, %v2826
    %2828 = vrot.lane.b32.xlu0 %v2805, 12
    %v2829 = vpop.permute.xlu0 %2828
    %2830 = vrot.lane.b32.xlu0 %v2807, 12
    %v2831 = vpop.permute.xlu0 %2830
    %2832 = vrot.lane.b32.xlu0 %v2809, 12
    %v2833 = vpop.permute.xlu0 %2832
    %2834 = vrot.lane.b32.xlu0 %v2811, 12
    %v2835 = vpop.permute.xlu0 %2834
    %2836 = vrot.lane.b32.xlu0 %v2813, 12
    %v2837 = vpop.permute.xlu0 %2836
    %2838 = vrot.lane.b32.xlu0 %v2815, 12
    %v2839 = vpop.permute.xlu0 %2838
    %2840 = vrot.lane.b32.xlu0 %v2817, 12
    %v2841 = vpop.permute.xlu0 %2840
    %2842 = vrot.lane.b32.xlu0 %v2819, 12
    %v2843 = vpop.permute.xlu0 %2842
    %2844 = vrot.lane.b32.xlu0 %v2821, 12
    %v2845 = vpop.permute.xlu0 %2844
    %2846 = vrot.lane.b32.xlu0 %v2823, 12
    %v2847 = vpop.permute.xlu0 %2846
    %2848 = vrot.lane.b32.xlu0 %v2825, 12
    %v2849 = vpop.permute.xlu0 %2848
    %2850 = vrot.lane.b32.xlu0 %v2827, 12
    %v2851 = vpop.permute.xlu0 %2850
    %vm2852 = vsmask.f32 4352
    %v2853 = vrot.slane %v2663, 3
    %v2854 = vrot.slane %v2666, 4
    %v2855 = vor.u32 %v2853, %v2854
    %v2856 = vrot.slane %v2671, 3
    %v2857 = vrot.slane %v2674, 4
    %v2858 = vor.u32 %v2856, %v2857
    %v2859 = vsel %vm2852, %v2855, %v2858
    %v2860 = vrot.slane %v2680, 3
    %v2861 = vrot.slane %v2683, 4
    %v2862 = vor.u32 %v2860, %v2861
    %v2863 = vsel %vm2852, %v2858, %v2862
    %v2864 = vrot.slane %v2689, 3
    %v2865 = vrot.slane %v2692, 4
    %v2866 = vor.u32 %v2864, %v2865
    %v2867 = vsel %vm2852, %v2862, %v2866
    %v2868 = vrot.slane %v2698, 3
    %v2869 = vrot.slane %v2701, 4
    %v2870 = vor.u32 %v2868, %v2869
    %v2871 = vsel %vm2852, %v2866, %v2870
    %v2872 = vrot.slane %v2707, 3
    %v2873 = vrot.slane %v2710, 4
    %v2874 = vor.u32 %v2872, %v2873
    %v2875 = vsel %vm2852, %v2870, %v2874
    %v2876 = vrot.slane %v2716, 3
    %v2877 = vrot.slane %v2719, 4
    %v2878 = vor.u32 %v2876, %v2877
    %v2879 = vsel %vm2852, %v2874, %v2878
    %v2880 = vrot.slane %v2725, 3
    %v2881 = vrot.slane %v2728, 4
    %v2882 = vor.u32 %v2880, %v2881
    %v2883 = vsel %vm2852, %v2878, %v2882
    %v2884 = vrot.slane %v2734, 3
    %v2885 = vrot.slane %v2737, 4
    %v2886 = vor.u32 %v2884, %v2885
    %v2887 = vsel %vm2852, %v2882, %v2886
    %v2888 = vrot.slane %v2743, 3
    %v2889 = vrot.slane %v2746, 4
    %v2890 = vor.u32 %v2888, %v2889
    %v2891 = vsel %vm2852, %v2886, %v2890
    %v2892 = vrot.slane %v2752, 3
    %v2893 = vrot.slane %v2755, 4
    %v2894 = vor.u32 %v2892, %v2893
    %v2895 = vsel %vm2852, %v2890, %v2894
    %v2896 = vrot.slane %v2761, 3
    %v2897 = vrot.slane %v2764, 4
    %v2898 = vor.u32 %v2896, %v2897
    %v2899 = vsel %vm2852, %v2894, %v2898
    %v2900 = vrot.slane %v2770, 3
    %v2901 = vrot.slane %v2773, 4
    %v2902 = vor.u32 %v2900, %v2901
    %v2903 = vsel %vm2852, %v2898, %v2902
    %2904 = vrot.lane.b32.xlu0 %v2859, 32
    %v2905 = vpop.permute.xlu0 %2904
    %2906 = vrot.lane.b32.xlu0 %v2863, 32
    %v2907 = vpop.permute.xlu0 %2906
    %2908 = vrot.lane.b32.xlu0 %v2867, 32
    %v2909 = vpop.permute.xlu0 %2908
    %2910 = vrot.lane.b32.xlu0 %v2871, 32
    %v2911 = vpop.permute.xlu0 %2910
    %2912 = vrot.lane.b32.xlu0 %v2875, 32
    %v2913 = vpop.permute.xlu0 %2912
    %2914 = vrot.lane.b32.xlu0 %v2879, 32
    %v2915 = vpop.permute.xlu0 %2914
    %2916 = vrot.lane.b32.xlu0 %v2883, 32
    %v2917 = vpop.permute.xlu0 %2916
    %2918 = vrot.lane.b32.xlu0 %v2887, 32
    %v2919 = vpop.permute.xlu0 %2918
    %2920 = vrot.lane.b32.xlu0 %v2891, 32
    %v2921 = vpop.permute.xlu0 %2920
    %2922 = vrot.lane.b32.xlu0 %v2895, 32
    %v2923 = vpop.permute.xlu0 %2922
    %2924 = vrot.lane.b32.xlu0 %v2899, 32
    %v2925 = vpop.permute.xlu0 %2924
    %2926 = vrot.lane.b32.xlu0 %v2903, 32
    %v2927 = vpop.permute.xlu0 %2926
    %v2928 = vpack.c.b16 %v2598, %v2292
    %2929 = vrot.lane.b32.xlu0 %v2280, 52
    %v2930 = vpop.permute.xlu0 %2929
    %2931 = vrot.lane.b32.xlu0 %v2281, 52
    %v2932 = vpop.permute.xlu0 %2931
    %2933 = vrot.lane.b32.xlu0 %v2282, 52
    %v2934 = vpop.permute.xlu0 %2933
    %2935 = vrot.lane.b32.xlu0 %v2283, 52
    %v2936 = vpop.permute.xlu0 %2935
    %2937 = vrot.lane.b32.xlu0 %v2284, 52
    %v2938 = vpop.permute.xlu0 %2937
    %2939 = vrot.lane.b32.xlu0 %v2285, 52
    %v2940 = vpop.permute.xlu0 %2939
    %2941 = vrot.lane.b32.xlu0 %v2286, 52
    %v2942 = vpop.permute.xlu0 %2941
    %2943 = vrot.lane.b32.xlu0 %v2287, 52
    %v2944 = vpop.permute.xlu0 %2943
    %2945 = vrot.lane.b32.xlu0 %v2288, 52
    %v2946 = vpop.permute.xlu0 %2945
    %2947 = vrot.lane.b32.xlu0 %v2289, 52
    %v2948 = vpop.permute.xlu0 %2947
    %2949 = vrot.lane.b32.xlu0 %v2290, 52
    %v2950 = vpop.permute.xlu0 %2949
    %2951 = vrot.lane.b32.xlu0 %v2928, 52
    %v2952 = vpop.permute.xlu0 %2951
    %v2954 = vunpack.c.l.b16 %v2196
    %v2955 = vpack.c.b16 %v2954, %v2598
    %2956 = vrot.lane.b32.xlu0 %v2600, 72
    %v2957 = vpop.permute.xlu0 %2956
    %2958 = vrot.lane.b32.xlu0 %v2601, 72
    %v2959 = vpop.permute.xlu0 %2958
    %2960 = vrot.lane.b32.xlu0 %v2602, 72
    %v2961 = vpop.permute.xlu0 %2960
    %2962 = vrot.lane.b32.xlu0 %v2603, 72
    %v2963 = vpop.permute.xlu0 %2962
    %2964 = vrot.lane.b32.xlu0 %v2604, 72
    %v2965 = vpop.permute.xlu0 %2964
    %2966 = vrot.lane.b32.xlu0 %v2605, 72
    %v2967 = vpop.permute.xlu0 %2966
    %2968 = vrot.lane.b32.xlu0 %v2606, 72
    %v2969 = vpop.permute.xlu0 %2968
    %2970 = vrot.lane.b32.xlu0 %v2607, 72
    %v2971 = vpop.permute.xlu0 %2970
    %2972 = vrot.lane.b32.xlu0 %v2608, 72
    %v2973 = vpop.permute.xlu0 %2972
    %2974 = vrot.lane.b32.xlu0 %v2609, 72
    %v2975 = vpop.permute.xlu0 %2974
    %2976 = vrot.lane.b32.xlu0 %v2610, 72
    %v2977 = vpop.permute.xlu0 %2976
    %2978 = vrot.lane.b32.xlu0 %v2955, 72
    %v2979 = vpop.permute.xlu0 %2978
    %v2981 = vunpack.c.l.b16 %v2197
    %v2982 = vpack.c.b16 %v2981, %v2981
    %v2983 = vrot.slane %v2674, 1
    %v2984 = vor.u32 %v2671, %v2983
    %v2985 = vrot.slane %v2683, 1
    %v2986 = vsel %vm2294, %v2984, %v2985
    %v2987 = vor.u32 %v2680, %v2985
    %v2988 = vrot.slane %v2692, 1
    %v2989 = vsel %vm2294, %v2987, %v2988
    %v2990 = vor.u32 %v2689, %v2988
    %v2991 = vrot.slane %v2701, 1
    %v2992 = vsel %vm2294, %v2990, %v2991
    %v2993 = vor.u32 %v2698, %v2991
    %v2994 = vrot.slane %v2710, 1
    %v2995 = vsel %vm2294, %v2993, %v2994
    %v2996 = vor.u32 %v2707, %v2994
    %v2997 = vrot.slane %v2719, 1
    %v2998 = vsel %vm2294, %v2996, %v2997
    %v2999 = vor.u32 %v2716, %v2997
    %v3000 = vrot.slane %v2728, 1
    %v3001 = vsel %vm2294, %v2999, %v3000
    %v3002 = vor.u32 %v2725, %v3000
    %v3003 = vrot.slane %v2737, 1
    %v3004 = vsel %vm2294, %v3002, %v3003
    %v3005 = vor.u32 %v2734, %v3003
    %v3006 = vrot.slane %v2746, 1
    %v3007 = vsel %vm2294, %v3005, %v3006
    %v3008 = vor.u32 %v2743, %v3006
    %v3009 = vrot.slane %v2755, 1
    %v3010 = vsel %vm2294, %v3008, %v3009
    %v3011 = vor.u32 %v2752, %v3009
    %v3012 = vrot.slane %v2764, 1
    %v3013 = vsel %vm2294, %v3011, %v3012
    %v3014 = vor.u32 %v2761, %v3012
    %v3016 = vshll.u32 %v2955, 16
    %v3018 = vrot.slane %v3016, 1
    %v3019 = vsel %vm2294, %v3014, %v3018
    %v3020 = vshrl.u32 %v2955, 16
    %v3022 = vor.u32 %v3020, %v3018
    %v3024 = vshll.u32 %v2982, 16
    %v3026 = vrot.slane %v3024, 1
    %v3027 = vsel %vm2294, %v3022, %v3026
    %3028 = vrot.lane.b32.xlu0 %v2986, 92
    %v3029 = vpop.permute.xlu0 %3028
    %3030 = vrot.lane.b32.xlu0 %v2989, 92
    %v3031 = vpop.permute.xlu0 %3030
    %3032 = vrot.lane.b32.xlu0 %v2992, 92
    %v3033 = vpop.permute.xlu0 %3032
    %3034 = vrot.lane.b32.xlu0 %v2995, 92
    %v3035 = vpop.permute.xlu0 %3034
    %3036 = vrot.lane.b32.xlu0 %v2998, 92
    %v3037 = vpop.permute.xlu0 %3036
    %3038 = vrot.lane.b32.xlu0 %v3001, 92
    %v3039 = vpop.permute.xlu0 %3038
    %3040 = vrot.lane.b32.xlu0 %v3004, 92
    %v3041 = vpop.permute.xlu0 %3040
    %3042 = vrot.lane.b32.xlu0 %v3007, 92
    %v3043 = vpop.permute.xlu0 %3042
    %3044 = vrot.lane.b32.xlu0 %v3010, 92
    %v3045 = vpop.permute.xlu0 %3044
    %3046 = vrot.lane.b32.xlu0 %v3013, 92
    %v3047 = vpop.permute.xlu0 %3046
    %3048 = vrot.lane.b32.xlu0 %v3019, 92
    %v3049 = vpop.permute.xlu0 %3048
    %3050 = vrot.lane.b32.xlu0 %v3027, 92
    %v3051 = vpop.permute.xlu0 %3050
    %v3052 = vrot.slane %v2600, 1
    %v3053 = vrot.slane %v2601, 1
    %v3054 = vsel %vm2419, %v3052, %v3053
    %v3055 = vrot.slane %v2602, 1
    %v3056 = vsel %vm2419, %v3053, %v3055
    %v3057 = vrot.slane %v2603, 1
    %v3058 = vsel %vm2419, %v3055, %v3057
    %v3059 = vrot.slane %v2604, 1
    %v3060 = vsel %vm2419, %v3057, %v3059
    %v3061 = vrot.slane %v2605, 1
    %v3062 = vsel %vm2419, %v3059, %v3061
    %v3063 = vrot.slane %v2606, 1
    %v3064 = vsel %vm2419, %v3061, %v3063
    %v3065 = vrot.slane %v2607, 1
    %v3066 = vsel %vm2419, %v3063, %v3065
    %v3067 = vrot.slane %v2608, 1
    %v3068 = vsel %vm2419, %v3065, %v3067
    %v3069 = vrot.slane %v2609, 1
    %v3070 = vsel %vm2419, %v3067, %v3069
    %v3071 = vrot.slane %v2610, 1
    %v3072 = vsel %vm2419, %v3069, %v3071
    %v3073 = vrot.slane %v2955, 1
    %v3074 = vsel %vm2419, %v3071, %v3073
    %v3075 = vrot.slane %v2982, 1
    %v3076 = vsel %vm2419, %v3073, %v3075
    %3077 = vrot.lane.b32.xlu0 %v3054, 112
    %v3078 = vpop.permute.xlu0 %3077
    %3079 = vrot.lane.b32.xlu0 %v3056, 112
    %v3080 = vpop.permute.xlu0 %3079
    %3081 = vrot.lane.b32.xlu0 %v3058, 112
    %v3082 = vpop.permute.xlu0 %3081
    %3083 = vrot.lane.b32.xlu0 %v3060, 112
    %v3084 = vpop.permute.xlu0 %3083
    %3085 = vrot.lane.b32.xlu0 %v3062, 112
    %v3086 = vpop.permute.xlu0 %3085
    %3087 = vrot.lane.b32.xlu0 %v3064, 112
    %v3088 = vpop.permute.xlu0 %3087
    %3089 = vrot.lane.b32.xlu0 %v3066, 112
    %v3090 = vpop.permute.xlu0 %3089
    %3091 = vrot.lane.b32.xlu0 %v3068, 112
    %v3092 = vpop.permute.xlu0 %3091
    %3093 = vrot.lane.b32.xlu0 %v3070, 112
    %v3094 = vpop.permute.xlu0 %3093
    %3095 = vrot.lane.b32.xlu0 %v3072, 112
    %v3096 = vpop.permute.xlu0 %3095
    %3097 = vrot.lane.b32.xlu0 %v3074, 112
    %v3098 = vpop.permute.xlu0 %3097
    %3099 = vrot.lane.b32.xlu0 %v3076, 112
    %v3100 = vpop.permute.xlu0 %3099
    %v3101 = vrot.slane %v2671, 1
    %v3102 = vrot.slane %v2674, 2
    %v3103 = vor.u32 %v3101, %v3102
    %v3104 = vrot.slane %v2680, 1
    %v3105 = vrot.slane %v2683, 2
    %v3106 = vor.u32 %v3104, %v3105
    %v3107 = vsel %vm2469, %v3103, %v3106
    %v3108 = vrot.slane %v2689, 1
    %v3109 = vrot.slane %v2692, 2
    %v3110 = vor.u32 %v3108, %v3109
    %v3111 = vsel %vm2469, %v3106, %v3110
    %v3112 = vrot.slane %v2698, 1
    %v3113 = vrot.slane %v2701, 2
    %v3114 = vor.u32 %v3112, %v3113
    %v3115 = vsel %vm2469, %v3110, %v3114
    %v3116 = vrot.slane %v2707, 1
    %v3117 = vrot.slane %v2710, 2
    %v3118 = vor.u32 %v3116, %v3117
    %v3119 = vsel %vm2469, %v3114, %v3118
    %v3120 = vrot.slane %v2716, 1
    %v3121 = vrot.slane %v2719, 2
    %v3122 = vor.u32 %v3120, %v3121
    %v3123 = vsel %vm2469, %v3118, %v3122
    %v3124 = vrot.slane %v2725, 1
    %v3125 = vrot.slane %v2728, 2
    %v3126 = vor.u32 %v3124, %v3125
    %v3127 = vsel %vm2469, %v3122, %v3126
    %v3128 = vrot.slane %v2734, 1
    %v3129 = vrot.slane %v2737, 2
    %v3130 = vor.u32 %v3128, %v3129
    %v3131 = vsel %vm2469, %v3126, %v3130
    %v3132 = vrot.slane %v2743, 1
    %v3133 = vrot.slane %v2746, 2
    %v3134 = vor.u32 %v3132, %v3133
    %v3135 = vsel %vm2469, %v3130, %v3134
    %v3136 = vrot.slane %v2752, 1
    %v3137 = vrot.slane %v2755, 2
    %v3138 = vor.u32 %v3136, %v3137
    %v3139 = vsel %vm2469, %v3134, %v3138
    %v3140 = vrot.slane %v2761, 1
    %v3141 = vrot.slane %v2764, 2
    %v3142 = vor.u32 %v3140, %v3141
    %v3143 = vsel %vm2469, %v3138, %v3142
    %v3144 = vrot.slane %v3020, 1
    %v3145 = vrot.slane %v3016, 2
    %v3146 = vor.u32 %v3144, %v3145
    %v3147 = vsel %vm2469, %v3142, %v3146
    %v3148 = vshrl.u32 %v2982, 16
    %v3150 = vrot.slane %v3148, 1
    %v3151 = vrot.slane %v3024, 2
    %v3152 = vor.u32 %v3150, %v3151
    %v3153 = vsel %vm2469, %v3146, %v3152
    %3154 = vrot.lane.b32.xlu0 %v3107, 4
    %v3155 = vpop.permute.xlu0 %3154
    %3156 = vrot.lane.b32.xlu0 %v3111, 4
    %v3157 = vpop.permute.xlu0 %3156
    %3158 = vrot.lane.b32.xlu0 %v3115, 4
    %v3159 = vpop.permute.xlu0 %3158
    %3160 = vrot.lane.b32.xlu0 %v3119, 4
    %v3161 = vpop.permute.xlu0 %3160
    %3162 = vrot.lane.b32.xlu0 %v3123, 4
    %v3163 = vpop.permute.xlu0 %3162
    %3164 = vrot.lane.b32.xlu0 %v3127, 4
    %v3165 = vpop.permute.xlu0 %3164
    %3166 = vrot.lane.b32.xlu0 %v3131, 4
    %v3167 = vpop.permute.xlu0 %3166
    %3168 = vrot.lane.b32.xlu0 %v3135, 4
    %v3169 = vpop.permute.xlu0 %3168
    %3170 = vrot.lane.b32.xlu0 %v3139, 4
    %v3171 = vpop.permute.xlu0 %3170
    %3172 = vrot.lane.b32.xlu0 %v3143, 4
    %v3173 = vpop.permute.xlu0 %3172
    %3174 = vrot.lane.b32.xlu0 %v3147, 4
    %v3175 = vpop.permute.xlu0 %3174
    %3176 = vrot.lane.b32.xlu0 %v3153, 4
    %v3177 = vpop.permute.xlu0 %3176
    %v3178 = vrot.slane %v2955, 2
    %v3179 = vsel %vm2547, %v2633, %v3178
    %v3180 = vrot.slane %v2982, 2
    %v3181 = vsel %vm2547, %v3178, %v3180
    %3182 = vrot.lane.b32.xlu0 %v2616, 24
    %v3183 = vpop.permute.xlu0 %3182
    %3184 = vrot.lane.b32.xlu0 %v2618, 24
    %v3185 = vpop.permute.xlu0 %3184
    %3186 = vrot.lane.b32.xlu0 %v2620, 24
    %v3187 = vpop.permute.xlu0 %3186
    %3188 = vrot.lane.b32.xlu0 %v2622, 24
    %v3189 = vpop.permute.xlu0 %3188
    %3190 = vrot.lane.b32.xlu0 %v2624, 24
    %v3191 = vpop.permute.xlu0 %3190
    %3192 = vrot.lane.b32.xlu0 %v2626, 24
    %v3193 = vpop.permute.xlu0 %3192
    %3194 = vrot.lane.b32.xlu0 %v2628, 24
    %v3195 = vpop.permute.xlu0 %3194
    %3196 = vrot.lane.b32.xlu0 %v2630, 24
    %v3197 = vpop.permute.xlu0 %3196
    %3198 = vrot.lane.b32.xlu0 %v2632, 24
    %v3199 = vpop.permute.xlu0 %3198
    %3200 = vrot.lane.b32.xlu0 %v2634, 24
    %v3201 = vpop.permute.xlu0 %3200
    %3202 = vrot.lane.b32.xlu0 %v3179, 24
    %v3203 = vpop.permute.xlu0 %3202
    %3204 = vrot.lane.b32.xlu0 %v3181, 24
    %v3205 = vpop.permute.xlu0 %3204
    %v3207 = vunpack.c.l.b16 %v2198
    %v3208 = vpack.c.b16 %v2981, %v2954
    %v3209 = vpack.c.b16 %v3207, %v3207
    %v3210 = vrot.slane %v2928, 2
    %v3211 = vsel %vm2547, %v2569, %v3210
    %v3212 = vrot.slane %v3208, 2
    %v3213 = vsel %vm2547, %v3210, %v3212
    %v3214 = vrot.slane %v3209, 2
    %v3215 = vsel %vm2547, %v3212, %v3214
    %3216 = vrot.lane.b32.xlu0 %v2554, 44
    %v3217 = vpop.permute.xlu0 %3216
    %3218 = vrot.lane.b32.xlu0 %v2556, 44
    %v3219 = vpop.permute.xlu0 %3218
    %3220 = vrot.lane.b32.xlu0 %v2558, 44
    %v3221 = vpop.permute.xlu0 %3220
    %3222 = vrot.lane.b32.xlu0 %v2560, 44
    %v3223 = vpop.permute.xlu0 %3222
    %3224 = vrot.lane.b32.xlu0 %v2562, 44
    %v3225 = vpop.permute.xlu0 %3224
    %3226 = vrot.lane.b32.xlu0 %v2564, 44
    %v3227 = vpop.permute.xlu0 %3226
    %3228 = vrot.lane.b32.xlu0 %v2566, 44
    %v3229 = vpop.permute.xlu0 %3228
    %3230 = vrot.lane.b32.xlu0 %v2568, 44
    %v3231 = vpop.permute.xlu0 %3230
    %3232 = vrot.lane.b32.xlu0 %v2570, 44
    %v3233 = vpop.permute.xlu0 %3232
    %3234 = vrot.lane.b32.xlu0 %v3211, 44
    %v3235 = vpop.permute.xlu0 %3234
    %3236 = vrot.lane.b32.xlu0 %v3213, 44
    %v3237 = vpop.permute.xlu0 %3236
    %3238 = vrot.lane.b32.xlu0 %v3215, 44
    %v3239 = vpop.permute.xlu0 %3238
    %vm3240 = vcmask 162816
    %v3242 = vsel %vm3240, %v2279, %v2396
    %v3244 = vsel %vm3240, %v2280, %v2398
    %v3246 = vsel %vm3240, %v2281, %v2400
    %v3248 = vsel %vm3240, %v2282, %v2402
    %v3250 = vsel %vm3240, %v2283, %v2404
    %v3252 = vsel %vm3240, %v2284, %v2406
    %v3254 = vsel %vm3240, %v2285, %v2408
    %v3256 = vsel %vm3240, %v2286, %v2410
    %v3258 = vsel %vm3240, %v2287, %v2412
    %v3260 = vsel %vm3240, %v2288, %v2414
    %v3262 = vsel %vm3240, %v2289, %v2416
    %v3264 = vsel %vm3240, %v2290, %v2418
    %vm3265 = vcmask 326656
    %v3267 = vsel %vm3265, %v3242, %v2446
    %v3269 = vsel %vm3265, %v3244, %v2448
    %v3271 = vsel %vm3265, %v3246, %v2450
    %v3273 = vsel %vm3265, %v3248, %v2452
    %v3275 = vsel %vm3265, %v3250, %v2454
    %v3277 = vsel %vm3265, %v3252, %v2456
    %v3279 = vsel %vm3265, %v3254, %v2458
    %v3281 = vsel %vm3265, %v3256, %v2460
    %v3283 = vsel %vm3265, %v3258, %v2462
    %v3285 = vsel %vm3265, %v3260, %v2464
    %v3287 = vsel %vm3265, %v3262, %v2466
    %v3289 = vsel %vm3265, %v3264, %v2468
    %vm3290 = vcmask 490496
    %v3292 = vsel %vm3290, %v3267, %v2524
    %v3294 = vsel %vm3290, %v3269, %v2526
    %v3296 = vsel %vm3290, %v3271, %v2528
    %v3298 = vsel %vm3290, %v3273, %v2530
    %v3300 = vsel %vm3290, %v3275, %v2532
    %v3302 = vsel %vm3290, %v3277, %v2534
    %v3304 = vsel %vm3290, %v3279, %v2536
    %v3306 = vsel %vm3290, %v3281, %v2538
    %v3308 = vsel %vm3290, %v3283, %v2540
    %v3310 = vsel %vm3290, %v3285, %v2542
    %v3312 = vsel %vm3290, %v3287, %v2544
    %v3314 = vsel %vm3290, %v3289, %v2546
    %vm3315 = vcmask 654336
    %v3317 = vsel %vm3315, %v3292, %v2574
    %v3319 = vsel %vm3315, %v3294, %v2576
    %v3321 = vsel %vm3315, %v3296, %v2578
    %v3323 = vsel %vm3315, %v3298, %v2580
    %v3325 = vsel %vm3315, %v3300, %v2582
    %v3327 = vsel %vm3315, %v3302, %v2584
    %v3329 = vsel %vm3315, %v3304, %v2586
    %v3331 = vsel %vm3315, %v3306, %v2588
    %v3333 = vsel %vm3315, %v3308, %v2590
    %v3335 = vsel %vm3315, %v3310, %v2592
    %v3337 = vsel %vm3315, %v3312, %v2594
    %v3339 = vsel %vm3315, %v3314, %v2596
    %vm3340 = vcmask 818176
    %v3342 = vsel %vm3340, %v3317, %v2638
    %v3344 = vsel %vm3340, %v3319, %v2640
    %v3346 = vsel %vm3340, %v3321, %v2642
    %v3348 = vsel %vm3340, %v3323, %v2644
    %v3350 = vsel %vm3340, %v3325, %v2646
    %v3352 = vsel %vm3340, %v3327, %v2648
    %v3354 = vsel %vm3340, %v3329, %v2650
    %v3356 = vsel %vm3340, %v3331, %v2652
    %v3358 = vsel %vm3340, %v3333, %v2654
    %v3360 = vsel %vm3340, %v3335, %v2656
    %v3362 = vsel %vm3340, %v3337, %v2658
    %v3364 = vsel %vm3340, %v3339, %v2660
    %vm3365 = vcmask 982016
    %v3367 = vsel %vm3365, %v3342, %v2779
    %v3370 = vsel %vm3365, %v3344, %v2781
    %v3373 = vsel %vm3365, %v3346, %v2783
    %v3376 = vsel %vm3365, %v3348, %v2785
    %v3379 = vsel %vm3365, %v3350, %v2787
    %v3382 = vsel %vm3365, %v3352, %v2789
    %v3385 = vsel %vm3365, %v3354, %v2791
    %v3388 = vsel %vm3365, %v3356, %v2793
    %v3391 = vsel %vm3365, %v3358, %v2795
    %v3394 = vsel %vm3365, %v3360, %v2797
    %v3397 = vsel %vm3365, %v3362, %v2799
    %v3400 = vsel %vm3365, %v3364, %v2801
    %vm3402 = vcmask 97280
    %v3404 = vsel %vm3402, %v2779, %v2829
    %v3406 = vsel %vm3402, %v2781, %v2831
    %v3408 = vsel %vm3402, %v2783, %v2833
    %v3410 = vsel %vm3402, %v2785, %v2835
    %v3412 = vsel %vm3402, %v2787, %v2837
    %v3414 = vsel %vm3402, %v2789, %v2839
    %v3416 = vsel %vm3402, %v2791, %v2841
    %v3418 = vsel %vm3402, %v2793, %v2843
    %v3420 = vsel %vm3402, %v2795, %v2845
    %v3422 = vsel %vm3402, %v2797, %v2847
    %v3424 = vsel %vm3402, %v2799, %v2849
    %v3426 = vsel %vm3402, %v2801, %v2851
    %vm3427 = vcmask 261120
    %v3429 = vsel %vm3427, %v3404, %v2905
    %v3431 = vsel %vm3427, %v3406, %v2907
    %v3433 = vsel %vm3427, %v3408, %v2909
    %v3435 = vsel %vm3427, %v3410, %v2911
    %v3437 = vsel %vm3427, %v3412, %v2913
    %v3439 = vsel %vm3427, %v3414, %v2915
    %v3441 = vsel %vm3427, %v3416, %v2917
    %v3443 = vsel %vm3427, %v3418, %v2919
    %v3445 = vsel %vm3427, %v3420, %v2921
    %v3447 = vsel %vm3427, %v3422, %v2923
    %v3449 = vsel %vm3427, %v3424, %v2925
    %v3451 = vsel %vm3427, %v3426, %v2927
    %vm3452 = vcmask 424960
    %v3454 = vsel %vm3452, %v3429, %v2930
    %v3456 = vsel %vm3452, %v3431, %v2932
    %v3458 = vsel %vm3452, %v3433, %v2934
    %v3460 = vsel %vm3452, %v3435, %v2936
    %v3462 = vsel %vm3452, %v3437, %v2938
    %v3464 = vsel %vm3452, %v3439, %v2940
    %v3466 = vsel %vm3452, %v3441, %v2942
    %v3468 = vsel %vm3452, %v3443, %v2944
    %v3470 = vsel %vm3452, %v3445, %v2946
    %v3472 = vsel %vm3452, %v3447, %v2948
    %v3474 = vsel %vm3452, %v3449, %v2950
    %v3476 = vsel %vm3452, %v3451, %v2952
    %vm3477 = vcmask 588800
    %v3479 = vsel %vm3477, %v3454, %v2957
    %v3481 = vsel %vm3477, %v3456, %v2959
    %v3483 = vsel %vm3477, %v3458, %v2961
    %v3485 = vsel %vm3477, %v3460, %v2963
    %v3487 = vsel %vm3477, %v3462, %v2965
    %v3489 = vsel %vm3477, %v3464, %v2967
    %v3491 = vsel %vm3477, %v3466, %v2969
    %v3493 = vsel %vm3477, %v3468, %v2971
    %v3495 = vsel %vm3477, %v3470, %v2973
    %v3497 = vsel %vm3477, %v3472, %v2975
    %v3499 = vsel %vm3477, %v3474, %v2977
    %v3501 = vsel %vm3477, %v3476, %v2979
    %vm3502 = vcmask 752640
    %v3504 = vsel %vm3502, %v3479, %v3029
    %v3506 = vsel %vm3502, %v3481, %v3031
    %v3508 = vsel %vm3502, %v3483, %v3033
    %v3510 = vsel %vm3502, %v3485, %v3035
    %v3512 = vsel %vm3502, %v3487, %v3037
    %v3514 = vsel %vm3502, %v3489, %v3039
    %v3516 = vsel %vm3502, %v3491, %v3041
    %v3518 = vsel %vm3502, %v3493, %v3043
    %v3520 = vsel %vm3502, %v3495, %v3045
    %v3522 = vsel %vm3502, %v3497, %v3047
    %v3524 = vsel %vm3502, %v3499, %v3049
    %v3526 = vsel %vm3502, %v3501, %v3051
    %vm3527 = vcmask 916480
    %v3529 = vsel %vm3527, %v3504, %v3078
    %v3532 = vsel %vm3527, %v3506, %v3080
    %v3535 = vsel %vm3527, %v3508, %v3082
    %v3538 = vsel %vm3527, %v3510, %v3084
    %v3541 = vsel %vm3527, %v3512, %v3086
    %v3544 = vsel %vm3527, %v3514, %v3088
    %v3547 = vsel %vm3527, %v3516, %v3090
    %v3550 = vsel %vm3527, %v3518, %v3092
    %v3553 = vsel %vm3527, %v3520, %v3094
    %v3556 = vsel %vm3527, %v3522, %v3096
    %v3559 = vsel %vm3527, %v3524, %v3098
    %v3562 = vsel %vm3527, %v3526, %v3100
    %vm3564 = vcmask 31744
    %v3566 = vsel %vm3564, %v3078, %v3155
    %v3568 = vsel %vm3564, %v3080, %v3157
    %v3570 = vsel %vm3564, %v3082, %v3159
    %v3572 = vsel %vm3564, %v3084, %v3161
    %v3574 = vsel %vm3564, %v3086, %v3163
    %v3576 = vsel %vm3564, %v3088, %v3165
    %v3578 = vsel %vm3564, %v3090, %v3167
    %v3580 = vsel %vm3564, %v3092, %v3169
    %v3582 = vsel %vm3564, %v3094, %v3171
    %v3584 = vsel %vm3564, %v3096, %v3173
    %v3586 = vsel %vm3564, %v3098, %v3175
    %v3588 = vsel %vm3564, %v3100, %v3177
    %vm3589 = vcmask 195584
    %v3591 = vsel %vm3589, %v3566, %v3183
    %v3593 = vsel %vm3589, %v3568, %v3185
    %v3595 = vsel %vm3589, %v3570, %v3187
    %v3597 = vsel %vm3589, %v3572, %v3189
    %v3599 = vsel %vm3589, %v3574, %v3191
    %v3601 = vsel %vm3589, %v3576, %v3193
    %v3603 = vsel %vm3589, %v3578, %v3195
    %v3605 = vsel %vm3589, %v3580, %v3197
    %v3607 = vsel %vm3589, %v3582, %v3199
    %v3609 = vsel %vm3589, %v3584, %v3201
    %v3611 = vsel %vm3589, %v3586, %v3203
    %v3613 = vsel %vm3589, %v3588, %v3205
    %vm3614 = vcmask 359424
    %v3616 = vsel %vm3614, %v3591, %v3217
    %v3618 = vsel %vm3614, %v3593, %v3219
    %v3620 = vsel %vm3614, %v3595, %v3221
    %v3622 = vsel %vm3614, %v3597, %v3223
    %v3624 = vsel %vm3614, %v3599, %v3225
    %v3626 = vsel %vm3614, %v3601, %v3227
    %v3628 = vsel %vm3614, %v3603, %v3229
    %v3630 = vsel %vm3614, %v3605, %v3231
    %v3632 = vsel %vm3614, %v3607, %v3233
    %v3634 = vsel %vm3614, %v3609, %v3235
    %v3636 = vsel %vm3614, %v3611, %v3237
    %v3638 = vsel %vm3614, %v3613, %v3239
    %v3640 = vshll.u32 %v2928, 16
    %v3642 = vrot.slane %v3640, 1
    %v3643 = vsel %vm2294, %v2389, %v3642
    %v3644 = vshrl.u32 %v2928, 16
    %v3646 = vor.u32 %v3644, %v3642
    %v3648 = vshll.u32 %v3208, 16
    %v3650 = vrot.slane %v3648, 1
    %v3651 = vsel %vm2294, %v3646, %v3650
    %v3652 = vshrl.u32 %v3208, 16
    %v3654 = vor.u32 %v3652, %v3650
    %v3656 = vshll.u32 %v3209, 16
    %v3658 = vrot.slane %v3656, 1
    %v3659 = vsel %vm2294, %v3654, %v3658
    %v3660 = vshrl.u32 %v3209, 16
    %v3662 = vor.u32 %v3660, %v3658
    %3663 = vrot.lane.b32.xlu0 %v3643, 20
    %v3664 = vpop.permute.xlu0 %3663
    %3665 = vrot.lane.b32.xlu0 %v3651, 20
    %v3666 = vpop.permute.xlu0 %3665
    %3667 = vrot.lane.b32.xlu0 %v3659, 20
    %v3668 = vpop.permute.xlu0 %3667
    %3669 = vrot.lane.b32.xlu0 %v3662, 20
    %v3670 = vpop.permute.xlu0 %3669
    %v3671 = vrot.slane %v2928, 1
    %v3672 = vsel %vm2419, %v2441, %v3671
    %v3673 = vrot.slane %v3208, 1
    %v3674 = vsel %vm2419, %v3671, %v3673
    %v3675 = vrot.slane %v3209, 1
    %v3676 = vsel %vm2419, %v3673, %v3675
    %3677 = vrot.lane.b32.xlu0 %v3672, 40
    %v3678 = vpop.permute.xlu0 %3677
    %3679 = vrot.lane.b32.xlu0 %v3674, 40
    %v3680 = vpop.permute.xlu0 %3679
    %3681 = vrot.lane.b32.xlu0 %v3676, 40
    %v3682 = vpop.permute.xlu0 %3681
    %3683 = vrot.lane.b32.xlu0 %v3675, 40
    %v3684 = vpop.permute.xlu0 %3683
    %v3685 = vpack.c.b16 %v3207, %v2981
    %vm3686 = vsmask.f32 2304
    %v3687 = vrot.slane %v2680, 5
    %v3688 = vrot.slane %v2683, 6
    %v3689 = vor.u32 %v3687, %v3688
    %v3690 = vrot.slane %v2689, 5
    %v3691 = vrot.slane %v2692, 6
    %v3692 = vor.u32 %v3690, %v3691
    %v3693 = vsel %vm3686, %v3689, %v3692
    %v3694 = vrot.slane %v2698, 5
    %v3695 = vrot.slane %v2701, 6
    %v3696 = vor.u32 %v3694, %v3695
    %v3697 = vsel %vm3686, %v3692, %v3696
    %v3698 = vrot.slane %v2707, 5
    %v3699 = vrot.slane %v2710, 6
    %v3700 = vor.u32 %v3698, %v3699
    %v3701 = vsel %vm3686, %v3696, %v3700
    %v3702 = vrot.slane %v2716, 5
    %v3703 = vrot.slane %v2719, 6
    %v3704 = vor.u32 %v3702, %v3703
    %v3705 = vsel %vm3686, %v3700, %v3704
    %v3706 = vrot.slane %v2725, 5
    %v3707 = vrot.slane %v2728, 6
    %v3708 = vor.u32 %v3706, %v3707
    %v3709 = vsel %vm3686, %v3704, %v3708
    %v3710 = vrot.slane %v2734, 5
    %v3711 = vrot.slane %v2737, 6
    %v3712 = vor.u32 %v3710, %v3711
    %v3713 = vsel %vm3686, %v3708, %v3712
    %v3714 = vrot.slane %v2743, 5
    %v3715 = vrot.slane %v2746, 6
    %v3716 = vor.u32 %v3714, %v3715
    %v3717 = vsel %vm3686, %v3712, %v3716
    %v3718 = vrot.slane %v2752, 5
    %v3719 = vrot.slane %v2755, 6
    %v3720 = vor.u32 %v3718, %v3719
    %v3721 = vsel %vm3686, %v3716, %v3720
    %v3722 = vrot.slane %v2761, 5
    %v3723 = vrot.slane %v2764, 6
    %v3724 = vor.u32 %v3722, %v3723
    %v3725 = vsel %vm3686, %v3720, %v3724
    %v3726 = vrot.slane %v3020, 5
    %v3727 = vrot.slane %v3016, 6
    %v3728 = vor.u32 %v3726, %v3727
    %v3729 = vsel %vm3686, %v3724, %v3728
    %v3731 = vshrl.u32 %v3685, 16
    %v3733 = vrot.slane %v3731, 5
    %v3734 = vshll.u32 %v3685, 16
    %v3736 = vrot.slane %v3734, 6
    %v3737 = vor.u32 %v3733, %v3736
    %v3738 = vsel %vm3686, %v3728, %v3737
    %3739 = vrot.lane.b32.xlu0 %v3689, 60
    %v3740 = vpop.permute.xlu0 %3739
    %3741 = vrot.lane.b32.xlu0 %v3693, 60
    %v3742 = vpop.permute.xlu0 %3741
    %3743 = vrot.lane.b32.xlu0 %v3697, 60
    %v3744 = vpop.permute.xlu0 %3743
    %3745 = vrot.lane.b32.xlu0 %v3701, 60
    %v3746 = vpop.permute.xlu0 %3745
    %3747 = vrot.lane.b32.xlu0 %v3705, 60
    %v3748 = vpop.permute.xlu0 %3747
    %3749 = vrot.lane.b32.xlu0 %v3709, 60
    %v3750 = vpop.permute.xlu0 %3749
    %3751 = vrot.lane.b32.xlu0 %v3713, 60
    %v3752 = vpop.permute.xlu0 %3751
    %3753 = vrot.lane.b32.xlu0 %v3717, 60
    %v3754 = vpop.permute.xlu0 %3753
    %3755 = vrot.lane.b32.xlu0 %v3721, 60
    %v3756 = vpop.permute.xlu0 %3755
    %3757 = vrot.lane.b32.xlu0 %v3725, 60
    %v3758 = vpop.permute.xlu0 %3757
    %3759 = vrot.lane.b32.xlu0 %v3729, 60
    %v3760 = vpop.permute.xlu0 %3759
    %3761 = vrot.lane.b32.xlu0 %v3738, 60
    %v3762 = vpop.permute.xlu0 %3761
    %3763 = vrot.lane.b32.xlu0 %v3737, 60
    %v3764 = vpop.permute.xlu0 %3763
    %v3766 = vunpack.c.l.b16 %v2199
    %v3767 = vpack.c.b16 %v3766, %v3207
    %v3768 = vrot.slane %v2323, 5
    %v3769 = vrot.slane %v2319, 6
    %v3770 = vor.u32 %v3768, %v3769
    %v3771 = vrot.slane %v2331, 5
    %v3772 = vrot.slane %v2327, 6
    %v3773 = vor.u32 %v3771, %v3772
    %v3774 = vsel %vm3686, %v3770, %v3773
    %v3775 = vrot.slane %v2339, 5
    %v3776 = vrot.slane %v2335, 6
    %v3777 = vor.u32 %v3775, %v3776
    %v3778 = vsel %vm3686, %v3773, %v3777
    %v3779 = vrot.slane %v2347, 5
    %v3780 = vrot.slane %v2343, 6
    %v3781 = vor.u32 %v3779, %v3780
    %v3782 = vsel %vm3686, %v3777, %v3781
    %v3783 = vrot.slane %v2355, 5
    %v3784 = vrot.slane %v2351, 6
    %v3785 = vor.u32 %v3783, %v3784
    %v3786 = vsel %vm3686, %v3781, %v3785
    %v3787 = vrot.slane %v2363, 5
    %v3788 = vrot.slane %v2359, 6
    %v3789 = vor.u32 %v3787, %v3788
    %v3790 = vsel %vm3686, %v3785, %v3789
    %v3791 = vrot.slane %v2371, 5
    %v3792 = vrot.slane %v2367, 6
    %v3793 = vor.u32 %v3791, %v3792
    %v3794 = vsel %vm3686, %v3789, %v3793
    %v3795 = vrot.slane %v2379, 5
    %v3796 = vrot.slane %v2375, 6
    %v3797 = vor.u32 %v3795, %v3796
    %v3798 = vsel %vm3686, %v3793, %v3797
    %v3799 = vrot.slane %v2387, 5
    %v3800 = vrot.slane %v2383, 6
    %v3801 = vor.u32 %v3799, %v3800
    %v3802 = vsel %vm3686, %v3797, %v3801
    %v3803 = vrot.slane %v3644, 5
    %v3804 = vrot.slane %v3640, 6
    %v3805 = vor.u32 %v3803, %v3804
    %v3806 = vsel %vm3686, %v3801, %v3805
    %v3807 = vrot.slane %v3652, 5
    %v3808 = vrot.slane %v3648, 6
    %v3809 = vor.u32 %v3807, %v3808
    %v3810 = vsel %vm3686, %v3805, %v3809
    %v3812 = vshrl.u32 %v3767, 16
    %v3814 = vrot.slane %v3812, 5
    %v3815 = vshll.u32 %v3767, 16
    %v3817 = vrot.slane %v3815, 6
    %v3818 = vor.u32 %v3814, %v3817
    %v3819 = vsel %vm3686, %v3809, %v3818
    %3820 = vrot.lane.b32.xlu0 %v3770, 80
    %v3821 = vpop.permute.xlu0 %3820
    %3822 = vrot.lane.b32.xlu0 %v3774, 80
    %v3823 = vpop.permute.xlu0 %3822
    %3824 = vrot.lane.b32.xlu0 %v3778, 80
    %v3825 = vpop.permute.xlu0 %3824
    %3826 = vrot.lane.b32.xlu0 %v3782, 80
    %v3827 = vpop.permute.xlu0 %3826
    %3828 = vrot.lane.b32.xlu0 %v3786, 80
    %v3829 = vpop.permute.xlu0 %3828
    %3830 = vrot.lane.b32.xlu0 %v3790, 80
    %v3831 = vpop.permute.xlu0 %3830
    %3832 = vrot.lane.b32.xlu0 %v3794, 80
    %v3833 = vpop.permute.xlu0 %3832
    %3834 = vrot.lane.b32.xlu0 %v3798, 80
    %v3835 = vpop.permute.xlu0 %3834
    %3836 = vrot.lane.b32.xlu0 %v3802, 80
    %v3837 = vpop.permute.xlu0 %3836
    %3838 = vrot.lane.b32.xlu0 %v3806, 80
    %v3839 = vpop.permute.xlu0 %3838
    %3840 = vrot.lane.b32.xlu0 %v3810, 80
    %v3841 = vpop.permute.xlu0 %3840
    %3842 = vrot.lane.b32.xlu0 %v3819, 80
    %v3843 = vpop.permute.xlu0 %3842
    %3844 = vrot.lane.b32.xlu0 %v3818, 80
    %v3845 = vpop.permute.xlu0 %3844
    %v3847 = vunpack.c.l.b16 %v2200
    %v3848 = vpack.c.b16 %v3847, %v3847
    %vm3849 = vcmask 1041408
    %v3850 = vrot.slane %v2282, 6
    %v3851 = vrot.slane %v2283, 6
    %v3852 = vsel %vm3849, %v3850, %v3851
    %v3853 = vrot.slane %v2284, 6
    %v3854 = vsel %vm3849, %v3851, %v3853
    %v3855 = vrot.slane %v2285, 6
    %v3856 = vsel %vm3849, %v3853, %v3855
    %v3857 = vrot.slane %v2286, 6
    %v3858 = vsel %vm3849, %v3855, %v3857
    %v3859 = vrot.slane %v2287, 6
    %v3860 = vsel %vm3849, %v3857, %v3859
    %v3861 = vrot.slane %v2288, 6
    %v3862 = vsel %vm3849, %v3859, %v3861
    %v3863 = vrot.slane %v2289, 6
    %v3864 = vsel %vm3849, %v3861, %v3863
    %v3865 = vrot.slane %v2290, 6
    %v3866 = vsel %vm3849, %v3863, %v3865
    %v3867 = vrot.slane %v2928, 6
    %v3868 = vsel %vm3849, %v3865, %v3867
    %v3869 = vrot.slane %v3208, 6
    %v3870 = vsel %vm3849, %v3867, %v3869
    %v3871 = vrot.slane %v3767, 6
    %v3872 = vsel %vm3849, %v3869, %v3871
    %v3873 = vrot.slane %v3848, 6
    %v3874 = vsel %vm3849, %v3871, %v3873
    %3875 = vrot.lane.b32.xlu0 %v3850, 100
    %v3876 = vpop.permute.xlu0 %3875
    %3877 = vrot.lane.b32.xlu0 %v3852, 100
    %v3878 = vpop.permute.xlu0 %3877
    %3879 = vrot.lane.b32.xlu0 %v3854, 100
    %v3880 = vpop.permute.xlu0 %3879
    %3881 = vrot.lane.b32.xlu0 %v3856, 100
    %v3882 = vpop.permute.xlu0 %3881
    %3883 = vrot.lane.b32.xlu0 %v3858, 100
    %v3884 = vpop.permute.xlu0 %3883
    %3885 = vrot.lane.b32.xlu0 %v3860, 100
    %v3886 = vpop.permute.xlu0 %3885
    %3887 = vrot.lane.b32.xlu0 %v3862, 100
    %v3888 = vpop.permute.xlu0 %3887
    %3889 = vrot.lane.b32.xlu0 %v3864, 100
    %v3890 = vpop.permute.xlu0 %3889
    %3891 = vrot.lane.b32.xlu0 %v3866, 100
    %v3892 = vpop.permute.xlu0 %3891
    %3893 = vrot.lane.b32.xlu0 %v3868, 100
    %v3894 = vpop.permute.xlu0 %3893
    %3895 = vrot.lane.b32.xlu0 %v3870, 100
    %v3896 = vpop.permute.xlu0 %3895
    %3897 = vrot.lane.b32.xlu0 %v3872, 100
    %v3898 = vpop.permute.xlu0 %3897
    %3899 = vrot.lane.b32.xlu0 %v3874, 100
    %v3900 = vpop.permute.xlu0 %3899
    %vm3901 = vsmask.f32 1280
    %v3902 = vrot.slane %v2323, 6
    %v3903 = vrot.slane %v2319, 7
    %v3904 = vor.u32 %v3902, %v3903
    %v3905 = vrot.slane %v2331, 6
    %v3906 = vrot.slane %v2327, 7
    %v3907 = vor.u32 %v3905, %v3906
    %v3908 = vsel %vm3901, %v3904, %v3907
    %v3909 = vrot.slane %v2339, 6
    %v3910 = vrot.slane %v2335, 7
    %v3911 = vor.u32 %v3909, %v3910
    %v3912 = vsel %vm3901, %v3907, %v3911
    %v3913 = vrot.slane %v2347, 6
    %v3914 = vrot.slane %v2343, 7
    %v3915 = vor.u32 %v3913, %v3914
    %v3916 = vsel %vm3901, %v3911, %v3915
    %v3917 = vrot.slane %v2355, 6
    %v3918 = vrot.slane %v2351, 7
    %v3919 = vor.u32 %v3917, %v3918
    %v3920 = vsel %vm3901, %v3915, %v3919
    %v3921 = vrot.slane %v2363, 6
    %v3922 = vrot.slane %v2359, 7
    %v3923 = vor.u32 %v3921, %v3922
    %v3924 = vsel %vm3901, %v3919, %v3923
    %v3925 = vrot.slane %v2371, 6
    %v3926 = vrot.slane %v2367, 7
    %v3927 = vor.u32 %v3925, %v3926
    %v3928 = vsel %vm3901, %v3923, %v3927
    %v3929 = vrot.slane %v2379, 6
    %v3930 = vrot.slane %v2375, 7
    %v3931 = vor.u32 %v3929, %v3930
    %v3932 = vsel %vm3901, %v3927, %v3931
    %v3933 = vrot.slane %v2387, 6
    %v3934 = vrot.slane %v2383, 7
    %v3935 = vor.u32 %v3933, %v3934
    %v3936 = vsel %vm3901, %v3931, %v3935
    %v3937 = vrot.slane %v3644, 6
    %v3938 = vrot.slane %v3640, 7
    %v3939 = vor.u32 %v3937, %v3938
    %v3940 = vsel %vm3901, %v3935, %v3939
    %v3941 = vrot.slane %v3652, 6
    %v3942 = vrot.slane %v3648, 7
    %v3943 = vor.u32 %v3941, %v3942
    %v3944 = vsel %vm3901, %v3939, %v3943
    %v3945 = vrot.slane %v3812, 6
    %v3946 = vrot.slane %v3815, 7
    %v3947 = vor.u32 %v3945, %v3946
    %v3948 = vsel %vm3901, %v3943, %v3947
    %v3950 = vshrl.u32 %v3848, 16
    %v3952 = vrot.slane %v3950, 6
    %v3953 = vshll.u32 %v3848, 16
    %v3955 = vrot.slane %v3953, 7
    %v3956 = vor.u32 %v3952, %v3955
    %v3957 = vsel %vm3901, %v3947, %v3956
    %3958 = vrot.lane.b32.xlu0 %v3904, 120
    %v3959 = vpop.permute.xlu0 %3958
    %3960 = vrot.lane.b32.xlu0 %v3908, 120
    %v3961 = vpop.permute.xlu0 %3960
    %3962 = vrot.lane.b32.xlu0 %v3912, 120
    %v3963 = vpop.permute.xlu0 %3962
    %3964 = vrot.lane.b32.xlu0 %v3916, 120
    %v3965 = vpop.permute.xlu0 %3964
    %3966 = vrot.lane.b32.xlu0 %v3920, 120
    %v3967 = vpop.permute.xlu0 %3966
    %3968 = vrot.lane.b32.xlu0 %v3924, 120
    %v3969 = vpop.permute.xlu0 %3968
    %3970 = vrot.lane.b32.xlu0 %v3928, 120
    %v3971 = vpop.permute.xlu0 %3970
    %3972 = vrot.lane.b32.xlu0 %v3932, 120
    %v3973 = vpop.permute.xlu0 %3972
    %3974 = vrot.lane.b32.xlu0 %v3936, 120
    %v3975 = vpop.permute.xlu0 %3974
    %3976 = vrot.lane.b32.xlu0 %v3940, 120
    %v3977 = vpop.permute.xlu0 %3976
    %3978 = vrot.lane.b32.xlu0 %v3944, 120
    %v3979 = vpop.permute.xlu0 %3978
    %3980 = vrot.lane.b32.xlu0 %v3948, 120
    %v3981 = vpop.permute.xlu0 %3980
    %3982 = vrot.lane.b32.xlu0 %v3957, 120
    %v3983 = vpop.permute.xlu0 %3982
    %vm3984 = vcmask 1040384
    %v3985 = vrot.slane %v2282, 7
    %v3986 = vrot.slane %v2283, 7
    %v3987 = vsel %vm3984, %v3985, %v3986
    %v3988 = vrot.slane %v2284, 7
    %v3989 = vsel %vm3984, %v3986, %v3988
    %v3990 = vrot.slane %v2285, 7
    %v3991 = vsel %vm3984, %v3988, %v3990
    %v3992 = vrot.slane %v2286, 7
    %v3993 = vsel %vm3984, %v3990, %v3992
    %v3994 = vrot.slane %v2287, 7
    %v3995 = vsel %vm3984, %v3992, %v3994
    %v3996 = vrot.slane %v2288, 7
    %v3997 = vsel %vm3984, %v3994, %v3996
    %v3998 = vrot.slane %v2289, 7
    %v3999 = vsel %vm3984, %v3996, %v3998
    %v4000 = vrot.slane %v2290, 7
    %v4001 = vsel %vm3984, %v3998, %v4000
    %v4002 = vrot.slane %v2928, 7
    %v4003 = vsel %vm3984, %v4000, %v4002
    %v4004 = vrot.slane %v3208, 7
    %v4005 = vsel %vm3984, %v4002, %v4004
    %v4006 = vrot.slane %v3767, 7
    %v4007 = vsel %vm3984, %v4004, %v4006
    %v4008 = vrot.slane %v3848, 7
    %v4009 = vsel %vm3984, %v4006, %v4008
    %4010 = vrot.lane.b32.xlu0 %v3985, 12
    %v4011 = vpop.permute.xlu0 %4010
    %4012 = vrot.lane.b32.xlu0 %v3987, 12
    %v4013 = vpop.permute.xlu0 %4012
    %4014 = vrot.lane.b32.xlu0 %v3989, 12
    %v4015 = vpop.permute.xlu0 %4014
    %4016 = vrot.lane.b32.xlu0 %v3991, 12
    %v4017 = vpop.permute.xlu0 %4016
    %4018 = vrot.lane.b32.xlu0 %v3993, 12
    %v4019 = vpop.permute.xlu0 %4018
    %4020 = vrot.lane.b32.xlu0 %v3995, 12
    %v4021 = vpop.permute.xlu0 %4020
    %4022 = vrot.lane.b32.xlu0 %v3997, 12
    %v4023 = vpop.permute.xlu0 %4022
    %4024 = vrot.lane.b32.xlu0 %v3999, 12
    %v4025 = vpop.permute.xlu0 %4024
    %4026 = vrot.lane.b32.xlu0 %v4001, 12
    %v4027 = vpop.permute.xlu0 %4026
    %4028 = vrot.lane.b32.xlu0 %v4003, 12
    %v4029 = vpop.permute.xlu0 %4028
    %4030 = vrot.lane.b32.xlu0 %v4005, 12
    %v4031 = vpop.permute.xlu0 %4030
    %4032 = vrot.lane.b32.xlu0 %v4007, 12
    %v4033 = vpop.permute.xlu0 %4032
    %4034 = vrot.lane.b32.xlu0 %v4009, 12
    %v4035 = vpop.permute.xlu0 %4034
    %vm4036 = vsmask.f32 256
    %v4037 = vrot.slane %v2323, 7
    %v4038 = vor.u32 %v4037, %v2319
    %v4039 = vrot.slane %v2331, 7
    %v4040 = vor.u32 %v4039, %v2327
    %v4041 = vsel %vm4036, %v4037, %v4040
    %v4042 = vrot.slane %v2339, 7
    %v4043 = vor.u32 %v4042, %v2335
    %v4044 = vsel %vm4036, %v4039, %v4043
    %v4045 = vrot.slane %v2347, 7
    %v4046 = vor.u32 %v4045, %v2343
    %v4047 = vsel %vm4036, %v4042, %v4046
    %v4048 = vrot.slane %v2355, 7
    %v4049 = vor.u32 %v4048, %v2351
    %v4050 = vsel %vm4036, %v4045, %v4049
    %v4051 = vrot.slane %v2363, 7
    %v4052 = vor.u32 %v4051, %v2359
    %v4053 = vsel %vm4036, %v4048, %v4052
    %v4054 = vrot.slane %v2371, 7
    %v4055 = vor.u32 %v4054, %v2367
    %v4056 = vsel %vm4036, %v4051, %v4055
    %v4057 = vrot.slane %v2379, 7
    %v4058 = vor.u32 %v4057, %v2375
    %v4059 = vsel %vm4036, %v4054, %v4058
    %v4060 = vrot.slane %v2387, 7
    %v4061 = vor.u32 %v4060, %v2383
    %v4062 = vsel %vm4036, %v4057, %v4061
    %v4063 = vrot.slane %v3644, 7
    %v4064 = vor.u32 %v4063, %v3640
    %v4065 = vsel %vm4036, %v4060, %v4064
    %v4066 = vrot.slane %v3652, 7
    %v4067 = vor.u32 %v4066, %v3648
    %v4068 = vsel %vm4036, %v4063, %v4067
    %v4069 = vrot.slane %v3812, 7
    %v4070 = vor.u32 %v4069, %v3815
    %v4071 = vsel %vm4036, %v4066, %v4070
    %v4072 = vrot.slane %v3950, 7
    %v4073 = vor.u32 %v4072, %v3953
    %v4074 = vsel %vm4036, %v4069, %v4073
    %4075 = vrot.lane.b32.xlu0 %v4038, 32
    %v4076 = vpop.permute.xlu0 %4075
    %4077 = vrot.lane.b32.xlu0 %v4041, 32
    %v4078 = vpop.permute.xlu0 %4077
    %4079 = vrot.lane.b32.xlu0 %v4044, 32
    %v4080 = vpop.permute.xlu0 %4079
    %4081 = vrot.lane.b32.xlu0 %v4047, 32
    %v4082 = vpop.permute.xlu0 %4081
    %4083 = vrot.lane.b32.xlu0 %v4050, 32
    %v4084 = vpop.permute.xlu0 %4083
    %4085 = vrot.lane.b32.xlu0 %v4053, 32
    %v4086 = vpop.permute.xlu0 %4085
    %4087 = vrot.lane.b32.xlu0 %v4056, 32
    %v4088 = vpop.permute.xlu0 %4087
    %4089 = vrot.lane.b32.xlu0 %v4059, 32
    %v4090 = vpop.permute.xlu0 %4089
    %4091 = vrot.lane.b32.xlu0 %v4062, 32
    %v4092 = vpop.permute.xlu0 %4091
    %4093 = vrot.lane.b32.xlu0 %v4065, 32
    %v4094 = vpop.permute.xlu0 %4093
    %4095 = vrot.lane.b32.xlu0 %v4068, 32
    %v4096 = vpop.permute.xlu0 %4095
    %4097 = vrot.lane.b32.xlu0 %v4071, 32
    %v4098 = vpop.permute.xlu0 %4097
    %4099 = vrot.lane.b32.xlu0 %v4074, 32
    %v4100 = vpop.permute.xlu0 %4099
    %v4102 = vsel %vm3240, %v2290, %v3664
    %v4104 = vsel %vm3240, %v2928, %v3666
    %v4106 = vsel %vm3240, %v3208, %v3668
    %v4108 = vsel %vm3240, %v3209, %v3670
    %v4110 = vsel %vm3265, %v4102, %v3678
    %v4112 = vsel %vm3265, %v4104, %v3680
    %v4114 = vsel %vm3265, %v4106, %v3682
    %v4116 = vsel %vm3265, %v4108, %v3684
    %v4118 = vsel %vm3290, %v3271, %v3740
    %v4120 = vsel %vm3290, %v3273, %v3742
    %v4122 = vsel %vm3290, %v3275, %v3744
    %v4124 = vsel %vm3290, %v3277, %v3746
    %v4126 = vsel %vm3290, %v3279, %v3748
    %v4128 = vsel %vm3290, %v3281, %v3750
    %v4130 = vsel %vm3290, %v3283, %v3752
    %v4132 = vsel %vm3290, %v3285, %v3754
    %v4134 = vsel %vm3290, %v3287, %v3756
    %v4136 = vsel %vm3290, %v4110, %v3758
    %v4138 = vsel %vm3290, %v4112, %v3760
    %v4140 = vsel %vm3290, %v4114, %v3762
    %v4142 = vsel %vm3290, %v4116, %v3764
    %v4144 = vsel %vm3315, %v4118, %v3821
    %v4146 = vsel %vm3315, %v4120, %v3823
    %v4148 = vsel %vm3315, %v4122, %v3825
    %v4150 = vsel %vm3315, %v4124, %v3827
    %v4152 = vsel %vm3315, %v4126, %v3829
    %v4154 = vsel %vm3315, %v4128, %v3831
    %v4156 = vsel %vm3315, %v4130, %v3833
    %v4158 = vsel %vm3315, %v4132, %v3835
    %v4160 = vsel %vm3315, %v4134, %v3837
    %v4162 = vsel %vm3315, %v4136, %v3839
    %v4164 = vsel %vm3315, %v4138, %v3841
    %v4166 = vsel %vm3315, %v4140, %v3843
    %v4168 = vsel %vm3315, %v4142, %v3845
    %v4170 = vsel %vm3340, %v4144, %v3876
    %v4172 = vsel %vm3340, %v4146, %v3878
    %v4174 = vsel %vm3340, %v4148, %v3880
    %v4176 = vsel %vm3340, %v4150, %v3882
    %v4178 = vsel %vm3340, %v4152, %v3884
    %v4180 = vsel %vm3340, %v4154, %v3886
    %v4182 = vsel %vm3340, %v4156, %v3888
    %v4184 = vsel %vm3340, %v4158, %v3890
    %v4186 = vsel %vm3340, %v4160, %v3892
    %v4188 = vsel %vm3340, %v4162, %v3894
    %v4190 = vsel %vm3340, %v4164, %v3896
    %v4192 = vsel %vm3340, %v4166, %v3898
    %v4194 = vsel %vm3340, %v4168, %v3900
    %v4196 = vsel %vm3365, %v4170, %v3959
    %v4198 = vsel %vm3365, %v4172, %v3961
    %v4200 = vsel %vm3365, %v4174, %v3963
    %v4202 = vsel %vm3365, %v4176, %v3965
    %v4204 = vsel %vm3365, %v4178, %v3967
    %v4206 = vsel %vm3365, %v4180, %v3969
    %v4208 = vsel %vm3365, %v4182, %v3971
    %v4210 = vsel %vm3365, %v4184, %v3973
    %v4212 = vsel %vm3365, %v4186, %v3975
    %v4214 = vsel %vm3365, %v4188, %v3977
    %v4216 = vsel %vm3365, %v4190, %v3979
    %v4218 = vsel %vm3365, %v4192, %v3981
    %v4220 = vsel %vm3365, %v4194, %v3983
    %v4222 = vsel %vm3402, %v3959, %v4011
    %v4224 = vsel %vm3402, %v3961, %v4013
    %v4226 = vsel %vm3402, %v3963, %v4015
    %v4228 = vsel %vm3402, %v3965, %v4017
    %v4230 = vsel %vm3402, %v3967, %v4019
    %v4232 = vsel %vm3402, %v3969, %v4021
    %v4234 = vsel %vm3402, %v3971, %v4023
    %v4236 = vsel %vm3402, %v3973, %v4025
    %v4238 = vsel %vm3402, %v3975, %v4027
    %v4240 = vsel %vm3402, %v3977, %v4029
    %v4242 = vsel %vm3402, %v3979, %v4031
    %v4244 = vsel %vm3402, %v3981, %v4033
    %v4246 = vsel %vm3402, %v3983, %v4035
    %v4248 = vsel %vm3427, %v4222, %v4076
    %v4250 = vsel %vm3427, %v4224, %v4078
    %v4252 = vsel %vm3427, %v4226, %v4080
    %v4254 = vsel %vm3427, %v4228, %v4082
    %v4256 = vsel %vm3427, %v4230, %v4084
    %v4258 = vsel %vm3427, %v4232, %v4086
    %v4260 = vsel %vm3427, %v4234, %v4088
    %v4262 = vsel %vm3427, %v4236, %v4090
    %v4264 = vsel %vm3427, %v4238, %v4092
    %v4266 = vsel %vm3427, %v4240, %v4094
    %v4268 = vsel %vm3427, %v4242, %v4096
    %v4270 = vsel %vm3427, %v4244, %v4098
    %v4272 = vsel %vm3427, %v4246, %v4100
    %v4273 = vshrl.u32 %v4196, 16
    %v4275 = vrot.slane %v4273, 2
    %v4276 = vshll.u32 %v4196, 16
    %v4278 = vrot.slane %v4276, 3
    %v4279 = vor.u32 %v4275, %v4278
    %v4280 = vshrl.u32 %v4198, 16
    %v4282 = vrot.slane %v4280, 2
    %v4283 = vshll.u32 %v4198, 16
    %v4285 = vrot.slane %v4283, 3
    %v4286 = vor.u32 %v4282, %v4285
    %v4287 = vsel %vm2661, %v4279, %v4286
    %v4288 = vshrl.u32 %v4248, 16
    %v4290 = vrot.slane %v4288, 2
    %v4291 = vshll.u32 %v4248, 16
    %v4293 = vrot.slane %v4291, 3
    %v4294 = vor.u32 %v4290, %v4293
    %v4295 = vshrl.u32 %v4250, 16
    %v4297 = vrot.slane %v4295, 2
    %v4298 = vshll.u32 %v4250, 16
    %v4300 = vrot.slane %v4298, 3
    %v4301 = vor.u32 %v4297, %v4300
    %v4302 = vsel %vm2661, %v4294, %v4301
    %v4303 = vshrl.u32 %v4200, 16
    %v4305 = vrot.slane %v4303, 2
    %v4306 = vshll.u32 %v4200, 16
    %v4308 = vrot.slane %v4306, 3
    %v4309 = vor.u32 %v4305, %v4308
    %v4310 = vsel %vm2661, %v4286, %v4309
    %v4311 = vshrl.u32 %v4252, 16
    %v4313 = vrot.slane %v4311, 2
    %v4314 = vshll.u32 %v4252, 16
    %v4316 = vrot.slane %v4314, 3
    %v4317 = vor.u32 %v4313, %v4316
    %v4318 = vsel %vm2661, %v4301, %v4317
    %v4319 = vshrl.u32 %v4202, 16
    %v4321 = vrot.slane %v4319, 2
    %v4322 = vshll.u32 %v4202, 16
    %v4324 = vrot.slane %v4322, 3
    %v4325 = vor.u32 %v4321, %v4324
    %v4326 = vsel %vm2661, %v4309, %v4325
    %v4327 = vshrl.u32 %v4254, 16
    %v4329 = vrot.slane %v4327, 2
    %v4330 = vshll.u32 %v4254, 16
    %v4332 = vrot.slane %v4330, 3
    %v4333 = vor.u32 %v4329, %v4332
    %v4334 = vsel %vm2661, %v4317, %v4333
    %v4335 = vshrl.u32 %v4204, 16
    %v4337 = vrot.slane %v4335, 2
    %v4338 = vshll.u32 %v4204, 16
    %v4340 = vrot.slane %v4338, 3
    %v4341 = vor.u32 %v4337, %v4340
    %v4342 = vsel %vm2661, %v4325, %v4341
    %v4343 = vshrl.u32 %v4256, 16
    %v4345 = vrot.slane %v4343, 2
    %v4346 = vshll.u32 %v4256, 16
    %v4348 = vrot.slane %v4346, 3
    %v4349 = vor.u32 %v4345, %v4348
    %v4350 = vsel %vm2661, %v4333, %v4349
    %v4351 = vshrl.u32 %v4206, 16
    %v4353 = vrot.slane %v4351, 2
    %v4354 = vshll.u32 %v4206, 16
    %v4356 = vrot.slane %v4354, 3
    %v4357 = vor.u32 %v4353, %v4356
    %v4358 = vsel %vm2661, %v4341, %v4357
    %v4359 = vshrl.u32 %v4258, 16
    %v4361 = vrot.slane %v4359, 2
    %v4362 = vshll.u32 %v4258, 16
    %v4364 = vrot.slane %v4362, 3
    %v4365 = vor.u32 %v4361, %v4364
    %v4366 = vsel %vm2661, %v4349, %v4365
    %v4367 = vshrl.u32 %v4208, 16
    %v4369 = vrot.slane %v4367, 2
    %v4370 = vshll.u32 %v4208, 16
    %v4372 = vrot.slane %v4370, 3
    %v4373 = vor.u32 %v4369, %v4372
    %v4374 = vsel %vm2661, %v4357, %v4373
    %v4375 = vshrl.u32 %v4260, 16
    %v4377 = vrot.slane %v4375, 2
    %v4378 = vshll.u32 %v4260, 16
    %v4380 = vrot.slane %v4378, 3
    %v4381 = vor.u32 %v4377, %v4380
    %v4382 = vsel %vm2661, %v4365, %v4381
    %v4383 = vshrl.u32 %v4210, 16
    %v4385 = vrot.slane %v4383, 2
    %v4386 = vshll.u32 %v4210, 16
    %v4388 = vrot.slane %v4386, 3
    %v4389 = vor.u32 %v4385, %v4388
    %v4390 = vsel %vm2661, %v4373, %v4389
    %v4391 = vshrl.u32 %v4262, 16
    %v4393 = vrot.slane %v4391, 2
    %v4394 = vshll.u32 %v4262, 16
    %v4396 = vrot.slane %v4394, 3
    %v4397 = vor.u32 %v4393, %v4396
    %v4398 = vsel %vm2661, %v4381, %v4397
    %v4399 = vshrl.u32 %v4212, 16
    %v4401 = vrot.slane %v4399, 2
    %v4402 = vshll.u32 %v4212, 16
    %v4404 = vrot.slane %v4402, 3
    %v4405 = vor.u32 %v4401, %v4404
    %v4406 = vsel %vm2661, %v4389, %v4405
    %v4407 = vshrl.u32 %v4264, 16
    %v4409 = vrot.slane %v4407, 2
    %v4410 = vshll.u32 %v4264, 16
    %v4412 = vrot.slane %v4410, 3
    %v4413 = vor.u32 %v4409, %v4412
    %v4414 = vsel %vm2661, %v4397, %v4413
    %v4415 = vshrl.u32 %v4214, 16
    %v4417 = vrot.slane %v4415, 2
    %v4418 = vshll.u32 %v4214, 16
    %v4420 = vrot.slane %v4418, 3
    %v4421 = vor.u32 %v4417, %v4420
    %v4422 = vsel %vm2661, %v4405, %v4421
    %v4423 = vshrl.u32 %v4266, 16
    %v4425 = vrot.slane %v4423, 2
    %v4426 = vshll.u32 %v4266, 16
    %v4428 = vrot.slane %v4426, 3
    %v4429 = vor.u32 %v4425, %v4428
    %v4430 = vsel %vm2661, %v4413, %v4429
    %v4431 = vshrl.u32 %v4216, 16
    %v4433 = vrot.slane %v4431, 2
    %v4434 = vshll.u32 %v4216, 16
    %v4436 = vrot.slane %v4434, 3
    %v4437 = vor.u32 %v4433, %v4436
    %v4438 = vsel %vm2661, %v4421, %v4437
    %v4439 = vshrl.u32 %v4268, 16
    %v4441 = vrot.slane %v4439, 2
    %v4442 = vshll.u32 %v4268, 16
    %v4444 = vrot.slane %v4442, 3
    %v4445 = vor.u32 %v4441, %v4444
    %v4446 = vsel %vm2661, %v4429, %v4445
    %v4447 = vshrl.u32 %v4218, 16
    %v4449 = vrot.slane %v4447, 2
    %v4450 = vshll.u32 %v4218, 16
    %v4452 = vrot.slane %v4450, 3
    %v4453 = vor.u32 %v4449, %v4452
    %v4454 = vsel %vm2661, %v4437, %v4453
    %v4455 = vshrl.u32 %v4270, 16
    %v4457 = vrot.slane %v4455, 2
    %v4458 = vshll.u32 %v4270, 16
    %v4460 = vrot.slane %v4458, 3
    %v4461 = vor.u32 %v4457, %v4460
    %v4462 = vsel %vm2661, %v4445, %v4461
    %v4463 = vshrl.u32 %v4220, 16
    %v4465 = vrot.slane %v4463, 2
    %v4466 = vshll.u32 %v4220, 16
    %v4468 = vrot.slane %v4466, 3
    %v4469 = vor.u32 %v4465, %v4468
    %v4470 = vsel %vm2661, %v4453, %v4469
    %v4471 = vshrl.u32 %v4272, 16
    %v4473 = vrot.slane %v4471, 2
    %v4474 = vshll.u32 %v4272, 16
    %v4476 = vrot.slane %v4474, 3
    %v4477 = vor.u32 %v4473, %v4476
    %v4478 = vsel %vm2661, %v4461, %v4477
    %4479 = vrot.lane.b32.xlu0 %v4287, 64
    %v4480 = vpop.permute.xlu0 %4479
    %4481 = vrot.lane.b32.xlu0 %v4302, 64
    %v4482 = vpop.permute.xlu0 %4481
    %4483 = vrot.lane.b32.xlu0 %v4310, 64
    %v4484 = vpop.permute.xlu0 %4483
    %4485 = vrot.lane.b32.xlu0 %v4318, 64
    %v4486 = vpop.permute.xlu0 %4485
    %4487 = vrot.lane.b32.xlu0 %v4326, 64
    %v4488 = vpop.permute.xlu0 %4487
    %4489 = vrot.lane.b32.xlu0 %v4334, 64
    %v4490 = vpop.permute.xlu0 %4489
    %4491 = vrot.lane.b32.xlu0 %v4342, 64
    %v4492 = vpop.permute.xlu0 %4491
    %4493 = vrot.lane.b32.xlu0 %v4350, 64
    %v4494 = vpop.permute.xlu0 %4493
    %4495 = vrot.lane.b32.xlu0 %v4358, 64
    %v4496 = vpop.permute.xlu0 %4495
    %4497 = vrot.lane.b32.xlu0 %v4366, 64
    %v4498 = vpop.permute.xlu0 %4497
    %4499 = vrot.lane.b32.xlu0 %v4374, 64
    %v4500 = vpop.permute.xlu0 %4499
    %4501 = vrot.lane.b32.xlu0 %v4382, 64
    %v4502 = vpop.permute.xlu0 %4501
    %4503 = vrot.lane.b32.xlu0 %v4390, 64
    %v4504 = vpop.permute.xlu0 %4503
    %4505 = vrot.lane.b32.xlu0 %v4398, 64
    %v4506 = vpop.permute.xlu0 %4505
    %4507 = vrot.lane.b32.xlu0 %v4406, 64
    %v4508 = vpop.permute.xlu0 %4507
    %4509 = vrot.lane.b32.xlu0 %v4414, 64
    %v4510 = vpop.permute.xlu0 %4509
    %4511 = vrot.lane.b32.xlu0 %v4422, 64
    %v4512 = vpop.permute.xlu0 %4511
    %4513 = vrot.lane.b32.xlu0 %v4430, 64
    %v4514 = vpop.permute.xlu0 %4513
    %4515 = vrot.lane.b32.xlu0 %v4438, 64
    %v4516 = vpop.permute.xlu0 %4515
    %4517 = vrot.lane.b32.xlu0 %v4446, 64
    %v4518 = vpop.permute.xlu0 %4517
    %4519 = vrot.lane.b32.xlu0 %v4454, 64
    %v4520 = vpop.permute.xlu0 %4519
    %4521 = vrot.lane.b32.xlu0 %v4462, 64
    %v4522 = vpop.permute.xlu0 %4521
    %4523 = vrot.lane.b32.xlu0 %v4470, 64
    %v4524 = vpop.permute.xlu0 %4523
    %4525 = vrot.lane.b32.xlu0 %v4478, 64
    %v4526 = vpop.permute.xlu0 %4525
    %vm4527 = vcmask 523264
    %v4528 = vsel %vm4527, %v4480, %v4482
    %v4529 = vsel %vm4527, %v4484, %v4486
    %v4530 = vsel %vm4527, %v4488, %v4490
    %v4531 = vsel %vm4527, %v4492, %v4494
    %v4532 = vsel %vm4527, %v4496, %v4498
    %v4533 = vsel %vm4527, %v4500, %v4502
    %v4534 = vsel %vm4527, %v4504, %v4506
    %v4535 = vsel %vm4527, %v4508, %v4510
    %v4536 = vsel %vm4527, %v4512, %v4514
    %v4537 = vsel %vm4527, %v4516, %v4518
    %v4538 = vsel %vm4527, %v4520, %v4522
    %v4539 = vsel %vm4527, %v4524, %v4526
    %vm4540 = vcmask 523264
    %v4542 = vsel %vm4540, %v3616, %v4480
    %v4545 = vsel %vm4540, %v3618, %v4484
    %v4548 = vsel %vm4540, %v3620, %v4488
    %v4551 = vsel %vm4540, %v3622, %v4492
    %v4554 = vsel %vm4540, %v3624, %v4496
    %v4557 = vsel %vm4540, %v3626, %v4500
    %v4560 = vsel %vm4540, %v3628, %v4504
    %v4563 = vsel %vm4540, %v3630, %v4508
    %v4566 = vsel %vm4540, %v3632, %v4512
    %v4569 = vsel %vm4540, %v3634, %v4516
    %v4572 = vsel %vm4540, %v3636, %v4520
    %v4575 = vsel %vm4540, %v3638, %v4524
    %v4600 = vunpack.c.l.b16 %v2201
    %v4601 = vunpack.c.l.b16 %v2202
    %v4602 = vunpack.c.l.b16 %v2203
    %v4603 = vunpack.c.l.b16 %v2204
    %v4604 = vunpack.c.l.b16 %v2205
    %v4605 = vunpack.c.l.b16 %v2206
    %v4606 = vunpack.c.l.b16 %v2207
    %v4607 = vunpack.c.l.b16 %v2208
    %v4608 = vunpack.c.l.b16 %v2209
    %v4609 = vunpack.c.l.b16 %v2210
    %v4610 = vunpack.c.l.b16 %v2211
    %v4611 = vunpack.c.l.b16 %v2212
    %v4612 = vunpack.c.l.b16 %v2213
    %v4613 = vunpack.c.l.b16 %v2214
    %v4614 = vunpack.c.l.b16 %v2215
    %v4615 = vunpack.c.l.b16 %v2216
    %v4616 = vunpack.c.l.b16 %v2217
    %v4617 = vunpack.c.l.b16 %v2218
    %v4618 = vunpack.c.l.b16 %v2219
    %v4619 = vunpack.c.l.b16 %v2220
    %v4620 = vunpack.c.l.b16 %v2221
    %v4621 = vunpack.c.l.b16 %v2222
    %v4622 = vunpack.c.l.b16 %v2223
    %v4623 = vpack.c.b16 %v4600, %v3847
    %v4624 = vpack.c.b16 %v4602, %v4601
    %v4625 = vpack.c.b16 %v4604, %v4603
    %v4626 = vpack.c.b16 %v4606, %v4605
    %v4627 = vpack.c.b16 %v4608, %v4607
    %v4628 = vpack.c.b16 %v4610, %v4609
    %v4629 = vpack.c.b16 %v4612, %v4611
    %v4630 = vpack.c.b16 %v4614, %v4613
    %v4631 = vpack.c.b16 %v4616, %v4615
    %v4632 = vpack.c.b16 %v4618, %v4617
    %v4633 = vpack.c.b16 %v4620, %v4619
    %v4634 = vpack.c.b16 %v4622, %v4621
    %v4636 = vunpack.c.l.b16 %v2224
    %v4637 = vpack.c.b16 %v4636, %v4636
    %v4639 = vshrl.u32 %v4623, 16
    %v4641 = vshll.u32 %v4623, 16
    %v4643 = vrot.slane %v4641, 1
    %v4644 = vor.u32 %v4639, %v4643
    %v4646 = vshll.u32 %v4624, 16
    %v4648 = vrot.slane %v4646, 1
    %v4649 = vsel %vm2294, %v4644, %v4648
    %v4650 = vshrl.u32 %v4624, 16
    %v4652 = vor.u32 %v4650, %v4648
    %v4654 = vshll.u32 %v4625, 16
    %v4656 = vrot.slane %v4654, 1
    %v4657 = vsel %vm2294, %v4652, %v4656
    %v4658 = vshrl.u32 %v4625, 16
    %v4660 = vor.u32 %v4658, %v4656
    %v4662 = vshll.u32 %v4626, 16
    %v4664 = vrot.slane %v4662, 1
    %v4665 = vsel %vm2294, %v4660, %v4664
    %v4666 = vshrl.u32 %v4626, 16
    %v4668 = vor.u32 %v4666, %v4664
    %v4670 = vshll.u32 %v4627, 16
    %v4672 = vrot.slane %v4670, 1
    %v4673 = vsel %vm2294, %v4668, %v4672
    %v4674 = vshrl.u32 %v4627, 16
    %v4676 = vor.u32 %v4674, %v4672
    %v4678 = vshll.u32 %v4628, 16
    %v4680 = vrot.slane %v4678, 1
    %v4681 = vsel %vm2294, %v4676, %v4680
    %v4682 = vshrl.u32 %v4628, 16
    %v4684 = vor.u32 %v4682, %v4680
    %v4686 = vshll.u32 %v4629, 16
    %v4688 = vrot.slane %v4686, 1
    %v4689 = vsel %vm2294, %v4684, %v4688
    %v4690 = vshrl.u32 %v4629, 16
    %v4692 = vor.u32 %v4690, %v4688
    %v4694 = vshll.u32 %v4630, 16
    %v4696 = vrot.slane %v4694, 1
    %v4697 = vsel %vm2294, %v4692, %v4696
    %v4698 = vshrl.u32 %v4630, 16
    %v4700 = vor.u32 %v4698, %v4696
    %v4702 = vshll.u32 %v4631, 16
    %v4704 = vrot.slane %v4702, 1
    %v4705 = vsel %vm2294, %v4700, %v4704
    %v4706 = vshrl.u32 %v4631, 16
    %v4708 = vor.u32 %v4706, %v4704
    %v4710 = vshll.u32 %v4632, 16
    %v4712 = vrot.slane %v4710, 1
    %v4713 = vsel %vm2294, %v4708, %v4712
    %v4714 = vshrl.u32 %v4632, 16
    %v4716 = vor.u32 %v4714, %v4712
    %v4718 = vshll.u32 %v4633, 16
    %v4720 = vrot.slane %v4718, 1
    %v4721 = vsel %vm2294, %v4716, %v4720
    %v4722 = vshrl.u32 %v4633, 16
    %v4724 = vor.u32 %v4722, %v4720
    %v4726 = vshll.u32 %v4634, 16
    %v4728 = vrot.slane %v4726, 1
    %v4729 = vsel %vm2294, %v4724, %v4728
    %v4730 = vshrl.u32 %v4634, 16
    %v4732 = vor.u32 %v4730, %v4728
    %v4734 = vshll.u32 %v4637, 16
    %v4736 = vrot.slane %v4734, 1
    %v4737 = vsel %vm2294, %v4732, %v4736
    %4738 = vrot.lane.b32.xlu0 %v4649, 20
    %v4739 = vpop.permute.xlu0 %4738
    %4740 = vrot.lane.b32.xlu0 %v4657, 20
    %v4741 = vpop.permute.xlu0 %4740
    %4742 = vrot.lane.b32.xlu0 %v4665, 20
    %v4743 = vpop.permute.xlu0 %4742
    %4744 = vrot.lane.b32.xlu0 %v4673, 20
    %v4745 = vpop.permute.xlu0 %4744
    %4746 = vrot.lane.b32.xlu0 %v4681, 20
    %v4747 = vpop.permute.xlu0 %4746
    %4748 = vrot.lane.b32.xlu0 %v4689, 20
    %v4749 = vpop.permute.xlu0 %4748
    %4750 = vrot.lane.b32.xlu0 %v4697, 20
    %v4751 = vpop.permute.xlu0 %4750
    %4752 = vrot.lane.b32.xlu0 %v4705, 20
    %v4753 = vpop.permute.xlu0 %4752
    %4754 = vrot.lane.b32.xlu0 %v4713, 20
    %v4755 = vpop.permute.xlu0 %4754
    %4756 = vrot.lane.b32.xlu0 %v4721, 20
    %v4757 = vpop.permute.xlu0 %4756
    %4758 = vrot.lane.b32.xlu0 %v4729, 20
    %v4759 = vpop.permute.xlu0 %4758
    %4760 = vrot.lane.b32.xlu0 %v4737, 20
    %v4761 = vpop.permute.xlu0 %4760
    %v4762 = vrot.slane %v4623, 1
    %v4763 = vrot.slane %v4624, 1
    %v4764 = vsel %vm2419, %v4762, %v4763
    %v4765 = vrot.slane %v4625, 1
    %v4766 = vsel %vm2419, %v4763, %v4765
    %v4767 = vrot.slane %v4626, 1
    %v4768 = vsel %vm2419, %v4765, %v4767
    %v4769 = vrot.slane %v4627, 1
    %v4770 = vsel %vm2419, %v4767, %v4769
    %v4771 = vrot.slane %v4628, 1
    %v4772 = vsel %vm2419, %v4769, %v4771
    %v4773 = vrot.slane %v4629, 1
    %v4774 = vsel %vm2419, %v4771, %v4773
    %v4775 = vrot.slane %v4630, 1
    %v4776 = vsel %vm2419, %v4773, %v4775
    %v4777 = vrot.slane %v4631, 1
    %v4778 = vsel %vm2419, %v4775, %v4777
    %v4779 = vrot.slane %v4632, 1
    %v4780 = vsel %vm2419, %v4777, %v4779
    %v4781 = vrot.slane %v4633, 1
    %v4782 = vsel %vm2419, %v4779, %v4781
    %v4783 = vrot.slane %v4634, 1
    %v4784 = vsel %vm2419, %v4781, %v4783
    %v4785 = vrot.slane %v4637, 1
    %v4786 = vsel %vm2419, %v4783, %v4785
    %4787 = vrot.lane.b32.xlu0 %v4764, 40
    %v4788 = vpop.permute.xlu0 %4787
    %4789 = vrot.lane.b32.xlu0 %v4766, 40
    %v4790 = vpop.permute.xlu0 %4789
    %4791 = vrot.lane.b32.xlu0 %v4768, 40
    %v4792 = vpop.permute.xlu0 %4791
    %4793 = vrot.lane.b32.xlu0 %v4770, 40
    %v4794 = vpop.permute.xlu0 %4793
    %4795 = vrot.lane.b32.xlu0 %v4772, 40
    %v4796 = vpop.permute.xlu0 %4795
    %4797 = vrot.lane.b32.xlu0 %v4774, 40
    %v4798 = vpop.permute.xlu0 %4797
    %4799 = vrot.lane.b32.xlu0 %v4776, 40
    %v4800 = vpop.permute.xlu0 %4799
    %4801 = vrot.lane.b32.xlu0 %v4778, 40
    %v4802 = vpop.permute.xlu0 %4801
    %4803 = vrot.lane.b32.xlu0 %v4780, 40
    %v4804 = vpop.permute.xlu0 %4803
    %4805 = vrot.lane.b32.xlu0 %v4782, 40
    %v4806 = vpop.permute.xlu0 %4805
    %4807 = vrot.lane.b32.xlu0 %v4784, 40
    %v4808 = vpop.permute.xlu0 %4807
    %4809 = vrot.lane.b32.xlu0 %v4786, 40
    %v4810 = vpop.permute.xlu0 %4809
    %v4811 = vrot.slane %v4639, 1
    %v4812 = vrot.slane %v4641, 2
    %v4813 = vor.u32 %v4811, %v4812
    %v4814 = vrot.slane %v4650, 1
    %v4815 = vrot.slane %v4646, 2
    %v4816 = vor.u32 %v4814, %v4815
    %v4817 = vsel %vm2469, %v4813, %v4816
    %v4818 = vrot.slane %v4658, 1
    %v4819 = vrot.slane %v4654, 2
    %v4820 = vor.u32 %v4818, %v4819
    %v4821 = vsel %vm2469, %v4816, %v4820
    %v4822 = vrot.slane %v4666, 1
    %v4823 = vrot.slane %v4662, 2
    %v4824 = vor.u32 %v4822, %v4823
    %v4825 = vsel %vm2469, %v4820, %v4824
    %v4826 = vrot.slane %v4674, 1
    %v4827 = vrot.slane %v4670, 2
    %v4828 = vor.u32 %v4826, %v4827
    %v4829 = vsel %vm2469, %v4824, %v4828
    %v4830 = vrot.slane %v4682, 1
    %v4831 = vrot.slane %v4678, 2
    %v4832 = vor.u32 %v4830, %v4831
    %v4833 = vsel %vm2469, %v4828, %v4832
    %v4834 = vrot.slane %v4690, 1
    %v4835 = vrot.slane %v4686, 2
    %v4836 = vor.u32 %v4834, %v4835
    %v4837 = vsel %vm2469, %v4832, %v4836
    %v4838 = vrot.slane %v4698, 1
    %v4839 = vrot.slane %v4694, 2
    %v4840 = vor.u32 %v4838, %v4839
    %v4841 = vsel %vm2469, %v4836, %v4840
    %v4842 = vrot.slane %v4706, 1
    %v4843 = vrot.slane %v4702, 2
    %v4844 = vor.u32 %v4842, %v4843
    %v4845 = vsel %vm2469, %v4840, %v4844
    %v4846 = vrot.slane %v4714, 1
    %v4847 = vrot.slane %v4710, 2
    %v4848 = vor.u32 %v4846, %v4847
    %v4849 = vsel %vm2469, %v4844, %v4848
    %v4850 = vrot.slane %v4722, 1
    %v4851 = vrot.slane %v4718, 2
    %v4852 = vor.u32 %v4850, %v4851
    %v4853 = vsel %vm2469, %v4848, %v4852
    %v4854 = vrot.slane %v4730, 1
    %v4855 = vrot.slane %v4726, 2
    %v4856 = vor.u32 %v4854, %v4855
    %v4857 = vsel %vm2469, %v4852, %v4856
    %v4858 = vshrl.u32 %v4637, 16
    %v4860 = vrot.slane %v4858, 1
    %v4861 = vrot.slane %v4734, 2
    %v4862 = vor.u32 %v4860, %v4861
    %v4863 = vsel %vm2469, %v4856, %v4862
    %4864 = vrot.lane.b32.xlu0 %v4817, 60
    %v4865 = vpop.permute.xlu0 %4864
    %4866 = vrot.lane.b32.xlu0 %v4821, 60
    %v4867 = vpop.permute.xlu0 %4866
    %4868 = vrot.lane.b32.xlu0 %v4825, 60
    %v4869 = vpop.permute.xlu0 %4868
    %4870 = vrot.lane.b32.xlu0 %v4829, 60
    %v4871 = vpop.permute.xlu0 %4870
    %4872 = vrot.lane.b32.xlu0 %v4833, 60
    %v4873 = vpop.permute.xlu0 %4872
    %4874 = vrot.lane.b32.xlu0 %v4837, 60
    %v4875 = vpop.permute.xlu0 %4874
    %4876 = vrot.lane.b32.xlu0 %v4841, 60
    %v4877 = vpop.permute.xlu0 %4876
    %4878 = vrot.lane.b32.xlu0 %v4845, 60
    %v4879 = vpop.permute.xlu0 %4878
    %4880 = vrot.lane.b32.xlu0 %v4849, 60
    %v4881 = vpop.permute.xlu0 %4880
    %4882 = vrot.lane.b32.xlu0 %v4853, 60
    %v4883 = vpop.permute.xlu0 %4882
    %4884 = vrot.lane.b32.xlu0 %v4857, 60
    %v4885 = vpop.permute.xlu0 %4884
    %4886 = vrot.lane.b32.xlu0 %v4863, 60
    %v4887 = vpop.permute.xlu0 %4886
    %v4888 = vrot.slane %v4623, 2
    %v4889 = vrot.slane %v4624, 2
    %v4890 = vsel %vm2547, %v4888, %v4889
    %v4891 = vrot.slane %v4625, 2
    %v4892 = vsel %vm2547, %v4889, %v4891
    %v4893 = vrot.slane %v4626, 2
    %v4894 = vsel %vm2547, %v4891, %v4893
    %v4895 = vrot.slane %v4627, 2
    %v4896 = vsel %vm2547, %v4893, %v4895
    %v4897 = vrot.slane %v4628, 2
    %v4898 = vsel %vm2547, %v4895, %v4897
    %v4899 = vrot.slane %v4629, 2
    %v4900 = vsel %vm2547, %v4897, %v4899
    %v4901 = vrot.slane %v4630, 2
    %v4902 = vsel %vm2547, %v4899, %v4901
    %v4903 = vrot.slane %v4631, 2
    %v4904 = vsel %vm2547, %v4901, %v4903
    %v4905 = vrot.slane %v4632, 2
    %v4906 = vsel %vm2547, %v4903, %v4905
    %v4907 = vrot.slane %v4633, 2
    %v4908 = vsel %vm2547, %v4905, %v4907
    %v4909 = vrot.slane %v4634, 2
    %v4910 = vsel %vm2547, %v4907, %v4909
    %v4911 = vrot.slane %v4637, 2
    %v4912 = vsel %vm2547, %v4909, %v4911
    %4913 = vrot.lane.b32.xlu0 %v4890, 80
    %v4914 = vpop.permute.xlu0 %4913
    %4915 = vrot.lane.b32.xlu0 %v4892, 80
    %v4916 = vpop.permute.xlu0 %4915
    %4917 = vrot.lane.b32.xlu0 %v4894, 80
    %v4918 = vpop.permute.xlu0 %4917
    %4919 = vrot.lane.b32.xlu0 %v4896, 80
    %v4920 = vpop.permute.xlu0 %4919
    %4921 = vrot.lane.b32.xlu0 %v4898, 80
    %v4922 = vpop.permute.xlu0 %4921
    %4923 = vrot.lane.b32.xlu0 %v4900, 80
    %v4924 = vpop.permute.xlu0 %4923
    %4925 = vrot.lane.b32.xlu0 %v4902, 80
    %v4926 = vpop.permute.xlu0 %4925
    %4927 = vrot.lane.b32.xlu0 %v4904, 80
    %v4928 = vpop.permute.xlu0 %4927
    %4929 = vrot.lane.b32.xlu0 %v4906, 80
    %v4930 = vpop.permute.xlu0 %4929
    %4931 = vrot.lane.b32.xlu0 %v4908, 80
    %v4932 = vpop.permute.xlu0 %4931
    %4933 = vrot.lane.b32.xlu0 %v4910, 80
    %v4934 = vpop.permute.xlu0 %4933
    %4935 = vrot.lane.b32.xlu0 %v4912, 80
    %v4936 = vpop.permute.xlu0 %4935
    %v4938 = vunpack.c.l.b16 %v2225
    %v4939 = vpack.c.b16 %v4601, %v4600
    %v4940 = vpack.c.b16 %v4603, %v4602
    %v4941 = vpack.c.b16 %v4605, %v4604
    %v4942 = vpack.c.b16 %v4607, %v4606
    %v4943 = vpack.c.b16 %v4609, %v4608
    %v4944 = vpack.c.b16 %v4611, %v4610
    %v4945 = vpack.c.b16 %v4613, %v4612
    %v4946 = vpack.c.b16 %v4615, %v4614
    %v4947 = vpack.c.b16 %v4617, %v4616
    %v4948 = vpack.c.b16 %v4619, %v4618
    %v4949 = vpack.c.b16 %v4621, %v4620
    %v4950 = vpack.c.b16 %v4636, %v4622
    %v4951 = vpack.c.b16 %v4938, %v4938
    %v4952 = vrot.slane %v4939, 2
    %v4953 = vrot.slane %v4940, 2
    %v4954 = vsel %vm2547, %v4952, %v4953
    %v4955 = vrot.slane %v4941, 2
    %v4956 = vsel %vm2547, %v4953, %v4955
    %v4957 = vrot.slane %v4942, 2
    %v4958 = vsel %vm2547, %v4955, %v4957
    %v4959 = vrot.slane %v4943, 2
    %v4960 = vsel %vm2547, %v4957, %v4959
    %v4961 = vrot.slane %v4944, 2
    %v4962 = vsel %vm2547, %v4959, %v4961
    %v4963 = vrot.slane %v4945, 2
    %v4964 = vsel %vm2547, %v4961, %v4963
    %v4965 = vrot.slane %v4946, 2
    %v4966 = vsel %vm2547, %v4963, %v4965
    %v4967 = vrot.slane %v4947, 2
    %v4968 = vsel %vm2547, %v4965, %v4967
    %v4969 = vrot.slane %v4948, 2
    %v4970 = vsel %vm2547, %v4967, %v4969
    %v4971 = vrot.slane %v4949, 2
    %v4972 = vsel %vm2547, %v4969, %v4971
    %v4973 = vrot.slane %v4950, 2
    %v4974 = vsel %vm2547, %v4971, %v4973
    %v4975 = vrot.slane %v4951, 2
    %v4976 = vsel %vm2547, %v4973, %v4975
    %4977 = vrot.lane.b32.xlu0 %v4954, 100
    %v4978 = vpop.permute.xlu0 %4977
    %4979 = vrot.lane.b32.xlu0 %v4956, 100
    %v4980 = vpop.permute.xlu0 %4979
    %4981 = vrot.lane.b32.xlu0 %v4958, 100
    %v4982 = vpop.permute.xlu0 %4981
    %4983 = vrot.lane.b32.xlu0 %v4960, 100
    %v4984 = vpop.permute.xlu0 %4983
    %4985 = vrot.lane.b32.xlu0 %v4962, 100
    %v4986 = vpop.permute.xlu0 %4985
    %4987 = vrot.lane.b32.xlu0 %v4964, 100
    %v4988 = vpop.permute.xlu0 %4987
    %4989 = vrot.lane.b32.xlu0 %v4966, 100
    %v4990 = vpop.permute.xlu0 %4989
    %4991 = vrot.lane.b32.xlu0 %v4968, 100
    %v4992 = vpop.permute.xlu0 %4991
    %4993 = vrot.lane.b32.xlu0 %v4970, 100
    %v4994 = vpop.permute.xlu0 %4993
    %4995 = vrot.lane.b32.xlu0 %v4972, 100
    %v4996 = vpop.permute.xlu0 %4995
    %4997 = vrot.lane.b32.xlu0 %v4974, 100
    %v4998 = vpop.permute.xlu0 %4997
    %4999 = vrot.lane.b32.xlu0 %v4976, 100
    %v5000 = vpop.permute.xlu0 %4999
    %v5002 = vshrl.u32 %v4939, 16
    %v5004 = vrot.slane %v5002, 2
    %v5005 = vshll.u32 %v4939, 16
    %v5007 = vrot.slane %v5005, 3
    %v5008 = vor.u32 %v5004, %v5007
    %v5010 = vshrl.u32 %v4940, 16
    %v5012 = vrot.slane %v5010, 2
    %v5013 = vshll.u32 %v4940, 16
    %v5015 = vrot.slane %v5013, 3
    %v5016 = vor.u32 %v5012, %v5015
    %v5017 = vsel %vm2661, %v5008, %v5016
    %v5019 = vshrl.u32 %v4941, 16
    %v5021 = vrot.slane %v5019, 2
    %v5022 = vshll.u32 %v4941, 16
    %v5024 = vrot.slane %v5022, 3
    %v5025 = vor.u32 %v5021, %v5024
    %v5026 = vsel %vm2661, %v5016, %v5025
    %v5028 = vshrl.u32 %v4942, 16
    %v5030 = vrot.slane %v5028, 2
    %v5031 = vshll.u32 %v4942, 16
    %v5033 = vrot.slane %v5031, 3
    %v5034 = vor.u32 %v5030, %v5033
    %v5035 = vsel %vm2661, %v5025, %v5034
    %v5037 = vshrl.u32 %v4943, 16
    %v5039 = vrot.slane %v5037, 2
    %v5040 = vshll.u32 %v4943, 16
    %v5042 = vrot.slane %v5040, 3
    %v5043 = vor.u32 %v5039, %v5042
    %v5044 = vsel %vm2661, %v5034, %v5043
    %v5046 = vshrl.u32 %v4944, 16
    %v5048 = vrot.slane %v5046, 2
    %v5049 = vshll.u32 %v4944, 16
    %v5051 = vrot.slane %v5049, 3
    %v5052 = vor.u32 %v5048, %v5051
    %v5053 = vsel %vm2661, %v5043, %v5052
    %v5055 = vshrl.u32 %v4945, 16
    %v5057 = vrot.slane %v5055, 2
    %v5058 = vshll.u32 %v4945, 16
    %v5060 = vrot.slane %v5058, 3
    %v5061 = vor.u32 %v5057, %v5060
    %v5062 = vsel %vm2661, %v5052, %v5061
    %v5064 = vshrl.u32 %v4946, 16
    %v5066 = vrot.slane %v5064, 2
    %v5067 = vshll.u32 %v4946, 16
    %v5069 = vrot.slane %v5067, 3
    %v5070 = vor.u32 %v5066, %v5069
    %v5071 = vsel %vm2661, %v5061, %v5070
    %v5073 = vshrl.u32 %v4947, 16
    %v5075 = vrot.slane %v5073, 2
    %v5076 = vshll.u32 %v4947, 16
    %v5078 = vrot.slane %v5076, 3
    %v5079 = vor.u32 %v5075, %v5078
    %v5080 = vsel %vm2661, %v5070, %v5079
    %v5082 = vshrl.u32 %v4948, 16
    %v5084 = vrot.slane %v5082, 2
    %v5085 = vshll.u32 %v4948, 16
    %v5087 = vrot.slane %v5085, 3
    %v5088 = vor.u32 %v5084, %v5087
    %v5089 = vsel %vm2661, %v5079, %v5088
    %v5091 = vshrl.u32 %v4949, 16
    %v5093 = vrot.slane %v5091, 2
    %v5094 = vshll.u32 %v4949, 16
    %v5096 = vrot.slane %v5094, 3
    %v5097 = vor.u32 %v5093, %v5096
    %v5098 = vsel %vm2661, %v5088, %v5097
    %v5100 = vshrl.u32 %v4950, 16
    %v5102 = vrot.slane %v5100, 2
    %v5103 = vshll.u32 %v4950, 16
    %v5105 = vrot.slane %v5103, 3
    %v5106 = vor.u32 %v5102, %v5105
    %v5107 = vsel %vm2661, %v5097, %v5106
    %v5109 = vshrl.u32 %v4951, 16
    %v5111 = vrot.slane %v5109, 2
    %v5112 = vshll.u32 %v4951, 16
    %v5114 = vrot.slane %v5112, 3
    %v5115 = vor.u32 %v5111, %v5114
    %v5116 = vsel %vm2661, %v5106, %v5115
    %5117 = vrot.lane.b32.xlu0 %v5017, 120
    %v5118 = vpop.permute.xlu0 %5117
    %5119 = vrot.lane.b32.xlu0 %v5026, 120
    %v5120 = vpop.permute.xlu0 %5119
    %5121 = vrot.lane.b32.xlu0 %v5035, 120
    %v5122 = vpop.permute.xlu0 %5121
    %5123 = vrot.lane.b32.xlu0 %v5044, 120
    %v5124 = vpop.permute.xlu0 %5123
    %5125 = vrot.lane.b32.xlu0 %v5053, 120
    %v5126 = vpop.permute.xlu0 %5125
    %5127 = vrot.lane.b32.xlu0 %v5062, 120
    %v5128 = vpop.permute.xlu0 %5127
    %5129 = vrot.lane.b32.xlu0 %v5071, 120
    %v5130 = vpop.permute.xlu0 %5129
    %5131 = vrot.lane.b32.xlu0 %v5080, 120
    %v5132 = vpop.permute.xlu0 %5131
    %5133 = vrot.lane.b32.xlu0 %v5089, 120
    %v5134 = vpop.permute.xlu0 %5133
    %5135 = vrot.lane.b32.xlu0 %v5098, 120
    %v5136 = vpop.permute.xlu0 %5135
    %5137 = vrot.lane.b32.xlu0 %v5107, 120
    %v5138 = vpop.permute.xlu0 %5137
    %5139 = vrot.lane.b32.xlu0 %v5116, 120
    %v5140 = vpop.permute.xlu0 %5139
    %v5141 = vrot.slane %v4939, 3
    %v5142 = vrot.slane %v4940, 3
    %v5143 = vsel %vm2802, %v5141, %v5142
    %v5144 = vrot.slane %v4941, 3
    %v5145 = vsel %vm2802, %v5142, %v5144
    %v5146 = vrot.slane %v4942, 3
    %v5147 = vsel %vm2802, %v5144, %v5146
    %v5148 = vrot.slane %v4943, 3
    %v5149 = vsel %vm2802, %v5146, %v5148
    %v5150 = vrot.slane %v4944, 3
    %v5151 = vsel %vm2802, %v5148, %v5150
    %v5152 = vrot.slane %v4945, 3
    %v5153 = vsel %vm2802, %v5150, %v5152
    %v5154 = vrot.slane %v4946, 3
    %v5155 = vsel %vm2802, %v5152, %v5154
    %v5156 = vrot.slane %v4947, 3
    %v5157 = vsel %vm2802, %v5154, %v5156
    %v5158 = vrot.slane %v4948, 3
    %v5159 = vsel %vm2802, %v5156, %v5158
    %v5160 = vrot.slane %v4949, 3
    %v5161 = vsel %vm2802, %v5158, %v5160
    %v5162 = vrot.slane %v4950, 3
    %v5163 = vsel %vm2802, %v5160, %v5162
    %v5164 = vrot.slane %v4951, 3
    %v5165 = vsel %vm2802, %v5162, %v5164
    %5166 = vrot.lane.b32.xlu0 %v5143, 12
    %v5167 = vpop.permute.xlu0 %5166
    %5168 = vrot.lane.b32.xlu0 %v5145, 12
    %v5169 = vpop.permute.xlu0 %5168
    %5170 = vrot.lane.b32.xlu0 %v5147, 12
    %v5171 = vpop.permute.xlu0 %5170
    %5172 = vrot.lane.b32.xlu0 %v5149, 12
    %v5173 = vpop.permute.xlu0 %5172
    %5174 = vrot.lane.b32.xlu0 %v5151, 12
    %v5175 = vpop.permute.xlu0 %5174
    %5176 = vrot.lane.b32.xlu0 %v5153, 12
    %v5177 = vpop.permute.xlu0 %5176
    %5178 = vrot.lane.b32.xlu0 %v5155, 12
    %v5179 = vpop.permute.xlu0 %5178
    %5180 = vrot.lane.b32.xlu0 %v5157, 12
    %v5181 = vpop.permute.xlu0 %5180
    %5182 = vrot.lane.b32.xlu0 %v5159, 12
    %v5183 = vpop.permute.xlu0 %5182
    %5184 = vrot.lane.b32.xlu0 %v5161, 12
    %v5185 = vpop.permute.xlu0 %5184
    %5186 = vrot.lane.b32.xlu0 %v5163, 12
    %v5187 = vpop.permute.xlu0 %5186
    %5188 = vrot.lane.b32.xlu0 %v5165, 12
    %v5189 = vpop.permute.xlu0 %5188
    %v5190 = vrot.slane %v5002, 3
    %v5191 = vrot.slane %v5005, 4
    %v5192 = vor.u32 %v5190, %v5191
    %v5193 = vrot.slane %v5010, 3
    %v5194 = vrot.slane %v5013, 4
    %v5195 = vor.u32 %v5193, %v5194
    %v5196 = vsel %vm2852, %v5192, %v5195
    %v5197 = vrot.slane %v5019, 3
    %v5198 = vrot.slane %v5022, 4
    %v5199 = vor.u32 %v5197, %v5198
    %v5200 = vsel %vm2852, %v5195, %v5199
    %v5201 = vrot.slane %v5028, 3
    %v5202 = vrot.slane %v5031, 4
    %v5203 = vor.u32 %v5201, %v5202
    %v5204 = vsel %vm2852, %v5199, %v5203
    %v5205 = vrot.slane %v5037, 3
    %v5206 = vrot.slane %v5040, 4
    %v5207 = vor.u32 %v5205, %v5206
    %v5208 = vsel %vm2852, %v5203, %v5207
    %v5209 = vrot.slane %v5046, 3
    %v5210 = vrot.slane %v5049, 4
    %v5211 = vor.u32 %v5209, %v5210
    %v5212 = vsel %vm2852, %v5207, %v5211
    %v5213 = vrot.slane %v5055, 3
    %v5214 = vrot.slane %v5058, 4
    %v5215 = vor.u32 %v5213, %v5214
    %v5216 = vsel %vm2852, %v5211, %v5215
    %v5217 = vrot.slane %v5064, 3
    %v5218 = vrot.slane %v5067, 4
    %v5219 = vor.u32 %v5217, %v5218
    %v5220 = vsel %vm2852, %v5215, %v5219
    %v5221 = vrot.slane %v5073, 3
    %v5222 = vrot.slane %v5076, 4
    %v5223 = vor.u32 %v5221, %v5222
    %v5224 = vsel %vm2852, %v5219, %v5223
    %v5225 = vrot.slane %v5082, 3
    %v5226 = vrot.slane %v5085, 4
    %v5227 = vor.u32 %v5225, %v5226
    %v5228 = vsel %vm2852, %v5223, %v5227
    %v5229 = vrot.slane %v5091, 3
    %v5230 = vrot.slane %v5094, 4
    %v5231 = vor.u32 %v5229, %v5230
    %v5232 = vsel %vm2852, %v5227, %v5231
    %v5233 = vrot.slane %v5100, 3
    %v5234 = vrot.slane %v5103, 4
    %v5235 = vor.u32 %v5233, %v5234
    %v5236 = vsel %vm2852, %v5231, %v5235
    %v5237 = vrot.slane %v5109, 3
    %v5238 = vrot.slane %v5112, 4
    %v5239 = vor.u32 %v5237, %v5238
    %v5240 = vsel %vm2852, %v5235, %v5239
    %5241 = vrot.lane.b32.xlu0 %v5196, 32
    %v5242 = vpop.permute.xlu0 %5241
    %5243 = vrot.lane.b32.xlu0 %v5200, 32
    %v5244 = vpop.permute.xlu0 %5243
    %5245 = vrot.lane.b32.xlu0 %v5204, 32
    %v5246 = vpop.permute.xlu0 %5245
    %5247 = vrot.lane.b32.xlu0 %v5208, 32
    %v5248 = vpop.permute.xlu0 %5247
    %5249 = vrot.lane.b32.xlu0 %v5212, 32
    %v5250 = vpop.permute.xlu0 %5249
    %5251 = vrot.lane.b32.xlu0 %v5216, 32
    %v5252 = vpop.permute.xlu0 %5251
    %5253 = vrot.lane.b32.xlu0 %v5220, 32
    %v5254 = vpop.permute.xlu0 %5253
    %5255 = vrot.lane.b32.xlu0 %v5224, 32
    %v5256 = vpop.permute.xlu0 %5255
    %5257 = vrot.lane.b32.xlu0 %v5228, 32
    %v5258 = vpop.permute.xlu0 %5257
    %5259 = vrot.lane.b32.xlu0 %v5232, 32
    %v5260 = vpop.permute.xlu0 %5259
    %5261 = vrot.lane.b32.xlu0 %v5236, 32
    %v5262 = vpop.permute.xlu0 %5261
    %5263 = vrot.lane.b32.xlu0 %v5240, 32
    %v5264 = vpop.permute.xlu0 %5263
    %v5265 = vpack.c.b16 %v4938, %v4636
    %5266 = vrot.lane.b32.xlu0 %v4624, 52
    %v5267 = vpop.permute.xlu0 %5266
    %5268 = vrot.lane.b32.xlu0 %v4625, 52
    %v5269 = vpop.permute.xlu0 %5268
    %5270 = vrot.lane.b32.xlu0 %v4626, 52
    %v5271 = vpop.permute.xlu0 %5270
    %5272 = vrot.lane.b32.xlu0 %v4627, 52
    %v5273 = vpop.permute.xlu0 %5272
    %5274 = vrot.lane.b32.xlu0 %v4628, 52
    %v5275 = vpop.permute.xlu0 %5274
    %5276 = vrot.lane.b32.xlu0 %v4629, 52
    %v5277 = vpop.permute.xlu0 %5276
    %5278 = vrot.lane.b32.xlu0 %v4630, 52
    %v5279 = vpop.permute.xlu0 %5278
    %5280 = vrot.lane.b32.xlu0 %v4631, 52
    %v5281 = vpop.permute.xlu0 %5280
    %5282 = vrot.lane.b32.xlu0 %v4632, 52
    %v5283 = vpop.permute.xlu0 %5282
    %5284 = vrot.lane.b32.xlu0 %v4633, 52
    %v5285 = vpop.permute.xlu0 %5284
    %5286 = vrot.lane.b32.xlu0 %v4634, 52
    %v5287 = vpop.permute.xlu0 %5286
    %5288 = vrot.lane.b32.xlu0 %v5265, 52
    %v5289 = vpop.permute.xlu0 %5288
    %v5291 = vunpack.c.l.b16 %v2226
    %v5292 = vpack.c.b16 %v5291, %v4938
    %5293 = vrot.lane.b32.xlu0 %v4940, 72
    %v5294 = vpop.permute.xlu0 %5293
    %5295 = vrot.lane.b32.xlu0 %v4941, 72
    %v5296 = vpop.permute.xlu0 %5295
    %5297 = vrot.lane.b32.xlu0 %v4942, 72
    %v5298 = vpop.permute.xlu0 %5297
    %5299 = vrot.lane.b32.xlu0 %v4943, 72
    %v5300 = vpop.permute.xlu0 %5299
    %5301 = vrot.lane.b32.xlu0 %v4944, 72
    %v5302 = vpop.permute.xlu0 %5301
    %5303 = vrot.lane.b32.xlu0 %v4945, 72
    %v5304 = vpop.permute.xlu0 %5303
    %5305 = vrot.lane.b32.xlu0 %v4946, 72
    %v5306 = vpop.permute.xlu0 %5305
    %5307 = vrot.lane.b32.xlu0 %v4947, 72
    %v5308 = vpop.permute.xlu0 %5307
    %5309 = vrot.lane.b32.xlu0 %v4948, 72
    %v5310 = vpop.permute.xlu0 %5309
    %5311 = vrot.lane.b32.xlu0 %v4949, 72
    %v5312 = vpop.permute.xlu0 %5311
    %5313 = vrot.lane.b32.xlu0 %v4950, 72
    %v5314 = vpop.permute.xlu0 %5313
    %5315 = vrot.lane.b32.xlu0 %v5292, 72
    %v5316 = vpop.permute.xlu0 %5315
    %v5318 = vunpack.c.l.b16 %v2227
    %v5319 = vpack.c.b16 %v5318, %v5318
    %v5320 = vrot.slane %v5013, 1
    %v5321 = vor.u32 %v5010, %v5320
    %v5322 = vrot.slane %v5022, 1
    %v5323 = vsel %vm2294, %v5321, %v5322
    %v5324 = vor.u32 %v5019, %v5322
    %v5325 = vrot.slane %v5031, 1
    %v5326 = vsel %vm2294, %v5324, %v5325
    %v5327 = vor.u32 %v5028, %v5325
    %v5328 = vrot.slane %v5040, 1
    %v5329 = vsel %vm2294, %v5327, %v5328
    %v5330 = vor.u32 %v5037, %v5328
    %v5331 = vrot.slane %v5049, 1
    %v5332 = vsel %vm2294, %v5330, %v5331
    %v5333 = vor.u32 %v5046, %v5331
    %v5334 = vrot.slane %v5058, 1
    %v5335 = vsel %vm2294, %v5333, %v5334
    %v5336 = vor.u32 %v5055, %v5334
    %v5337 = vrot.slane %v5067, 1
    %v5338 = vsel %vm2294, %v5336, %v5337
    %v5339 = vor.u32 %v5064, %v5337
    %v5340 = vrot.slane %v5076, 1
    %v5341 = vsel %vm2294, %v5339, %v5340
    %v5342 = vor.u32 %v5073, %v5340
    %v5343 = vrot.slane %v5085, 1
    %v5344 = vsel %vm2294, %v5342, %v5343
    %v5345 = vor.u32 %v5082, %v5343
    %v5346 = vrot.slane %v5094, 1
    %v5347 = vsel %vm2294, %v5345, %v5346
    %v5348 = vor.u32 %v5091, %v5346
    %v5349 = vrot.slane %v5103, 1
    %v5350 = vsel %vm2294, %v5348, %v5349
    %v5351 = vor.u32 %v5100, %v5349
    %v5353 = vshll.u32 %v5292, 16
    %v5355 = vrot.slane %v5353, 1
    %v5356 = vsel %vm2294, %v5351, %v5355
    %v5357 = vshrl.u32 %v5292, 16
    %v5359 = vor.u32 %v5357, %v5355
    %v5361 = vshll.u32 %v5319, 16
    %v5363 = vrot.slane %v5361, 1
    %v5364 = vsel %vm2294, %v5359, %v5363
    %5365 = vrot.lane.b32.xlu0 %v5323, 92
    %v5366 = vpop.permute.xlu0 %5365
    %5367 = vrot.lane.b32.xlu0 %v5326, 92
    %v5368 = vpop.permute.xlu0 %5367
    %5369 = vrot.lane.b32.xlu0 %v5329, 92
    %v5370 = vpop.permute.xlu0 %5369
    %5371 = vrot.lane.b32.xlu0 %v5332, 92
    %v5372 = vpop.permute.xlu0 %5371
    %5373 = vrot.lane.b32.xlu0 %v5335, 92
    %v5374 = vpop.permute.xlu0 %5373
    %5375 = vrot.lane.b32.xlu0 %v5338, 92
    %v5376 = vpop.permute.xlu0 %5375
    %5377 = vrot.lane.b32.xlu0 %v5341, 92
    %v5378 = vpop.permute.xlu0 %5377
    %5379 = vrot.lane.b32.xlu0 %v5344, 92
    %v5380 = vpop.permute.xlu0 %5379
    %5381 = vrot.lane.b32.xlu0 %v5347, 92
    %v5382 = vpop.permute.xlu0 %5381
    %5383 = vrot.lane.b32.xlu0 %v5350, 92
    %v5384 = vpop.permute.xlu0 %5383
    %5385 = vrot.lane.b32.xlu0 %v5356, 92
    %v5386 = vpop.permute.xlu0 %5385
    %5387 = vrot.lane.b32.xlu0 %v5364, 92
    %v5388 = vpop.permute.xlu0 %5387
    %v5389 = vrot.slane %v4940, 1
    %v5390 = vrot.slane %v4941, 1
    %v5391 = vsel %vm2419, %v5389, %v5390
    %v5392 = vrot.slane %v4942, 1
    %v5393 = vsel %vm2419, %v5390, %v5392
    %v5394 = vrot.slane %v4943, 1
    %v5395 = vsel %vm2419, %v5392, %v5394
    %v5396 = vrot.slane %v4944, 1
    %v5397 = vsel %vm2419, %v5394, %v5396
    %v5398 = vrot.slane %v4945, 1
    %v5399 = vsel %vm2419, %v5396, %v5398
    %v5400 = vrot.slane %v4946, 1
    %v5401 = vsel %vm2419, %v5398, %v5400
    %v5402 = vrot.slane %v4947, 1
    %v5403 = vsel %vm2419, %v5400, %v5402
    %v5404 = vrot.slane %v4948, 1
    %v5405 = vsel %vm2419, %v5402, %v5404
    %v5406 = vrot.slane %v4949, 1
    %v5407 = vsel %vm2419, %v5404, %v5406
    %v5408 = vrot.slane %v4950, 1
    %v5409 = vsel %vm2419, %v5406, %v5408
    %v5410 = vrot.slane %v5292, 1
    %v5411 = vsel %vm2419, %v5408, %v5410
    %v5412 = vrot.slane %v5319, 1
    %v5413 = vsel %vm2419, %v5410, %v5412
    %5414 = vrot.lane.b32.xlu0 %v5391, 112
    %v5415 = vpop.permute.xlu0 %5414
    %5416 = vrot.lane.b32.xlu0 %v5393, 112
    %v5417 = vpop.permute.xlu0 %5416
    %5418 = vrot.lane.b32.xlu0 %v5395, 112
    %v5419 = vpop.permute.xlu0 %5418
    %5420 = vrot.lane.b32.xlu0 %v5397, 112
    %v5421 = vpop.permute.xlu0 %5420
    %5422 = vrot.lane.b32.xlu0 %v5399, 112
    %v5423 = vpop.permute.xlu0 %5422
    %5424 = vrot.lane.b32.xlu0 %v5401, 112
    %v5425 = vpop.permute.xlu0 %5424
    %5426 = vrot.lane.b32.xlu0 %v5403, 112
    %v5427 = vpop.permute.xlu0 %5426
    %5428 = vrot.lane.b32.xlu0 %v5405, 112
    %v5429 = vpop.permute.xlu0 %5428
    %5430 = vrot.lane.b32.xlu0 %v5407, 112
    %v5431 = vpop.permute.xlu0 %5430
    %5432 = vrot.lane.b32.xlu0 %v5409, 112
    %v5433 = vpop.permute.xlu0 %5432
    %5434 = vrot.lane.b32.xlu0 %v5411, 112
    %v5435 = vpop.permute.xlu0 %5434
    %5436 = vrot.lane.b32.xlu0 %v5413, 112
    %v5437 = vpop.permute.xlu0 %5436
    %v5438 = vrot.slane %v5010, 1
    %v5439 = vrot.slane %v5013, 2
    %v5440 = vor.u32 %v5438, %v5439
    %v5441 = vrot.slane %v5019, 1
    %v5442 = vrot.slane %v5022, 2
    %v5443 = vor.u32 %v5441, %v5442
    %v5444 = vsel %vm2469, %v5440, %v5443
    %v5445 = vrot.slane %v5028, 1
    %v5446 = vrot.slane %v5031, 2
    %v5447 = vor.u32 %v5445, %v5446
    %v5448 = vsel %vm2469, %v5443, %v5447
    %v5449 = vrot.slane %v5037, 1
    %v5450 = vrot.slane %v5040, 2
    %v5451 = vor.u32 %v5449, %v5450
    %v5452 = vsel %vm2469, %v5447, %v5451
    %v5453 = vrot.slane %v5046, 1
    %v5454 = vrot.slane %v5049, 2
    %v5455 = vor.u32 %v5453, %v5454
    %v5456 = vsel %vm2469, %v5451, %v5455
    %v5457 = vrot.slane %v5055, 1
    %v5458 = vrot.slane %v5058, 2
    %v5459 = vor.u32 %v5457, %v5458
    %v5460 = vsel %vm2469, %v5455, %v5459
    %v5461 = vrot.slane %v5064, 1
    %v5462 = vrot.slane %v5067, 2
    %v5463 = vor.u32 %v5461, %v5462
    %v5464 = vsel %vm2469, %v5459, %v5463
    %v5465 = vrot.slane %v5073, 1
    %v5466 = vrot.slane %v5076, 2
    %v5467 = vor.u32 %v5465, %v5466
    %v5468 = vsel %vm2469, %v5463, %v5467
    %v5469 = vrot.slane %v5082, 1
    %v5470 = vrot.slane %v5085, 2
    %v5471 = vor.u32 %v5469, %v5470
    %v5472 = vsel %vm2469, %v5467, %v5471
    %v5473 = vrot.slane %v5091, 1
    %v5474 = vrot.slane %v5094, 2
    %v5475 = vor.u32 %v5473, %v5474
    %v5476 = vsel %vm2469, %v5471, %v5475
    %v5477 = vrot.slane %v5100, 1
    %v5478 = vrot.slane %v5103, 2
    %v5479 = vor.u32 %v5477, %v5478
    %v5480 = vsel %vm2469, %v5475, %v5479
    %v5481 = vrot.slane %v5357, 1
    %v5482 = vrot.slane %v5353, 2
    %v5483 = vor.u32 %v5481, %v5482
    %v5484 = vsel %vm2469, %v5479, %v5483
    %v5485 = vshrl.u32 %v5319, 16
    %v5487 = vrot.slane %v5485, 1
    %v5488 = vrot.slane %v5361, 2
    %v5489 = vor.u32 %v5487, %v5488
    %v5490 = vsel %vm2469, %v5483, %v5489
    %5491 = vrot.lane.b32.xlu0 %v5444, 4
    %v5492 = vpop.permute.xlu0 %5491
    %5493 = vrot.lane.b32.xlu0 %v5448, 4
    %v5494 = vpop.permute.xlu0 %5493
    %5495 = vrot.lane.b32.xlu0 %v5452, 4
    %v5496 = vpop.permute.xlu0 %5495
    %5497 = vrot.lane.b32.xlu0 %v5456, 4
    %v5498 = vpop.permute.xlu0 %5497
    %5499 = vrot.lane.b32.xlu0 %v5460, 4
    %v5500 = vpop.permute.xlu0 %5499
    %5501 = vrot.lane.b32.xlu0 %v5464, 4
    %v5502 = vpop.permute.xlu0 %5501
    %5503 = vrot.lane.b32.xlu0 %v5468, 4
    %v5504 = vpop.permute.xlu0 %5503
    %5505 = vrot.lane.b32.xlu0 %v5472, 4
    %v5506 = vpop.permute.xlu0 %5505
    %5507 = vrot.lane.b32.xlu0 %v5476, 4
    %v5508 = vpop.permute.xlu0 %5507
    %5509 = vrot.lane.b32.xlu0 %v5480, 4
    %v5510 = vpop.permute.xlu0 %5509
    %5511 = vrot.lane.b32.xlu0 %v5484, 4
    %v5512 = vpop.permute.xlu0 %5511
    %5513 = vrot.lane.b32.xlu0 %v5490, 4
    %v5514 = vpop.permute.xlu0 %5513
    %v5515 = vrot.slane %v5292, 2
    %v5516 = vsel %vm2547, %v4973, %v5515
    %v5517 = vrot.slane %v5319, 2
    %v5518 = vsel %vm2547, %v5515, %v5517
    %5519 = vrot.lane.b32.xlu0 %v4956, 24
    %v5520 = vpop.permute.xlu0 %5519
    %5521 = vrot.lane.b32.xlu0 %v4958, 24
    %v5522 = vpop.permute.xlu0 %5521
    %5523 = vrot.lane.b32.xlu0 %v4960, 24
    %v5524 = vpop.permute.xlu0 %5523
    %5525 = vrot.lane.b32.xlu0 %v4962, 24
    %v5526 = vpop.permute.xlu0 %5525
    %5527 = vrot.lane.b32.xlu0 %v4964, 24
    %v5528 = vpop.permute.xlu0 %5527
    %5529 = vrot.lane.b32.xlu0 %v4966, 24
    %v5530 = vpop.permute.xlu0 %5529
    %5531 = vrot.lane.b32.xlu0 %v4968, 24
    %v5532 = vpop.permute.xlu0 %5531
    %5533 = vrot.lane.b32.xlu0 %v4970, 24
    %v5534 = vpop.permute.xlu0 %5533
    %5535 = vrot.lane.b32.xlu0 %v4972, 24
    %v5536 = vpop.permute.xlu0 %5535
    %5537 = vrot.lane.b32.xlu0 %v4974, 24
    %v5538 = vpop.permute.xlu0 %5537
    %5539 = vrot.lane.b32.xlu0 %v5516, 24
    %v5540 = vpop.permute.xlu0 %5539
    %5541 = vrot.lane.b32.xlu0 %v5518, 24
    %v5542 = vpop.permute.xlu0 %5541
    %v5544 = vunpack.c.l.b16 %v2228
    %v5545 = vpack.c.b16 %v5318, %v5291
    %v5546 = vpack.c.b16 %v5544, %v5544
    %v5547 = vrot.slane %v5265, 2
    %v5548 = vsel %vm2547, %v4909, %v5547
    %v5549 = vrot.slane %v5545, 2
    %v5550 = vsel %vm2547, %v5547, %v5549
    %v5551 = vrot.slane %v5546, 2
    %v5552 = vsel %vm2547, %v5549, %v5551
    %5553 = vrot.lane.b32.xlu0 %v4894, 44
    %v5554 = vpop.permute.xlu0 %5553
    %5555 = vrot.lane.b32.xlu0 %v4896, 44
    %v5556 = vpop.permute.xlu0 %5555
    %5557 = vrot.lane.b32.xlu0 %v4898, 44
    %v5558 = vpop.permute.xlu0 %5557
    %5559 = vrot.lane.b32.xlu0 %v4900, 44
    %v5560 = vpop.permute.xlu0 %5559
    %5561 = vrot.lane.b32.xlu0 %v4902, 44
    %v5562 = vpop.permute.xlu0 %5561
    %5563 = vrot.lane.b32.xlu0 %v4904, 44
    %v5564 = vpop.permute.xlu0 %5563
    %5565 = vrot.lane.b32.xlu0 %v4906, 44
    %v5566 = vpop.permute.xlu0 %5565
    %5567 = vrot.lane.b32.xlu0 %v4908, 44
    %v5568 = vpop.permute.xlu0 %5567
    %5569 = vrot.lane.b32.xlu0 %v4910, 44
    %v5570 = vpop.permute.xlu0 %5569
    %5571 = vrot.lane.b32.xlu0 %v5548, 44
    %v5572 = vpop.permute.xlu0 %5571
    %5573 = vrot.lane.b32.xlu0 %v5550, 44
    %v5574 = vpop.permute.xlu0 %5573
    %5575 = vrot.lane.b32.xlu0 %v5552, 44
    %v5576 = vpop.permute.xlu0 %5575
    %v5578 = vsel %vm3240, %v4623, %v4739
    %v5580 = vsel %vm3240, %v4624, %v4741
    %v5582 = vsel %vm3240, %v4625, %v4743
    %v5584 = vsel %vm3240, %v4626, %v4745
    %v5586 = vsel %vm3240, %v4627, %v4747
    %v5588 = vsel %vm3240, %v4628, %v4749
    %v5590 = vsel %vm3240, %v4629, %v4751
    %v5592 = vsel %vm3240, %v4630, %v4753
    %v5594 = vsel %vm3240, %v4631, %v4755
    %v5596 = vsel %vm3240, %v4632, %v4757
    %v5598 = vsel %vm3240, %v4633, %v4759
    %v5600 = vsel %vm3240, %v4634, %v4761
    %v5602 = vsel %vm3265, %v5578, %v4788
    %v5604 = vsel %vm3265, %v5580, %v4790
    %v5606 = vsel %vm3265, %v5582, %v4792
    %v5608 = vsel %vm3265, %v5584, %v4794
    %v5610 = vsel %vm3265, %v5586, %v4796
    %v5612 = vsel %vm3265, %v5588, %v4798
    %v5614 = vsel %vm3265, %v5590, %v4800
    %v5616 = vsel %vm3265, %v5592, %v4802
    %v5618 = vsel %vm3265, %v5594, %v4804
    %v5620 = vsel %vm3265, %v5596, %v4806
    %v5622 = vsel %vm3265, %v5598, %v4808
    %v5624 = vsel %vm3265, %v5600, %v4810
    %v5626 = vsel %vm3290, %v5602, %v4865
    %v5628 = vsel %vm3290, %v5604, %v4867
    %v5630 = vsel %vm3290, %v5606, %v4869
    %v5632 = vsel %vm3290, %v5608, %v4871
    %v5634 = vsel %vm3290, %v5610, %v4873
    %v5636 = vsel %vm3290, %v5612, %v4875
    %v5638 = vsel %vm3290, %v5614, %v4877
    %v5640 = vsel %vm3290, %v5616, %v4879
    %v5642 = vsel %vm3290, %v5618, %v4881
    %v5644 = vsel %vm3290, %v5620, %v4883
    %v5646 = vsel %vm3290, %v5622, %v4885
    %v5648 = vsel %vm3290, %v5624, %v4887
    %v5650 = vsel %vm3315, %v5626, %v4914
    %v5652 = vsel %vm3315, %v5628, %v4916
    %v5654 = vsel %vm3315, %v5630, %v4918
    %v5656 = vsel %vm3315, %v5632, %v4920
    %v5658 = vsel %vm3315, %v5634, %v4922
    %v5660 = vsel %vm3315, %v5636, %v4924
    %v5662 = vsel %vm3315, %v5638, %v4926
    %v5664 = vsel %vm3315, %v5640, %v4928
    %v5666 = vsel %vm3315, %v5642, %v4930
    %v5668 = vsel %vm3315, %v5644, %v4932
    %v5670 = vsel %vm3315, %v5646, %v4934
    %v5672 = vsel %vm3315, %v5648, %v4936
    %v5674 = vsel %vm3340, %v5650, %v4978
    %v5676 = vsel %vm3340, %v5652, %v4980
    %v5678 = vsel %vm3340, %v5654, %v4982
    %v5680 = vsel %vm3340, %v5656, %v4984
    %v5682 = vsel %vm3340, %v5658, %v4986
    %v5684 = vsel %vm3340, %v5660, %v4988
    %v5686 = vsel %vm3340, %v5662, %v4990
    %v5688 = vsel %vm3340, %v5664, %v4992
    %v5690 = vsel %vm3340, %v5666, %v4994
    %v5692 = vsel %vm3340, %v5668, %v4996
    %v5694 = vsel %vm3340, %v5670, %v4998
    %v5696 = vsel %vm3340, %v5672, %v5000
    %v5698 = vsel %vm3365, %v5674, %v5118
    %v5701 = vsel %vm3365, %v5676, %v5120
    %v5704 = vsel %vm3365, %v5678, %v5122
    %v5707 = vsel %vm3365, %v5680, %v5124
    %v5710 = vsel %vm3365, %v5682, %v5126
    %v5713 = vsel %vm3365, %v5684, %v5128
    %v5716 = vsel %vm3365, %v5686, %v5130
    %v5719 = vsel %vm3365, %v5688, %v5132
    %v5722 = vsel %vm3365, %v5690, %v5134
    %v5725 = vsel %vm3365, %v5692, %v5136
    %v5728 = vsel %vm3365, %v5694, %v5138
    %v5731 = vsel %vm3365, %v5696, %v5140
    %v5734 = vsel %vm3402, %v5118, %v5167
    %v5736 = vsel %vm3402, %v5120, %v5169
    %v5738 = vsel %vm3402, %v5122, %v5171
    %v5740 = vsel %vm3402, %v5124, %v5173
    %v5742 = vsel %vm3402, %v5126, %v5175
    %v5744 = vsel %vm3402, %v5128, %v5177
    %v5746 = vsel %vm3402, %v5130, %v5179
    %v5748 = vsel %vm3402, %v5132, %v5181
    %v5750 = vsel %vm3402, %v5134, %v5183
    %v5752 = vsel %vm3402, %v5136, %v5185
    %v5754 = vsel %vm3402, %v5138, %v5187
    %v5756 = vsel %vm3402, %v5140, %v5189
    %v5758 = vsel %vm3427, %v5734, %v5242
    %v5760 = vsel %vm3427, %v5736, %v5244
    %v5762 = vsel %vm3427, %v5738, %v5246
    %v5764 = vsel %vm3427, %v5740, %v5248
    %v5766 = vsel %vm3427, %v5742, %v5250
    %v5768 = vsel %vm3427, %v5744, %v5252
    %v5770 = vsel %vm3427, %v5746, %v5254
    %v5772 = vsel %vm3427, %v5748, %v5256
    %v5774 = vsel %vm3427, %v5750, %v5258
    %v5776 = vsel %vm3427, %v5752, %v5260
    %v5778 = vsel %vm3427, %v5754, %v5262
    %v5780 = vsel %vm3427, %v5756, %v5264
    %v5782 = vsel %vm3452, %v5758, %v5267
    %v5784 = vsel %vm3452, %v5760, %v5269
    %v5786 = vsel %vm3452, %v5762, %v5271
    %v5788 = vsel %vm3452, %v5764, %v5273
    %v5790 = vsel %vm3452, %v5766, %v5275
    %v5792 = vsel %vm3452, %v5768, %v5277
    %v5794 = vsel %vm3452, %v5770, %v5279
    %v5796 = vsel %vm3452, %v5772, %v5281
    %v5798 = vsel %vm3452, %v5774, %v5283
    %v5800 = vsel %vm3452, %v5776, %v5285
    %v5802 = vsel %vm3452, %v5778, %v5287
    %v5804 = vsel %vm3452, %v5780, %v5289
    %v5806 = vsel %vm3477, %v5782, %v5294
    %v5808 = vsel %vm3477, %v5784, %v5296
    %v5810 = vsel %vm3477, %v5786, %v5298
    %v5812 = vsel %vm3477, %v5788, %v5300
    %v5814 = vsel %vm3477, %v5790, %v5302
    %v5816 = vsel %vm3477, %v5792, %v5304
    %v5818 = vsel %vm3477, %v5794, %v5306
    %v5820 = vsel %vm3477, %v5796, %v5308
    %v5822 = vsel %vm3477, %v5798, %v5310
    %v5824 = vsel %vm3477, %v5800, %v5312
    %v5826 = vsel %vm3477, %v5802, %v5314
    %v5828 = vsel %vm3477, %v5804, %v5316
    %v5830 = vsel %vm3502, %v5806, %v5366
    %v5832 = vsel %vm3502, %v5808, %v5368
    %v5834 = vsel %vm3502, %v5810, %v5370
    %v5836 = vsel %vm3502, %v5812, %v5372
    %v5838 = vsel %vm3502, %v5814, %v5374
    %v5840 = vsel %vm3502, %v5816, %v5376
    %v5842 = vsel %vm3502, %v5818, %v5378
    %v5844 = vsel %vm3502, %v5820, %v5380
    %v5846 = vsel %vm3502, %v5822, %v5382
    %v5848 = vsel %vm3502, %v5824, %v5384
    %v5850 = vsel %vm3502, %v5826, %v5386
    %v5852 = vsel %vm3502, %v5828, %v5388
    %v5854 = vsel %vm3527, %v5830, %v5415
    %v5857 = vsel %vm3527, %v5832, %v5417
    %v5860 = vsel %vm3527, %v5834, %v5419
    %v5863 = vsel %vm3527, %v5836, %v5421
    %v5866 = vsel %vm3527, %v5838, %v5423
    %v5869 = vsel %vm3527, %v5840, %v5425
    %v5872 = vsel %vm3527, %v5842, %v5427
    %v5875 = vsel %vm3527, %v5844, %v5429
    %v5878 = vsel %vm3527, %v5846, %v5431
    %v5881 = vsel %vm3527, %v5848, %v5433
    %v5884 = vsel %vm3527, %v5850, %v5435
    %v5887 = vsel %vm3527, %v5852, %v5437
    %v5890 = vsel %vm3564, %v5415, %v5492
    %v5892 = vsel %vm3564, %v5417, %v5494
    %v5894 = vsel %vm3564, %v5419, %v5496
    %v5896 = vsel %vm3564, %v5421, %v5498
    %v5898 = vsel %vm3564, %v5423, %v5500
    %v5900 = vsel %vm3564, %v5425, %v5502
    %v5902 = vsel %vm3564, %v5427, %v5504
    %v5904 = vsel %vm3564, %v5429, %v5506
    %v5906 = vsel %vm3564, %v5431, %v5508
    %v5908 = vsel %vm3564, %v5433, %v5510
    %v5910 = vsel %vm3564, %v5435, %v5512
    %v5912 = vsel %vm3564, %v5437, %v5514
    %v5914 = vsel %vm3589, %v5890, %v5520
    %v5916 = vsel %vm3589, %v5892, %v5522
    %v5918 = vsel %vm3589, %v5894, %v5524
    %v5920 = vsel %vm3589, %v5896, %v5526
    %v5922 = vsel %vm3589, %v5898, %v5528
    %v5924 = vsel %vm3589, %v5900, %v5530
    %v5926 = vsel %vm3589, %v5902, %v5532
    %v5928 = vsel %vm3589, %v5904, %v5534
    %v5930 = vsel %vm3589, %v5906, %v5536
    %v5932 = vsel %vm3589, %v5908, %v5538
    %v5934 = vsel %vm3589, %v5910, %v5540
    %v5936 = vsel %vm3589, %v5912, %v5542
    %v5938 = vsel %vm3614, %v5914, %v5554
    %v5940 = vsel %vm3614, %v5916, %v5556
    %v5942 = vsel %vm3614, %v5918, %v5558
    %v5944 = vsel %vm3614, %v5920, %v5560
    %v5946 = vsel %vm3614, %v5922, %v5562
    %v5948 = vsel %vm3614, %v5924, %v5564
    %v5950 = vsel %vm3614, %v5926, %v5566
    %v5952 = vsel %vm3614, %v5928, %v5568
    %v5954 = vsel %vm3614, %v5930, %v5570
    %v5956 = vsel %vm3614, %v5932, %v5572
    %v5958 = vsel %vm3614, %v5934, %v5574
    %v5960 = vsel %vm3614, %v5936, %v5576
    %v5962 = vshll.u32 %v5265, 16
    %v5964 = vrot.slane %v5962, 1
    %v5965 = vsel %vm2294, %v4732, %v5964
    %v5966 = vshrl.u32 %v5265, 16
    %v5968 = vor.u32 %v5966, %v5964
    %v5970 = vshll.u32 %v5545, 16
    %v5972 = vrot.slane %v5970, 1
    %v5973 = vsel %vm2294, %v5968, %v5972
    %v5974 = vshrl.u32 %v5545, 16
    %v5976 = vor.u32 %v5974, %v5972
    %v5978 = vshll.u32 %v5546, 16
    %v5980 = vrot.slane %v5978, 1
    %v5981 = vsel %vm2294, %v5976, %v5980
    %v5982 = vshrl.u32 %v5546, 16
    %v5984 = vor.u32 %v5982, %v5980
    %5985 = vrot.lane.b32.xlu0 %v5965, 20
    %v5986 = vpop.permute.xlu0 %5985
    %5987 = vrot.lane.b32.xlu0 %v5973, 20
    %v5988 = vpop.permute.xlu0 %5987
    %5989 = vrot.lane.b32.xlu0 %v5981, 20
    %v5990 = vpop.permute.xlu0 %5989
    %5991 = vrot.lane.b32.xlu0 %v5984, 20
    %v5992 = vpop.permute.xlu0 %5991
    %v5993 = vrot.slane %v5265, 1
    %v5994 = vsel %vm2419, %v4783, %v5993
    %v5995 = vrot.slane %v5545, 1
    %v5996 = vsel %vm2419, %v5993, %v5995
    %v5997 = vrot.slane %v5546, 1
    %v5998 = vsel %vm2419, %v5995, %v5997
    %5999 = vrot.lane.b32.xlu0 %v5994, 40
    %v6000 = vpop.permute.xlu0 %5999
    %6001 = vrot.lane.b32.xlu0 %v5996, 40
    %v6002 = vpop.permute.xlu0 %6001
    %6003 = vrot.lane.b32.xlu0 %v5998, 40
    %v6004 = vpop.permute.xlu0 %6003
    %6005 = vrot.lane.b32.xlu0 %v5997, 40
    %v6006 = vpop.permute.xlu0 %6005
    %v6007 = vpack.c.b16 %v5544, %v5318
    %v6008 = vrot.slane %v5019, 5
    %v6009 = vrot.slane %v5022, 6
    %v6010 = vor.u32 %v6008, %v6009
    %v6011 = vrot.slane %v5028, 5
    %v6012 = vrot.slane %v5031, 6
    %v6013 = vor.u32 %v6011, %v6012
    %v6014 = vsel %vm3686, %v6010, %v6013
    %v6015 = vrot.slane %v5037, 5
    %v6016 = vrot.slane %v5040, 6
    %v6017 = vor.u32 %v6015, %v6016
    %v6018 = vsel %vm3686, %v6013, %v6017
    %v6019 = vrot.slane %v5046, 5
    %v6020 = vrot.slane %v5049, 6
    %v6021 = vor.u32 %v6019, %v6020
    %v6022 = vsel %vm3686, %v6017, %v6021
    %v6023 = vrot.slane %v5055, 5
    %v6024 = vrot.slane %v5058, 6
    %v6025 = vor.u32 %v6023, %v6024
    %v6026 = vsel %vm3686, %v6021, %v6025
    %v6027 = vrot.slane %v5064, 5
    %v6028 = vrot.slane %v5067, 6
    %v6029 = vor.u32 %v6027, %v6028
    %v6030 = vsel %vm3686, %v6025, %v6029
    %v6031 = vrot.slane %v5073, 5
    %v6032 = vrot.slane %v5076, 6
    %v6033 = vor.u32 %v6031, %v6032
    %v6034 = vsel %vm3686, %v6029, %v6033
    %v6035 = vrot.slane %v5082, 5
    %v6036 = vrot.slane %v5085, 6
    %v6037 = vor.u32 %v6035, %v6036
    %v6038 = vsel %vm3686, %v6033, %v6037
    %v6039 = vrot.slane %v5091, 5
    %v6040 = vrot.slane %v5094, 6
    %v6041 = vor.u32 %v6039, %v6040
    %v6042 = vsel %vm3686, %v6037, %v6041
    %v6043 = vrot.slane %v5100, 5
    %v6044 = vrot.slane %v5103, 6
    %v6045 = vor.u32 %v6043, %v6044
    %v6046 = vsel %vm3686, %v6041, %v6045
    %v6047 = vrot.slane %v5357, 5
    %v6048 = vrot.slane %v5353, 6
    %v6049 = vor.u32 %v6047, %v6048
    %v6050 = vsel %vm3686, %v6045, %v6049
    %v6052 = vshrl.u32 %v6007, 16
    %v6054 = vrot.slane %v6052, 5
    %v6055 = vshll.u32 %v6007, 16
    %v6057 = vrot.slane %v6055, 6
    %v6058 = vor.u32 %v6054, %v6057
    %v6059 = vsel %vm3686, %v6049, %v6058
    %6060 = vrot.lane.b32.xlu0 %v6010, 60
    %v6061 = vpop.permute.xlu0 %6060
    %6062 = vrot.lane.b32.xlu0 %v6014, 60
    %v6063 = vpop.permute.xlu0 %6062
    %6064 = vrot.lane.b32.xlu0 %v6018, 60
    %v6065 = vpop.permute.xlu0 %6064
    %6066 = vrot.lane.b32.xlu0 %v6022, 60
    %v6067 = vpop.permute.xlu0 %6066
    %6068 = vrot.lane.b32.xlu0 %v6026, 60
    %v6069 = vpop.permute.xlu0 %6068
    %6070 = vrot.lane.b32.xlu0 %v6030, 60
    %v6071 = vpop.permute.xlu0 %6070
    %6072 = vrot.lane.b32.xlu0 %v6034, 60
    %v6073 = vpop.permute.xlu0 %6072
    %6074 = vrot.lane.b32.xlu0 %v6038, 60
    %v6075 = vpop.permute.xlu0 %6074
    %6076 = vrot.lane.b32.xlu0 %v6042, 60
    %v6077 = vpop.permute.xlu0 %6076
    %6078 = vrot.lane.b32.xlu0 %v6046, 60
    %v6079 = vpop.permute.xlu0 %6078
    %6080 = vrot.lane.b32.xlu0 %v6050, 60
    %v6081 = vpop.permute.xlu0 %6080
    %6082 = vrot.lane.b32.xlu0 %v6059, 60
    %v6083 = vpop.permute.xlu0 %6082
    %6084 = vrot.lane.b32.xlu0 %v6058, 60
    %v6085 = vpop.permute.xlu0 %6084
    %v6087 = vunpack.c.l.b16 %v2229
    %v6088 = vpack.c.b16 %v6087, %v5544
    %v6089 = vrot.slane %v4666, 5
    %v6090 = vrot.slane %v4662, 6
    %v6091 = vor.u32 %v6089, %v6090
    %v6092 = vrot.slane %v4674, 5
    %v6093 = vrot.slane %v4670, 6
    %v6094 = vor.u32 %v6092, %v6093
    %v6095 = vsel %vm3686, %v6091, %v6094
    %v6096 = vrot.slane %v4682, 5
    %v6097 = vrot.slane %v4678, 6
    %v6098 = vor.u32 %v6096, %v6097
    %v6099 = vsel %vm3686, %v6094, %v6098
    %v6100 = vrot.slane %v4690, 5
    %v6101 = vrot.slane %v4686, 6
    %v6102 = vor.u32 %v6100, %v6101
    %v6103 = vsel %vm3686, %v6098, %v6102
    %v6104 = vrot.slane %v4698, 5
    %v6105 = vrot.slane %v4694, 6
    %v6106 = vor.u32 %v6104, %v6105
    %v6107 = vsel %vm3686, %v6102, %v6106
    %v6108 = vrot.slane %v4706, 5
    %v6109 = vrot.slane %v4702, 6
    %v6110 = vor.u32 %v6108, %v6109
    %v6111 = vsel %vm3686, %v6106, %v6110
    %v6112 = vrot.slane %v4714, 5
    %v6113 = vrot.slane %v4710, 6
    %v6114 = vor.u32 %v6112, %v6113
    %v6115 = vsel %vm3686, %v6110, %v6114
    %v6116 = vrot.slane %v4722, 5
    %v6117 = vrot.slane %v4718, 6
    %v6118 = vor.u32 %v6116, %v6117
    %v6119 = vsel %vm3686, %v6114, %v6118
    %v6120 = vrot.slane %v4730, 5
    %v6121 = vrot.slane %v4726, 6
    %v6122 = vor.u32 %v6120, %v6121
    %v6123 = vsel %vm3686, %v6118, %v6122
    %v6124 = vrot.slane %v5966, 5
    %v6125 = vrot.slane %v5962, 6
    %v6126 = vor.u32 %v6124, %v6125
    %v6127 = vsel %vm3686, %v6122, %v6126
    %v6128 = vrot.slane %v5974, 5
    %v6129 = vrot.slane %v5970, 6
    %v6130 = vor.u32 %v6128, %v6129
    %v6131 = vsel %vm3686, %v6126, %v6130
    %v6133 = vshrl.u32 %v6088, 16
    %v6135 = vrot.slane %v6133, 5
    %v6136 = vshll.u32 %v6088, 16
    %v6138 = vrot.slane %v6136, 6
    %v6139 = vor.u32 %v6135, %v6138
    %v6140 = vsel %vm3686, %v6130, %v6139
    %6141 = vrot.lane.b32.xlu0 %v6091, 80
    %v6142 = vpop.permute.xlu0 %6141
    %6143 = vrot.lane.b32.xlu0 %v6095, 80
    %v6144 = vpop.permute.xlu0 %6143
    %6145 = vrot.lane.b32.xlu0 %v6099, 80
    %v6146 = vpop.permute.xlu0 %6145
    %6147 = vrot.lane.b32.xlu0 %v6103, 80
    %v6148 = vpop.permute.xlu0 %6147
    %6149 = vrot.lane.b32.xlu0 %v6107, 80
    %v6150 = vpop.permute.xlu0 %6149
    %6151 = vrot.lane.b32.xlu0 %v6111, 80
    %v6152 = vpop.permute.xlu0 %6151
    %6153 = vrot.lane.b32.xlu0 %v6115, 80
    %v6154 = vpop.permute.xlu0 %6153
    %6155 = vrot.lane.b32.xlu0 %v6119, 80
    %v6156 = vpop.permute.xlu0 %6155
    %6157 = vrot.lane.b32.xlu0 %v6123, 80
    %v6158 = vpop.permute.xlu0 %6157
    %6159 = vrot.lane.b32.xlu0 %v6127, 80
    %v6160 = vpop.permute.xlu0 %6159
    %6161 = vrot.lane.b32.xlu0 %v6131, 80
    %v6162 = vpop.permute.xlu0 %6161
    %6163 = vrot.lane.b32.xlu0 %v6140, 80
    %v6164 = vpop.permute.xlu0 %6163
    %6165 = vrot.lane.b32.xlu0 %v6139, 80
    %v6166 = vpop.permute.xlu0 %6165
    %v6168 = vunpack.c.l.b16 %v2230
    %v6169 = vpack.c.b16 %v6168, %v6168
    %v6170 = vrot.slane %v4626, 6
    %v6171 = vrot.slane %v4627, 6
    %v6172 = vsel %vm3849, %v6170, %v6171
    %v6173 = vrot.slane %v4628, 6
    %v6174 = vsel %vm3849, %v6171, %v6173
    %v6175 = vrot.slane %v4629, 6
    %v6176 = vsel %vm3849, %v6173, %v6175
    %v6177 = vrot.slane %v4630, 6
    %v6178 = vsel %vm3849, %v6175, %v6177
    %v6179 = vrot.slane %v4631, 6
    %v6180 = vsel %vm3849, %v6177, %v6179
    %v6181 = vrot.slane %v4632, 6
    %v6182 = vsel %vm3849, %v6179, %v6181
    %v6183 = vrot.slane %v4633, 6
    %v6184 = vsel %vm3849, %v6181, %v6183
    %v6185 = vrot.slane %v4634, 6
    %v6186 = vsel %vm3849, %v6183, %v6185
    %v6187 = vrot.slane %v5265, 6
    %v6188 = vsel %vm3849, %v6185, %v6187
    %v6189 = vrot.slane %v5545, 6
    %v6190 = vsel %vm3849, %v6187, %v6189
    %v6191 = vrot.slane %v6088, 6
    %v6192 = vsel %vm3849, %v6189, %v6191
    %v6193 = vrot.slane %v6169, 6
    %v6194 = vsel %vm3849, %v6191, %v6193
    %6195 = vrot.lane.b32.xlu0 %v6170, 100
    %v6196 = vpop.permute.xlu0 %6195
    %6197 = vrot.lane.b32.xlu0 %v6172, 100
    %v6198 = vpop.permute.xlu0 %6197
    %6199 = vrot.lane.b32.xlu0 %v6174, 100
    %v6200 = vpop.permute.xlu0 %6199
    %6201 = vrot.lane.b32.xlu0 %v6176, 100
    %v6202 = vpop.permute.xlu0 %6201
    %6203 = vrot.lane.b32.xlu0 %v6178, 100
    %v6204 = vpop.permute.xlu0 %6203
    %6205 = vrot.lane.b32.xlu0 %v6180, 100
    %v6206 = vpop.permute.xlu0 %6205
    %6207 = vrot.lane.b32.xlu0 %v6182, 100
    %v6208 = vpop.permute.xlu0 %6207
    %6209 = vrot.lane.b32.xlu0 %v6184, 100
    %v6210 = vpop.permute.xlu0 %6209
    %6211 = vrot.lane.b32.xlu0 %v6186, 100
    %v6212 = vpop.permute.xlu0 %6211
    %6213 = vrot.lane.b32.xlu0 %v6188, 100
    %v6214 = vpop.permute.xlu0 %6213
    %6215 = vrot.lane.b32.xlu0 %v6190, 100
    %v6216 = vpop.permute.xlu0 %6215
    %6217 = vrot.lane.b32.xlu0 %v6192, 100
    %v6218 = vpop.permute.xlu0 %6217
    %6219 = vrot.lane.b32.xlu0 %v6194, 100
    %v6220 = vpop.permute.xlu0 %6219
    %v6221 = vrot.slane %v4666, 6
    %v6222 = vrot.slane %v4662, 7
    %v6223 = vor.u32 %v6221, %v6222
    %v6224 = vrot.slane %v4674, 6
    %v6225 = vrot.slane %v4670, 7
    %v6226 = vor.u32 %v6224, %v6225
    %v6227 = vsel %vm3901, %v6223, %v6226
    %v6228 = vrot.slane %v4682, 6
    %v6229 = vrot.slane %v4678, 7
    %v6230 = vor.u32 %v6228, %v6229
    %v6231 = vsel %vm3901, %v6226, %v6230
    %v6232 = vrot.slane %v4690, 6
    %v6233 = vrot.slane %v4686, 7
    %v6234 = vor.u32 %v6232, %v6233
    %v6235 = vsel %vm3901, %v6230, %v6234
    %v6236 = vrot.slane %v4698, 6
    %v6237 = vrot.slane %v4694, 7
    %v6238 = vor.u32 %v6236, %v6237
    %v6239 = vsel %vm3901, %v6234, %v6238
    %v6240 = vrot.slane %v4706, 6
    %v6241 = vrot.slane %v4702, 7
    %v6242 = vor.u32 %v6240, %v6241
    %v6243 = vsel %vm3901, %v6238, %v6242
    %v6244 = vrot.slane %v4714, 6
    %v6245 = vrot.slane %v4710, 7
    %v6246 = vor.u32 %v6244, %v6245
    %v6247 = vsel %vm3901, %v6242, %v6246
    %v6248 = vrot.slane %v4722, 6
    %v6249 = vrot.slane %v4718, 7
    %v6250 = vor.u32 %v6248, %v6249
    %v6251 = vsel %vm3901, %v6246, %v6250
    %v6252 = vrot.slane %v4730, 6
    %v6253 = vrot.slane %v4726, 7
    %v6254 = vor.u32 %v6252, %v6253
    %v6255 = vsel %vm3901, %v6250, %v6254
    %v6256 = vrot.slane %v5966, 6
    %v6257 = vrot.slane %v5962, 7
    %v6258 = vor.u32 %v6256, %v6257
    %v6259 = vsel %vm3901, %v6254, %v6258
    %v6260 = vrot.slane %v5974, 6
    %v6261 = vrot.slane %v5970, 7
    %v6262 = vor.u32 %v6260, %v6261
    %v6263 = vsel %vm3901, %v6258, %v6262
    %v6264 = vrot.slane %v6133, 6
    %v6265 = vrot.slane %v6136, 7
    %v6266 = vor.u32 %v6264, %v6265
    %v6267 = vsel %vm3901, %v6262, %v6266
    %v6269 = vshrl.u32 %v6169, 16
    %v6271 = vrot.slane %v6269, 6
    %v6272 = vshll.u32 %v6169, 16
    %v6274 = vrot.slane %v6272, 7
    %v6275 = vor.u32 %v6271, %v6274
    %v6276 = vsel %vm3901, %v6266, %v6275
    %6277 = vrot.lane.b32.xlu0 %v6223, 120
    %v6278 = vpop.permute.xlu0 %6277
    %6279 = vrot.lane.b32.xlu0 %v6227, 120
    %v6280 = vpop.permute.xlu0 %6279
    %6281 = vrot.lane.b32.xlu0 %v6231, 120
    %v6282 = vpop.permute.xlu0 %6281
    %6283 = vrot.lane.b32.xlu0 %v6235, 120
    %v6284 = vpop.permute.xlu0 %6283
    %6285 = vrot.lane.b32.xlu0 %v6239, 120
    %v6286 = vpop.permute.xlu0 %6285
    %6287 = vrot.lane.b32.xlu0 %v6243, 120
    %v6288 = vpop.permute.xlu0 %6287
    %6289 = vrot.lane.b32.xlu0 %v6247, 120
    %v6290 = vpop.permute.xlu0 %6289
    %6291 = vrot.lane.b32.xlu0 %v6251, 120
    %v6292 = vpop.permute.xlu0 %6291
    %6293 = vrot.lane.b32.xlu0 %v6255, 120
    %v6294 = vpop.permute.xlu0 %6293
    %6295 = vrot.lane.b32.xlu0 %v6259, 120
    %v6296 = vpop.permute.xlu0 %6295
    %6297 = vrot.lane.b32.xlu0 %v6263, 120
    %v6298 = vpop.permute.xlu0 %6297
    %6299 = vrot.lane.b32.xlu0 %v6267, 120
    %v6300 = vpop.permute.xlu0 %6299
    %6301 = vrot.lane.b32.xlu0 %v6276, 120
    %v6302 = vpop.permute.xlu0 %6301
    %v6303 = vrot.slane %v4626, 7
    %v6304 = vrot.slane %v4627, 7
    %v6305 = vsel %vm3984, %v6303, %v6304
    %v6306 = vrot.slane %v4628, 7
    %v6307 = vsel %vm3984, %v6304, %v6306
    %v6308 = vrot.slane %v4629, 7
    %v6309 = vsel %vm3984, %v6306, %v6308
    %v6310 = vrot.slane %v4630, 7
    %v6311 = vsel %vm3984, %v6308, %v6310
    %v6312 = vrot.slane %v4631, 7
    %v6313 = vsel %vm3984, %v6310, %v6312
    %v6314 = vrot.slane %v4632, 7
    %v6315 = vsel %vm3984, %v6312, %v6314
    %v6316 = vrot.slane %v4633, 7
    %v6317 = vsel %vm3984, %v6314, %v6316
    %v6318 = vrot.slane %v4634, 7
    %v6319 = vsel %vm3984, %v6316, %v6318
    %v6320 = vrot.slane %v5265, 7
    %v6321 = vsel %vm3984, %v6318, %v6320
    %v6322 = vrot.slane %v5545, 7
    %v6323 = vsel %vm3984, %v6320, %v6322
    %v6324 = vrot.slane %v6088, 7
    %v6325 = vsel %vm3984, %v6322, %v6324
    %v6326 = vrot.slane %v6169, 7
    %v6327 = vsel %vm3984, %v6324, %v6326
    %6328 = vrot.lane.b32.xlu0 %v6303, 12
    %v6329 = vpop.permute.xlu0 %6328
    %6330 = vrot.lane.b32.xlu0 %v6305, 12
    %v6331 = vpop.permute.xlu0 %6330
    %6332 = vrot.lane.b32.xlu0 %v6307, 12
    %v6333 = vpop.permute.xlu0 %6332
    %6334 = vrot.lane.b32.xlu0 %v6309, 12
    %v6335 = vpop.permute.xlu0 %6334
    %6336 = vrot.lane.b32.xlu0 %v6311, 12
    %v6337 = vpop.permute.xlu0 %6336
    %6338 = vrot.lane.b32.xlu0 %v6313, 12
    %v6339 = vpop.permute.xlu0 %6338
    %6340 = vrot.lane.b32.xlu0 %v6315, 12
    %v6341 = vpop.permute.xlu0 %6340
    %6342 = vrot.lane.b32.xlu0 %v6317, 12
    %v6343 = vpop.permute.xlu0 %6342
    %6344 = vrot.lane.b32.xlu0 %v6319, 12
    %v6345 = vpop.permute.xlu0 %6344
    %6346 = vrot.lane.b32.xlu0 %v6321, 12
    %v6347 = vpop.permute.xlu0 %6346
    %6348 = vrot.lane.b32.xlu0 %v6323, 12
    %v6349 = vpop.permute.xlu0 %6348
    %6350 = vrot.lane.b32.xlu0 %v6325, 12
    %v6351 = vpop.permute.xlu0 %6350
    %6352 = vrot.lane.b32.xlu0 %v6327, 12
    %v6353 = vpop.permute.xlu0 %6352
    %v6354 = vrot.slane %v4666, 7
    %v6355 = vor.u32 %v6354, %v4662
    %v6356 = vrot.slane %v4674, 7
    %v6357 = vor.u32 %v6356, %v4670
    %v6358 = vsel %vm4036, %v6354, %v6357
    %v6359 = vrot.slane %v4682, 7
    %v6360 = vor.u32 %v6359, %v4678
    %v6361 = vsel %vm4036, %v6356, %v6360
    %v6362 = vrot.slane %v4690, 7
    %v6363 = vor.u32 %v6362, %v4686
    %v6364 = vsel %vm4036, %v6359, %v6363
    %v6365 = vrot.slane %v4698, 7
    %v6366 = vor.u32 %v6365, %v4694
    %v6367 = vsel %vm4036, %v6362, %v6366
    %v6368 = vrot.slane %v4706, 7
    %v6369 = vor.u32 %v6368, %v4702
    %v6370 = vsel %vm4036, %v6365, %v6369
    %v6371 = vrot.slane %v4714, 7
    %v6372 = vor.u32 %v6371, %v4710
    %v6373 = vsel %vm4036, %v6368, %v6372
    %v6374 = vrot.slane %v4722, 7
    %v6375 = vor.u32 %v6374, %v4718
    %v6376 = vsel %vm4036, %v6371, %v6375
    %v6377 = vrot.slane %v4730, 7
    %v6378 = vor.u32 %v6377, %v4726
    %v6379 = vsel %vm4036, %v6374, %v6378
    %v6380 = vrot.slane %v5966, 7
    %v6381 = vor.u32 %v6380, %v5962
    %v6382 = vsel %vm4036, %v6377, %v6381
    %v6383 = vrot.slane %v5974, 7
    %v6384 = vor.u32 %v6383, %v5970
    %v6385 = vsel %vm4036, %v6380, %v6384
    %v6386 = vrot.slane %v6133, 7
    %v6387 = vor.u32 %v6386, %v6136
    %v6388 = vsel %vm4036, %v6383, %v6387
    %v6389 = vrot.slane %v6269, 7
    %v6390 = vor.u32 %v6389, %v6272
    %v6391 = vsel %vm4036, %v6386, %v6390
    %6392 = vrot.lane.b32.xlu0 %v6355, 32
    %v6393 = vpop.permute.xlu0 %6392
    %6394 = vrot.lane.b32.xlu0 %v6358, 32
    %v6395 = vpop.permute.xlu0 %6394
    %6396 = vrot.lane.b32.xlu0 %v6361, 32
    %v6397 = vpop.permute.xlu0 %6396
    %6398 = vrot.lane.b32.xlu0 %v6364, 32
    %v6399 = vpop.permute.xlu0 %6398
    %6400 = vrot.lane.b32.xlu0 %v6367, 32
    %v6401 = vpop.permute.xlu0 %6400
    %6402 = vrot.lane.b32.xlu0 %v6370, 32
    %v6403 = vpop.permute.xlu0 %6402
    %6404 = vrot.lane.b32.xlu0 %v6373, 32
    %v6405 = vpop.permute.xlu0 %6404
    %6406 = vrot.lane.b32.xlu0 %v6376, 32
    %v6407 = vpop.permute.xlu0 %6406
    %6408 = vrot.lane.b32.xlu0 %v6379, 32
    %v6409 = vpop.permute.xlu0 %6408
    %6410 = vrot.lane.b32.xlu0 %v6382, 32
    %v6411 = vpop.permute.xlu0 %6410
    %6412 = vrot.lane.b32.xlu0 %v6385, 32
    %v6413 = vpop.permute.xlu0 %6412
    %6414 = vrot.lane.b32.xlu0 %v6388, 32
    %v6415 = vpop.permute.xlu0 %6414
    %6416 = vrot.lane.b32.xlu0 %v6391, 32
    %v6417 = vpop.permute.xlu0 %6416
    %v6419 = vsel %vm3240, %v4634, %v5986
    %v6421 = vsel %vm3240, %v5265, %v5988
    %v6423 = vsel %vm3240, %v5545, %v5990
    %v6425 = vsel %vm3240, %v5546, %v5992
    %v6427 = vsel %vm3265, %v6419, %v6000
    %v6429 = vsel %vm3265, %v6421, %v6002
    %v6431 = vsel %vm3265, %v6423, %v6004
    %v6433 = vsel %vm3265, %v6425, %v6006
    %v6435 = vsel %vm3290, %v5606, %v6061
    %v6437 = vsel %vm3290, %v5608, %v6063
    %v6439 = vsel %vm3290, %v5610, %v6065
    %v6441 = vsel %vm3290, %v5612, %v6067
    %v6443 = vsel %vm3290, %v5614, %v6069
    %v6445 = vsel %vm3290, %v5616, %v6071
    %v6447 = vsel %vm3290, %v5618, %v6073
    %v6449 = vsel %vm3290, %v5620, %v6075
    %v6451 = vsel %vm3290, %v5622, %v6077
    %v6453 = vsel %vm3290, %v6427, %v6079
    %v6455 = vsel %vm3290, %v6429, %v6081
    %v6457 = vsel %vm3290, %v6431, %v6083
    %v6459 = vsel %vm3290, %v6433, %v6085
    %v6461 = vsel %vm3315, %v6435, %v6142
    %v6463 = vsel %vm3315, %v6437, %v6144
    %v6465 = vsel %vm3315, %v6439, %v6146
    %v6467 = vsel %vm3315, %v6441, %v6148
    %v6469 = vsel %vm3315, %v6443, %v6150
    %v6471 = vsel %vm3315, %v6445, %v6152
    %v6473 = vsel %vm3315, %v6447, %v6154
    %v6475 = vsel %vm3315, %v6449, %v6156
    %v6477 = vsel %vm3315, %v6451, %v6158
    %v6479 = vsel %vm3315, %v6453, %v6160
    %v6481 = vsel %vm3315, %v6455, %v6162
    %v6483 = vsel %vm3315, %v6457, %v6164
    %v6485 = vsel %vm3315, %v6459, %v6166
    %v6487 = vsel %vm3340, %v6461, %v6196
    %v6489 = vsel %vm3340, %v6463, %v6198
    %v6491 = vsel %vm3340, %v6465, %v6200
    %v6493 = vsel %vm3340, %v6467, %v6202
    %v6495 = vsel %vm3340, %v6469, %v6204
    %v6497 = vsel %vm3340, %v6471, %v6206
    %v6499 = vsel %vm3340, %v6473, %v6208
    %v6501 = vsel %vm3340, %v6475, %v6210
    %v6503 = vsel %vm3340, %v6477, %v6212
    %v6505 = vsel %vm3340, %v6479, %v6214
    %v6507 = vsel %vm3340, %v6481, %v6216
    %v6509 = vsel %vm3340, %v6483, %v6218
    %v6511 = vsel %vm3340, %v6485, %v6220
    %v6513 = vsel %vm3365, %v6487, %v6278
    %v6515 = vsel %vm3365, %v6489, %v6280
    %v6517 = vsel %vm3365, %v6491, %v6282
    %v6519 = vsel %vm3365, %v6493, %v6284
    %v6521 = vsel %vm3365, %v6495, %v6286
    %v6523 = vsel %vm3365, %v6497, %v6288
    %v6525 = vsel %vm3365, %v6499, %v6290
    %v6527 = vsel %vm3365, %v6501, %v6292
    %v6529 = vsel %vm3365, %v6503, %v6294
    %v6531 = vsel %vm3365, %v6505, %v6296
    %v6533 = vsel %vm3365, %v6507, %v6298
    %v6535 = vsel %vm3365, %v6509, %v6300
    %v6537 = vsel %vm3365, %v6511, %v6302
    %v6539 = vsel %vm3402, %v6278, %v6329
    %v6541 = vsel %vm3402, %v6280, %v6331
    %v6543 = vsel %vm3402, %v6282, %v6333
    %v6545 = vsel %vm3402, %v6284, %v6335
    %v6547 = vsel %vm3402, %v6286, %v6337
    %v6549 = vsel %vm3402, %v6288, %v6339
    %v6551 = vsel %vm3402, %v6290, %v6341
    %v6553 = vsel %vm3402, %v6292, %v6343
    %v6555 = vsel %vm3402, %v6294, %v6345
    %v6557 = vsel %vm3402, %v6296, %v6347
    %v6559 = vsel %vm3402, %v6298, %v6349
    %v6561 = vsel %vm3402, %v6300, %v6351
    %v6563 = vsel %vm3402, %v6302, %v6353
    %v6565 = vsel %vm3427, %v6539, %v6393
    %v6567 = vsel %vm3427, %v6541, %v6395
    %v6569 = vsel %vm3427, %v6543, %v6397
    %v6571 = vsel %vm3427, %v6545, %v6399
    %v6573 = vsel %vm3427, %v6547, %v6401
    %v6575 = vsel %vm3427, %v6549, %v6403
    %v6577 = vsel %vm3427, %v6551, %v6405
    %v6579 = vsel %vm3427, %v6553, %v6407
    %v6581 = vsel %vm3427, %v6555, %v6409
    %v6583 = vsel %vm3427, %v6557, %v6411
    %v6585 = vsel %vm3427, %v6559, %v6413
    %v6587 = vsel %vm3427, %v6561, %v6415
    %v6589 = vsel %vm3427, %v6563, %v6417
    %v6590 = vshrl.u32 %v6513, 16
    %v6592 = vrot.slane %v6590, 2
    %v6593 = vshll.u32 %v6513, 16
    %v6595 = vrot.slane %v6593, 3
    %v6596 = vor.u32 %v6592, %v6595
    %v6597 = vshrl.u32 %v6515, 16
    %v6599 = vrot.slane %v6597, 2
    %v6600 = vshll.u32 %v6515, 16
    %v6602 = vrot.slane %v6600, 3
    %v6603 = vor.u32 %v6599, %v6602
    %v6604 = vsel %vm2661, %v6596, %v6603
    %v6605 = vshrl.u32 %v6565, 16
    %v6607 = vrot.slane %v6605, 2
    %v6608 = vshll.u32 %v6565, 16
    %v6610 = vrot.slane %v6608, 3
    %v6611 = vor.u32 %v6607, %v6610
    %v6612 = vshrl.u32 %v6567, 16
    %v6614 = vrot.slane %v6612, 2
    %v6615 = vshll.u32 %v6567, 16
    %v6617 = vrot.slane %v6615, 3
    %v6618 = vor.u32 %v6614, %v6617
    %v6619 = vsel %vm2661, %v6611, %v6618
    %v6620 = vshrl.u32 %v6517, 16
    %v6622 = vrot.slane %v6620, 2
    %v6623 = vshll.u32 %v6517, 16
    %v6625 = vrot.slane %v6623, 3
    %v6626 = vor.u32 %v6622, %v6625
    %v6627 = vsel %vm2661, %v6603, %v6626
    %v6628 = vshrl.u32 %v6569, 16
    %v6630 = vrot.slane %v6628, 2
    %v6631 = vshll.u32 %v6569, 16
    %v6633 = vrot.slane %v6631, 3
    %v6634 = vor.u32 %v6630, %v6633
    %v6635 = vsel %vm2661, %v6618, %v6634
    %v6636 = vshrl.u32 %v6519, 16
    %v6638 = vrot.slane %v6636, 2
    %v6639 = vshll.u32 %v6519, 16
    %v6641 = vrot.slane %v6639, 3
    %v6642 = vor.u32 %v6638, %v6641
    %v6643 = vsel %vm2661, %v6626, %v6642
    %v6644 = vshrl.u32 %v6571, 16
    %v6646 = vrot.slane %v6644, 2
    %v6647 = vshll.u32 %v6571, 16
    %v6649 = vrot.slane %v6647, 3
    %v6650 = vor.u32 %v6646, %v6649
    %v6651 = vsel %vm2661, %v6634, %v6650
    %v6652 = vshrl.u32 %v6521, 16
    %v6654 = vrot.slane %v6652, 2
    %v6655 = vshll.u32 %v6521, 16
    %v6657 = vrot.slane %v6655, 3
    %v6658 = vor.u32 %v6654, %v6657
    %v6659 = vsel %vm2661, %v6642, %v6658
    %v6660 = vshrl.u32 %v6573, 16
    %v6662 = vrot.slane %v6660, 2
    %v6663 = vshll.u32 %v6573, 16
    %v6665 = vrot.slane %v6663, 3
    %v6666 = vor.u32 %v6662, %v6665
    %v6667 = vsel %vm2661, %v6650, %v6666
    %v6668 = vshrl.u32 %v6523, 16
    %v6670 = vrot.slane %v6668, 2
    %v6671 = vshll.u32 %v6523, 16
    %v6673 = vrot.slane %v6671, 3
    %v6674 = vor.u32 %v6670, %v6673
    %v6675 = vsel %vm2661, %v6658, %v6674
    %v6676 = vshrl.u32 %v6575, 16
    %v6678 = vrot.slane %v6676, 2
    %v6679 = vshll.u32 %v6575, 16
    %v6681 = vrot.slane %v6679, 3
    %v6682 = vor.u32 %v6678, %v6681
    %v6683 = vsel %vm2661, %v6666, %v6682
    %v6684 = vshrl.u32 %v6525, 16
    %v6686 = vrot.slane %v6684, 2
    %v6687 = vshll.u32 %v6525, 16
    %v6689 = vrot.slane %v6687, 3
    %v6690 = vor.u32 %v6686, %v6689
    %v6691 = vsel %vm2661, %v6674, %v6690
    %v6692 = vshrl.u32 %v6577, 16
    %v6694 = vrot.slane %v6692, 2
    %v6695 = vshll.u32 %v6577, 16
    %v6697 = vrot.slane %v6695, 3
    %v6698 = vor.u32 %v6694, %v6697
    %v6699 = vsel %vm2661, %v6682, %v6698
    %v6700 = vshrl.u32 %v6527, 16
    %v6702 = vrot.slane %v6700, 2
    %v6703 = vshll.u32 %v6527, 16
    %v6705 = vrot.slane %v6703, 3
    %v6706 = vor.u32 %v6702, %v6705
    %v6707 = vsel %vm2661, %v6690, %v6706
    %v6708 = vshrl.u32 %v6579, 16
    %v6710 = vrot.slane %v6708, 2
    %v6711 = vshll.u32 %v6579, 16
    %v6713 = vrot.slane %v6711, 3
    %v6714 = vor.u32 %v6710, %v6713
    %v6715 = vsel %vm2661, %v6698, %v6714
    %v6716 = vshrl.u32 %v6529, 16
    %v6718 = vrot.slane %v6716, 2
    %v6719 = vshll.u32 %v6529, 16
    %v6721 = vrot.slane %v6719, 3
    %v6722 = vor.u32 %v6718, %v6721
    %v6723 = vsel %vm2661, %v6706, %v6722
    %v6724 = vshrl.u32 %v6581, 16
    %v6726 = vrot.slane %v6724, 2
    %v6727 = vshll.u32 %v6581, 16
    %v6729 = vrot.slane %v6727, 3
    %v6730 = vor.u32 %v6726, %v6729
    %v6731 = vsel %vm2661, %v6714, %v6730
    %v6732 = vshrl.u32 %v6531, 16
    %v6734 = vrot.slane %v6732, 2
    %v6735 = vshll.u32 %v6531, 16
    %v6737 = vrot.slane %v6735, 3
    %v6738 = vor.u32 %v6734, %v6737
    %v6739 = vsel %vm2661, %v6722, %v6738
    %v6740 = vshrl.u32 %v6583, 16
    %v6742 = vrot.slane %v6740, 2
    %v6743 = vshll.u32 %v6583, 16
    %v6745 = vrot.slane %v6743, 3
    %v6746 = vor.u32 %v6742, %v6745
    %v6747 = vsel %vm2661, %v6730, %v6746
    %v6748 = vshrl.u32 %v6533, 16
    %v6750 = vrot.slane %v6748, 2
    %v6751 = vshll.u32 %v6533, 16
    %v6753 = vrot.slane %v6751, 3
    %v6754 = vor.u32 %v6750, %v6753
    %v6755 = vsel %vm2661, %v6738, %v6754
    %v6756 = vshrl.u32 %v6585, 16
    %v6758 = vrot.slane %v6756, 2
    %v6759 = vshll.u32 %v6585, 16
    %v6761 = vrot.slane %v6759, 3
    %v6762 = vor.u32 %v6758, %v6761
    %v6763 = vsel %vm2661, %v6746, %v6762
    %v6764 = vshrl.u32 %v6535, 16
    %v6766 = vrot.slane %v6764, 2
    %v6767 = vshll.u32 %v6535, 16
    %v6769 = vrot.slane %v6767, 3
    %v6770 = vor.u32 %v6766, %v6769
    %v6771 = vsel %vm2661, %v6754, %v6770
    %v6772 = vshrl.u32 %v6587, 16
    %v6774 = vrot.slane %v6772, 2
    %v6775 = vshll.u32 %v6587, 16
    %v6777 = vrot.slane %v6775, 3
    %v6778 = vor.u32 %v6774, %v6777
    %v6779 = vsel %vm2661, %v6762, %v6778
    %v6780 = vshrl.u32 %v6537, 16
    %v6782 = vrot.slane %v6780, 2
    %v6783 = vshll.u32 %v6537, 16
    %v6785 = vrot.slane %v6783, 3
    %v6786 = vor.u32 %v6782, %v6785
    %v6787 = vsel %vm2661, %v6770, %v6786
    %v6788 = vshrl.u32 %v6589, 16
    %v6790 = vrot.slane %v6788, 2
    %v6791 = vshll.u32 %v6589, 16
    %v6793 = vrot.slane %v6791, 3
    %v6794 = vor.u32 %v6790, %v6793
    %v6795 = vsel %vm2661, %v6778, %v6794
    %6796 = vrot.lane.b32.xlu0 %v6604, 64
    %v6797 = vpop.permute.xlu0 %6796
    %6798 = vrot.lane.b32.xlu0 %v6619, 64
    %v6799 = vpop.permute.xlu0 %6798
    %6800 = vrot.lane.b32.xlu0 %v6627, 64
    %v6801 = vpop.permute.xlu0 %6800
    %6802 = vrot.lane.b32.xlu0 %v6635, 64
    %v6803 = vpop.permute.xlu0 %6802
    %6804 = vrot.lane.b32.xlu0 %v6643, 64
    %v6805 = vpop.permute.xlu0 %6804
    %6806 = vrot.lane.b32.xlu0 %v6651, 64
    %v6807 = vpop.permute.xlu0 %6806
    %6808 = vrot.lane.b32.xlu0 %v6659, 64
    %v6809 = vpop.permute.xlu0 %6808
    %6810 = vrot.lane.b32.xlu0 %v6667, 64
    %v6811 = vpop.permute.xlu0 %6810
    %6812 = vrot.lane.b32.xlu0 %v6675, 64
    %v6813 = vpop.permute.xlu0 %6812
    %6814 = vrot.lane.b32.xlu0 %v6683, 64
    %v6815 = vpop.permute.xlu0 %6814
    %6816 = vrot.lane.b32.xlu0 %v6691, 64
    %v6817 = vpop.permute.xlu0 %6816
    %6818 = vrot.lane.b32.xlu0 %v6699, 64
    %v6819 = vpop.permute.xlu0 %6818
    %6820 = vrot.lane.b32.xlu0 %v6707, 64
    %v6821 = vpop.permute.xlu0 %6820
    %6822 = vrot.lane.b32.xlu0 %v6715, 64
    %v6823 = vpop.permute.xlu0 %6822
    %6824 = vrot.lane.b32.xlu0 %v6723, 64
    %v6825 = vpop.permute.xlu0 %6824
    %6826 = vrot.lane.b32.xlu0 %v6731, 64
    %v6827 = vpop.permute.xlu0 %6826
    %6828 = vrot.lane.b32.xlu0 %v6739, 64
    %v6829 = vpop.permute.xlu0 %6828
    %6830 = vrot.lane.b32.xlu0 %v6747, 64
    %v6831 = vpop.permute.xlu0 %6830
    %6832 = vrot.lane.b32.xlu0 %v6755, 64
    %v6833 = vpop.permute.xlu0 %6832
    %6834 = vrot.lane.b32.xlu0 %v6763, 64
    %v6835 = vpop.permute.xlu0 %6834
    %6836 = vrot.lane.b32.xlu0 %v6771, 64
    %v6837 = vpop.permute.xlu0 %6836
    %6838 = vrot.lane.b32.xlu0 %v6779, 64
    %v6839 = vpop.permute.xlu0 %6838
    %6840 = vrot.lane.b32.xlu0 %v6787, 64
    %v6841 = vpop.permute.xlu0 %6840
    %6842 = vrot.lane.b32.xlu0 %v6795, 64
    %v6843 = vpop.permute.xlu0 %6842
    %v6844 = vsel %vm4527, %v6797, %v6799
    %v6845 = vsel %vm4527, %v6801, %v6803
    %v6846 = vsel %vm4527, %v6805, %v6807
    %v6847 = vsel %vm4527, %v6809, %v6811
    %v6848 = vsel %vm4527, %v6813, %v6815
    %v6849 = vsel %vm4527, %v6817, %v6819
    %v6850 = vsel %vm4527, %v6821, %v6823
    %v6851 = vsel %vm4527, %v6825, %v6827
    %v6852 = vsel %vm4527, %v6829, %v6831
    %v6853 = vsel %vm4527, %v6833, %v6835
    %v6854 = vsel %vm4527, %v6837, %v6839
    %v6855 = vsel %vm4527, %v6841, %v6843
    %v6857 = vsel %vm4540, %v5938, %v6797
    %v6860 = vsel %vm4540, %v5940, %v6801
    %v6863 = vsel %vm4540, %v5942, %v6805
    %v6866 = vsel %vm4540, %v5944, %v6809
    %v6869 = vsel %vm4540, %v5946, %v6813
    %v6872 = vsel %vm4540, %v5948, %v6817
    %v6875 = vsel %vm4540, %v5950, %v6821
    %v6878 = vsel %vm4540, %v5952, %v6825
    %v6881 = vsel %vm4540, %v5954, %v6829
    %v6884 = vsel %vm4540, %v5956, %v6833
    %v6887 = vsel %vm4540, %v5958, %v6837
    %v6890 = vsel %vm4540, %v5960, %v6841
    %v6892 = vld [vmem:[%s3] sm:$0xf]
    %v6893 = vld [vmem:[%s3 + $0x4] sm:$0xf]
    %v6894 = vld [vmem:[%s3 + $0x8] sm:$0xf]
    %v6895 = vld [vmem:[%s3 + $0xc] sm:$0xf]
    %v6896 = vld [vmem:[%s3 + $0x10] sm:$0xf]
    %v6897 = vld [vmem:[%s3 + $0x14] sm:$0xf]
    %v6898 = vld [vmem:[%s3 + $0x18] sm:$0xf]
    %v6899 = vld [vmem:[%s3 + $0x1c] sm:$0xf]
    %v6900 = vld [vmem:[%s3 + $0x20] sm:$0xf]
    %v6901 = vld [vmem:[%s3 + $0x24] sm:$0xf]
    %v6902 = vld [vmem:[%s3 + $0x28] sm:$0xf]
    %v6903 = vld [vmem:[%s3 + $0x2c] sm:$0xf]
    %v6904 = vld [vmem:[%s3 + $0x30] sm:$0xf]
    %v6905 = vld [vmem:[%s3 + $0x34] sm:$0xf]
    %v6906 = vld [vmem:[%s3 + $0x38] sm:$0xf]
    %v6907 = vld [vmem:[%s3 + $0x3c] sm:$0xf]
    %v6908 = vld [vmem:[%s3 + $0x40] sm:$0xf]
    %v6909 = vld [vmem:[%s3 + $0x44] sm:$0xf]
    %v6910 = vld [vmem:[%s3 + $0x48] sm:$0xf]
    %v6911 = vld [vmem:[%s3 + $0x4c] sm:$0xf]
    %v6912 = vld [vmem:[%s3 + $0x50] sm:$0xf]
    %v6913 = vld [vmem:[%s3 + $0x54] sm:$0xf]
    %v6914 = vld [vmem:[%s3 + $0x58] sm:$0xf]
    %v6915 = vld [vmem:[%s3 + $0x5c] sm:$0xf]
    %v6916 = vld [vmem:[%s3 + $0x60] sm:$0xf]
    %v6917 = vld [vmem:[%s3 + $0x64] sm:$0xf]
    %v6918 = vld [vmem:[%s3 + $0x68] sm:$0xf]
    %v6919 = vld [vmem:[%s3 + $0x6c] sm:$0xf]
    %v6920 = vld [vmem:[%s3 + $0x70] sm:$0xf]
    %v6921 = vld [vmem:[%s3 + $0x74] sm:$0xf]
    %v6922 = vld [vmem:[%s3 + $0x78] sm:$0xf]
    %v6923 = vld [vmem:[%s3 + $0x7c] sm:$0xf]
    %v6924 = vld [vmem:[%s3 + $0x80] sm:$0xf]
    %v6925 = vld [vmem:[%s3 + $0x84] sm:$0xf]
    %v6926 = vld [vmem:[%s3 + $0x88] sm:$0xf]
    %v6927 = vld [vmem:[%s3 + $0x8c] sm:$0xf]
    %v6928 = vld [vmem:[%s3 + $0x90] sm:$0xf]
    %v6929 = vld [vmem:[%s3 + $0x94] sm:$0xf]
    %v6930 = vld [vmem:[%s3 + $0x98] sm:$0xf]
    %v6931 = vld [vmem:[%s3 + $0x9c] sm:$0xf]
    %v6932 = vld [vmem:[%s3 + $0xa0] sm:$0xf]
    %v6933 = vld [vmem:[%s3 + $0xa4] sm:$0xf]
    %v6934 = vld [vmem:[%s3 + $0xa8] sm:$0xf]
    %v6935 = vld [vmem:[%s3 + $0xac] sm:$0xf]
    %v6936 = vld [vmem:[%s3 + $0xb0] sm:$0xf]
    %v6937 = vld [vmem:[%s3 + $0xb4] sm:$0xf]
    %v6938 = vld [vmem:[%s3 + $0xb8] sm:$0xf]
    %v6939 = vld [vmem:[%s3 + $0xbc] sm:$0xf]
    %v6940 = vld [vmem:[%s3 + $0xc0] sm:$0xf]
    %v6941 = vld [vmem:[%s3 + $0xc4] sm:$0xf]
    %v6942 = vld [vmem:[%s3 + $0xc8] sm:$0xf]
    %v6943 = vld [vmem:[%s3 + $0xcc] sm:$0xf]
    %v6944 = vld [vmem:[%s3 + $0xd0] sm:$0xf]
    %v6945 = vld [vmem:[%s3 + $0xd4] sm:$0xf]
    %v6946 = vld [vmem:[%s3 + $0xd8] sm:$0xf]
    %v6947 = vld [vmem:[%s3 + $0xdc] sm:$0xf]
    %v6948 = vld [vmem:[%s3 + $0xe0] sm:$0xf]
    %v6949 = vld [vmem:[%s3 + $0xe4] sm:$0xf]
    %v6950 = vld [vmem:[%s3 + $0xe8] sm:$0xf]
    %v6951 = vld [vmem:[%s3 + $0xec] sm:$0xf]
    %v6952 = vld [vmem:[%s3 + $0xf0] sm:$0xf]
    %v6953 = vld [vmem:[%s3 + $0xf4] sm:$0xf]
    %v6954 = vld [vmem:[%s3 + $0xf8] sm:$0x3]
    %v7018 = vunpack.c.l.b16 %v6892
    %v7019 = vunpack.c.l.b16 %v6893
    %v7020 = vunpack.c.l.b16 %v6894
    %v7021 = vunpack.c.l.b16 %v6895
    %v7022 = vunpack.c.l.b16 %v6896
    %v7023 = vunpack.c.l.b16 %v6897
    %v7024 = vunpack.c.l.b16 %v6898
    %v7025 = vunpack.c.l.b16 %v6899
    %v7026 = vunpack.c.l.b16 %v6900
    %v7027 = vunpack.c.l.b16 %v6901
    %v7028 = vunpack.c.l.b16 %v6902
    %v7029 = vunpack.c.l.b16 %v6903
    %v7030 = vunpack.c.l.b16 %v6904
    %v7031 = vunpack.c.l.b16 %v6905
    %v7032 = vunpack.c.l.b16 %v6906
    %v7033 = vunpack.c.l.b16 %v6907
    %v7034 = vunpack.c.l.b16 %v6908
    %v7035 = vunpack.c.l.b16 %v6909
    %v7036 = vunpack.c.l.b16 %v6910
    %v7037 = vunpack.c.l.b16 %v6911
    %v7038 = vunpack.c.l.b16 %v6912
    %v7039 = vunpack.c.l.b16 %v6913
    %v7040 = vunpack.c.l.b16 %v6914
    %v7041 = vunpack.c.l.b16 %v6915
    %v7042 = vunpack.c.l.b16 %v6916
    %v7043 = vunpack.c.l.b16 %v6917
    %v7044 = vunpack.c.l.b16 %v6918
    %v7045 = vunpack.c.l.b16 %v6919
    %v7046 = vunpack.c.l.b16 %v6920
    %v7047 = vunpack.c.l.b16 %v6921
    %v7048 = vunpack.c.l.b16 %v6922
    %v7049 = vunpack.c.l.b16 %v6923
    %v7050 = vunpack.c.l.b16 %v6924
    %v7051 = vunpack.c.l.b16 %v6925
    %v7052 = vunpack.c.l.b16 %v6926
    %v7053 = vunpack.c.l.b16 %v6927
    %v7054 = vunpack.c.l.b16 %v6928
    %v7055 = vunpack.c.l.b16 %v6929
    %v7056 = vunpack.c.l.b16 %v6930
    %v7057 = vunpack.c.l.b16 %v6931
    %v7058 = vunpack.c.l.b16 %v6932
    %v7059 = vunpack.c.l.b16 %v6933
    %v7060 = vunpack.c.l.b16 %v6934
    %v7061 = vunpack.c.l.b16 %v6935
    %v7062 = vunpack.c.l.b16 %v6936
    %v7063 = vunpack.c.l.b16 %v6937
    %v7064 = vunpack.c.l.b16 %v6938
    %v7065 = vunpack.c.l.b16 %v6939
    %v7066 = vunpack.c.l.b16 %v6940
    %v7067 = vunpack.c.l.b16 %v6941
    %v7068 = vunpack.c.l.b16 %v6942
    %v7069 = vunpack.c.l.b16 %v6943
    %v7070 = vunpack.c.l.b16 %v6944
    %v7071 = vunpack.c.l.b16 %v6945
    %v7072 = vunpack.c.l.b16 %v6946
    %v7073 = vunpack.c.l.b16 %v6947
    %v7074 = vunpack.c.l.b16 %v6948
    %v7075 = vunpack.c.l.b16 %v6949
    %v7076 = vunpack.c.l.b16 %v6950
    %v7077 = vunpack.c.l.b16 %v6951
    %v7078 = vunpack.c.l.b16 %v6952
    %v7079 = vunpack.c.l.b16 %v6953
    %v7080 = vunpack.c.l.b16 %v6954
    %v7081 = vpack.c.b16 %v7019, %v7018
    %v7082 = vpack.c.b16 %v7021, %v7020
    %v7083 = vpack.c.b16 %v7023, %v7022
    %v7084 = vpack.c.b16 %v7025, %v7024
    %v7085 = vpack.c.b16 %v7027, %v7026
    %v7086 = vpack.c.b16 %v7029, %v7028
    %v7087 = vpack.c.b16 %v7031, %v7030
    %v7088 = vpack.c.b16 %v7033, %v7032
    %v7089 = vpack.c.b16 %v7035, %v7034
    %v7090 = vpack.c.b16 %v7037, %v7036
    %v7091 = vpack.c.b16 %v7039, %v7038
    %v7092 = vpack.c.b16 %v7041, %v7040
    %v7093 = vpack.c.b16 %v7043, %v7042
    %v7094 = vpack.c.b16 %v7045, %v7044
    %v7095 = vpack.c.b16 %v7047, %v7046
    %v7096 = vpack.c.b16 %v7049, %v7048
    %v7097 = vpack.c.b16 %v7051, %v7050
    %v7098 = vpack.c.b16 %v7053, %v7052
    %v7099 = vpack.c.b16 %v7055, %v7054
    %v7100 = vpack.c.b16 %v7057, %v7056
    %v7101 = vpack.c.b16 %v7059, %v7058
    %v7102 = vpack.c.b16 %v7061, %v7060
    %v7103 = vpack.c.b16 %v7063, %v7062
    %v7104 = vpack.c.b16 %v7065, %v7064
    %v7105 = vpack.c.b16 %v7067, %v7066
    %v7106 = vpack.c.b16 %v7069, %v7068
    %v7107 = vpack.c.b16 %v7071, %v7070
    %v7108 = vpack.c.b16 %v7073, %v7072
    %v7109 = vpack.c.b16 %v7075, %v7074
    %v7110 = vpack.c.b16 %v7077, %v7076
    %v7111 = vpack.c.b16 %v7079, %v7078
    %v7112 = vpack.c.b16 %v7080, %v7080
    %vm7144 = vcmask 949248
    %v7146 = vsel %vm7144, %v4528, 0
    %v7149 = vsel %vm7144, %v4529, 0
    %v7152 = vsel %vm7144, %v4530, 0
    %v7155 = vsel %vm7144, %v4531, 0
    %v7158 = vsel %vm7144, %v4532, 0
    %v7161 = vsel %vm7144, %v4533, 0
    %v7164 = vsel %vm7144, %v4534, 0
    %v7167 = vsel %vm7144, %v4535, 0
    %v7170 = vsel %vm7144, %v4536, 0
    %v7173 = vsel %vm7144, %v4537, 0
    %v7176 = vsel %vm7144, %v4538, 0
    %v7179 = vsel %vm7144, %v4539, 0
    %v7182 = vsel %vm7144, %v6844, 0
    %v7185 = vsel %vm7144, %v6845, 0
    %v7188 = vsel %vm7144, %v6846, 0
    %v7191 = vsel %vm7144, %v6847, 0
    %v7194 = vsel %vm7144, %v6848, 0
    %v7197 = vsel %vm7144, %v6849, 0
    %v7200 = vsel %vm7144, %v6850, 0
    %v7203 = vsel %vm7144, %v6851, 0
    %v7206 = vsel %vm7144, %v6852, 0
    %v7209 = vsel %vm7144, %v6853, 0
    %v7212 = vsel %vm7144, %v6854, 0
    %v7215 = vsel %vm7144, %v6855, 0
    %vm7217 = vcmask 1041408
    %v7219 = vsel %vm7217, %v7112, 0
    %7221 = vmatpush.bf16.msra.mxu0 %v7088
    %7222 = vmatpush.bf16.msra.mxu0 %v7087
    %7223 = vmatpush.bf16.msra.mxu0 %v7086
    %7224 = vmatpush.bf16.msra.mxu0 %v7085
    %7225 = vmatpush.bf16.msra.mxu0 %v7084
    %7226 = vmatpush.bf16.msra.mxu0 %v7083
    %7227 = vmatpush.bf16.msra.mxu0 %v7082
    %7228 = vmatpush.bf16.msra.mxu0 %v7081
    %7229 = vmatmul.bf16.gmra.mxu0 %v3367
    %v7230 = vpop.f32.mrf.mxu0
    %v7231 = vadd.f32 0.0, %v7230
    %v7232 = vpop.f32.mrf.mxu0
    %v7233 = vadd.f32 0.0, %v7232
    %7234 = vmatmul.bf16.gmra.mxu0 %v3370
    %v7235 = vpop.f32.mrf.mxu0
    %v7236 = vadd.f32 0.0, %v7235
    %v7237 = vpop.f32.mrf.mxu0
    %v7238 = vadd.f32 0.0, %v7237
    %7239 = vmatmul.bf16.gmra.mxu0 %v3373
    %v7240 = vpop.f32.mrf.mxu0
    %v7241 = vadd.f32 0.0, %v7240
    %v7242 = vpop.f32.mrf.mxu0
    %v7243 = vadd.f32 0.0, %v7242
    %7244 = vmatmul.bf16.gmra.mxu0 %v3376
    %v7245 = vpop.f32.mrf.mxu0
    %v7246 = vadd.f32 0.0, %v7245
    %v7247 = vpop.f32.mrf.mxu0
    %v7248 = vadd.f32 0.0, %v7247
    %7249 = vmatmul.bf16.gmra.mxu0 %v3379
    %v7250 = vpop.f32.mrf.mxu0
    %v7251 = vadd.f32 0.0, %v7250
    %v7252 = vpop.f32.mrf.mxu0
    %v7253 = vadd.f32 0.0, %v7252
    %7254 = vmatmul.bf16.gmra.mxu0 %v3382
    %v7255 = vpop.f32.mrf.mxu0
    %v7256 = vadd.f32 0.0, %v7255
    %v7257 = vpop.f32.mrf.mxu0
    %v7258 = vadd.f32 0.0, %v7257
    %7259 = vmatmul.bf16.gmra.mxu0 %v3385
    %v7260 = vpop.f32.mrf.mxu0
    %v7261 = vadd.f32 0.0, %v7260
    %v7262 = vpop.f32.mrf.mxu0
    %v7263 = vadd.f32 0.0, %v7262
    %7264 = vmatmul.bf16.gmra.mxu0 %v3388
    %v7265 = vpop.f32.mrf.mxu0
    %v7266 = vadd.f32 0.0, %v7265
    %v7267 = vpop.f32.mrf.mxu0
    %v7268 = vadd.f32 0.0, %v7267
    %7269 = vmatmul.bf16.gmra.mxu0 %v3391
    %v7270 = vpop.f32.mrf.mxu0
    %v7271 = vadd.f32 0.0, %v7270
    %v7272 = vpop.f32.mrf.mxu0
    %v7273 = vadd.f32 0.0, %v7272
    %7274 = vmatmul.bf16.gmra.mxu0 %v3394
    %v7275 = vpop.f32.mrf.mxu0
    %v7276 = vadd.f32 0.0, %v7275
    %v7277 = vpop.f32.mrf.mxu0
    %v7278 = vadd.f32 0.0, %v7277
    %7279 = vmatmul.bf16.gmra.mxu0 %v3397
    %v7280 = vpop.f32.mrf.mxu0
    %v7281 = vadd.f32 0.0, %v7280
    %v7282 = vpop.f32.mrf.mxu0
    %v7283 = vadd.f32 0.0, %v7282
    %7284 = vmatmul.bf16.gmra.mxu0 %v3400
    %v7285 = vpop.f32.mrf.mxu0
    %v7286 = vadd.f32 0.0, %v7285
    %v7287 = vpop.f32.mrf.mxu0
    %v7288 = vadd.f32 0.0, %v7287
    %7289 = vmatmul.bf16.gmra.mxu0 %v5698
    %v7290 = vpop.f32.mrf.mxu0
    %v7291 = vadd.f32 0.0, %v7290
    %v7292 = vpop.f32.mrf.mxu0
    %v7293 = vadd.f32 0.0, %v7292
    %7294 = vmatmul.bf16.gmra.mxu0 %v5701
    %v7295 = vpop.f32.mrf.mxu0
    %v7296 = vadd.f32 0.0, %v7295
    %v7297 = vpop.f32.mrf.mxu0
    %v7298 = vadd.f32 0.0, %v7297
    %7299 = vmatmul.bf16.gmra.mxu0 %v5704
    %v7300 = vpop.f32.mrf.mxu0
    %v7301 = vadd.f32 0.0, %v7300
    %v7302 = vpop.f32.mrf.mxu0
    %v7303 = vadd.f32 0.0, %v7302
    %7304 = vmatmul.bf16.gmra.mxu0 %v5707
    %v7305 = vpop.f32.mrf.mxu0
    %v7306 = vadd.f32 0.0, %v7305
    %v7307 = vpop.f32.mrf.mxu0
    %v7308 = vadd.f32 0.0, %v7307
    %7309 = vmatmul.bf16.gmra.mxu0 %v5710
    %v7310 = vpop.f32.mrf.mxu0
    %v7311 = vadd.f32 0.0, %v7310
    %v7312 = vpop.f32.mrf.mxu0
    %v7313 = vadd.f32 0.0, %v7312
    %7314 = vmatmul.bf16.gmra.mxu0 %v5713
    %v7315 = vpop.f32.mrf.mxu0
    %v7316 = vadd.f32 0.0, %v7315
    %v7317 = vpop.f32.mrf.mxu0
    %v7318 = vadd.f32 0.0, %v7317
    %7319 = vmatmul.bf16.gmra.mxu0 %v5716
    %v7320 = vpop.f32.mrf.mxu0
    %v7321 = vadd.f32 0.0, %v7320
    %v7322 = vpop.f32.mrf.mxu0
    %v7323 = vadd.f32 0.0, %v7322
    %7324 = vmatmul.bf16.gmra.mxu0 %v5719
    %v7325 = vpop.f32.mrf.mxu0
    %v7326 = vadd.f32 0.0, %v7325
    %v7327 = vpop.f32.mrf.mxu0
    %v7328 = vadd.f32 0.0, %v7327
    %7329 = vmatmul.bf16.gmra.mxu0 %v5722
    %v7330 = vpop.f32.mrf.mxu0
    %v7331 = vadd.f32 0.0, %v7330
    %v7332 = vpop.f32.mrf.mxu0
    %v7333 = vadd.f32 0.0, %v7332
    %7334 = vmatmul.bf16.gmra.mxu0 %v5725
    %v7335 = vpop.f32.mrf.mxu0
    %v7336 = vadd.f32 0.0, %v7335
    %v7337 = vpop.f32.mrf.mxu0
    %v7338 = vadd.f32 0.0, %v7337
    %7339 = vmatmul.bf16.gmra.mxu0 %v5728
    %v7340 = vpop.f32.mrf.mxu0
    %v7341 = vadd.f32 0.0, %v7340
    %v7342 = vpop.f32.mrf.mxu0
    %v7343 = vadd.f32 0.0, %v7342
    %7344 = vmatmul.bf16.gmra.mxu0 %v5731
    %v7345 = vpop.f32.mrf.mxu0
    %v7346 = vadd.f32 0.0, %v7345
    %v7347 = vpop.f32.mrf.mxu0
    %v7348 = vadd.f32 0.0, %v7347
    %7349 = vdwg.mxu0
    %7350 = vmatpush.bf16.msra.mxu0 %v7096
    %7351 = vmatpush.bf16.msra.mxu0 %v7095
    %7352 = vmatpush.bf16.msra.mxu0 %v7094
    %7353 = vmatpush.bf16.msra.mxu0 %v7093
    %7354 = vmatpush.bf16.msra.mxu0 %v7092
    %7355 = vmatpush.bf16.msra.mxu0 %v7091
    %7356 = vmatpush.bf16.msra.mxu0 %v7090
    %7357 = vmatpush.bf16.msra.mxu0 %v7089
    %7358 = vmatmul.bf16.gmra.mxu0 %v3529
    %v7359 = vpop.f32.mrf.mxu0
    %v7360 = vadd.f32 %v7231, %v7359
    %v7361 = vpop.f32.mrf.mxu0
    %v7362 = vadd.f32 %v7233, %v7361
    %7363 = vmatmul.bf16.gmra.mxu0 %v3532
    %v7364 = vpop.f32.mrf.mxu0
    %v7365 = vadd.f32 %v7236, %v7364
    %v7366 = vpop.f32.mrf.mxu0
    %v7367 = vadd.f32 %v7238, %v7366
    %7368 = vmatmul.bf16.gmra.mxu0 %v3535
    %v7369 = vpop.f32.mrf.mxu0
    %v7370 = vadd.f32 %v7241, %v7369
    %v7371 = vpop.f32.mrf.mxu0
    %v7372 = vadd.f32 %v7243, %v7371
    %7373 = vmatmul.bf16.gmra.mxu0 %v3538
    %v7374 = vpop.f32.mrf.mxu0
    %v7375 = vadd.f32 %v7246, %v7374
    %v7376 = vpop.f32.mrf.mxu0
    %v7377 = vadd.f32 %v7248, %v7376
    %7378 = vmatmul.bf16.gmra.mxu0 %v3541
    %v7379 = vpop.f32.mrf.mxu0
    %v7380 = vadd.f32 %v7251, %v7379
    %v7381 = vpop.f32.mrf.mxu0
    %v7382 = vadd.f32 %v7253, %v7381
    %7383 = vmatmul.bf16.gmra.mxu0 %v3544
    %v7384 = vpop.f32.mrf.mxu0
    %v7385 = vadd.f32 %v7256, %v7384
    %v7386 = vpop.f32.mrf.mxu0
    %v7387 = vadd.f32 %v7258, %v7386
    %7388 = vmatmul.bf16.gmra.mxu0 %v3547
    %v7389 = vpop.f32.mrf.mxu0
    %v7390 = vadd.f32 %v7261, %v7389
    %v7391 = vpop.f32.mrf.mxu0
    %v7392 = vadd.f32 %v7263, %v7391
    %7393 = vmatmul.bf16.gmra.mxu0 %v3550
    %v7394 = vpop.f32.mrf.mxu0
    %v7395 = vadd.f32 %v7266, %v7394
    %v7396 = vpop.f32.mrf.mxu0
    %v7397 = vadd.f32 %v7268, %v7396
    %7398 = vmatmul.bf16.gmra.mxu0 %v3553
    %v7399 = vpop.f32.mrf.mxu0
    %v7400 = vadd.f32 %v7271, %v7399
    %v7401 = vpop.f32.mrf.mxu0
    %v7402 = vadd.f32 %v7273, %v7401
    %7403 = vmatmul.bf16.gmra.mxu0 %v3556
    %v7404 = vpop.f32.mrf.mxu0
    %v7405 = vadd.f32 %v7276, %v7404
    %v7406 = vpop.f32.mrf.mxu0
    %v7407 = vadd.f32 %v7278, %v7406
    %7408 = vmatmul.bf16.gmra.mxu0 %v3559
    %v7409 = vpop.f32.mrf.mxu0
    %v7410 = vadd.f32 %v7281, %v7409
    %v7411 = vpop.f32.mrf.mxu0
    %v7412 = vadd.f32 %v7283, %v7411
    %7413 = vmatmul.bf16.gmra.mxu0 %v3562
    %v7414 = vpop.f32.mrf.mxu0
    %v7415 = vadd.f32 %v7286, %v7414
    %v7416 = vpop.f32.mrf.mxu0
    %v7417 = vadd.f32 %v7288, %v7416
    %7418 = vmatmul.bf16.gmra.mxu0 %v5854
    %v7419 = vpop.f32.mrf.mxu0
    %v7420 = vadd.f32 %v7291, %v7419
    %v7421 = vpop.f32.mrf.mxu0
    %v7422 = vadd.f32 %v7293, %v7421
    %7423 = vmatmul.bf16.gmra.mxu0 %v5857
    %v7424 = vpop.f32.mrf.mxu0
    %v7425 = vadd.f32 %v7296, %v7424
    %v7426 = vpop.f32.mrf.mxu0
    %v7427 = vadd.f32 %v7298, %v7426
    %7428 = vmatmul.bf16.gmra.mxu0 %v5860
    %v7429 = vpop.f32.mrf.mxu0
    %v7430 = vadd.f32 %v7301, %v7429
    %v7431 = vpop.f32.mrf.mxu0
    %v7432 = vadd.f32 %v7303, %v7431
    %7433 = vmatmul.bf16.gmra.mxu0 %v5863
    %v7434 = vpop.f32.mrf.mxu0
    %v7435 = vadd.f32 %v7306, %v7434
    %v7436 = vpop.f32.mrf.mxu0
    %v7437 = vadd.f32 %v7308, %v7436
    %7438 = vmatmul.bf16.gmra.mxu0 %v5866
    %v7439 = vpop.f32.mrf.mxu0
    %v7440 = vadd.f32 %v7311, %v7439
    %v7441 = vpop.f32.mrf.mxu0
    %v7442 = vadd.f32 %v7313, %v7441
    %7443 = vmatmul.bf16.gmra.mxu0 %v5869
    %v7444 = vpop.f32.mrf.mxu0
    %v7445 = vadd.f32 %v7316, %v7444
    %v7446 = vpop.f32.mrf.mxu0
    %v7447 = vadd.f32 %v7318, %v7446
    %7448 = vmatmul.bf16.gmra.mxu0 %v5872
    %v7449 = vpop.f32.mrf.mxu0
    %v7450 = vadd.f32 %v7321, %v7449
    %v7451 = vpop.f32.mrf.mxu0
    %v7452 = vadd.f32 %v7323, %v7451
    %7453 = vmatmul.bf16.gmra.mxu0 %v5875
    %v7454 = vpop.f32.mrf.mxu0
    %v7455 = vadd.f32 %v7326, %v7454
    %v7456 = vpop.f32.mrf.mxu0
    %v7457 = vadd.f32 %v7328, %v7456
    %7458 = vmatmul.bf16.gmra.mxu0 %v5878
    %v7459 = vpop.f32.mrf.mxu0
    %v7460 = vadd.f32 %v7331, %v7459
    %v7461 = vpop.f32.mrf.mxu0
    %v7462 = vadd.f32 %v7333, %v7461
    %7463 = vmatmul.bf16.gmra.mxu0 %v5881
    %v7464 = vpop.f32.mrf.mxu0
    %v7465 = vadd.f32 %v7336, %v7464
    %v7466 = vpop.f32.mrf.mxu0
    %v7467 = vadd.f32 %v7338, %v7466
    %7468 = vmatmul.bf16.gmra.mxu0 %v5884
    %v7469 = vpop.f32.mrf.mxu0
    %v7470 = vadd.f32 %v7341, %v7469
    %v7471 = vpop.f32.mrf.mxu0
    %v7472 = vadd.f32 %v7343, %v7471
    %7473 = vmatmul.bf16.gmra.mxu0 %v5887
    %v7474 = vpop.f32.mrf.mxu0
    %v7475 = vadd.f32 %v7346, %v7474
    %v7476 = vpop.f32.mrf.mxu0
    %v7477 = vadd.f32 %v7348, %v7476
    %7478 = vdwg.mxu0
    %7479 = vmatpush.bf16.msra.mxu0 %v7104
    %7480 = vmatpush.bf16.msra.mxu0 %v7103
    %7481 = vmatpush.bf16.msra.mxu0 %v7102
    %7482 = vmatpush.bf16.msra.mxu0 %v7101
    %7483 = vmatpush.bf16.msra.mxu0 %v7100
    %7484 = vmatpush.bf16.msra.mxu0 %v7099
    %7485 = vmatpush.bf16.msra.mxu0 %v7098
    %7486 = vmatpush.bf16.msra.mxu0 %v7097
    %7487 = vmatmul.bf16.gmra.mxu0 %v4542
    %v7488 = vpop.f32.mrf.mxu0
    %v7489 = vadd.f32 %v7360, %v7488
    %v7490 = vpop.f32.mrf.mxu0
    %v7491 = vadd.f32 %v7362, %v7490
    %7492 = vmatmul.bf16.gmra.mxu0 %v4545
    %v7493 = vpop.f32.mrf.mxu0
    %v7494 = vadd.f32 %v7365, %v7493
    %v7495 = vpop.f32.mrf.mxu0
    %v7496 = vadd.f32 %v7367, %v7495
    %7497 = vmatmul.bf16.gmra.mxu0 %v4548
    %v7498 = vpop.f32.mrf.mxu0
    %v7499 = vadd.f32 %v7370, %v7498
    %v7500 = vpop.f32.mrf.mxu0
    %v7501 = vadd.f32 %v7372, %v7500
    %7502 = vmatmul.bf16.gmra.mxu0 %v4551
    %v7503 = vpop.f32.mrf.mxu0
    %v7504 = vadd.f32 %v7375, %v7503
    %v7505 = vpop.f32.mrf.mxu0
    %v7506 = vadd.f32 %v7377, %v7505
    %7507 = vmatmul.bf16.gmra.mxu0 %v4554
    %v7508 = vpop.f32.mrf.mxu0
    %v7509 = vadd.f32 %v7380, %v7508
    %v7510 = vpop.f32.mrf.mxu0
    %v7511 = vadd.f32 %v7382, %v7510
    %7512 = vmatmul.bf16.gmra.mxu0 %v4557
    %v7513 = vpop.f32.mrf.mxu0
    %v7514 = vadd.f32 %v7385, %v7513
    %v7515 = vpop.f32.mrf.mxu0
    %v7516 = vadd.f32 %v7387, %v7515
    %7517 = vmatmul.bf16.gmra.mxu0 %v4560
    %v7518 = vpop.f32.mrf.mxu0
    %v7519 = vadd.f32 %v7390, %v7518
    %v7520 = vpop.f32.mrf.mxu0
    %v7521 = vadd.f32 %v7392, %v7520
    %7522 = vmatmul.bf16.gmra.mxu0 %v4563
    %v7523 = vpop.f32.mrf.mxu0
    %v7524 = vadd.f32 %v7395, %v7523
    %v7525 = vpop.f32.mrf.mxu0
    %v7526 = vadd.f32 %v7397, %v7525
    %7527 = vmatmul.bf16.gmra.mxu0 %v4566
    %v7528 = vpop.f32.mrf.mxu0
    %v7529 = vadd.f32 %v7400, %v7528
    %v7530 = vpop.f32.mrf.mxu0
    %v7531 = vadd.f32 %v7402, %v7530
    %7532 = vmatmul.bf16.gmra.mxu0 %v4569
    %v7533 = vpop.f32.mrf.mxu0
    %v7534 = vadd.f32 %v7405, %v7533
    %v7535 = vpop.f32.mrf.mxu0
    %v7536 = vadd.f32 %v7407, %v7535
    %7537 = vmatmul.bf16.gmra.mxu0 %v4572
    %v7538 = vpop.f32.mrf.mxu0
    %v7539 = vadd.f32 %v7410, %v7538
    %v7540 = vpop.f32.mrf.mxu0
    %v7541 = vadd.f32 %v7412, %v7540
    %7542 = vmatmul.bf16.gmra.mxu0 %v4575
    %v7543 = vpop.f32.mrf.mxu0
    %v7544 = vadd.f32 %v7415, %v7543
    %v7545 = vpop.f32.mrf.mxu0
    %v7546 = vadd.f32 %v7417, %v7545
    %7547 = vmatmul.bf16.gmra.mxu0 %v6857
    %v7548 = vpop.f32.mrf.mxu0
    %v7549 = vadd.f32 %v7420, %v7548
    %v7550 = vpop.f32.mrf.mxu0
    %v7551 = vadd.f32 %v7422, %v7550
    %7552 = vmatmul.bf16.gmra.mxu0 %v6860
    %v7553 = vpop.f32.mrf.mxu0
    %v7554 = vadd.f32 %v7425, %v7553
    %v7555 = vpop.f32.mrf.mxu0
    %v7556 = vadd.f32 %v7427, %v7555
    %7557 = vmatmul.bf16.gmra.mxu0 %v6863
    %v7558 = vpop.f32.mrf.mxu0
    %v7559 = vadd.f32 %v7430, %v7558
    %v7560 = vpop.f32.mrf.mxu0
    %v7561 = vadd.f32 %v7432, %v7560
    %7562 = vmatmul.bf16.gmra.mxu0 %v6866
    %v7563 = vpop.f32.mrf.mxu0
    %v7564 = vadd.f32 %v7435, %v7563
    %v7565 = vpop.f32.mrf.mxu0
    %v7566 = vadd.f32 %v7437, %v7565
    %7567 = vmatmul.bf16.gmra.mxu0 %v6869
    %v7568 = vpop.f32.mrf.mxu0
    %v7569 = vadd.f32 %v7440, %v7568
    %v7570 = vpop.f32.mrf.mxu0
    %v7571 = vadd.f32 %v7442, %v7570
    %7572 = vmatmul.bf16.gmra.mxu0 %v6872
    %v7573 = vpop.f32.mrf.mxu0
    %v7574 = vadd.f32 %v7445, %v7573
    %v7575 = vpop.f32.mrf.mxu0
    %v7576 = vadd.f32 %v7447, %v7575
    %7577 = vmatmul.bf16.gmra.mxu0 %v6875
    %v7578 = vpop.f32.mrf.mxu0
    %v7579 = vadd.f32 %v7450, %v7578
    %v7580 = vpop.f32.mrf.mxu0
    %v7581 = vadd.f32 %v7452, %v7580
    %7582 = vmatmul.bf16.gmra.mxu0 %v6878
    %v7583 = vpop.f32.mrf.mxu0
    %v7584 = vadd.f32 %v7455, %v7583
    %v7585 = vpop.f32.mrf.mxu0
    %v7586 = vadd.f32 %v7457, %v7585
    %7587 = vmatmul.bf16.gmra.mxu0 %v6881
    %v7588 = vpop.f32.mrf.mxu0
    %v7589 = vadd.f32 %v7460, %v7588
    %v7590 = vpop.f32.mrf.mxu0
    %v7591 = vadd.f32 %v7462, %v7590
    %7592 = vmatmul.bf16.gmra.mxu0 %v6884
    %v7593 = vpop.f32.mrf.mxu0
    %v7594 = vadd.f32 %v7465, %v7593
    %v7595 = vpop.f32.mrf.mxu0
    %v7596 = vadd.f32 %v7467, %v7595
    %7597 = vmatmul.bf16.gmra.mxu0 %v6887
    %v7598 = vpop.f32.mrf.mxu0
    %v7599 = vadd.f32 %v7470, %v7598
    %v7600 = vpop.f32.mrf.mxu0
    %v7601 = vadd.f32 %v7472, %v7600
    %7602 = vmatmul.bf16.gmra.mxu0 %v6890
    %v7603 = vpop.f32.mrf.mxu0
    %v7604 = vadd.f32 %v7475, %v7603
    %v7605 = vpop.f32.mrf.mxu0
    %v7606 = vadd.f32 %v7477, %v7605
    %7607 = vdwg.mxu0
    %7608 = vmatpush.bf16.msra.mxu0 %v7219
    %7609 = vmatpush.bf16.msra.mxu0 %v7111
    %7610 = vmatpush.bf16.msra.mxu0 %v7110
    %7611 = vmatpush.bf16.msra.mxu0 %v7109
    %7612 = vmatpush.bf16.msra.mxu0 %v7108
    %7613 = vmatpush.bf16.msra.mxu0 %v7107
    %7614 = vmatpush.bf16.msra.mxu0 %v7106
    %7615 = vmatpush.bf16.msra.mxu0 %v7105
    %7616 = vmatmul.bf16.gmra.mxu0 %v7146
    %v7617 = vpop.f32.mrf.mxu0
    %v7618 = vadd.f32 %v7489, %v7617
    %v7619 = vpop.f32.mrf.mxu0
    %v7620 = vadd.f32 %v7491, %v7619
    %7621 = vmatmul.bf16.gmra.mxu0 %v7149
    %v7622 = vpop.f32.mrf.mxu0
    %v7623 = vadd.f32 %v7494, %v7622
    %v7624 = vpop.f32.mrf.mxu0
    %v7625 = vadd.f32 %v7496, %v7624
    %7626 = vmatmul.bf16.gmra.mxu0 %v7152
    %v7627 = vpop.f32.mrf.mxu0
    %v7628 = vadd.f32 %v7499, %v7627
    %v7629 = vpop.f32.mrf.mxu0
    %v7630 = vadd.f32 %v7501, %v7629
    %7631 = vmatmul.bf16.gmra.mxu0 %v7155
    %v7632 = vpop.f32.mrf.mxu0
    %v7633 = vadd.f32 %v7504, %v7632
    %v7634 = vpop.f32.mrf.mxu0
    %v7635 = vadd.f32 %v7506, %v7634
    %7636 = vmatmul.bf16.gmra.mxu0 %v7158
    %v7637 = vpop.f32.mrf.mxu0
    %v7638 = vadd.f32 %v7509, %v7637
    %v7639 = vpop.f32.mrf.mxu0
    %v7640 = vadd.f32 %v7511, %v7639
    %7641 = vmatmul.bf16.gmra.mxu0 %v7161
    %v7642 = vpop.f32.mrf.mxu0
    %v7643 = vadd.f32 %v7514, %v7642
    %v7644 = vpop.f32.mrf.mxu0
    %v7645 = vadd.f32 %v7516, %v7644
    %7646 = vmatmul.bf16.gmra.mxu0 %v7164
    %v7647 = vpop.f32.mrf.mxu0
    %v7648 = vadd.f32 %v7519, %v7647
    %v7649 = vpop.f32.mrf.mxu0
    %v7650 = vadd.f32 %v7521, %v7649
    %7651 = vmatmul.bf16.gmra.mxu0 %v7167
    %v7652 = vpop.f32.mrf.mxu0
    %v7653 = vadd.f32 %v7524, %v7652
    %v7654 = vpop.f32.mrf.mxu0
    %v7655 = vadd.f32 %v7526, %v7654
    %7656 = vmatmul.bf16.gmra.mxu0 %v7170
    %v7657 = vpop.f32.mrf.mxu0
    %v7658 = vadd.f32 %v7529, %v7657
    %v7659 = vpop.f32.mrf.mxu0
    %v7660 = vadd.f32 %v7531, %v7659
    %7661 = vmatmul.bf16.gmra.mxu0 %v7173
    %v7662 = vpop.f32.mrf.mxu0
    %v7663 = vadd.f32 %v7534, %v7662
    %v7664 = vpop.f32.mrf.mxu0
    %v7665 = vadd.f32 %v7536, %v7664
    %7666 = vmatmul.bf16.gmra.mxu0 %v7176
    %v7667 = vpop.f32.mrf.mxu0
    %v7668 = vadd.f32 %v7539, %v7667
    %v7669 = vpop.f32.mrf.mxu0
    %v7670 = vadd.f32 %v7541, %v7669
    %7671 = vmatmul.bf16.gmra.mxu0 %v7179
    %v7672 = vpop.f32.mrf.mxu0
    %v7673 = vadd.f32 %v7544, %v7672
    %v7674 = vpop.f32.mrf.mxu0
    %v7675 = vadd.f32 %v7546, %v7674
    %7676 = vmatmul.bf16.gmra.mxu0 %v7182
    %v7677 = vpop.f32.mrf.mxu0
    %v7678 = vadd.f32 %v7549, %v7677
    %v7679 = vpop.f32.mrf.mxu0
    %v7680 = vadd.f32 %v7551, %v7679
    %7681 = vmatmul.bf16.gmra.mxu0 %v7185
    %v7682 = vpop.f32.mrf.mxu0
    %v7683 = vadd.f32 %v7554, %v7682
    %v7684 = vpop.f32.mrf.mxu0
    %v7685 = vadd.f32 %v7556, %v7684
    %7686 = vmatmul.bf16.gmra.mxu0 %v7188
    %v7687 = vpop.f32.mrf.mxu0
    %v7688 = vadd.f32 %v7559, %v7687
    %v7689 = vpop.f32.mrf.mxu0
    %v7690 = vadd.f32 %v7561, %v7689
    %7691 = vmatmul.bf16.gmra.mxu0 %v7191
    %v7692 = vpop.f32.mrf.mxu0
    %v7693 = vadd.f32 %v7564, %v7692
    %v7694 = vpop.f32.mrf.mxu0
    %v7695 = vadd.f32 %v7566, %v7694
    %7696 = vmatmul.bf16.gmra.mxu0 %v7194
    %v7697 = vpop.f32.mrf.mxu0
    %v7698 = vadd.f32 %v7569, %v7697
    %v7699 = vpop.f32.mrf.mxu0
    %v7700 = vadd.f32 %v7571, %v7699
    %7701 = vmatmul.bf16.gmra.mxu0 %v7197
    %v7702 = vpop.f32.mrf.mxu0
    %v7703 = vadd.f32 %v7574, %v7702
    %v7704 = vpop.f32.mrf.mxu0
    %v7705 = vadd.f32 %v7576, %v7704
    %7706 = vmatmul.bf16.gmra.mxu0 %v7200
    %v7707 = vpop.f32.mrf.mxu0
    %v7708 = vadd.f32 %v7579, %v7707
    %v7709 = vpop.f32.mrf.mxu0
    %v7710 = vadd.f32 %v7581, %v7709
    %7711 = vmatmul.bf16.gmra.mxu0 %v7203
    %v7712 = vpop.f32.mrf.mxu0
    %v7713 = vadd.f32 %v7584, %v7712
    %v7714 = vpop.f32.mrf.mxu0
    %v7715 = vadd.f32 %v7586, %v7714
    %7716 = vmatmul.bf16.gmra.mxu0 %v7206
    %v7717 = vpop.f32.mrf.mxu0
    %v7718 = vadd.f32 %v7589, %v7717
    %v7719 = vpop.f32.mrf.mxu0
    %v7720 = vadd.f32 %v7591, %v7719
    %7721 = vmatmul.bf16.gmra.mxu0 %v7209
    %v7722 = vpop.f32.mrf.mxu0
    %v7723 = vadd.f32 %v7594, %v7722
    %v7724 = vpop.f32.mrf.mxu0
    %v7725 = vadd.f32 %v7596, %v7724
    %7726 = vmatmul.bf16.gmra.mxu0 %v7212
    %v7727 = vpop.f32.mrf.mxu0
    %v7728 = vadd.f32 %v7599, %v7727
    %v7729 = vpop.f32.mrf.mxu0
    %v7730 = vadd.f32 %v7601, %v7729
    %7731 = vmatmul.bf16.gmra.mxu0 %v7215
    %v7732 = vpop.f32.mrf.mxu0
    %v7733 = vadd.f32 %v7604, %v7732
    %v7734 = vpop.f32.mrf.mxu0
    %v7735 = vadd.f32 %v7606, %v7734
    %7736 = vdwg.mxu0
    %vm7753 = vcmask 1046528
    %v7754 = vrot.slane %v7618, 1
    %v7755 = vrot.slane %v7620, 1
    %v7756 = vsel %vm7753, %v7754, %v7755
    %v7757 = vrot.slane %v7625, 1
    %v7758 = vrot.slane %v7628, 1
    %v7759 = vsel %vm7753, %v7757, %v7758
    %v7760 = vrot.slane %v7633, 1
    %v7761 = vrot.slane %v7635, 1
    %v7762 = vsel %vm7753, %v7760, %v7761
    %v7763 = vrot.slane %v7640, 1
    %v7764 = vrot.slane %v7643, 1
    %v7765 = vsel %vm7753, %v7763, %v7764
    %v7766 = vrot.slane %v7648, 1
    %v7767 = vrot.slane %v7650, 1
    %v7768 = vsel %vm7753, %v7766, %v7767
    %v7769 = vrot.slane %v7655, 1
    %v7770 = vrot.slane %v7658, 1
    %v7771 = vsel %vm7753, %v7769, %v7770
    %v7772 = vrot.slane %v7663, 1
    %v7773 = vrot.slane %v7665, 1
    %v7774 = vsel %vm7753, %v7772, %v7773
    %v7775 = vrot.slane %v7670, 1
    %v7776 = vrot.slane %v7673, 1
    %v7777 = vsel %vm7753, %v7775, %v7776
    %v7786 = vmax.f32 %v7618, %v7756
    %v7787 = vmax.f32 %v7625, %v7759
    %v7788 = vmax.f32 %v7633, %v7762
    %v7789 = vmax.f32 %v7640, %v7765
    %v7790 = vmax.f32 %v7648, %v7768
    %v7791 = vmax.f32 %v7655, %v7771
    %v7792 = vmax.f32 %v7663, %v7774
    %v7793 = vmax.f32 %v7670, %v7777
    %v7802 = vrot.slane %v7623, 1
    %v7803 = vsel %vm7753, %v7755, %v7802
    %v7804 = vsel %vm7753, %v7802, %v7757
    %v7805 = vrot.slane %v7630, 1
    %v7806 = vsel %vm7753, %v7758, %v7805
    %v7807 = vsel %vm7753, %v7805, %v7760
    %v7808 = vrot.slane %v7638, 1
    %v7809 = vsel %vm7753, %v7761, %v7808
    %v7810 = vsel %vm7753, %v7808, %v7763
    %v7811 = vrot.slane %v7645, 1
    %v7812 = vsel %vm7753, %v7764, %v7811
    %v7813 = vsel %vm7753, %v7811, %v7766
    %v7814 = vrot.slane %v7653, 1
    %v7815 = vsel %vm7753, %v7767, %v7814
    %v7816 = vsel %vm7753, %v7814, %v7769
    %v7817 = vrot.slane %v7660, 1
    %v7818 = vsel %vm7753, %v7770, %v7817
    %v7819 = vsel %vm7753, %v7817, %v7772
    %v7820 = vrot.slane %v7668, 1
    %v7821 = vsel %vm7753, %v7773, %v7820
    %v7822 = vsel %vm7753, %v7820, %v7775
    %v7823 = vrot.slane %v7675, 1
    %v7824 = vsel %vm7753, %v7776, %v7823
    %v7841 = vmax.f32 %v7620, %v7803
    %v7842 = vmax.f32 %v7623, %v7804
    %v7843 = vmax.f32 %v7628, %v7806
    %v7844 = vmax.f32 %v7630, %v7807
    %v7845 = vmax.f32 %v7635, %v7809
    %v7846 = vmax.f32 %v7638, %v7810
    %v7847 = vmax.f32 %v7643, %v7812
    %v7848 = vmax.f32 %v7645, %v7813
    %v7849 = vmax.f32 %v7650, %v7815
    %v7850 = vmax.f32 %v7653, %v7816
    %v7851 = vmax.f32 %v7658, %v7818
    %v7852 = vmax.f32 %v7660, %v7819
    %v7853 = vmax.f32 %v7665, %v7821
    %v7854 = vmax.f32 %v7668, %v7822
    %v7855 = vmax.f32 %v7673, %v7824
    %v7856 = vmax.f32 %v7675, %v7823
    %v7873 = vrot.slane %v7841, 4
    %v7874 = vrot.slane %v7842, 4
    %v7875 = vsel %vm1250, %v7873, %v7874
    %v7876 = vrot.slane %v7843, 4
    %v7877 = vrot.slane %v7844, 4
    %v7878 = vsel %vm1250, %v7876, %v7877
    %v7879 = vrot.slane %v7845, 4
    %v7880 = vrot.slane %v7846, 4
    %v7881 = vsel %vm1250, %v7879, %v7880
    %v7882 = vrot.slane %v7847, 4
    %v7883 = vrot.slane %v7848, 4
    %v7884 = vsel %vm1250, %v7882, %v7883
    %v7885 = vrot.slane %v7849, 4
    %v7886 = vrot.slane %v7850, 4
    %v7887 = vsel %vm1250, %v7885, %v7886
    %v7888 = vrot.slane %v7851, 4
    %v7889 = vrot.slane %v7852, 4
    %v7890 = vsel %vm1250, %v7888, %v7889
    %v7891 = vrot.slane %v7853, 4
    %v7892 = vrot.slane %v7854, 4
    %v7893 = vsel %vm1250, %v7891, %v7892
    %v7894 = vrot.slane %v7855, 4
    %v7895 = vrot.slane %v7856, 4
    %v7896 = vsel %vm1250, %v7894, %v7895
    %v7905 = vmax.f32 %v7786, %v7875
    %v7906 = vmax.f32 %v7787, %v7878
    %v7907 = vmax.f32 %v7788, %v7881
    %v7908 = vmax.f32 %v7789, %v7884
    %v7909 = vmax.f32 %v7790, %v7887
    %v7910 = vmax.f32 %v7791, %v7890
    %v7911 = vmax.f32 %v7792, %v7893
    %v7912 = vmax.f32 %v7793, %v7896
    %v7913 = vld [vmem:[%s4] sm:$0x1]
    %v7915 = vperm.slane %v7913, 0
    %v7917 = vadd.f32 %v7905, %v7915
    %v7918 = vadd.f32 %v7906, %v7915
    %v7919 = vadd.f32 %v7907, %v7915
    %v7920 = vadd.f32 %v7908, %v7915
    %v7921 = vadd.f32 %v7909, %v7915
    %v7922 = vadd.f32 %v7910, %v7915
    %v7923 = vadd.f32 %v7911, %v7915
    %v7924 = vadd.f32 %v7912, %v7915
    %v7925 = vmax.f32 %v7917, 0.0
    %v7926 = vmax.f32 %v7918, 0.0
    %v7927 = vmax.f32 %v7919, 0.0
    %v7928 = vmax.f32 %v7920, 0.0
    %v7929 = vmax.f32 %v7921, 0.0
    %v7930 = vmax.f32 %v7922, 0.0
    %v7931 = vmax.f32 %v7923, 0.0
    %v7932 = vmax.f32 %v7924, 0.0
    %v7933 = vpack.c.bf16 %v7925, %v7925
    %v7934 = vpack.c.bf16 %v7926, %v7926
    %v7935 = vpack.c.bf16 %v7927, %v7927
    %v7936 = vpack.c.bf16 %v7928, %v7928
    %v7937 = vpack.c.bf16 %v7929, %v7929
    %v7938 = vpack.c.bf16 %v7930, %v7930
    %v7939 = vpack.c.bf16 %v7931, %v7931
    %v7940 = vpack.c.bf16 %v7932, %v7932
    %v7942 = vunpack.c.l.b16 %v7933
    %v7943 = vpack.c.b16 %v7942, %v7942
    %v7944 = vrot.slane %v7943, 1
    %7945 = vrot.lane.b32.xlu0 %v7944, 50
    %v7946 = vpop.permute.xlu0 %7945
    %v7947 = vrot.slane %v7943, 2
    %7948 = vrot.lane.b32.xlu0 %v7947, 100
    %v7949 = vpop.permute.xlu0 %7948
    %v7950 = vrot.slane %v7943, 3
    %7951 = vrot.lane.b32.xlu0 %v7950, 22
    %v7952 = vpop.permute.xlu0 %7951
    %v7954 = vunpack.c.l.b16 %v7934
    %v7955 = vpack.c.b16 %v7954, %v7954
    %7956 = vrot.lane.b32.xlu0 %v7955, 72
    %v7957 = vpop.permute.xlu0 %7956
    %v7958 = vrot.slane %v7955, 1
    %7959 = vrot.lane.b32.xlu0 %v7958, 122
    %v7960 = vpop.permute.xlu0 %7959
    %v7961 = vrot.slane %v7955, 2
    %7962 = vrot.lane.b32.xlu0 %v7961, 44
    %v7963 = vpop.permute.xlu0 %7962
    %v7964 = vrot.slane %v7955, 3
    %7965 = vrot.lane.b32.xlu0 %v7964, 94
    %v7966 = vpop.permute.xlu0 %7965
    %v7968 = vunpack.c.l.b16 %v7935
    %v7969 = vpack.c.b16 %v7968, %v7968
    %7970 = vrot.lane.b32.xlu0 %v7969, 16
    %v7971 = vpop.permute.xlu0 %7970
    %v7972 = vrot.slane %v7969, 1
    %7973 = vrot.lane.b32.xlu0 %v7972, 66
    %v7974 = vpop.permute.xlu0 %7973
    %v7975 = vrot.slane %v7969, 2
    %7976 = vrot.lane.b32.xlu0 %v7975, 116
    %v7977 = vpop.permute.xlu0 %7976
    %v7978 = vrot.slane %v7969, 3
    %7979 = vrot.lane.b32.xlu0 %v7978, 38
    %v7980 = vpop.permute.xlu0 %7979
    %v7982 = vunpack.c.l.b16 %v7936
    %v7983 = vpack.c.b16 %v7982, %v7982
    %7984 = vrot.lane.b32.xlu0 %v7983, 88
    %v7985 = vpop.permute.xlu0 %7984
    %v7986 = vrot.slane %v7983, 1
    %7987 = vrot.lane.b32.xlu0 %v7986, 10
    %v7988 = vpop.permute.xlu0 %7987
    %v7989 = vrot.slane %v7983, 2
    %7990 = vrot.lane.b32.xlu0 %v7989, 60
    %v7991 = vpop.permute.xlu0 %7990
    %v7992 = vrot.slane %v7983, 3
    %7993 = vrot.lane.b32.xlu0 %v7992, 110
    %v7994 = vpop.permute.xlu0 %7993
    %vm7995 = vcmask 408576
    %v7998 = vsel %vm7995, %v7933, %v7946
    %v8000 = vsel %vm3340, %v7998, %v7949
    %vm8002 = vcmask 179200
    %v8004 = vsel %vm8002, %v7949, %v7952
    %v8006 = vsel %vm3477, %v8004, %v7957
    %vm8007 = vcmask 998400
    %v8009 = vsel %vm8007, %v8006, %v7960
    %v8012 = vsel %vm3614, %v7960, %v7963
    %vm8013 = vcmask 769024
    %v8015 = vsel %vm8013, %v8012, %v7966
    %vm8017 = vcmask 130048
    %v8019 = vsel %vm8017, %v7966, %v7971
    %vm8020 = vcmask 539648
    %v8022 = vsel %vm8020, %v8019, %v7974
    %v8024 = vsel %vm7144, %v8022, %v7977
    %vm8026 = vcmask 310272
    %v8028 = vsel %vm8026, %v7977, %v7980
    %vm8029 = vcmask 719872
    %v8031 = vsel %vm8029, %v8028, %v7985
    %vm8033 = vcmask 80896
    %v8035 = vsel %vm8033, %v7985, %v7988
    %v8037 = vsel %vm3290, %v8035, %v7991
    %vm8038 = vcmask 900096
    %v8040 = vsel %vm8038, %v8037, %v7994
    %v8043 = vunpack.c.l.b16 %v7937
    %v8044 = vpack.c.b16 %v8043, %v8043
    %v8045 = vrot.slane %v8044, 1
    %8046 = vrot.lane.b32.xlu0 %v8045, 50
    %v8047 = vpop.permute.xlu0 %8046
    %v8048 = vrot.slane %v8044, 2
    %8049 = vrot.lane.b32.xlu0 %v8048, 100
    %v8050 = vpop.permute.xlu0 %8049
    %v8051 = vrot.slane %v8044, 3
    %8052 = vrot.lane.b32.xlu0 %v8051, 22
    %v8053 = vpop.permute.xlu0 %8052
    %v8055 = vunpack.c.l.b16 %v7938
    %v8056 = vpack.c.b16 %v8055, %v8055
    %8057 = vrot.lane.b32.xlu0 %v8056, 72
    %v8058 = vpop.permute.xlu0 %8057
    %v8059 = vrot.slane %v8056, 1
    %8060 = vrot.lane.b32.xlu0 %v8059, 122
    %v8061 = vpop.permute.xlu0 %8060
    %v8062 = vrot.slane %v8056, 2
    %8063 = vrot.lane.b32.xlu0 %v8062, 44
    %v8064 = vpop.permute.xlu0 %8063
    %v8065 = vrot.slane %v8056, 3
    %8066 = vrot.lane.b32.xlu0 %v8065, 94
    %v8067 = vpop.permute.xlu0 %8066
    %v8069 = vunpack.c.l.b16 %v7939
    %v8070 = vpack.c.b16 %v8069, %v8069
    %8071 = vrot.lane.b32.xlu0 %v8070, 16
    %v8072 = vpop.permute.xlu0 %8071
    %v8073 = vrot.slane %v8070, 1
    %8074 = vrot.lane.b32.xlu0 %v8073, 66
    %v8075 = vpop.permute.xlu0 %8074
    %v8076 = vrot.slane %v8070, 2
    %8077 = vrot.lane.b32.xlu0 %v8076, 116
    %v8078 = vpop.permute.xlu0 %8077
    %v8079 = vrot.slane %v8070, 3
    %8080 = vrot.lane.b32.xlu0 %v8079, 38
    %v8081 = vpop.permute.xlu0 %8080
    %v8083 = vunpack.c.l.b16 %v7940
    %v8084 = vpack.c.b16 %v8083, %v8083
    %8085 = vrot.lane.b32.xlu0 %v8084, 88
    %v8086 = vpop.permute.xlu0 %8085
    %v8087 = vrot.slane %v8084, 1
    %8088 = vrot.lane.b32.xlu0 %v8087, 10
    %v8089 = vpop.permute.xlu0 %8088
    %v8090 = vrot.slane %v8084, 2
    %8091 = vrot.lane.b32.xlu0 %v8090, 60
    %v8092 = vpop.permute.xlu0 %8091
    %v8093 = vrot.slane %v8084, 3
    %8094 = vrot.lane.b32.xlu0 %v8093, 110
    %v8095 = vpop.permute.xlu0 %8094
    %v8098 = vsel %vm7995, %v7937, %v8047
    %v8100 = vsel %vm3340, %v8098, %v8050
    %v8102 = vsel %vm8002, %v8050, %v8053
    %v8104 = vsel %vm3477, %v8102, %v8058
    %v8106 = vsel %vm8007, %v8104, %v8061
    %v8108 = vsel %vm3614, %v8061, %v8064
    %v8110 = vsel %vm8013, %v8108, %v8067
    %v8112 = vsel %vm8017, %v8067, %v8072
    %v8114 = vsel %vm8020, %v8112, %v8075
    %v8116 = vsel %vm7144, %v8114, %v8078
    %v8118 = vsel %vm8026, %v8078, %v8081
    %v8120 = vsel %vm8029, %v8118, %v8086
    %v8122 = vsel %vm8033, %v8086, %v8089
    %v8124 = vsel %vm3290, %v8122, %v8092
    %v8126 = vsel %vm8038, %v8124, %v8095
    %8133 = vrot.lane.b32.xlu0 %v8100, 32
    %v8134 = vpop.permute.xlu0 %8133
    %8135 = vrot.lane.b32.xlu0 %v8106, 32
    %v8136 = vpop.permute.xlu0 %8135
    %8137 = vrot.lane.b32.xlu0 %v8110, 32
    %v8138 = vpop.permute.xlu0 %8137
    %8139 = vrot.lane.b32.xlu0 %v8116, 32
    %v8140 = vpop.permute.xlu0 %8139
    %8141 = vrot.lane.b32.xlu0 %v8120, 32
    %v8142 = vpop.permute.xlu0 %8141
    %8143 = vrot.lane.b32.xlu0 %v8126, 32
    %v8144 = vpop.permute.xlu0 %8143
    %8145 = vrot.lane.b32.xlu0 %v8095, 32
    %v8146 = vpop.permute.xlu0 %8145
    %vm8147 = vcmask 261120
    %v8148 = vsel %vm8147, %v8134, %v8136
    %v8149 = vsel %vm8147, %v8136, %v8138
    %v8150 = vsel %vm8147, %v8138, %v8140
    %v8151 = vsel %vm8147, %v8140, %v8142
    %v8152 = vsel %vm8147, %v8142, %v8144
    %v8153 = vsel %vm8147, %v8144, %v8146
    %v8161 = vsel %vm3427, %v7994, %v8134
    %v8179 = vrot.slane %v7678, 1
    %v8180 = vrot.slane %v7680, 1
    %v8181 = vsel %vm7753, %v8179, %v8180
    %v8182 = vrot.slane %v7685, 1
    %v8183 = vrot.slane %v7688, 1
    %v8184 = vsel %vm7753, %v8182, %v8183
    %v8185 = vrot.slane %v7693, 1
    %v8186 = vrot.slane %v7695, 1
    %v8187 = vsel %vm7753, %v8185, %v8186
    %v8188 = vrot.slane %v7700, 1
    %v8189 = vrot.slane %v7703, 1
    %v8190 = vsel %vm7753, %v8188, %v8189
    %v8191 = vrot.slane %v7708, 1
    %v8192 = vrot.slane %v7710, 1
    %v8193 = vsel %vm7753, %v8191, %v8192
    %v8194 = vrot.slane %v7715, 1
    %v8195 = vrot.slane %v7718, 1
    %v8196 = vsel %vm7753, %v8194, %v8195
    %v8197 = vrot.slane %v7723, 1
    %v8198 = vrot.slane %v7725, 1
    %v8199 = vsel %vm7753, %v8197, %v8198
    %v8200 = vrot.slane %v7730, 1
    %v8201 = vrot.slane %v7733, 1
    %v8202 = vsel %vm7753, %v8200, %v8201
    %v8211 = vmax.f32 %v7678, %v8181
    %v8212 = vmax.f32 %v7685, %v8184
    %v8213 = vmax.f32 %v7693, %v8187
    %v8214 = vmax.f32 %v7700, %v8190
    %v8215 = vmax.f32 %v7708, %v8193
    %v8216 = vmax.f32 %v7715, %v8196
    %v8217 = vmax.f32 %v7723, %v8199
    %v8218 = vmax.f32 %v7730, %v8202
    %v8227 = vrot.slane %v7683, 1
    %v8228 = vsel %vm7753, %v8180, %v8227
    %v8229 = vsel %vm7753, %v8227, %v8182
    %v8230 = vrot.slane %v7690, 1
    %v8231 = vsel %vm7753, %v8183, %v8230
    %v8232 = vsel %vm7753, %v8230, %v8185
    %v8233 = vrot.slane %v7698, 1
    %v8234 = vsel %vm7753, %v8186, %v8233
    %v8235 = vsel %vm7753, %v8233, %v8188
    %v8236 = vrot.slane %v7705, 1
    %v8237 = vsel %vm7753, %v8189, %v8236
    %v8238 = vsel %vm7753, %v8236, %v8191
    %v8239 = vrot.slane %v7713, 1
    %v8240 = vsel %vm7753, %v8192, %v8239
    %v8241 = vsel %vm7753, %v8239, %v8194
    %v8242 = vrot.slane %v7720, 1
    %v8243 = vsel %vm7753, %v8195, %v8242
    %v8244 = vsel %vm7753, %v8242, %v8197
    %v8245 = vrot.slane %v7728, 1
    %v8246 = vsel %vm7753, %v8198, %v8245
    %v8247 = vsel %vm7753, %v8245, %v8200
    %v8248 = vrot.slane %v7735, 1
    %v8249 = vsel %vm7753, %v8201, %v8248
    %v8266 = vmax.f32 %v7680, %v8228
    %v8267 = vmax.f32 %v7683, %v8229
    %v8268 = vmax.f32 %v7688, %v8231
    %v8269 = vmax.f32 %v7690, %v8232
    %v8270 = vmax.f32 %v7695, %v8234
    %v8271 = vmax.f32 %v7698, %v8235
    %v8272 = vmax.f32 %v7703, %v8237
    %v8273 = vmax.f32 %v7705, %v8238
    %v8274 = vmax.f32 %v7710, %v8240
    %v8275 = vmax.f32 %v7713, %v8241
    %v8276 = vmax.f32 %v7718, %v8243
    %v8277 = vmax.f32 %v7720, %v8244
    %v8278 = vmax.f32 %v7725, %v8246
    %v8279 = vmax.f32 %v7728, %v8247
    %v8280 = vmax.f32 %v7733, %v8249
    %v8281 = vmax.f32 %v7735, %v8248
    %v8298 = vrot.slane %v8266, 4
    %v8299 = vrot.slane %v8267, 4
    %v8300 = vsel %vm1250, %v8298, %v8299
    %v8301 = vrot.slane %v8268, 4
    %v8302 = vrot.slane %v8269, 4
    %v8303 = vsel %vm1250, %v8301, %v8302
    %v8304 = vrot.slane %v8270, 4
    %v8305 = vrot.slane %v8271, 4
    %v8306 = vsel %vm1250, %v8304, %v8305
    %v8307 = vrot.slane %v8272, 4
    %v8308 = vrot.slane %v8273, 4
    %v8309 = vsel %vm1250, %v8307, %v8308
    %v8310 = vrot.slane %v8274, 4
    %v8311 = vrot.slane %v8275, 4
    %v8312 = vsel %vm1250, %v8310, %v8311
    %v8313 = vrot.slane %v8276, 4
    %v8314 = vrot.slane %v8277, 4
    %v8315 = vsel %vm1250, %v8313, %v8314
    %v8316 = vrot.slane %v8278, 4
    %v8317 = vrot.slane %v8279, 4
    %v8318 = vsel %vm1250, %v8316, %v8317
    %v8319 = vrot.slane %v8280, 4
    %v8320 = vrot.slane %v8281, 4
    %v8321 = vsel %vm1250, %v8319, %v8320
    %v8330 = vmax.f32 %v8211, %v8300
    %v8331 = vmax.f32 %v8212, %v8303
    %v8332 = vmax.f32 %v8213, %v8306
    %v8333 = vmax.f32 %v8214, %v8309
    %v8334 = vmax.f32 %v8215, %v8312
    %v8335 = vmax.f32 %v8216, %v8315
    %v8336 = vmax.f32 %v8217, %v8318
    %v8337 = vmax.f32 %v8218, %v8321
    %v8338 = vadd.f32 %v8330, %v7915
    %v8339 = vadd.f32 %v8331, %v7915
    %v8340 = vadd.f32 %v8332, %v7915
    %v8341 = vadd.f32 %v8333, %v7915
    %v8342 = vadd.f32 %v8334, %v7915
    %v8343 = vadd.f32 %v8335, %v7915
    %v8344 = vadd.f32 %v8336, %v7915
    %v8345 = vadd.f32 %v8337, %v7915
    %v8346 = vmax.f32 %v8338, 0.0
    %v8347 = vmax.f32 %v8339, 0.0
    %v8348 = vmax.f32 %v8340, 0.0
    %v8349 = vmax.f32 %v8341, 0.0
    %v8350 = vmax.f32 %v8342, 0.0
    %v8351 = vmax.f32 %v8343, 0.0
    %v8352 = vmax.f32 %v8344, 0.0
    %v8353 = vmax.f32 %v8345, 0.0
    %v8354 = vpack.c.bf16 %v8346, %v8346
    %v8355 = vpack.c.bf16 %v8347, %v8347
    %v8356 = vpack.c.bf16 %v8348, %v8348
    %v8357 = vpack.c.bf16 %v8349, %v8349
    %v8358 = vpack.c.bf16 %v8350, %v8350
    %v8359 = vpack.c.bf16 %v8351, %v8351
    %v8360 = vpack.c.bf16 %v8352, %v8352
    %v8361 = vpack.c.bf16 %v8353, %v8353
    %v8363 = vunpack.c.l.b16 %v8354
    %v8364 = vpack.c.b16 %v8363, %v8363
    %v8365 = vrot.slane %v8364, 1
    %8366 = vrot.lane.b32.xlu0 %v8365, 50
    %v8367 = vpop.permute.xlu0 %8366
    %v8368 = vrot.slane %v8364, 2
    %8369 = vrot.lane.b32.xlu0 %v8368, 100
    %v8370 = vpop.permute.xlu0 %8369
    %v8371 = vrot.slane %v8364, 3
    %8372 = vrot.lane.b32.xlu0 %v8371, 22
    %v8373 = vpop.permute.xlu0 %8372
    %v8375 = vunpack.c.l.b16 %v8355
    %v8376 = vpack.c.b16 %v8375, %v8375
    %8377 = vrot.lane.b32.xlu0 %v8376, 72
    %v8378 = vpop.permute.xlu0 %8377
    %v8379 = vrot.slane %v8376, 1
    %8380 = vrot.lane.b32.xlu0 %v8379, 122
    %v8381 = vpop.permute.xlu0 %8380
    %v8382 = vrot.slane %v8376, 2
    %8383 = vrot.lane.b32.xlu0 %v8382, 44
    %v8384 = vpop.permute.xlu0 %8383
    %v8385 = vrot.slane %v8376, 3
    %8386 = vrot.lane.b32.xlu0 %v8385, 94
    %v8387 = vpop.permute.xlu0 %8386
    %v8389 = vunpack.c.l.b16 %v8356
    %v8390 = vpack.c.b16 %v8389, %v8389
    %8391 = vrot.lane.b32.xlu0 %v8390, 16
    %v8392 = vpop.permute.xlu0 %8391
    %v8393 = vrot.slane %v8390, 1
    %8394 = vrot.lane.b32.xlu0 %v8393, 66
    %v8395 = vpop.permute.xlu0 %8394
    %v8396 = vrot.slane %v8390, 2
    %8397 = vrot.lane.b32.xlu0 %v8396, 116
    %v8398 = vpop.permute.xlu0 %8397
    %v8399 = vrot.slane %v8390, 3
    %8400 = vrot.lane.b32.xlu0 %v8399, 38
    %v8401 = vpop.permute.xlu0 %8400
    %v8403 = vunpack.c.l.b16 %v8357
    %v8404 = vpack.c.b16 %v8403, %v8403
    %8405 = vrot.lane.b32.xlu0 %v8404, 88
    %v8406 = vpop.permute.xlu0 %8405
    %v8407 = vrot.slane %v8404, 1
    %8408 = vrot.lane.b32.xlu0 %v8407, 10
    %v8409 = vpop.permute.xlu0 %8408
    %v8410 = vrot.slane %v8404, 2
    %8411 = vrot.lane.b32.xlu0 %v8410, 60
    %v8412 = vpop.permute.xlu0 %8411
    %v8413 = vrot.slane %v8404, 3
    %8414 = vrot.lane.b32.xlu0 %v8413, 110
    %v8415 = vpop.permute.xlu0 %8414
    %v8418 = vsel %vm7995, %v8354, %v8367
    %v8420 = vsel %vm3340, %v8418, %v8370
    %v8422 = vsel %vm8002, %v8370, %v8373
    %v8424 = vsel %vm3477, %v8422, %v8378
    %v8426 = vsel %vm8007, %v8424, %v8381
    %v8428 = vsel %vm3614, %v8381, %v8384
    %v8430 = vsel %vm8013, %v8428, %v8387
    %v8432 = vsel %vm8017, %v8387, %v8392
    %v8434 = vsel %vm8020, %v8432, %v8395
    %v8436 = vsel %vm7144, %v8434, %v8398
    %v8438 = vsel %vm8026, %v8398, %v8401
    %v8440 = vsel %vm8029, %v8438, %v8406
    %v8442 = vsel %vm8033, %v8406, %v8409
    %v8444 = vsel %vm3290, %v8442, %v8412
    %v8446 = vsel %vm8038, %v8444, %v8415
    %v8448 = vunpack.c.l.b16 %v8358
    %v8449 = vpack.c.b16 %v8448, %v8448
    %v8450 = vrot.slane %v8449, 1
    %8451 = vrot.lane.b32.xlu0 %v8450, 50
    %v8452 = vpop.permute.xlu0 %8451
    %v8453 = vrot.slane %v8449, 2
    %8454 = vrot.lane.b32.xlu0 %v8453, 100
    %v8455 = vpop.permute.xlu0 %8454
    %v8456 = vrot.slane %v8449, 3
    %8457 = vrot.lane.b32.xlu0 %v8456, 22
    %v8458 = vpop.permute.xlu0 %8457
    %v8460 = vunpack.c.l.b16 %v8359
    %v8461 = vpack.c.b16 %v8460, %v8460
    %8462 = vrot.lane.b32.xlu0 %v8461, 72
    %v8463 = vpop.permute.xlu0 %8462
    %v8464 = vrot.slane %v8461, 1
    %8465 = vrot.lane.b32.xlu0 %v8464, 122
    %v8466 = vpop.permute.xlu0 %8465
    %v8467 = vrot.slane %v8461, 2
    %8468 = vrot.lane.b32.xlu0 %v8467, 44
    %v8469 = vpop.permute.xlu0 %8468
    %v8470 = vrot.slane %v8461, 3
    %8471 = vrot.lane.b32.xlu0 %v8470, 94
    %v8472 = vpop.permute.xlu0 %8471
    %v8474 = vunpack.c.l.b16 %v8360
    %v8475 = vpack.c.b16 %v8474, %v8474
    %8476 = vrot.lane.b32.xlu0 %v8475, 16
    %v8477 = vpop.permute.xlu0 %8476
    %v8478 = vrot.slane %v8475, 1
    %8479 = vrot.lane.b32.xlu0 %v8478, 66
    %v8480 = vpop.permute.xlu0 %8479
    %v8481 = vrot.slane %v8475, 2
    %8482 = vrot.lane.b32.xlu0 %v8481, 116
    %v8483 = vpop.permute.xlu0 %8482
    %v8484 = vrot.slane %v8475, 3
    %8485 = vrot.lane.b32.xlu0 %v8484, 38
    %v8486 = vpop.permute.xlu0 %8485
    %v8488 = vunpack.c.l.b16 %v8361
    %v8489 = vpack.c.b16 %v8488, %v8488
    %8490 = vrot.lane.b32.xlu0 %v8489, 88
    %v8491 = vpop.permute.xlu0 %8490
    %v8492 = vrot.slane %v8489, 1
    %8493 = vrot.lane.b32.xlu0 %v8492, 10
    %v8494 = vpop.permute.xlu0 %8493
    %v8495 = vrot.slane %v8489, 2
    %8496 = vrot.lane.b32.xlu0 %v8495, 60
    %v8497 = vpop.permute.xlu0 %8496
    %v8498 = vrot.slane %v8489, 3
    %8499 = vrot.lane.b32.xlu0 %v8498, 110
    %v8500 = vpop.permute.xlu0 %8499
    %v8503 = vsel %vm7995, %v8358, %v8452
    %v8505 = vsel %vm3340, %v8503, %v8455
    %v8507 = vsel %vm8002, %v8455, %v8458
    %v8509 = vsel %vm3477, %v8507, %v8463
    %v8511 = vsel %vm8007, %v8509, %v8466
    %v8513 = vsel %vm3614, %v8466, %v8469
    %v8515 = vsel %vm8013, %v8513, %v8472
    %v8517 = vsel %vm8017, %v8472, %v8477
    %v8519 = vsel %vm8020, %v8517, %v8480
    %v8521 = vsel %vm7144, %v8519, %v8483
    %v8523 = vsel %vm8026, %v8483, %v8486
    %v8525 = vsel %vm8029, %v8523, %v8491
    %v8527 = vsel %vm8033, %v8491, %v8494
    %v8529 = vsel %vm3290, %v8527, %v8497
    %v8531 = vsel %vm8038, %v8529, %v8500
    %8538 = vrot.lane.b32.xlu0 %v8505, 32
    %v8539 = vpop.permute.xlu0 %8538
    %8540 = vrot.lane.b32.xlu0 %v8511, 32
    %v8541 = vpop.permute.xlu0 %8540
    %8542 = vrot.lane.b32.xlu0 %v8515, 32
    %v8543 = vpop.permute.xlu0 %8542
    %8544 = vrot.lane.b32.xlu0 %v8521, 32
    %v8545 = vpop.permute.xlu0 %8544
    %8546 = vrot.lane.b32.xlu0 %v8525, 32
    %v8547 = vpop.permute.xlu0 %8546
    %8548 = vrot.lane.b32.xlu0 %v8531, 32
    %v8549 = vpop.permute.xlu0 %8548
    %8550 = vrot.lane.b32.xlu0 %v8500, 32
    %v8551 = vpop.permute.xlu0 %8550
    %v8552 = vsel %vm8147, %v8539, %v8541
    %v8553 = vsel %vm8147, %v8541, %v8543
    %v8554 = vsel %vm8147, %v8543, %v8545
    %v8555 = vsel %vm8147, %v8545, %v8547
    %v8556 = vsel %vm8147, %v8547, %v8549
    %v8557 = vsel %vm8147, %v8549, %v8551
    %v8559 = vsel %vm3427, %v8415, %v8539
    %v8560 = vshll.u32 %v8420, 16
    %v8562 = vshll.u32 %v8426, 16
    %v8564 = vshll.u32 %v8430, 16
    %v8566 = vshll.u32 %v8436, 16
    %v8568 = vshll.u32 %v8440, 16
    %v8570 = vshll.u32 %v8446, 16
    %v8572 = vshll.u32 %v8559, 16
    %v8575 = vshll.u32 %v8552, 16
    %v8578 = vshll.u32 %v8553, 16
    %v8581 = vshll.u32 %v8554, 16
    %v8584 = vshll.u32 %v8555, 16
    %v8587 = vshll.u32 %v8556, 16
    %v8590 = vshll.u32 %v8557, 16
    %vm8605 = vmand %vm3984, %vm4036
    %v8606 = vsel %vm8605, %v8000, %v8560
    %v8607 = vsel %vm8605, %v8009, %v8562
    %v8608 = vsel %vm8605, %v8015, %v8564
    %v8609 = vsel %vm8605, %v8024, %v8566
    %v8610 = vsel %vm8605, %v8031, %v8568
    %v8611 = vsel %vm8605, %v8040, %v8570
    %v8612 = vsel %vm8605, %v8161, %v8572
    %v8613 = vsel %vm8605, %v8148, %v8575
    %v8614 = vsel %vm8605, %v8149, %v8578
    %v8615 = vsel %vm8605, %v8150, %v8581
    %v8616 = vsel %vm8605, %v8151, %v8584
    %v8617 = vsel %vm8605, %v8152, %v8587
    %v8618 = vsel %vm8605, %v8153, %v8590
    %v8619 = vld [vmem:[%s5] sm:$0xff]
    %v8620 = vld [vmem:[%s5 + $0x8] sm:$0xff]
    %v8621 = vld [vmem:[%s5 + $0x10] sm:$0xff]
    %v8622 = vld [vmem:[%s5 + $0x18] sm:$0xff]
    %v8623 = vld [vmem:[%s5 + $0x20] sm:$0xff]
    %v8624 = vld [vmem:[%s5 + $0x28] sm:$0xff]
    %v8625 = vld [vmem:[%s5 + $0x30] sm:$0xff]
    %v8626 = vld [vmem:[%s5 + $0x38] sm:$0xff]
    %v8627 = vld [vmem:[%s5 + $0x40] sm:$0xff]
    %v8628 = vld [vmem:[%s5 + $0x48] sm:$0xff]
    %v8629 = vld [vmem:[%s5 + $0x50] sm:$0xff]
    %v8630 = vld [vmem:[%s5 + $0x58] sm:$0xff]
    %v8631 = vld [vmem:[%s5 + $0x60] sm:$0xff]
    %v8632 = vld [vmem:[%s5 + $0x68] sm:$0xff]
    %v8633 = vld [vmem:[%s5 + $0x70] sm:$0xff]
    %v8634 = vld [vmem:[%s5 + $0x78] sm:$0xff]
    %v8635 = vld [vmem:[%s5 + $0x80] sm:$0xff]
    %v8636 = vld [vmem:[%s5 + $0x88] sm:$0xff]
    %v8637 = vld [vmem:[%s5 + $0x90] sm:$0xff]
    %v8638 = vld [vmem:[%s5 + $0x98] sm:$0xff]
    %v8639 = vld [vmem:[%s5 + $0xa0] sm:$0xff]
    %v8640 = vld [vmem:[%s5 + $0xa8] sm:$0xff]
    %v8641 = vld [vmem:[%s5 + $0xb0] sm:$0xff]
    %v8642 = vld [vmem:[%s5 + $0xb8] sm:$0xff]
    %v8643 = vld [vmem:[%s5 + $0xc0] sm:$0xff]
    %v8644 = vld [vmem:[%s5 + $0xc8] sm:$0xff]
    %v8645 = vld [vmem:[%s5 + $0xd0] sm:$0xff]
    %v8646 = vld [vmem:[%s5 + $0xd8] sm:$0xff]
    %v8647 = vld [vmem:[%s5 + $0xe0] sm:$0xff]
    %v8648 = vld [vmem:[%s5 + $0xe8] sm:$0xff]
    %v8649 = vld [vmem:[%s5 + $0xf0] sm:$0xff]
    %v8650 = vld [vmem:[%s5 + $0xf8] sm:$0xff]
    %v8651 = vld [vmem:[%s5 + $0x100] sm:$0xff]
    %v8652 = vld [vmem:[%s5 + $0x108] sm:$0xff]
    %v8653 = vld [vmem:[%s5 + $0x110] sm:$0xff]
    %v8654 = vld [vmem:[%s5 + $0x118] sm:$0xff]
    %v8655 = vld [vmem:[%s5 + $0x120] sm:$0xff]
    %v8656 = vld [vmem:[%s5 + $0x128] sm:$0xff]
    %v8657 = vld [vmem:[%s5 + $0x130] sm:$0xff]
    %v8658 = vld [vmem:[%s5 + $0x138] sm:$0xff]
    %v8659 = vld [vmem:[%s5 + $0x140] sm:$0xff]
    %v8660 = vld [vmem:[%s5 + $0x148] sm:$0xff]
    %v8661 = vld [vmem:[%s5 + $0x150] sm:$0xff]
    %v8662 = vld [vmem:[%s5 + $0x158] sm:$0xff]
    %v8663 = vld [vmem:[%s5 + $0x160] sm:$0xff]
    %v8664 = vld [vmem:[%s5 + $0x168] sm:$0xff]
    %v8665 = vld [vmem:[%s5 + $0x170] sm:$0xff]
    %v8666 = vld [vmem:[%s5 + $0x178] sm:$0xff]
    %v8667 = vld [vmem:[%s5 + $0x180] sm:$0xff]
    %v8668 = vld [vmem:[%s5 + $0x188] sm:$0xff]
    %v8669 = vld [vmem:[%s5 + $0x190] sm:$0xff]
    %v8670 = vld [vmem:[%s5 + $0x198] sm:$0xff]
    %v8671 = vld [vmem:[%s5 + $0x1a0] sm:$0xff]
    %v8672 = vld [vmem:[%s5 + $0x1a8] sm:$0xff]
    %v8673 = vld [vmem:[%s5 + $0x1b0] sm:$0xff]
    %v8674 = vld [vmem:[%s5 + $0x1b8] sm:$0xff]
    %v8675 = vld [vmem:[%s5 + $0x1c0] sm:$0xff]
    %v8676 = vld [vmem:[%s5 + $0x1c8] sm:$0xff]
    %v8677 = vld [vmem:[%s5 + $0x1d0] sm:$0xff]
    %v8678 = vld [vmem:[%s5 + $0x1d8] sm:$0xff]
    %v8679 = vld [vmem:[%s5 + $0x1e0] sm:$0xff]
    %v8680 = vld [vmem:[%s5 + $0x1e8] sm:$0xff]
    %v8681 = vld [vmem:[%s5 + $0x1f0] sm:$0xff]
    %v8682 = vld [vmem:[%s5 + $0x1f8] sm:$0xff]
    %v8683 = vld [vmem:[%s5 + $0x200] sm:$0xff]
    %v8684 = vld [vmem:[%s5 + $0x208] sm:$0xff]
    %v8685 = vld [vmem:[%s5 + $0x210] sm:$0xff]
    %v8686 = vld [vmem:[%s5 + $0x218] sm:$0xff]
    %v8687 = vld [vmem:[%s5 + $0x220] sm:$0xff]
    %v8688 = vld [vmem:[%s5 + $0x228] sm:$0xff]
    %v8689 = vld [vmem:[%s5 + $0x230] sm:$0xff]
    %v8690 = vld [vmem:[%s5 + $0x238] sm:$0xff]
    %v8691 = vld [vmem:[%s5 + $0x240] sm:$0xff]
    %v8692 = vld [vmem:[%s5 + $0x248] sm:$0xff]
    %v8693 = vld [vmem:[%s5 + $0x250] sm:$0xff]
    %v8694 = vld [vmem:[%s5 + $0x258] sm:$0xff]
    %v8695 = vld [vmem:[%s5 + $0x260] sm:$0xff]
    %v8696 = vld [vmem:[%s5 + $0x268] sm:$0xff]
    %v8697 = vld [vmem:[%s5 + $0x270] sm:$0xff]
    %v8698 = vld [vmem:[%s5 + $0x278] sm:$0xff]
    %v8699 = vld [vmem:[%s5 + $0x280] sm:$0xff]
    %v8700 = vld [vmem:[%s5 + $0x288] sm:$0xff]
    %v8701 = vld [vmem:[%s5 + $0x290] sm:$0xff]
    %v8702 = vld [vmem:[%s5 + $0x298] sm:$0xff]
    %v8703 = vld [vmem:[%s5 + $0x2a0] sm:$0xff]
    %v8704 = vld [vmem:[%s5 + $0x2a8] sm:$0xff]
    %v8705 = vld [vmem:[%s5 + $0x2b0] sm:$0xff]
    %v8706 = vld [vmem:[%s5 + $0x2b8] sm:$0xff]
    %v8707 = vld [vmem:[%s5 + $0x2c0] sm:$0xff]
    %v8708 = vld [vmem:[%s5 + $0x2c8] sm:$0xff]
    %v8709 = vld [vmem:[%s5 + $0x2d0] sm:$0xff]
    %v8710 = vld [vmem:[%s5 + $0x2d8] sm:$0xff]
    %v8711 = vld [vmem:[%s5 + $0x2e0] sm:$0xff]
    %v8712 = vld [vmem:[%s5 + $0x2e8] sm:$0xff]
    %v8713 = vld [vmem:[%s5 + $0x2f0] sm:$0xff]
    %v8714 = vld [vmem:[%s5 + $0x2f8] sm:$0xff]
    %v8715 = vld [vmem:[%s5 + $0x300] sm:$0xff]
    %v8716 = vld [vmem:[%s5 + $0x308] sm:$0xff]
    %v8717 = vld [vmem:[%s5 + $0x310] sm:$0xff]
    %v8718 = vld [vmem:[%s5 + $0x318] sm:$0xff]
    %v8719 = vld [vmem:[%s5 + $0x320] sm:$0xff]
    %v8720 = vld [vmem:[%s5 + $0x328] sm:$0xff]
    %v8721 = vld [vmem:[%s5 + $0x330] sm:$0xff]
    %v8722 = vld [vmem:[%s5 + $0x338] sm:$0xff]
    %v8723 = vld [vmem:[%s5 + $0x340] sm:$0xff]
    %v8724 = vld [vmem:[%s5 + $0x348] sm:$0xff]
    %v8725 = vld [vmem:[%s5 + $0x350] sm:$0xff]
    %v8726 = vld [vmem:[%s5 + $0x358] sm:$0xff]
    %v8727 = vld [vmem:[%s5 + $0x360] sm:$0xff]
    %v8728 = vld [vmem:[%s5 + $0x368] sm:$0xff]
    %v8729 = vld [vmem:[%s5 + $0x370] sm:$0xff]
    %v8730 = vld [vmem:[%s5 + $0x378] sm:$0xff]
    %v8731 = vld [vmem:[%s5 + $0x380] sm:$0xff]
    %v8732 = vld [vmem:[%s5 + $0x388] sm:$0xff]
    %v8733 = vld [vmem:[%s5 + $0x390] sm:$0xff]
    %v8734 = vld [vmem:[%s5 + $0x398] sm:$0xff]
    %v8735 = vld [vmem:[%s5 + $0x3a0] sm:$0xff]
    %v8736 = vld [vmem:[%s5 + $0x3a8] sm:$0xff]
    %v8737 = vld [vmem:[%s5 + $0x3b0] sm:$0xff]
    %v8738 = vld [vmem:[%s5 + $0x3b8] sm:$0xff]
    %v8739 = vld [vmem:[%s5 + $0x3c0] sm:$0xff]
    %v8740 = vld [vmem:[%s5 + $0x3c8] sm:$0xff]
    %v8741 = vld [vmem:[%s5 + $0x3d0] sm:$0xff]
    %v8742 = vld [vmem:[%s5 + $0x3d8] sm:$0xff]
    %v8743 = vld [vmem:[%s5 + $0x3e0] sm:$0xff]
    %v8744 = vld [vmem:[%s5 + $0x3e8] sm:$0xff]
    %v8745 = vld [vmem:[%s5 + $0x3f0] sm:$0xff]
    %v8746 = vld [vmem:[%s5 + $0x3f8] sm:$0xff]
    %v8747 = vld [vmem:[%s5 + $0x400] sm:$0xff]
    %v8748 = vld [vmem:[%s5 + $0x408] sm:$0xff]
    %v8749 = vld [vmem:[%s5 + $0x410] sm:$0xff]
    %v8750 = vld [vmem:[%s5 + $0x418] sm:$0xff]
    %v8751 = vld [vmem:[%s5 + $0x420] sm:$0xff]
    %v8752 = vld [vmem:[%s5 + $0x428] sm:$0xff]
    %v8753 = vld [vmem:[%s5 + $0x430] sm:$0xff]
    %v8754 = vld [vmem:[%s5 + $0x438] sm:$0xff]
    %v8755 = vld [vmem:[%s5 + $0x440] sm:$0xff]
    %v8756 = vld [vmem:[%s5 + $0x448] sm:$0xff]
    %v8757 = vld [vmem:[%s5 + $0x450] sm:$0xff]
    %v8758 = vld [vmem:[%s5 + $0x458] sm:$0xff]
    %v8759 = vld [vmem:[%s5 + $0x460] sm:$0xff]
    %v8760 = vld [vmem:[%s5 + $0x468] sm:$0xff]
    %v8761 = vld [vmem:[%s5 + $0x470] sm:$0xff]
    %v8762 = vld [vmem:[%s5 + $0x478] sm:$0xff]
    %v8763 = vld [vmem:[%s5 + $0x480] sm:$0xff]
    %v8764 = vld [vmem:[%s5 + $0x488] sm:$0xff]
    %v8765 = vld [vmem:[%s5 + $0x490] sm:$0xff]
    %v8766 = vld [vmem:[%s5 + $0x498] sm:$0xff]
    %v8767 = vld [vmem:[%s5 + $0x4a0] sm:$0xff]
    %v8768 = vld [vmem:[%s5 + $0x4a8] sm:$0xff]
    %v8769 = vld [vmem:[%s5 + $0x4b0] sm:$0xff]
    %v8770 = vld [vmem:[%s5 + $0x4b8] sm:$0xff]
    %v8771 = vld [vmem:[%s5 + $0x4c0] sm:$0xff]
    %v8772 = vld [vmem:[%s5 + $0x4c8] sm:$0xff]
    %v8773 = vld [vmem:[%s5 + $0x4d0] sm:$0xff]
    %v8774 = vld [vmem:[%s5 + $0x4d8] sm:$0xff]
    %v8775 = vld [vmem:[%s5 + $0x4e0] sm:$0xff]
    %v8776 = vld [vmem:[%s5 + $0x4e8] sm:$0xff]
    %v8777 = vld [vmem:[%s5 + $0x4f0] sm:$0xff]
    %v8778 = vld [vmem:[%s5 + $0x4f8] sm:$0xff]
    %v8779 = vld [vmem:[%s5 + $0x500] sm:$0xff]
    %v8780 = vld [vmem:[%s5 + $0x508] sm:$0xff]
    %v8781 = vld [vmem:[%s5 + $0x510] sm:$0xff]
    %v8782 = vld [vmem:[%s5 + $0x518] sm:$0xff]
    %v8783 = vld [vmem:[%s5 + $0x520] sm:$0xff]
    %v8784 = vld [vmem:[%s5 + $0x528] sm:$0xff]
    %v8785 = vld [vmem:[%s5 + $0x530] sm:$0xff]
    %v8786 = vld [vmem:[%s5 + $0x538] sm:$0xff]
    %v8787 = vld [vmem:[%s5 + $0x540] sm:$0xff]
    %v8788 = vld [vmem:[%s5 + $0x548] sm:$0xff]
    %v8789 = vld [vmem:[%s5 + $0x550] sm:$0xff]
    %v8790 = vld [vmem:[%s5 + $0x558] sm:$0xff]
    %v8791 = vld [vmem:[%s5 + $0x560] sm:$0xff]
    %v8792 = vld [vmem:[%s5 + $0x568] sm:$0xff]
    %v8793 = vld [vmem:[%s5 + $0x570] sm:$0xff]
    %v8794 = vld [vmem:[%s5 + $0x578] sm:$0xff]
    %v8795 = vld [vmem:[%s5 + $0x580] sm:$0xff]
    %v8796 = vld [vmem:[%s5 + $0x588] sm:$0xff]
    %v8797 = vld [vmem:[%s5 + $0x590] sm:$0xff]
    %v8798 = vld [vmem:[%s5 + $0x598] sm:$0xff]
    %v8799 = vld [vmem:[%s5 + $0x5a0] sm:$0xff]
    %v8800 = vld [vmem:[%s5 + $0x5a8] sm:$0xff]
    %v8801 = vld [vmem:[%s5 + $0x5b0] sm:$0xff]
    %v8802 = vld [vmem:[%s5 + $0x5b8] sm:$0xff]
    %v8803 = vld [vmem:[%s5 + $0x5c0] sm:$0xff]
    %v8804 = vld [vmem:[%s5 + $0x5c8] sm:$0xff]
    %v8805 = vld [vmem:[%s5 + $0x5d0] sm:$0xff]
    %v8806 = vld [vmem:[%s5 + $0x5d8] sm:$0xff]
    %v8807 = vld [vmem:[%s5 + $0x5e0] sm:$0xff]
    %v8808 = vld [vmem:[%s5 + $0x5e8] sm:$0xff]
    %v8809 = vld [vmem:[%s5 + $0x5f0] sm:$0xff]
    %v8810 = vld [vmem:[%s5 + $0x5f8] sm:$0xff]
    %v8811 = vld [vmem:[%s5 + $0x600] sm:$0xff]
    %v8812 = vld [vmem:[%s5 + $0x608] sm:$0xff]
    %v8813 = vld [vmem:[%s5 + $0x610] sm:$0xff]
    %v8814 = vld [vmem:[%s5 + $0x618] sm:$0xff]
    %v8815 = vld [vmem:[%s5 + $0x620] sm:$0xff]
    %v8816 = vld [vmem:[%s5 + $0x628] sm:$0xff]
    %v8817 = vld [vmem:[%s5 + $0x630] sm:$0xff]
    %v8818 = vld [vmem:[%s5 + $0x638] sm:$0xff]
    %v8819 = vld [vmem:[%s5 + $0x640] sm:$0xff]
    %v8820 = vld [vmem:[%s5 + $0x648] sm:$0xff]
    %v8821 = vld [vmem:[%s5 + $0x650] sm:$0xff]
    %v8822 = vld [vmem:[%s5 + $0x658] sm:$0xff]
    %v8823 = vld [vmem:[%s5 + $0x660] sm:$0xff]
    %v8824 = vld [vmem:[%s5 + $0x668] sm:$0xff]
    %v8825 = vld [vmem:[%s5 + $0x670] sm:$0xff]
    %v8826 = vld [vmem:[%s5 + $0x678] sm:$0xff]
    %v8827 = vld [vmem:[%s5 + $0x680] sm:$0xff]
    %v8828 = vld [vmem:[%s5 + $0x688] sm:$0xff]
    %v8829 = vld [vmem:[%s5 + $0x690] sm:$0xff]
    %v8830 = vld [vmem:[%s5 + $0x698] sm:$0xff]
    %v8831 = vld [vmem:[%s5 + $0x6a0] sm:$0xff]
    %v8832 = vld [vmem:[%s5 + $0x6a8] sm:$0xff]
    %v8833 = vld [vmem:[%s5 + $0x6b0] sm:$0xff]
    %v8834 = vld [vmem:[%s5 + $0x6b8] sm:$0xff]
    %v8835 = vld [vmem:[%s5 + $0x6c0] sm:$0xff]
    %v8836 = vld [vmem:[%s5 + $0x6c8] sm:$0xff]
    %v8837 = vld [vmem:[%s5 + $0x6d0] sm:$0xff]
    %v8838 = vld [vmem:[%s5 + $0x6d8] sm:$0xff]
    %v8839 = vld [vmem:[%s5 + $0x6e0] sm:$0xff]
    %v8840 = vld [vmem:[%s5 + $0x6e8] sm:$0xff]
    %v8841 = vld [vmem:[%s5 + $0x6f0] sm:$0xff]
    %v8842 = vld [vmem:[%s5 + $0x6f8] sm:$0xff]
    %v8843 = vld [vmem:[%s5 + $0x700] sm:$0xff]
    %v8844 = vld [vmem:[%s5 + $0x708] sm:$0xff]
    %v8845 = vld [vmem:[%s5 + $0x710] sm:$0xff]
    %v8846 = vld [vmem:[%s5 + $0x718] sm:$0xff]
    %v8847 = vld [vmem:[%s5 + $0x720] sm:$0xff]
    %v8848 = vld [vmem:[%s5 + $0x728] sm:$0xff]
    %v8849 = vld [vmem:[%s5 + $0x730] sm:$0xff]
    %v8850 = vld [vmem:[%s5 + $0x738] sm:$0xff]
    %v8851 = vld [vmem:[%s5 + $0x740] sm:$0xff]
    %v8852 = vld [vmem:[%s5 + $0x748] sm:$0xff]
    %v8853 = vld [vmem:[%s5 + $0x750] sm:$0xff]
    %v8854 = vld [vmem:[%s5 + $0x758] sm:$0xff]
    %v8855 = vld [vmem:[%s5 + $0x760] sm:$0xff]
    %v8856 = vld [vmem:[%s5 + $0x768] sm:$0xff]
    %v8857 = vld [vmem:[%s5 + $0x770] sm:$0xff]
    %v8858 = vld [vmem:[%s5 + $0x778] sm:$0xff]
    %v8859 = vld [vmem:[%s5 + $0x780] sm:$0xff]
    %v8860 = vld [vmem:[%s5 + $0x788] sm:$0xff]
    %v8861 = vld [vmem:[%s5 + $0x790] sm:$0xff]
    %v8862 = vld [vmem:[%s5 + $0x798] sm:$0xff]
    %v8863 = vld [vmem:[%s5 + $0x7a0] sm:$0xff]
    %v8864 = vld [vmem:[%s5 + $0x7a8] sm:$0xff]
    %v8865 = vld [vmem:[%s5 + $0x7b0] sm:$0xff]
    %v8866 = vld [vmem:[%s5 + $0x7b8] sm:$0xff]
    %v8867 = vld [vmem:[%s5 + $0x7c0] sm:$0xff]
    %v8868 = vld [vmem:[%s5 + $0x7c8] sm:$0xff]
    %v8869 = vld [vmem:[%s5 + $0x7d0] sm:$0xff]
    %v8870 = vld [vmem:[%s5 + $0x7d8] sm:$0xff]
    %v8871 = vld [vmem:[%s5 + $0x7e0] sm:$0xff]
    %v8872 = vld [vmem:[%s5 + $0x7e8] sm:$0xff]
    %v8873 = vld [vmem:[%s5 + $0x7f0] sm:$0xff]
    %v8874 = vld [vmem:[%s5 + $0x7f8] sm:$0xff]
    %v8875 = vld [vmem:[%s5 + $0x800] sm:$0xff]
    %v8876 = vld [vmem:[%s5 + $0x808] sm:$0xff]
    %v8877 = vld [vmem:[%s5 + $0x810] sm:$0xff]
    %v8878 = vld [vmem:[%s5 + $0x818] sm:$0xff]
    %v8879 = vld [vmem:[%s5 + $0x820] sm:$0xff]
    %v8880 = vld [vmem:[%s5 + $0x828] sm:$0xff]
    %v8881 = vld [vmem:[%s5 + $0x830] sm:$0xff]
    %v8882 = vld [vmem:[%s5 + $0x838] sm:$0xff]
    %v8883 = vld [vmem:[%s5 + $0x840] sm:$0xff]
    %v8884 = vld [vmem:[%s5 + $0x848] sm:$0xff]
    %v8885 = vld [vmem:[%s5 + $0x850] sm:$0xff]
    %v8886 = vld [vmem:[%s5 + $0x858] sm:$0xff]
    %v8887 = vld [vmem:[%s5 + $0x860] sm:$0xff]
    %v8888 = vld [vmem:[%s5 + $0x868] sm:$0xff]
    %v8889 = vld [vmem:[%s5 + $0x870] sm:$0xff]
    %v8890 = vld [vmem:[%s5 + $0x878] sm:$0xff]
    %v8891 = vld [vmem:[%s5 + $0x880] sm:$0xff]
    %v8892 = vld [vmem:[%s5 + $0x888] sm:$0xff]
    %v8893 = vld [vmem:[%s5 + $0x890] sm:$0xff]
    %v8894 = vld [vmem:[%s5 + $0x898] sm:$0xff]
    %v8895 = vld [vmem:[%s5 + $0x8a0] sm:$0xff]
    %v8896 = vld [vmem:[%s5 + $0x8a8] sm:$0xff]
    %v8897 = vld [vmem:[%s5 + $0x8b0] sm:$0xff]
    %v8898 = vld [vmem:[%s5 + $0x8b8] sm:$0xff]
    %v8899 = vld [vmem:[%s5 + $0x8c0] sm:$0xff]
    %v8900 = vld [vmem:[%s5 + $0x8c8] sm:$0xff]
    %v8901 = vld [vmem:[%s5 + $0x8d0] sm:$0xff]
    %v8902 = vld [vmem:[%s5 + $0x8d8] sm:$0xff]
    %v8903 = vld [vmem:[%s5 + $0x8e0] sm:$0xff]
    %v8904 = vld [vmem:[%s5 + $0x8e8] sm:$0xff]
    %v8905 = vld [vmem:[%s5 + $0x8f0] sm:$0xff]
    %v8906 = vld [vmem:[%s5 + $0x8f8] sm:$0xff]
    %v8907 = vld [vmem:[%s5 + $0x900] sm:$0xff]
    %v8908 = vld [vmem:[%s5 + $0x908] sm:$0xff]
    %v8909 = vld [vmem:[%s5 + $0x910] sm:$0xff]
    %v8910 = vld [vmem:[%s5 + $0x918] sm:$0xff]
    %v8911 = vld [vmem:[%s5 + $0x920] sm:$0xff]
    %v8912 = vld [vmem:[%s5 + $0x928] sm:$0xff]
    %v8913 = vld [vmem:[%s5 + $0x930] sm:$0xff]
    %v8914 = vld [vmem:[%s5 + $0x938] sm:$0xff]
    %v8915 = vld [vmem:[%s5 + $0x940] sm:$0xff]
    %v8916 = vld [vmem:[%s5 + $0x948] sm:$0xff]
    %v8917 = vld [vmem:[%s5 + $0x950] sm:$0xff]
    %v8918 = vld [vmem:[%s5 + $0x958] sm:$0xff]
    %v8919 = vld [vmem:[%s5 + $0x960] sm:$0xff]
    %v8920 = vld [vmem:[%s5 + $0x968] sm:$0xff]
    %v8921 = vld [vmem:[%s5 + $0x970] sm:$0xff]
    %v8922 = vld [vmem:[%s5 + $0x978] sm:$0xff]
    %v8923 = vld [vmem:[%s5 + $0x980] sm:$0xff]
    %v8924 = vld [vmem:[%s5 + $0x988] sm:$0xff]
    %v8925 = vld [vmem:[%s5 + $0x990] sm:$0xff]
    %v8926 = vld [vmem:[%s5 + $0x998] sm:$0xff]
    %v8927 = vld [vmem:[%s5 + $0x9a0] sm:$0xff]
    %v8928 = vld [vmem:[%s5 + $0x9a8] sm:$0xff]
    %v8929 = vld [vmem:[%s5 + $0x9b0] sm:$0xff]
    %v8930 = vld [vmem:[%s5 + $0x9b8] sm:$0xff]
    %v8931 = vld [vmem:[%s5 + $0x9c0] sm:$0xff]
    %v8932 = vld [vmem:[%s5 + $0x9c8] sm:$0xff]
    %v8933 = vld [vmem:[%s5 + $0x9d0] sm:$0xff]
    %v8934 = vld [vmem:[%s5 + $0x9d8] sm:$0xff]
    %v8935 = vld [vmem:[%s5 + $0x9e0] sm:$0xff]
    %v8936 = vld [vmem:[%s5 + $0x9e8] sm:$0xff]
    %v8937 = vld [vmem:[%s5 + $0x9f0] sm:$0xff]
    %v8938 = vld [vmem:[%s5 + $0x9f8] sm:$0xff]
    %v8939 = vld [vmem:[%s5 + $0xa00] sm:$0xff]
    %v8940 = vld [vmem:[%s5 + $0xa08] sm:$0xff]
    %v8941 = vld [vmem:[%s5 + $0xa10] sm:$0xff]
    %v8942 = vld [vmem:[%s5 + $0xa18] sm:$0xff]
    %v8943 = vld [vmem:[%s5 + $0xa20] sm:$0xff]
    %v8944 = vld [vmem:[%s5 + $0xa28] sm:$0xff]
    %v8945 = vld [vmem:[%s5 + $0xa30] sm:$0xff]
    %v8946 = vld [vmem:[%s5 + $0xa38] sm:$0xff]
    %v8947 = vld [vmem:[%s5 + $0xa40] sm:$0xff]
    %v8948 = vld [vmem:[%s5 + $0xa48] sm:$0xff]
    %v8949 = vld [vmem:[%s5 + $0xa50] sm:$0xff]
    %v8950 = vld [vmem:[%s5 + $0xa58] sm:$0xff]
    %v8951 = vld [vmem:[%s5 + $0xa60] sm:$0xff]
    %v8952 = vld [vmem:[%s5 + $0xa68] sm:$0xff]
    %v8953 = vld [vmem:[%s5 + $0xa70] sm:$0xff]
    %v8954 = vld [vmem:[%s5 + $0xa78] sm:$0xff]
    %v8955 = vld [vmem:[%s5 + $0xa80] sm:$0xff]
    %v8956 = vld [vmem:[%s5 + $0xa88] sm:$0xff]
    %v8957 = vld [vmem:[%s5 + $0xa90] sm:$0xff]
    %v8958 = vld [vmem:[%s5 + $0xa98] sm:$0xff]
    %v8959 = vld [vmem:[%s5 + $0xaa0] sm:$0xff]
    %v8960 = vld [vmem:[%s5 + $0xaa8] sm:$0xff]
    %v8961 = vld [vmem:[%s5 + $0xab0] sm:$0xff]
    %v8962 = vld [vmem:[%s5 + $0xab8] sm:$0xff]
    %v8963 = vld [vmem:[%s5 + $0xac0] sm:$0xff]
    %v8964 = vld [vmem:[%s5 + $0xac8] sm:$0xff]
    %v8965 = vld [vmem:[%s5 + $0xad0] sm:$0xff]
    %v8966 = vld [vmem:[%s5 + $0xad8] sm:$0xff]
    %v8967 = vld [vmem:[%s5 + $0xae0] sm:$0xff]
    %v8968 = vld [vmem:[%s5 + $0xae8] sm:$0xff]
    %v8969 = vld [vmem:[%s5 + $0xaf0] sm:$0xff]
    %v8970 = vld [vmem:[%s5 + $0xaf8] sm:$0xff]
    %v8971 = vld [vmem:[%s5 + $0xb00] sm:$0xff]
    %v8972 = vld [vmem:[%s5 + $0xb08] sm:$0xff]
    %v8973 = vld [vmem:[%s5 + $0xb10] sm:$0xff]
    %v8974 = vld [vmem:[%s5 + $0xb18] sm:$0xff]
    %v8975 = vld [vmem:[%s5 + $0xb20] sm:$0xff]
    %v8976 = vld [vmem:[%s5 + $0xb28] sm:$0xff]
    %v8977 = vld [vmem:[%s5 + $0xb30] sm:$0xff]
    %v8978 = vld [vmem:[%s5 + $0xb38] sm:$0xff]
    %v8979 = vld [vmem:[%s5 + $0xb40] sm:$0xff]
    %v8980 = vld [vmem:[%s5 + $0xb48] sm:$0xff]
    %v8981 = vld [vmem:[%s5 + $0xb50] sm:$0xff]
    %v8982 = vld [vmem:[%s5 + $0xb58] sm:$0xff]
    %v8983 = vld [vmem:[%s5 + $0xb60] sm:$0xff]
    %v8984 = vld [vmem:[%s5 + $0xb68] sm:$0xff]
    %v8985 = vld [vmem:[%s5 + $0xb70] sm:$0xff]
    %v8986 = vld [vmem:[%s5 + $0xb78] sm:$0xff]
    %v8987 = vld [vmem:[%s5 + $0xb80] sm:$0xff]
    %v8988 = vld [vmem:[%s5 + $0xb88] sm:$0xff]
    %v8989 = vld [vmem:[%s5 + $0xb90] sm:$0xff]
    %v8990 = vld [vmem:[%s5 + $0xb98] sm:$0xff]
    %v8991 = vld [vmem:[%s5 + $0xba0] sm:$0xff]
    %v8992 = vld [vmem:[%s5 + $0xba8] sm:$0xff]
    %v8993 = vld [vmem:[%s5 + $0xbb0] sm:$0xff]
    %v8994 = vld [vmem:[%s5 + $0xbb8] sm:$0xff]
    %v8995 = vld [vmem:[%s5 + $0xbc0] sm:$0xff]
    %v8996 = vld [vmem:[%s5 + $0xbc8] sm:$0xff]
    %v8997 = vld [vmem:[%s5 + $0xbd0] sm:$0xff]
    %v8998 = vld [vmem:[%s5 + $0xbd8] sm:$0xff]
    %v8999 = vld [vmem:[%s5 + $0xbe0] sm:$0xff]
    %v9000 = vld [vmem:[%s5 + $0xbe8] sm:$0xff]
    %v9001 = vld [vmem:[%s5 + $0xbf0] sm:$0xff]
    %v9002 = vld [vmem:[%s5 + $0xbf8] sm:$0xff]
    %v9003 = vld [vmem:[%s5 + $0xc00] sm:$0xff]
    %v9004 = vld [vmem:[%s5 + $0xc08] sm:$0xff]
    %v9005 = vld [vmem:[%s5 + $0xc10] sm:$0xff]
    %v9006 = vld [vmem:[%s5 + $0xc18] sm:$0xff]
    %v9007 = vld [vmem:[%s5 + $0xc20] sm:$0xff]
    %v9008 = vld [vmem:[%s5 + $0xc28] sm:$0xff]
    %v9009 = vld [vmem:[%s5 + $0xc30] sm:$0xff]
    %v9010 = vld [vmem:[%s5 + $0xc38] sm:$0xff]
    %v9011 = vld [vmem:[%s5 + $0xc40] sm:$0xff]
    %v9012 = vld [vmem:[%s5 + $0xc48] sm:$0xff]
    %v9013 = vld [vmem:[%s5 + $0xc50] sm:$0xff]
    %v9014 = vld [vmem:[%s5 + $0xc58] sm:$0xff]
    %v9015 = vld [vmem:[%s5 + $0xc60] sm:$0xff]
    %v9016 = vld [vmem:[%s5 + $0xc68] sm:$0xff]
    %v9017 = vld [vmem:[%s5 + $0xc70] sm:$0xff]
    %v9018 = vld [vmem:[%s5 + $0xc78] sm:$0xff]
    %v9019 = vld [vmem:[%s6] sm:$0xf]
    %v9021 = vperm.slane %v9019, 0
    %v9022 = vperm.slane %v9019, 1
    %v9023 = vperm.slane %v9019, 2
    %v9024 = vperm.slane %v9019, 3
    %v9429 = vunpack.c.l.b16 %v8619
    %v9430 = vunpack.c.h.b16 %v8619
    %v9431 = vunpack.c.l.b16 %v8620
    %v9432 = vunpack.c.h.b16 %v8620
    %v9433 = vunpack.c.l.b16 %v8621
    %v9434 = vunpack.c.h.b16 %v8621
    %v9435 = vunpack.c.l.b16 %v8622
    %v9436 = vunpack.c.h.b16 %v8622
    %v9437 = vunpack.c.l.b16 %v8623
    %v9438 = vunpack.c.h.b16 %v8623
    %v9439 = vunpack.c.l.b16 %v8624
    %v9440 = vunpack.c.h.b16 %v8624
    %v9441 = vunpack.c.l.b16 %v8625
    %v9442 = vunpack.c.h.b16 %v8625
    %v9443 = vunpack.c.l.b16 %v8626
    %v9444 = vunpack.c.h.b16 %v8626
    %v9445 = vunpack.c.l.b16 %v8627
    %v9446 = vunpack.c.h.b16 %v8627
    %v9447 = vunpack.c.l.b16 %v8628
    %v9448 = vunpack.c.h.b16 %v8628
    %v9449 = vunpack.c.l.b16 %v8629
    %v9450 = vunpack.c.h.b16 %v8629
    %v9451 = vunpack.c.l.b16 %v8630
    %v9452 = vunpack.c.h.b16 %v8630
    %v9453 = vunpack.c.l.b16 %v8631
    %v9454 = vunpack.c.h.b16 %v8631
    %v9455 = vunpack.c.l.b16 %v8632
    %v9456 = vunpack.c.h.b16 %v8632
    %v9457 = vunpack.c.l.b16 %v8633
    %v9458 = vunpack.c.h.b16 %v8633
    %v9459 = vunpack.c.l.b16 %v8634
    %v9460 = vunpack.c.h.b16 %v8634
    %v9461 = vunpack.c.l.b16 %v8635
    %v9462 = vunpack.c.h.b16 %v8635
    %v9463 = vunpack.c.l.b16 %v8636
    %v9464 = vunpack.c.h.b16 %v8636
    %v9465 = vunpack.c.l.b16 %v8637
    %v9466 = vunpack.c.h.b16 %v8637
    %v9467 = vunpack.c.l.b16 %v8638
    %v9468 = vunpack.c.h.b16 %v8638
    %v9469 = vunpack.c.l.b16 %v8639
    %v9470 = vunpack.c.h.b16 %v8639
    %v9471 = vunpack.c.l.b16 %v8640
    %v9472 = vunpack.c.h.b16 %v8640
    %v9473 = vunpack.c.l.b16 %v8641
    %v9474 = vunpack.c.h.b16 %v8641
    %v9475 = vunpack.c.l.b16 %v8642
    %v9476 = vunpack.c.h.b16 %v8642
    %v9477 = vunpack.c.l.b16 %v8643
    %v9478 = vunpack.c.h.b16 %v8643
    %v9479 = vunpack.c.l.b16 %v8644
    %v9480 = vunpack.c.h.b16 %v8644
    %v9481 = vunpack.c.l.b16 %v8645
    %v9482 = vunpack.c.h.b16 %v8645
    %v9483 = vunpack.c.l.b16 %v8646
    %v9484 = vunpack.c.h.b16 %v8646
    %v9485 = vunpack.c.l.b16 %v8647
    %v9486 = vunpack.c.h.b16 %v8647
    %v9487 = vunpack.c.l.b16 %v8648
    %v9488 = vunpack.c.h.b16 %v8648
    %v9489 = vunpack.c.l.b16 %v8649
    %v9490 = vunpack.c.h.b16 %v8649
    %v9491 = vunpack.c.l.b16 %v8650
    %v9492 = vunpack.c.h.b16 %v8650
    %v9493 = vunpack.c.l.b16 %v8651
    %v9494 = vunpack.c.h.b16 %v8651
    %v9495 = vunpack.c.l.b16 %v8652
    %v9496 = vunpack.c.h.b16 %v8652
    %v9497 = vunpack.c.l.b16 %v8653
    %v9498 = vunpack.c.h.b16 %v8653
    %v9499 = vunpack.c.l.b16 %v8654
    %v9500 = vunpack.c.h.b16 %v8654
    %v9501 = vunpack.c.l.b16 %v8655
    %v9502 = vunpack.c.h.b16 %v8655
    %v9503 = vunpack.c.l.b16 %v8656
    %v9504 = vunpack.c.h.b16 %v8656
    %v9505 = vunpack.c.l.b16 %v8657
    %v9506 = vunpack.c.h.b16 %v8657
    %v9507 = vunpack.c.l.b16 %v8658
    %v9508 = vunpack.c.h.b16 %v8658
    %v9509 = vunpack.c.l.b16 %v8659
    %v9510 = vunpack.c.h.b16 %v8659
    %v9511 = vunpack.c.l.b16 %v8660
    %v9512 = vunpack.c.h.b16 %v8660
    %v9513 = vunpack.c.l.b16 %v8661
    %v9514 = vunpack.c.h.b16 %v8661
    %v9515 = vunpack.c.l.b16 %v8662
    %v9516 = vunpack.c.h.b16 %v8662
    %v9517 = vunpack.c.l.b16 %v8663
    %v9518 = vunpack.c.h.b16 %v8663
    %v9519 = vunpack.c.l.b16 %v8664
    %v9520 = vunpack.c.h.b16 %v8664
    %v9521 = vunpack.c.l.b16 %v8665
    %v9522 = vunpack.c.h.b16 %v8665
    %v9523 = vunpack.c.l.b16 %v8666
    %v9524 = vunpack.c.h.b16 %v8666
    %v9525 = vunpack.c.l.b16 %v8667
    %v9526 = vunpack.c.h.b16 %v8667
    %v9527 = vunpack.c.l.b16 %v8668
    %v9528 = vunpack.c.h.b16 %v8668
    %v9529 = vunpack.c.l.b16 %v8669
    %v9530 = vunpack.c.h.b16 %v8669
    %v9531 = vunpack.c.l.b16 %v8670
    %v9532 = vunpack.c.h.b16 %v8670
    %v9533 = vunpack.c.l.b16 %v8671
    %v9534 = vunpack.c.h.b16 %v8671
    %v9535 = vunpack.c.l.b16 %v8672
    %v9536 = vunpack.c.h.b16 %v8672
    %v9537 = vunpack.c.l.b16 %v8673
    %v9538 = vunpack.c.h.b16 %v8673
    %v9539 = vunpack.c.l.b16 %v8674
    %v9540 = vunpack.c.h.b16 %v8674
    %v9541 = vunpack.c.l.b16 %v8675
    %v9542 = vunpack.c.h.b16 %v8675
    %v9543 = vunpack.c.l.b16 %v8676
    %v9544 = vunpack.c.h.b16 %v8676
    %v9545 = vunpack.c.l.b16 %v8677
    %v9546 = vunpack.c.h.b16 %v8677
    %v9547 = vunpack.c.l.b16 %v8678
    %v9548 = vunpack.c.h.b16 %v8678
    %v9549 = vunpack.c.l.b16 %v8679
    %v9550 = vunpack.c.h.b16 %v8679
    %v9551 = vunpack.c.l.b16 %v8680
    %v9552 = vunpack.c.h.b16 %v8680
    %v9553 = vunpack.c.l.b16 %v8681
    %v9554 = vunpack.c.h.b16 %v8681
    %v9555 = vunpack.c.l.b16 %v8682
    %v9556 = vunpack.c.h.b16 %v8682
    %v9557 = vunpack.c.l.b16 %v8683
    %v9558 = vunpack.c.h.b16 %v8683
    %v9559 = vunpack.c.l.b16 %v8684
    %v9560 = vunpack.c.h.b16 %v8684
    %v9561 = vunpack.c.l.b16 %v8685
    %v9562 = vunpack.c.h.b16 %v8685
    %v9563 = vunpack.c.l.b16 %v8686
    %v9564 = vunpack.c.h.b16 %v8686
    %v9565 = vunpack.c.l.b16 %v8687
    %v9566 = vunpack.c.h.b16 %v8687
    %v9567 = vunpack.c.l.b16 %v8688
    %v9568 = vunpack.c.h.b16 %v8688
    %v9569 = vunpack.c.l.b16 %v8689
    %v9570 = vunpack.c.h.b16 %v8689
    %v9571 = vunpack.c.l.b16 %v8690
    %v9572 = vunpack.c.h.b16 %v8690
    %v9573 = vunpack.c.l.b16 %v8691
    %v9574 = vunpack.c.h.b16 %v8691
    %v9575 = vunpack.c.l.b16 %v8692
    %v9576 = vunpack.c.h.b16 %v8692
    %v9577 = vunpack.c.l.b16 %v8693
    %v9578 = vunpack.c.h.b16 %v8693
    %v9579 = vunpack.c.l.b16 %v8694
    %v9580 = vunpack.c.h.b16 %v8694
    %v9581 = vunpack.c.l.b16 %v8695
    %v9582 = vunpack.c.h.b16 %v8695
    %v9583 = vunpack.c.l.b16 %v8696
    %v9584 = vunpack.c.h.b16 %v8696
    %v9585 = vunpack.c.l.b16 %v8697
    %v9586 = vunpack.c.h.b16 %v8697
    %v9587 = vunpack.c.l.b16 %v8698
    %v9588 = vunpack.c.h.b16 %v8698
    %v9589 = vunpack.c.l.b16 %v8699
    %v9590 = vunpack.c.h.b16 %v8699
    %v9591 = vunpack.c.l.b16 %v8700
    %v9592 = vunpack.c.h.b16 %v8700
    %v9593 = vunpack.c.l.b16 %v8701
    %v9594 = vunpack.c.h.b16 %v8701
    %v9595 = vunpack.c.l.b16 %v8702
    %v9596 = vunpack.c.h.b16 %v8702
    %v9597 = vunpack.c.l.b16 %v8703
    %v9598 = vunpack.c.h.b16 %v8703
    %v9599 = vunpack.c.l.b16 %v8704
    %v9600 = vunpack.c.h.b16 %v8704
    %v9601 = vunpack.c.l.b16 %v8705
    %v9602 = vunpack.c.h.b16 %v8705
    %v9603 = vunpack.c.l.b16 %v8706
    %v9604 = vunpack.c.h.b16 %v8706
    %v9605 = vunpack.c.l.b16 %v8707
    %v9606 = vunpack.c.h.b16 %v8707
    %v9607 = vunpack.c.l.b16 %v8708
    %v9608 = vunpack.c.h.b16 %v8708
    %v9609 = vunpack.c.l.b16 %v8709
    %v9610 = vunpack.c.h.b16 %v8709
    %v9611 = vunpack.c.l.b16 %v8710
    %v9612 = vunpack.c.h.b16 %v8710
    %v9613 = vunpack.c.l.b16 %v8711
    %v9614 = vunpack.c.h.b16 %v8711
    %v9615 = vunpack.c.l.b16 %v8712
    %v9616 = vunpack.c.h.b16 %v8712
    %v9617 = vunpack.c.l.b16 %v8713
    %v9618 = vunpack.c.h.b16 %v8713
    %v9619 = vunpack.c.l.b16 %v8714
    %v9620 = vunpack.c.h.b16 %v8714
    %v9621 = vunpack.c.l.b16 %v8715
    %v9622 = vunpack.c.h.b16 %v8715
    %v9623 = vunpack.c.l.b16 %v8716
    %v9624 = vunpack.c.h.b16 %v8716
    %v9625 = vunpack.c.l.b16 %v8717
    %v9626 = vunpack.c.h.b16 %v8717
    %v9627 = vunpack.c.l.b16 %v8718
    %v9628 = vunpack.c.h.b16 %v8718
    %v9629 = vunpack.c.l.b16 %v8719
    %v9630 = vunpack.c.h.b16 %v8719
    %v9631 = vunpack.c.l.b16 %v8720
    %v9632 = vunpack.c.h.b16 %v8720
    %v9633 = vunpack.c.l.b16 %v8721
    %v9634 = vunpack.c.h.b16 %v8721
    %v9635 = vunpack.c.l.b16 %v8722
    %v9636 = vunpack.c.h.b16 %v8722
    %v9637 = vunpack.c.l.b16 %v8723
    %v9638 = vunpack.c.h.b16 %v8723
    %v9639 = vunpack.c.l.b16 %v8724
    %v9640 = vunpack.c.h.b16 %v8724
    %v9641 = vunpack.c.l.b16 %v8725
    %v9642 = vunpack.c.h.b16 %v8725
    %v9643 = vunpack.c.l.b16 %v8726
    %v9644 = vunpack.c.h.b16 %v8726
    %v9645 = vunpack.c.l.b16 %v8727
    %v9646 = vunpack.c.h.b16 %v8727
    %v9647 = vunpack.c.l.b16 %v8728
    %v9648 = vunpack.c.h.b16 %v8728
    %v9649 = vunpack.c.l.b16 %v8729
    %v9650 = vunpack.c.h.b16 %v8729
    %v9651 = vunpack.c.l.b16 %v8730
    %v9652 = vunpack.c.h.b16 %v8730
    %v9653 = vunpack.c.l.b16 %v8731
    %v9654 = vunpack.c.h.b16 %v8731
    %v9655 = vunpack.c.l.b16 %v8732
    %v9656 = vunpack.c.h.b16 %v8732
    %v9657 = vunpack.c.l.b16 %v8733
    %v9658 = vunpack.c.h.b16 %v8733
    %v9659 = vunpack.c.l.b16 %v8734
    %v9660 = vunpack.c.h.b16 %v8734
    %v9661 = vunpack.c.l.b16 %v8735
    %v9662 = vunpack.c.h.b16 %v8735
    %v9663 = vunpack.c.l.b16 %v8736
    %v9664 = vunpack.c.h.b16 %v8736
    %v9665 = vunpack.c.l.b16 %v8737
    %v9666 = vunpack.c.h.b16 %v8737
    %v9667 = vunpack.c.l.b16 %v8738
    %v9668 = vunpack.c.h.b16 %v8738
    %v9669 = vunpack.c.l.b16 %v8739
    %v9670 = vunpack.c.h.b16 %v8739
    %v9671 = vunpack.c.l.b16 %v8740
    %v9672 = vunpack.c.h.b16 %v8740
    %v9673 = vunpack.c.l.b16 %v8741
    %v9674 = vunpack.c.h.b16 %v8741
    %v9675 = vunpack.c.l.b16 %v8742
    %v9676 = vunpack.c.h.b16 %v8742
    %v9677 = vunpack.c.l.b16 %v8743
    %v9678 = vunpack.c.h.b16 %v8743
    %v9679 = vunpack.c.l.b16 %v8744
    %v9680 = vunpack.c.h.b16 %v8744
    %v9681 = vunpack.c.l.b16 %v8745
    %v9682 = vunpack.c.h.b16 %v8745
    %v9683 = vunpack.c.l.b16 %v8746
    %v9684 = vunpack.c.h.b16 %v8746
    %v9685 = vunpack.c.l.b16 %v8747
    %v9686 = vunpack.c.h.b16 %v8747
    %v9687 = vunpack.c.l.b16 %v8748
    %v9688 = vunpack.c.h.b16 %v8748
    %v9689 = vunpack.c.l.b16 %v8749
    %v9690 = vunpack.c.h.b16 %v8749
    %v9691 = vunpack.c.l.b16 %v8750
    %v9692 = vunpack.c.h.b16 %v8750
    %v9693 = vunpack.c.l.b16 %v8751
    %v9694 = vunpack.c.h.b16 %v8751
    %v9695 = vunpack.c.l.b16 %v8752
    %v9696 = vunpack.c.h.b16 %v8752
    %v9697 = vunpack.c.l.b16 %v8753
    %v9698 = vunpack.c.h.b16 %v8753
    %v9699 = vunpack.c.l.b16 %v8754
    %v9700 = vunpack.c.h.b16 %v8754
    %v9701 = vunpack.c.l.b16 %v8755
    %v9702 = vunpack.c.h.b16 %v8755
    %v9703 = vunpack.c.l.b16 %v8756
    %v9704 = vunpack.c.h.b16 %v8756
    %v9705 = vunpack.c.l.b16 %v8757
    %v9706 = vunpack.c.h.b16 %v8757
    %v9707 = vunpack.c.l.b16 %v8758
    %v9708 = vunpack.c.h.b16 %v8758
    %v9709 = vunpack.c.l.b16 %v8759
    %v9710 = vunpack.c.h.b16 %v8759
    %v9711 = vunpack.c.l.b16 %v8760
    %v9712 = vunpack.c.h.b16 %v8760
    %v9713 = vunpack.c.l.b16 %v8761
    %v9714 = vunpack.c.h.b16 %v8761
    %v9715 = vunpack.c.l.b16 %v8762
    %v9716 = vunpack.c.h.b16 %v8762
    %v9717 = vunpack.c.l.b16 %v8763
    %v9718 = vunpack.c.h.b16 %v8763
    %v9719 = vunpack.c.l.b16 %v8764
    %v9720 = vunpack.c.h.b16 %v8764
    %v9721 = vunpack.c.l.b16 %v8765
    %v9722 = vunpack.c.h.b16 %v8765
    %v9723 = vunpack.c.l.b16 %v8766
    %v9724 = vunpack.c.h.b16 %v8766
    %v9725 = vunpack.c.l.b16 %v8767
    %v9726 = vunpack.c.h.b16 %v8767
    %v9727 = vunpack.c.l.b16 %v8768
    %v9728 = vunpack.c.h.b16 %v8768
    %v9729 = vunpack.c.l.b16 %v8769
    %v9730 = vunpack.c.h.b16 %v8769
    %v9731 = vunpack.c.l.b16 %v8770
    %v9732 = vunpack.c.h.b16 %v8770
    %v9733 = vunpack.c.l.b16 %v8771
    %v9734 = vunpack.c.h.b16 %v8771
    %v9735 = vunpack.c.l.b16 %v8772
    %v9736 = vunpack.c.h.b16 %v8772
    %v9737 = vunpack.c.l.b16 %v8773
    %v9738 = vunpack.c.h.b16 %v8773
    %v9739 = vunpack.c.l.b16 %v8774
    %v9740 = vunpack.c.h.b16 %v8774
    %v9741 = vunpack.c.l.b16 %v8775
    %v9742 = vunpack.c.h.b16 %v8775
    %v9743 = vunpack.c.l.b16 %v8776
    %v9744 = vunpack.c.h.b16 %v8776
    %v9745 = vunpack.c.l.b16 %v8777
    %v9746 = vunpack.c.h.b16 %v8777
    %v9747 = vunpack.c.l.b16 %v8778
    %v9748 = vunpack.c.h.b16 %v8778
    %v9749 = vunpack.c.l.b16 %v8779
    %v9750 = vunpack.c.h.b16 %v8779
    %v9751 = vunpack.c.l.b16 %v8780
    %v9752 = vunpack.c.h.b16 %v8780
    %v9753 = vunpack.c.l.b16 %v8781
    %v9754 = vunpack.c.h.b16 %v8781
    %v9755 = vunpack.c.l.b16 %v8782
    %v9756 = vunpack.c.h.b16 %v8782
    %v9757 = vunpack.c.l.b16 %v8783
    %v9758 = vunpack.c.h.b16 %v8783
    %v9759 = vunpack.c.l.b16 %v8784
    %v9760 = vunpack.c.h.b16 %v8784
    %v9761 = vunpack.c.l.b16 %v8785
    %v9762 = vunpack.c.h.b16 %v8785
    %v9763 = vunpack.c.l.b16 %v8786
    %v9764 = vunpack.c.h.b16 %v8786
    %v9765 = vunpack.c.l.b16 %v8787
    %v9766 = vunpack.c.h.b16 %v8787
    %v9767 = vunpack.c.l.b16 %v8788
    %v9768 = vunpack.c.h.b16 %v8788
    %v9769 = vunpack.c.l.b16 %v8789
    %v9770 = vunpack.c.h.b16 %v8789
    %v9771 = vunpack.c.l.b16 %v8790
    %v9772 = vunpack.c.h.b16 %v8790
    %v9773 = vunpack.c.l.b16 %v8791
    %v9774 = vunpack.c.h.b16 %v8791
    %v9775 = vunpack.c.l.b16 %v8792
    %v9776 = vunpack.c.h.b16 %v8792
    %v9777 = vunpack.c.l.b16 %v8793
    %v9778 = vunpack.c.h.b16 %v8793
    %v9779 = vunpack.c.l.b16 %v8794
    %v9780 = vunpack.c.h.b16 %v8794
    %v9781 = vunpack.c.l.b16 %v8795
    %v9782 = vunpack.c.h.b16 %v8795
    %v9783 = vunpack.c.l.b16 %v8796
    %v9784 = vunpack.c.h.b16 %v8796
    %v9785 = vunpack.c.l.b16 %v8797
    %v9786 = vunpack.c.h.b16 %v8797
    %v9787 = vunpack.c.l.b16 %v8798
    %v9788 = vunpack.c.h.b16 %v8798
    %v9789 = vunpack.c.l.b16 %v8799
    %v9790 = vunpack.c.h.b16 %v8799
    %v9791 = vunpack.c.l.b16 %v8800
    %v9792 = vunpack.c.h.b16 %v8800
    %v9793 = vunpack.c.l.b16 %v8801
    %v9794 = vunpack.c.h.b16 %v8801
    %v9795 = vunpack.c.l.b16 %v8802
    %v9796 = vunpack.c.h.b16 %v8802
    %v9797 = vunpack.c.l.b16 %v8803
    %v9798 = vunpack.c.h.b16 %v8803
    %v9799 = vunpack.c.l.b16 %v8804
    %v9800 = vunpack.c.h.b16 %v8804
    %v9801 = vunpack.c.l.b16 %v8805
    %v9802 = vunpack.c.h.b16 %v8805
    %v9803 = vunpack.c.l.b16 %v8806
    %v9804 = vunpack.c.h.b16 %v8806
    %v9805 = vunpack.c.l.b16 %v8807
    %v9806 = vunpack.c.h.b16 %v8807
    %v9807 = vunpack.c.l.b16 %v8808
    %v9808 = vunpack.c.h.b16 %v8808
    %v9809 = vunpack.c.l.b16 %v8809
    %v9810 = vunpack.c.h.b16 %v8809
    %v9811 = vunpack.c.l.b16 %v8810
    %v9812 = vunpack.c.h.b16 %v8810
    %v9813 = vunpack.c.l.b16 %v8811
    %v9814 = vunpack.c.h.b16 %v8811
    %v9815 = vunpack.c.l.b16 %v8812
    %v9816 = vunpack.c.h.b16 %v8812
    %v9817 = vunpack.c.l.b16 %v8813
    %v9818 = vunpack.c.h.b16 %v8813
    %v9819 = vunpack.c.l.b16 %v8814
    %v9820 = vunpack.c.h.b16 %v8814
    %v9821 = vunpack.c.l.b16 %v8815
    %v9822 = vunpack.c.h.b16 %v8815
    %v9823 = vunpack.c.l.b16 %v8816
    %v9824 = vunpack.c.h.b16 %v8816
    %v9825 = vunpack.c.l.b16 %v8817
    %v9826 = vunpack.c.h.b16 %v8817
    %v9827 = vunpack.c.l.b16 %v8818
    %v9828 = vunpack.c.h.b16 %v8818
    %v9829 = vunpack.c.l.b16 %v8819
    %v9830 = vunpack.c.h.b16 %v8819
    %v9831 = vunpack.c.l.b16 %v8820
    %v9832 = vunpack.c.h.b16 %v8820
    %v9833 = vunpack.c.l.b16 %v8821
    %v9834 = vunpack.c.h.b16 %v8821
    %v9835 = vunpack.c.l.b16 %v8822
    %v9836 = vunpack.c.h.b16 %v8822
    %v9837 = vunpack.c.l.b16 %v8823
    %v9838 = vunpack.c.h.b16 %v8823
    %v9839 = vunpack.c.l.b16 %v8824
    %v9840 = vunpack.c.h.b16 %v8824
    %v9841 = vunpack.c.l.b16 %v8825
    %v9842 = vunpack.c.h.b16 %v8825
    %v9843 = vunpack.c.l.b16 %v8826
    %v9844 = vunpack.c.h.b16 %v8826
    %v9845 = vunpack.c.l.b16 %v8827
    %v9846 = vunpack.c.h.b16 %v8827
    %v9847 = vunpack.c.l.b16 %v8828
    %v9848 = vunpack.c.h.b16 %v8828
    %v9849 = vunpack.c.l.b16 %v8829
    %v9850 = vunpack.c.h.b16 %v8829
    %v9851 = vunpack.c.l.b16 %v8830
    %v9852 = vunpack.c.h.b16 %v8830
    %v9853 = vunpack.c.l.b16 %v8831
    %v9854 = vunpack.c.h.b16 %v8831
    %v9855 = vunpack.c.l.b16 %v8832
    %v9856 = vunpack.c.h.b16 %v8832
    %v9857 = vunpack.c.l.b16 %v8833
    %v9858 = vunpack.c.h.b16 %v8833
    %v9859 = vunpack.c.l.b16 %v8834
    %v9860 = vunpack.c.h.b16 %v8834
    %v9861 = vunpack.c.l.b16 %v8835
    %v9862 = vunpack.c.h.b16 %v8835
    %v9863 = vunpack.c.l.b16 %v8836
    %v9864 = vunpack.c.h.b16 %v8836
    %v9865 = vunpack.c.l.b16 %v8837
    %v9866 = vunpack.c.h.b16 %v8837
    %v9867 = vunpack.c.l.b16 %v8838
    %v9868 = vunpack.c.h.b16 %v8838
    %v9869 = vunpack.c.l.b16 %v8839
    %v9870 = vunpack.c.h.b16 %v8839
    %v9871 = vunpack.c.l.b16 %v8840
    %v9872 = vunpack.c.h.b16 %v8840
    %v9873 = vunpack.c.l.b16 %v8841
    %v9874 = vunpack.c.h.b16 %v8841
    %v9875 = vunpack.c.l.b16 %v8842
    %v9876 = vunpack.c.h.b16 %v8842
    %v9877 = vunpack.c.l.b16 %v8843
    %v9878 = vunpack.c.h.b16 %v8843
    %v9879 = vunpack.c.l.b16 %v8844
    %v9880 = vunpack.c.h.b16 %v8844
    %v9881 = vunpack.c.l.b16 %v8845
    %v9882 = vunpack.c.h.b16 %v8845
    %v9883 = vunpack.c.l.b16 %v8846
    %v9884 = vunpack.c.h.b16 %v8846
    %v9885 = vunpack.c.l.b16 %v8847
    %v9886 = vunpack.c.h.b16 %v8847
    %v9887 = vunpack.c.l.b16 %v8848
    %v9888 = vunpack.c.h.b16 %v8848
    %v9889 = vunpack.c.l.b16 %v8849
    %v9890 = vunpack.c.h.b16 %v8849
    %v9891 = vunpack.c.l.b16 %v8850
    %v9892 = vunpack.c.h.b16 %v8850
    %v9893 = vunpack.c.l.b16 %v8851
    %v9894 = vunpack.c.h.b16 %v8851
    %v9895 = vunpack.c.l.b16 %v8852
    %v9896 = vunpack.c.h.b16 %v8852
    %v9897 = vunpack.c.l.b16 %v8853
    %v9898 = vunpack.c.h.b16 %v8853
    %v9899 = vunpack.c.l.b16 %v8854
    %v9900 = vunpack.c.h.b16 %v8854
    %v9901 = vunpack.c.l.b16 %v8855
    %v9902 = vunpack.c.h.b16 %v8855
    %v9903 = vunpack.c.l.b16 %v8856
    %v9904 = vunpack.c.h.b16 %v8856
    %v9905 = vunpack.c.l.b16 %v8857
    %v9906 = vunpack.c.h.b16 %v8857
    %v9907 = vunpack.c.l.b16 %v8858
    %v9908 = vunpack.c.h.b16 %v8858
    %v9909 = vunpack.c.l.b16 %v8859
    %v9910 = vunpack.c.h.b16 %v8859
    %v9911 = vunpack.c.l.b16 %v8860
    %v9912 = vunpack.c.h.b16 %v8860
    %v9913 = vunpack.c.l.b16 %v8861
    %v9914 = vunpack.c.h.b16 %v8861
    %v9915 = vunpack.c.l.b16 %v8862
    %v9916 = vunpack.c.h.b16 %v8862
    %v9917 = vunpack.c.l.b16 %v8863
    %v9918 = vunpack.c.h.b16 %v8863
    %v9919 = vunpack.c.l.b16 %v8864
    %v9920 = vunpack.c.h.b16 %v8864
    %v9921 = vunpack.c.l.b16 %v8865
    %v9922 = vunpack.c.h.b16 %v8865
    %v9923 = vunpack.c.l.b16 %v8866
    %v9924 = vunpack.c.h.b16 %v8866
    %v9925 = vunpack.c.l.b16 %v8867
    %v9926 = vunpack.c.h.b16 %v8867
    %v9927 = vunpack.c.l.b16 %v8868
    %v9928 = vunpack.c.h.b16 %v8868
    %v9929 = vunpack.c.l.b16 %v8869
    %v9930 = vunpack.c.h.b16 %v8869
    %v9931 = vunpack.c.l.b16 %v8870
    %v9932 = vunpack.c.h.b16 %v8870
    %v9933 = vunpack.c.l.b16 %v8871
    %v9934 = vunpack.c.h.b16 %v8871
    %v9935 = vunpack.c.l.b16 %v8872
    %v9936 = vunpack.c.h.b16 %v8872
    %v9937 = vunpack.c.l.b16 %v8873
    %v9938 = vunpack.c.h.b16 %v8873
    %v9939 = vunpack.c.l.b16 %v8874
    %v9940 = vunpack.c.h.b16 %v8874
    %v9941 = vunpack.c.l.b16 %v8875
    %v9942 = vunpack.c.h.b16 %v8875
    %v9943 = vunpack.c.l.b16 %v8876
    %v9944 = vunpack.c.h.b16 %v8876
    %v9945 = vunpack.c.l.b16 %v8877
    %v9946 = vunpack.c.h.b16 %v8877
    %v9947 = vunpack.c.l.b16 %v8878
    %v9948 = vunpack.c.h.b16 %v8878
    %v9949 = vunpack.c.l.b16 %v8879
    %v9950 = vunpack.c.h.b16 %v8879
    %v9951 = vunpack.c.l.b16 %v8880
    %v9952 = vunpack.c.h.b16 %v8880
    %v9953 = vunpack.c.l.b16 %v8881
    %v9954 = vunpack.c.h.b16 %v8881
    %v9955 = vunpack.c.l.b16 %v8882
    %v9956 = vunpack.c.h.b16 %v8882
    %v9957 = vunpack.c.l.b16 %v8883
    %v9958 = vunpack.c.h.b16 %v8883
    %v9959 = vunpack.c.l.b16 %v8884
    %v9960 = vunpack.c.h.b16 %v8884
    %v9961 = vunpack.c.l.b16 %v8885
    %v9962 = vunpack.c.h.b16 %v8885
    %v9963 = vunpack.c.l.b16 %v8886
    %v9964 = vunpack.c.h.b16 %v8886
    %v9965 = vunpack.c.l.b16 %v8887
    %v9966 = vunpack.c.h.b16 %v8887
    %v9967 = vunpack.c.l.b16 %v8888
    %v9968 = vunpack.c.h.b16 %v8888
    %v9969 = vunpack.c.l.b16 %v8889
    %v9970 = vunpack.c.h.b16 %v8889
    %v9971 = vunpack.c.l.b16 %v8890
    %v9972 = vunpack.c.h.b16 %v8890
    %v9973 = vunpack.c.l.b16 %v8891
    %v9974 = vunpack.c.h.b16 %v8891
    %v9975 = vunpack.c.l.b16 %v8892
    %v9976 = vunpack.c.h.b16 %v8892
    %v9977 = vunpack.c.l.b16 %v8893
    %v9978 = vunpack.c.h.b16 %v8893
    %v9979 = vunpack.c.l.b16 %v8894
    %v9980 = vunpack.c.h.b16 %v8894
    %v9981 = vunpack.c.l.b16 %v8895
    %v9982 = vunpack.c.h.b16 %v8895
    %v9983 = vunpack.c.l.b16 %v8896
    %v9984 = vunpack.c.h.b16 %v8896
    %v9985 = vunpack.c.l.b16 %v8897
    %v9986 = vunpack.c.h.b16 %v8897
    %v9987 = vunpack.c.l.b16 %v8898
    %v9988 = vunpack.c.h.b16 %v8898
    %v9989 = vunpack.c.l.b16 %v8899
    %v9990 = vunpack.c.h.b16 %v8899
    %v9991 = vunpack.c.l.b16 %v8900
    %v9992 = vunpack.c.h.b16 %v8900
    %v9993 = vunpack.c.l.b16 %v8901
    %v9994 = vunpack.c.h.b16 %v8901
    %v9995 = vunpack.c.l.b16 %v8902
    %v9996 = vunpack.c.h.b16 %v8902
    %v9997 = vunpack.c.l.b16 %v8903
    %v9998 = vunpack.c.h.b16 %v8903
    %v9999 = vunpack.c.l.b16 %v8904
    %v10000 = vunpack.c.h.b16 %v8904
    %v10001 = vunpack.c.l.b16 %v8905
    %v10002 = vunpack.c.h.b16 %v8905
    %v10003 = vunpack.c.l.b16 %v8906
    %v10004 = vunpack.c.h.b16 %v8906
    %v10005 = vunpack.c.l.b16 %v8907
    %v10006 = vunpack.c.h.b16 %v8907
    %v10007 = vunpack.c.l.b16 %v8908
    %v10008 = vunpack.c.h.b16 %v8908
    %v10009 = vunpack.c.l.b16 %v8909
    %v10010 = vunpack.c.h.b16 %v8909
    %v10011 = vunpack.c.l.b16 %v8910
    %v10012 = vunpack.c.h.b16 %v8910
    %v10013 = vunpack.c.l.b16 %v8911
    %v10014 = vunpack.c.h.b16 %v8911
    %v10015 = vunpack.c.l.b16 %v8912
    %v10016 = vunpack.c.h.b16 %v8912
    %v10017 = vunpack.c.l.b16 %v8913
    %v10018 = vunpack.c.h.b16 %v8913
    %v10019 = vunpack.c.l.b16 %v8914
    %v10020 = vunpack.c.h.b16 %v8914
    %v10021 = vunpack.c.l.b16 %v8915
    %v10022 = vunpack.c.h.b16 %v8915
    %v10023 = vunpack.c.l.b16 %v8916
    %v10024 = vunpack.c.h.b16 %v8916
    %v10025 = vunpack.c.l.b16 %v8917
    %v10026 = vunpack.c.h.b16 %v8917
    %v10027 = vunpack.c.l.b16 %v8918
    %v10028 = vunpack.c.h.b16 %v8918
    %v10029 = vunpack.c.l.b16 %v8919
    %v10030 = vunpack.c.h.b16 %v8919
    %v10031 = vunpack.c.l.b16 %v8920
    %v10032 = vunpack.c.h.b16 %v8920
    %v10033 = vunpack.c.l.b16 %v8921
    %v10034 = vunpack.c.h.b16 %v8921
    %v10035 = vunpack.c.l.b16 %v8922
    %v10036 = vunpack.c.h.b16 %v8922
    %v10037 = vunpack.c.l.b16 %v8923
    %v10038 = vunpack.c.h.b16 %v8923
    %v10039 = vunpack.c.l.b16 %v8924
    %v10040 = vunpack.c.h.b16 %v8924
    %v10041 = vunpack.c.l.b16 %v8925
    %v10042 = vunpack.c.h.b16 %v8925
    %v10043 = vunpack.c.l.b16 %v8926
    %v10044 = vunpack.c.h.b16 %v8926
    %v10045 = vunpack.c.l.b16 %v8927
    %v10046 = vunpack.c.h.b16 %v8927
    %v10047 = vunpack.c.l.b16 %v8928
    %v10048 = vunpack.c.h.b16 %v8928
    %v10049 = vunpack.c.l.b16 %v8929
    %v10050 = vunpack.c.h.b16 %v8929
    %v10051 = vunpack.c.l.b16 %v8930
    %v10052 = vunpack.c.h.b16 %v8930
    %v10053 = vunpack.c.l.b16 %v8931
    %v10054 = vunpack.c.h.b16 %v8931
    %v10055 = vunpack.c.l.b16 %v8932
    %v10056 = vunpack.c.h.b16 %v8932
    %v10057 = vunpack.c.l.b16 %v8933
    %v10058 = vunpack.c.h.b16 %v8933
    %v10059 = vunpack.c.l.b16 %v8934
    %v10060 = vunpack.c.h.b16 %v8934
    %v10061 = vunpack.c.l.b16 %v8935
    %v10062 = vunpack.c.h.b16 %v8935
    %v10063 = vunpack.c.l.b16 %v8936
    %v10064 = vunpack.c.h.b16 %v8936
    %v10065 = vunpack.c.l.b16 %v8937
    %v10066 = vunpack.c.h.b16 %v8937
    %v10067 = vunpack.c.l.b16 %v8938
    %v10068 = vunpack.c.h.b16 %v8938
    %v10069 = vunpack.c.l.b16 %v8939
    %v10070 = vunpack.c.h.b16 %v8939
    %v10071 = vunpack.c.l.b16 %v8940
    %v10072 = vunpack.c.h.b16 %v8940
    %v10073 = vunpack.c.l.b16 %v8941
    %v10074 = vunpack.c.h.b16 %v8941
    %v10075 = vunpack.c.l.b16 %v8942
    %v10076 = vunpack.c.h.b16 %v8942
    %v10077 = vunpack.c.l.b16 %v8943
    %v10078 = vunpack.c.h.b16 %v8943
    %v10079 = vunpack.c.l.b16 %v8944
    %v10080 = vunpack.c.h.b16 %v8944
    %v10081 = vunpack.c.l.b16 %v8945
    %v10082 = vunpack.c.h.b16 %v8945
    %v10083 = vunpack.c.l.b16 %v8946
    %v10084 = vunpack.c.h.b16 %v8946
    %v10085 = vunpack.c.l.b16 %v8947
    %v10086 = vunpack.c.h.b16 %v8947
    %v10087 = vunpack.c.l.b16 %v8948
    %v10088 = vunpack.c.h.b16 %v8948
    %v10089 = vunpack.c.l.b16 %v8949
    %v10090 = vunpack.c.h.b16 %v8949
    %v10091 = vunpack.c.l.b16 %v8950
    %v10092 = vunpack.c.h.b16 %v8950
    %v10093 = vunpack.c.l.b16 %v8951
    %v10094 = vunpack.c.h.b16 %v8951
    %v10095 = vunpack.c.l.b16 %v8952
    %v10096 = vunpack.c.h.b16 %v8952
    %v10097 = vunpack.c.l.b16 %v8953
    %v10098 = vunpack.c.h.b16 %v8953
    %v10099 = vunpack.c.l.b16 %v8954
    %v10100 = vunpack.c.h.b16 %v8954
    %v10101 = vunpack.c.l.b16 %v8955
    %v10102 = vunpack.c.h.b16 %v8955
    %v10103 = vunpack.c.l.b16 %v8956
    %v10104 = vunpack.c.h.b16 %v8956
    %v10105 = vunpack.c.l.b16 %v8957
    %v10106 = vunpack.c.h.b16 %v8957
    %v10107 = vunpack.c.l.b16 %v8958
    %v10108 = vunpack.c.h.b16 %v8958
    %v10109 = vunpack.c.l.b16 %v8959
    %v10110 = vunpack.c.h.b16 %v8959
    %v10111 = vunpack.c.l.b16 %v8960
    %v10112 = vunpack.c.h.b16 %v8960
    %v10113 = vunpack.c.l.b16 %v8961
    %v10114 = vunpack.c.h.b16 %v8961
    %v10115 = vunpack.c.l.b16 %v8962
    %v10116 = vunpack.c.h.b16 %v8962
    %v10117 = vunpack.c.l.b16 %v8963
    %v10118 = vunpack.c.h.b16 %v8963
    %v10119 = vunpack.c.l.b16 %v8964
    %v10120 = vunpack.c.h.b16 %v8964
    %v10121 = vunpack.c.l.b16 %v8965
    %v10122 = vunpack.c.h.b16 %v8965
    %v10123 = vunpack.c.l.b16 %v8966
    %v10124 = vunpack.c.h.b16 %v8966
    %v10125 = vunpack.c.l.b16 %v8967
    %v10126 = vunpack.c.h.b16 %v8967
    %v10127 = vunpack.c.l.b16 %v8968
    %v10128 = vunpack.c.h.b16 %v8968
    %v10129 = vunpack.c.l.b16 %v8969
    %v10130 = vunpack.c.h.b16 %v8969
    %v10131 = vunpack.c.l.b16 %v8970
    %v10132 = vunpack.c.h.b16 %v8970
    %v10133 = vunpack.c.l.b16 %v8971
    %v10134 = vunpack.c.h.b16 %v8971
    %v10135 = vunpack.c.l.b16 %v8972
    %v10136 = vunpack.c.h.b16 %v8972
    %v10137 = vunpack.c.l.b16 %v8973
    %v10138 = vunpack.c.h.b16 %v8973
    %v10139 = vunpack.c.l.b16 %v8974
    %v10140 = vunpack.c.h.b16 %v8974
    %v10141 = vunpack.c.l.b16 %v8975
    %v10142 = vunpack.c.h.b16 %v8975
    %v10143 = vunpack.c.l.b16 %v8976
    %v10144 = vunpack.c.h.b16 %v8976
    %v10145 = vunpack.c.l.b16 %v8977
    %v10146 = vunpack.c.h.b16 %v8977
    %v10147 = vunpack.c.l.b16 %v8978
    %v10148 = vunpack.c.h.b16 %v8978
    %v10149 = vunpack.c.l.b16 %v8979
    %v10150 = vunpack.c.h.b16 %v8979
    %v10151 = vunpack.c.l.b16 %v8980
    %v10152 = vunpack.c.h.b16 %v8980
    %v10153 = vunpack.c.l.b16 %v8981
    %v10154 = vunpack.c.h.b16 %v8981
    %v10155 = vunpack.c.l.b16 %v8982
    %v10156 = vunpack.c.h.b16 %v8982
    %v10157 = vunpack.c.l.b16 %v8983
    %v10158 = vunpack.c.h.b16 %v8983
    %v10159 = vunpack.c.l.b16 %v8984
    %v10160 = vunpack.c.h.b16 %v8984
    %v10161 = vunpack.c.l.b16 %v8985
    %v10162 = vunpack.c.h.b16 %v8985
    %v10163 = vunpack.c.l.b16 %v8986
    %v10164 = vunpack.c.h.b16 %v8986
    %v10165 = vunpack.c.l.b16 %v8987
    %v10166 = vunpack.c.h.b16 %v8987
    %v10167 = vunpack.c.l.b16 %v8988
    %v10168 = vunpack.c.h.b16 %v8988
    %v10169 = vunpack.c.l.b16 %v8989
    %v10170 = vunpack.c.h.b16 %v8989
    %v10171 = vunpack.c.l.b16 %v8990
    %v10172 = vunpack.c.h.b16 %v8990
    %v10173 = vunpack.c.l.b16 %v8991
    %v10174 = vunpack.c.h.b16 %v8991
    %v10175 = vunpack.c.l.b16 %v8992
    %v10176 = vunpack.c.h.b16 %v8992
    %v10177 = vunpack.c.l.b16 %v8993
    %v10178 = vunpack.c.h.b16 %v8993
    %v10179 = vunpack.c.l.b16 %v8994
    %v10180 = vunpack.c.h.b16 %v8994
    %v10181 = vunpack.c.l.b16 %v8995
    %v10182 = vunpack.c.h.b16 %v8995
    %v10183 = vunpack.c.l.b16 %v8996
    %v10184 = vunpack.c.h.b16 %v8996
    %v10185 = vunpack.c.l.b16 %v8997
    %v10186 = vunpack.c.h.b16 %v8997
    %v10187 = vunpack.c.l.b16 %v8998
    %v10188 = vunpack.c.h.b16 %v8998
    %v10189 = vunpack.c.l.b16 %v8999
    %v10190 = vunpack.c.h.b16 %v8999
    %v10191 = vunpack.c.l.b16 %v9000
    %v10192 = vunpack.c.h.b16 %v9000
    %v10193 = vunpack.c.l.b16 %v9001
    %v10194 = vunpack.c.h.b16 %v9001
    %v10195 = vunpack.c.l.b16 %v9002
    %v10196 = vunpack.c.h.b16 %v9002
    %v10197 = vunpack.c.l.b16 %v9003
    %v10198 = vunpack.c.h.b16 %v9003
    %v10199 = vunpack.c.l.b16 %v9004
    %v10200 = vunpack.c.h.b16 %v9004
    %v10201 = vunpack.c.l.b16 %v9005
    %v10202 = vunpack.c.h.b16 %v9005
    %v10203 = vunpack.c.l.b16 %v9006
    %v10204 = vunpack.c.h.b16 %v9006
    %v10205 = vunpack.c.l.b16 %v9007
    %v10206 = vunpack.c.h.b16 %v9007
    %v10207 = vunpack.c.l.b16 %v9008
    %v10208 = vunpack.c.h.b16 %v9008
    %v10209 = vunpack.c.l.b16 %v9009
    %v10210 = vunpack.c.h.b16 %v9009
    %v10211 = vunpack.c.l.b16 %v9010
    %v10212 = vunpack.c.h.b16 %v9010
    %v10213 = vunpack.c.l.b16 %v9011
    %v10214 = vunpack.c.h.b16 %v9011
    %v10215 = vunpack.c.l.b16 %v9012
    %v10216 = vunpack.c.h.b16 %v9012
    %v10217 = vunpack.c.l.b16 %v9013
    %v10218 = vunpack.c.h.b16 %v9013
    %v10219 = vunpack.c.l.b16 %v9014
    %v10220 = vunpack.c.h.b16 %v9014
    %v10221 = vunpack.c.l.b16 %v9015
    %v10222 = vunpack.c.h.b16 %v9015
    %v10223 = vunpack.c.l.b16 %v9016
    %v10224 = vunpack.c.h.b16 %v9016
    %v10225 = vunpack.c.l.b16 %v9017
    %v10226 = vunpack.c.h.b16 %v9017
    %v10227 = vunpack.c.l.b16 %v9018
    %v10228 = vunpack.c.h.b16 %v9018
    %v10229 = vpack.c.b16 %v9433, %v9429
    %v10230 = vpack.c.b16 %v9434, %v9430
    %v10231 = vpack.c.b16 %v9435, %v9431
    %v10232 = vpack.c.b16 %v9436, %v9432
    %v10233 = vpack.c.b16 %v9441, %v9437
    %v10234 = vpack.c.b16 %v9442, %v9438
    %v10235 = vpack.c.b16 %v9443, %v9439
    %v10236 = vpack.c.b16 %v9444, %v9440
    %v10237 = vpack.c.b16 %v9449, %v9445
    %v10238 = vpack.c.b16 %v9450, %v9446
    %v10239 = vpack.c.b16 %v9451, %v9447
    %v10240 = vpack.c.b16 %v9452, %v9448
    %v10241 = vpack.c.b16 %v9457, %v9453
    %v10242 = vpack.c.b16 %v9458, %v9454
    %v10243 = vpack.c.b16 %v9459, %v9455
    %v10244 = vpack.c.b16 %v9460, %v9456
    %v10245 = vpack.c.b16 %v9465, %v9461
    %v10246 = vpack.c.b16 %v9466, %v9462
    %v10247 = vpack.c.b16 %v9467, %v9463
    %v10248 = vpack.c.b16 %v9468, %v9464
    %v10249 = vpack.c.b16 %v9473, %v9469
    %v10250 = vpack.c.b16 %v9474, %v9470
    %v10251 = vpack.c.b16 %v9475, %v9471
    %v10252 = vpack.c.b16 %v9476, %v9472
    %v10253 = vpack.c.b16 %v9481, %v9477
    %v10254 = vpack.c.b16 %v9482, %v9478
    %v10255 = vpack.c.b16 %v9483, %v9479
    %v10256 = vpack.c.b16 %v9484, %v9480
    %v10257 = vpack.c.b16 %v9489, %v9485
    %v10258 = vpack.c.b16 %v9490, %v9486
    %v10259 = vpack.c.b16 %v9491, %v9487
    %v10260 = vpack.c.b16 %v9492, %v9488
    %v10261 = vpack.c.b16 %v9497, %v9493
    %v10262 = vpack.c.b16 %v9498, %v9494
    %v10263 = vpack.c.b16 %v9499, %v9495
    %v10264 = vpack.c.b16 %v9500, %v9496
    %v10265 = vpack.c.b16 %v9505, %v9501
    %v10266 = vpack.c.b16 %v9506, %v9502
    %v10267 = vpack.c.b16 %v9507, %v9503
    %v10268 = vpack.c.b16 %v9508, %v9504
    %v10269 = vpack.c.b16 %v9513, %v9509
    %v10270 = vpack.c.b16 %v9514, %v9510
    %v10271 = vpack.c.b16 %v9515, %v9511
    %v10272 = vpack.c.b16 %v9516, %v9512
    %v10273 = vpack.c.b16 %v9521, %v9517
    %v10274 = vpack.c.b16 %v9522, %v9518
    %v10275 = vpack.c.b16 %v9523, %v9519
    %v10276 = vpack.c.b16 %v9524, %v9520
    %v10277 = vpack.c.b16 %v9529, %v9525
    %v10278 = vpack.c.b16 %v9530, %v9526
    %v10279 = vpack.c.b16 %v9531, %v9527
    %v10280 = vpack.c.b16 %v9532, %v9528
    %v10281 = vpack.c.b16 %v9537, %v9533
    %v10282 = vpack.c.b16 %v9538, %v9534
    %v10283 = vpack.c.b16 %v9539, %v9535
    %v10284 = vpack.c.b16 %v9540, %v9536
    %v10285 = vpack.c.b16 %v9545, %v9541
    %v10286 = vpack.c.b16 %v9546, %v9542
    %v10287 = vpack.c.b16 %v9547, %v9543
    %v10288 = vpack.c.b16 %v9548, %v9544
    %v10289 = vpack.c.b16 %v9553, %v9549
    %v10290 = vpack.c.b16 %v9554, %v9550
    %v10291 = vpack.c.b16 %v9555, %v9551
    %v10292 = vpack.c.b16 %v9556, %v9552
    %v10293 = vpack.c.b16 %v9561, %v9557
    %v10294 = vpack.c.b16 %v9562, %v9558
    %v10295 = vpack.c.b16 %v9563, %v9559
    %v10296 = vpack.c.b16 %v9564, %v9560
    %v10297 = vpack.c.b16 %v9569, %v9565
    %v10298 = vpack.c.b16 %v9570, %v9566
    %v10299 = vpack.c.b16 %v9571, %v9567
    %v10300 = vpack.c.b16 %v9572, %v9568
    %v10301 = vpack.c.b16 %v9577, %v9573
    %v10302 = vpack.c.b16 %v9578, %v9574
    %v10303 = vpack.c.b16 %v9579, %v9575
    %v10304 = vpack.c.b16 %v9580, %v9576
    %v10305 = vpack.c.b16 %v9585, %v9581
    %v10306 = vpack.c.b16 %v9586, %v9582
    %v10307 = vpack.c.b16 %v9587, %v9583
    %v10308 = vpack.c.b16 %v9588, %v9584
    %v10309 = vpack.c.b16 %v9593, %v9589
    %v10310 = vpack.c.b16 %v9594, %v9590
    %v10311 = vpack.c.b16 %v9595, %v9591
    %v10312 = vpack.c.b16 %v9596, %v9592
    %v10313 = vpack.c.b16 %v9601, %v9597
    %v10314 = vpack.c.b16 %v9602, %v9598
    %v10315 = vpack.c.b16 %v9603, %v9599
    %v10316 = vpack.c.b16 %v9604, %v9600
    %v10317 = vpack.c.b16 %v9609, %v9605
    %v10318 = vpack.c.b16 %v9610, %v9606
    %v10319 = vpack.c.b16 %v9611, %v9607
    %v10320 = vpack.c.b16 %v9612, %v9608
    %v10321 = vpack.c.b16 %v9617, %v9613
    %v10322 = vpack.c.b16 %v9618, %v9614
    %v10323 = vpack.c.b16 %v9619, %v9615
    %v10324 = vpack.c.b16 %v9620, %v9616
    %v10325 = vpack.c.b16 %v9625, %v9621
    %v10326 = vpack.c.b16 %v9626, %v9622
    %v10327 = vpack.c.b16 %v9627, %v9623
    %v10328 = vpack.c.b16 %v9628, %v9624
    %v10329 = vpack.c.b16 %v9633, %v9629
    %v10330 = vpack.c.b16 %v9634, %v9630
    %v10331 = vpack.c.b16 %v9635, %v9631
    %v10332 = vpack.c.b16 %v9636, %v9632
    %v10333 = vpack.c.b16 %v9641, %v9637
    %v10334 = vpack.c.b16 %v9642, %v9638
    %v10335 = vpack.c.b16 %v9643, %v9639
    %v10336 = vpack.c.b16 %v9644, %v9640
    %v10337 = vpack.c.b16 %v9649, %v9645
    %v10338 = vpack.c.b16 %v9650, %v9646
    %v10339 = vpack.c.b16 %v9651, %v9647
    %v10340 = vpack.c.b16 %v9652, %v9648
    %v10341 = vpack.c.b16 %v9657, %v9653
    %v10342 = vpack.c.b16 %v9658, %v9654
    %v10343 = vpack.c.b16 %v9659, %v9655
    %v10344 = vpack.c.b16 %v9660, %v9656
    %v10345 = vpack.c.b16 %v9665, %v9661
    %v10346 = vpack.c.b16 %v9666, %v9662
    %v10347 = vpack.c.b16 %v9667, %v9663
    %v10348 = vpack.c.b16 %v9668, %v9664
    %v10349 = vpack.c.b16 %v9673, %v9669
    %v10350 = vpack.c.b16 %v9674, %v9670
    %v10351 = vpack.c.b16 %v9675, %v9671
    %v10352 = vpack.c.b16 %v9676, %v9672
    %v10353 = vpack.c.b16 %v9681, %v9677
    %v10354 = vpack.c.b16 %v9682, %v9678
    %v10355 = vpack.c.b16 %v9683, %v9679
    %v10356 = vpack.c.b16 %v9684, %v9680
    %v10357 = vpack.c.b16 %v9689, %v9685
    %v10358 = vpack.c.b16 %v9690, %v9686
    %v10359 = vpack.c.b16 %v9691, %v9687
    %v10360 = vpack.c.b16 %v9692, %v9688
    %v10361 = vpack.c.b16 %v9697, %v9693
    %v10362 = vpack.c.b16 %v9698, %v9694
    %v10363 = vpack.c.b16 %v9699, %v9695
    %v10364 = vpack.c.b16 %v9700, %v9696
    %v10365 = vpack.c.b16 %v9705, %v9701
    %v10366 = vpack.c.b16 %v9706, %v9702
    %v10367 = vpack.c.b16 %v9707, %v9703
    %v10368 = vpack.c.b16 %v9708, %v9704
    %v10369 = vpack.c.b16 %v9713, %v9709
    %v10370 = vpack.c.b16 %v9714, %v9710
    %v10371 = vpack.c.b16 %v9715, %v9711
    %v10372 = vpack.c.b16 %v9716, %v9712
    %v10373 = vpack.c.b16 %v9721, %v9717
    %v10374 = vpack.c.b16 %v9722, %v9718
    %v10375 = vpack.c.b16 %v9723, %v9719
    %v10376 = vpack.c.b16 %v9724, %v9720
    %v10377 = vpack.c.b16 %v9729, %v9725
    %v10378 = vpack.c.b16 %v9730, %v9726
    %v10379 = vpack.c.b16 %v9731, %v9727
    %v10380 = vpack.c.b16 %v9732, %v9728
    %v10381 = vpack.c.b16 %v9737, %v9733
    %v10382 = vpack.c.b16 %v9738, %v9734
    %v10383 = vpack.c.b16 %v9739, %v9735
    %v10384 = vpack.c.b16 %v9740, %v9736
    %v10385 = vpack.c.b16 %v9745, %v9741
    %v10386 = vpack.c.b16 %v9746, %v9742
    %v10387 = vpack.c.b16 %v9747, %v9743
    %v10388 = vpack.c.b16 %v9748, %v9744
    %v10389 = vpack.c.b16 %v9753, %v9749
    %v10390 = vpack.c.b16 %v9754, %v9750
    %v10391 = vpack.c.b16 %v9755, %v9751
    %v10392 = vpack.c.b16 %v9756, %v9752
    %v10393 = vpack.c.b16 %v9761, %v9757
    %v10394 = vpack.c.b16 %v9762, %v9758
    %v10395 = vpack.c.b16 %v9763, %v9759
    %v10396 = vpack.c.b16 %v9764, %v9760
    %v10397 = vpack.c.b16 %v9769, %v9765
    %v10398 = vpack.c.b16 %v9770, %v9766
    %v10399 = vpack.c.b16 %v9771, %v9767
    %v10400 = vpack.c.b16 %v9772, %v9768
    %v10401 = vpack.c.b16 %v9777, %v9773
    %v10402 = vpack.c.b16 %v9778, %v9774
    %v10403 = vpack.c.b16 %v9779, %v9775
    %v10404 = vpack.c.b16 %v9780, %v9776
    %v10405 = vpack.c.b16 %v9785, %v9781
    %v10406 = vpack.c.b16 %v9786, %v9782
    %v10407 = vpack.c.b16 %v9787, %v9783
    %v10408 = vpack.c.b16 %v9788, %v9784
    %v10409 = vpack.c.b16 %v9793, %v9789
    %v10410 = vpack.c.b16 %v9794, %v9790
    %v10411 = vpack.c.b16 %v9795, %v9791
    %v10412 = vpack.c.b16 %v9796, %v9792
    %v10413 = vpack.c.b16 %v9801, %v9797
    %v10414 = vpack.c.b16 %v9802, %v9798
    %v10415 = vpack.c.b16 %v9803, %v9799
    %v10416 = vpack.c.b16 %v9804, %v9800
    %v10417 = vpack.c.b16 %v9809, %v9805
    %v10418 = vpack.c.b16 %v9810, %v9806
    %v10419 = vpack.c.b16 %v9811, %v9807
    %v10420 = vpack.c.b16 %v9812, %v9808
    %v10421 = vpack.c.b16 %v9817, %v9813
    %v10422 = vpack.c.b16 %v9818, %v9814
    %v10423 = vpack.c.b16 %v9819, %v9815
    %v10424 = vpack.c.b16 %v9820, %v9816
    %v10425 = vpack.c.b16 %v9825, %v9821
    %v10426 = vpack.c.b16 %v9826, %v9822
    %v10427 = vpack.c.b16 %v9827, %v9823
    %v10428 = vpack.c.b16 %v9828, %v9824
    %v10429 = vpack.c.b16 %v9833, %v9829
    %v10430 = vpack.c.b16 %v9834, %v9830
    %v10431 = vpack.c.b16 %v9835, %v9831
    %v10432 = vpack.c.b16 %v9836, %v9832
    %v10433 = vpack.c.b16 %v9841, %v9837
    %v10434 = vpack.c.b16 %v9842, %v9838
    %v10435 = vpack.c.b16 %v9843, %v9839
    %v10436 = vpack.c.b16 %v9844, %v9840
    %v10437 = vpack.c.b16 %v9849, %v9845
    %v10438 = vpack.c.b16 %v9850, %v9846
    %v10439 = vpack.c.b16 %v9851, %v9847
    %v10440 = vpack.c.b16 %v9852, %v9848
    %v10441 = vpack.c.b16 %v9857, %v9853
    %v10442 = vpack.c.b16 %v9858, %v9854
    %v10443 = vpack.c.b16 %v9859, %v9855
    %v10444 = vpack.c.b16 %v9860, %v9856
    %v10445 = vpack.c.b16 %v9865, %v9861
    %v10446 = vpack.c.b16 %v9866, %v9862
    %v10447 = vpack.c.b16 %v9867, %v9863
    %v10448 = vpack.c.b16 %v9868, %v9864
    %v10449 = vpack.c.b16 %v9873, %v9869
    %v10450 = vpack.c.b16 %v9874, %v9870
    %v10451 = vpack.c.b16 %v9875, %v9871
    %v10452 = vpack.c.b16 %v9876, %v9872
    %v10453 = vpack.c.b16 %v9881, %v9877
    %v10454 = vpack.c.b16 %v9882, %v9878
    %v10455 = vpack.c.b16 %v9883, %v9879
    %v10456 = vpack.c.b16 %v9884, %v9880
    %v10457 = vpack.c.b16 %v9889, %v9885
    %v10458 = vpack.c.b16 %v9890, %v9886
    %v10459 = vpack.c.b16 %v9891, %v9887
    %v10460 = vpack.c.b16 %v9892, %v9888
    %v10461 = vpack.c.b16 %v9897, %v9893
    %v10462 = vpack.c.b16 %v9898, %v9894
    %v10463 = vpack.c.b16 %v9899, %v9895
    %v10464 = vpack.c.b16 %v9900, %v9896
    %v10465 = vpack.c.b16 %v9905, %v9901
    %v10466 = vpack.c.b16 %v9906, %v9902
    %v10467 = vpack.c.b16 %v9907, %v9903
    %v10468 = vpack.c.b16 %v9908, %v9904
    %v10469 = vpack.c.b16 %v9913, %v9909
    %v10470 = vpack.c.b16 %v9914, %v9910
    %v10471 = vpack.c.b16 %v9915, %v9911
    %v10472 = vpack.c.b16 %v9916, %v9912
    %v10473 = vpack.c.b16 %v9921, %v9917
    %v10474 = vpack.c.b16 %v9922, %v9918
    %v10475 = vpack.c.b16 %v9923, %v9919
    %v10476 = vpack.c.b16 %v9924, %v9920
    %v10477 = vpack.c.b16 %v9929, %v9925
    %v10478 = vpack.c.b16 %v9930, %v9926
    %v10479 = vpack.c.b16 %v9931, %v9927
    %v10480 = vpack.c.b16 %v9932, %v9928
    %v10481 = vpack.c.b16 %v9937, %v9933
    %v10482 = vpack.c.b16 %v9938, %v9934
    %v10483 = vpack.c.b16 %v9939, %v9935
    %v10484 = vpack.c.b16 %v9940, %v9936
    %v10485 = vpack.c.b16 %v9945, %v9941
    %v10486 = vpack.c.b16 %v9946, %v9942
    %v10487 = vpack.c.b16 %v9947, %v9943
    %v10488 = vpack.c.b16 %v9948, %v9944
    %v10489 = vpack.c.b16 %v9953, %v9949
    %v10490 = vpack.c.b16 %v9954, %v9950
    %v10491 = vpack.c.b16 %v9955, %v9951
    %v10492 = vpack.c.b16 %v9956, %v9952
    %v10493 = vpack.c.b16 %v9961, %v9957
    %v10494 = vpack.c.b16 %v9962, %v9958
    %v10495 = vpack.c.b16 %v9963, %v9959
    %v10496 = vpack.c.b16 %v9964, %v9960
    %v10497 = vpack.c.b16 %v9969, %v9965
    %v10498 = vpack.c.b16 %v9970, %v9966
    %v10499 = vpack.c.b16 %v9971, %v9967
    %v10500 = vpack.c.b16 %v9972, %v9968
    %v10501 = vpack.c.b16 %v9977, %v9973
    %v10502 = vpack.c.b16 %v9978, %v9974
    %v10503 = vpack.c.b16 %v9979, %v9975
    %v10504 = vpack.c.b16 %v9980, %v9976
    %v10505 = vpack.c.b16 %v9985, %v9981
    %v10506 = vpack.c.b16 %v9986, %v9982
    %v10507 = vpack.c.b16 %v9987, %v9983
    %v10508 = vpack.c.b16 %v9988, %v9984
    %v10509 = vpack.c.b16 %v9993, %v9989
    %v10510 = vpack.c.b16 %v9994, %v9990
    %v10511 = vpack.c.b16 %v9995, %v9991
    %v10512 = vpack.c.b16 %v9996, %v9992
    %v10513 = vpack.c.b16 %v10001, %v9997
    %v10514 = vpack.c.b16 %v10002, %v9998
    %v10515 = vpack.c.b16 %v10003, %v9999
    %v10516 = vpack.c.b16 %v10004, %v10000
    %v10517 = vpack.c.b16 %v10009, %v10005
    %v10518 = vpack.c.b16 %v10010, %v10006
    %v10519 = vpack.c.b16 %v10011, %v10007
    %v10520 = vpack.c.b16 %v10012, %v10008
    %v10521 = vpack.c.b16 %v10017, %v10013
    %v10522 = vpack.c.b16 %v10018, %v10014
    %v10523 = vpack.c.b16 %v10019, %v10015
    %v10524 = vpack.c.b16 %v10020, %v10016
    %v10525 = vpack.c.b16 %v10025, %v10021
    %v10526 = vpack.c.b16 %v10026, %v10022
    %v10527 = vpack.c.b16 %v10027, %v10023
    %v10528 = vpack.c.b16 %v10028, %v10024
    %v10529 = vpack.c.b16 %v10033, %v10029
    %v10530 = vpack.c.b16 %v10034, %v10030
    %v10531 = vpack.c.b16 %v10035, %v10031
    %v10532 = vpack.c.b16 %v10036, %v10032
    %v10533 = vpack.c.b16 %v10041, %v10037
    %v10534 = vpack.c.b16 %v10042, %v10038
    %v10535 = vpack.c.b16 %v10043, %v10039
    %v10536 = vpack.c.b16 %v10044, %v10040
    %v10537 = vpack.c.b16 %v10049, %v10045
    %v10538 = vpack.c.b16 %v10050, %v10046
    %v10539 = vpack.c.b16 %v10051, %v10047
    %v10540 = vpack.c.b16 %v10052, %v10048
    %v10541 = vpack.c.b16 %v10057, %v10053
    %v10542 = vpack.c.b16 %v10058, %v10054
    %v10543 = vpack.c.b16 %v10059, %v10055
    %v10544 = vpack.c.b16 %v10060, %v10056
    %v10545 = vpack.c.b16 %v10065, %v10061
    %v10546 = vpack.c.b16 %v10066, %v10062
    %v10547 = vpack.c.b16 %v10067, %v10063
    %v10548 = vpack.c.b16 %v10068, %v10064
    %v10549 = vpack.c.b16 %v10073, %v10069
    %v10550 = vpack.c.b16 %v10074, %v10070
    %v10551 = vpack.c.b16 %v10075, %v10071
    %v10552 = vpack.c.b16 %v10076, %v10072
    %v10553 = vpack.c.b16 %v10081, %v10077
    %v10554 = vpack.c.b16 %v10082, %v10078
    %v10555 = vpack.c.b16 %v10083, %v10079
    %v10556 = vpack.c.b16 %v10084, %v10080
    %v10557 = vpack.c.b16 %v10089, %v10085
    %v10558 = vpack.c.b16 %v10090, %v10086
    %v10559 = vpack.c.b16 %v10091, %v10087
    %v10560 = vpack.c.b16 %v10092, %v10088
    %v10561 = vpack.c.b16 %v10097, %v10093
    %v10562 = vpack.c.b16 %v10098, %v10094
    %v10563 = vpack.c.b16 %v10099, %v10095
    %v10564 = vpack.c.b16 %v10100, %v10096
    %v10565 = vpack.c.b16 %v10105, %v10101
    %v10566 = vpack.c.b16 %v10106, %v10102
    %v10567 = vpack.c.b16 %v10107, %v10103
    %v10568 = vpack.c.b16 %v10108, %v10104
    %v10569 = vpack.c.b16 %v10113, %v10109
    %v10570 = vpack.c.b16 %v10114, %v10110
    %v10571 = vpack.c.b16 %v10115, %v10111
    %v10572 = vpack.c.b16 %v10116, %v10112
    %v10573 = vpack.c.b16 %v10121, %v10117
    %v10574 = vpack.c.b16 %v10122, %v10118
    %v10575 = vpack.c.b16 %v10123, %v10119
    %v10576 = vpack.c.b16 %v10124, %v10120
    %v10577 = vpack.c.b16 %v10129, %v10125
    %v10578 = vpack.c.b16 %v10130, %v10126
    %v10579 = vpack.c.b16 %v10131, %v10127
    %v10580 = vpack.c.b16 %v10132, %v10128
    %v10581 = vpack.c.b16 %v10137, %v10133
    %v10582 = vpack.c.b16 %v10138, %v10134
    %v10583 = vpack.c.b16 %v10139, %v10135
    %v10584 = vpack.c.b16 %v10140, %v10136
    %v10585 = vpack.c.b16 %v10145, %v10141
    %v10586 = vpack.c.b16 %v10146, %v10142
    %v10587 = vpack.c.b16 %v10147, %v10143
    %v10588 = vpack.c.b16 %v10148, %v10144
    %v10589 = vpack.c.b16 %v10153, %v10149
    %v10590 = vpack.c.b16 %v10154, %v10150
    %v10591 = vpack.c.b16 %v10155, %v10151
    %v10592 = vpack.c.b16 %v10156, %v10152
    %v10593 = vpack.c.b16 %v10161, %v10157
    %v10594 = vpack.c.b16 %v10162, %v10158
    %v10595 = vpack.c.b16 %v10163, %v10159
    %v10596 = vpack.c.b16 %v10164, %v10160
    %v10597 = vpack.c.b16 %v10169, %v10165
    %v10598 = vpack.c.b16 %v10170, %v10166
    %v10599 = vpack.c.b16 %v10171, %v10167
    %v10600 = vpack.c.b16 %v10172, %v10168
    %v10601 = vpack.c.b16 %v10177, %v10173
    %v10602 = vpack.c.b16 %v10178, %v10174
    %v10603 = vpack.c.b16 %v10179, %v10175
    %v10604 = vpack.c.b16 %v10180, %v10176
    %v10605 = vpack.c.b16 %v10185, %v10181
    %v10606 = vpack.c.b16 %v10186, %v10182
    %v10607 = vpack.c.b16 %v10187, %v10183
    %v10608 = vpack.c.b16 %v10188, %v10184
    %v10609 = vpack.c.b16 %v10193, %v10189
    %v10610 = vpack.c.b16 %v10194, %v10190
    %v10611 = vpack.c.b16 %v10195, %v10191
    %v10612 = vpack.c.b16 %v10196, %v10192
    %v10613 = vpack.c.b16 %v10201, %v10197
    %v10614 = vpack.c.b16 %v10202, %v10198
    %v10615 = vpack.c.b16 %v10203, %v10199
    %v10616 = vpack.c.b16 %v10204, %v10200
    %v10617 = vpack.c.b16 %v10209, %v10205
    %v10618 = vpack.c.b16 %v10210, %v10206
    %v10619 = vpack.c.b16 %v10211, %v10207
    %v10620 = vpack.c.b16 %v10212, %v10208
    %v10621 = vpack.c.b16 %v10217, %v10213
    %v10622 = vpack.c.b16 %v10218, %v10214
    %v10623 = vpack.c.b16 %v10219, %v10215
    %v10624 = vpack.c.b16 %v10220, %v10216
    %v10625 = vpack.c.b16 %v10225, %v10221
    %v10626 = vpack.c.b16 %v10226, %v10222
    %v10627 = vpack.c.b16 %v10227, %v10223
    %v10628 = vpack.c.b16 %v10228, %v10224
    %v11030 = vsel %vm4540, %v8618, 0
    %11032 = vmatpush.bf16.msra.mxu0 %v10257
    %11033 = vmatpush.bf16.msra.mxu0 %v10253
    %11034 = vmatpush.bf16.msra.mxu0 %v10249
    %11035 = vmatpush.bf16.msra.mxu0 %v10245
    %11036 = vmatpush.bf16.msra.mxu0 %v10241
    %11037 = vmatpush.bf16.msra.mxu0 %v10237
    %11038 = vmatpush.bf16.msra.mxu0 %v10233
    %11039 = vmatpush.bf16.msra.mxu0 %v10229
    %11040 = vmatmul.bf16.gmra.mxu0 %v8606
    %v11041 = vpop.f32.mrf.mxu0
    %v11042 = vadd.f32 %v9021, %v11041
    %v11043 = vpop.f32.mrf.mxu0
    %11044 = vdwg.mxu0
    %11045 = vmatpush.bf16.msra.mxu0 %v10289
    %11046 = vmatpush.bf16.msra.mxu0 %v10285
    %11047 = vmatpush.bf16.msra.mxu0 %v10281
    %11048 = vmatpush.bf16.msra.mxu0 %v10277
    %11049 = vmatpush.bf16.msra.mxu0 %v10273
    %11050 = vmatpush.bf16.msra.mxu0 %v10269
    %11051 = vmatpush.bf16.msra.mxu0 %v10265
    %11052 = vmatpush.bf16.msra.mxu0 %v10261
    %11053 = vmatmul.bf16.gmra.mxu0 %v8607
    %v11054 = vpop.f32.mrf.mxu0
    %v11055 = vadd.f32 %v11042, %v11054
    %v11056 = vpop.f32.mrf.mxu0
    %11057 = vdwg.mxu0
    %11058 = vmatpush.bf16.msra.mxu0 %v10321
    %11059 = vmatpush.bf16.msra.mxu0 %v10317
    %11060 = vmatpush.bf16.msra.mxu0 %v10313
    %11061 = vmatpush.bf16.msra.mxu0 %v10309
    %11062 = vmatpush.bf16.msra.mxu0 %v10305
    %11063 = vmatpush.bf16.msra.mxu0 %v10301
    %11064 = vmatpush.bf16.msra.mxu0 %v10297
    %11065 = vmatpush.bf16.msra.mxu0 %v10293
    %11066 = vmatmul.bf16.gmra.mxu0 %v8608
    %v11067 = vpop.f32.mrf.mxu0
    %v11068 = vadd.f32 %v11055, %v11067
    %v11069 = vpop.f32.mrf.mxu0
    %11070 = vdwg.mxu0
    %11071 = vmatpush.bf16.msra.mxu0 %v10353
    %11072 = vmatpush.bf16.msra.mxu0 %v10349
    %11073 = vmatpush.bf16.msra.mxu0 %v10345
    %11074 = vmatpush.bf16.msra.mxu0 %v10341
    %11075 = vmatpush.bf16.msra.mxu0 %v10337
    %11076 = vmatpush.bf16.msra.mxu0 %v10333
    %11077 = vmatpush.bf16.msra.mxu0 %v10329
    %11078 = vmatpush.bf16.msra.mxu0 %v10325
    %11079 = vmatmul.bf16.gmra.mxu0 %v8609
    %v11080 = vpop.f32.mrf.mxu0
    %v11081 = vadd.f32 %v11068, %v11080
    %v11082 = vpop.f32.mrf.mxu0
    %11083 = vdwg.mxu0
    %11084 = vmatpush.bf16.msra.mxu0 %v10385
    %11085 = vmatpush.bf16.msra.mxu0 %v10381
    %11086 = vmatpush.bf16.msra.mxu0 %v10377
    %11087 = vmatpush.bf16.msra.mxu0 %v10373
    %11088 = vmatpush.bf16.msra.mxu0 %v10369
    %11089 = vmatpush.bf16.msra.mxu0 %v10365
    %11090 = vmatpush.bf16.msra.mxu0 %v10361
    %11091 = vmatpush.bf16.msra.mxu0 %v10357
    %11092 = vmatmul.bf16.gmra.mxu0 %v8610
    %v11093 = vpop.f32.mrf.mxu0
    %v11094 = vadd.f32 %v11081, %v11093
    %v11095 = vpop.f32.mrf.mxu0
    %11096 = vdwg.mxu0
    %11097 = vmatpush.bf16.msra.mxu0 %v10417
    %11098 = vmatpush.bf16.msra.mxu0 %v10413
    %11099 = vmatpush.bf16.msra.mxu0 %v10409
    %11100 = vmatpush.bf16.msra.mxu0 %v10405
    %11101 = vmatpush.bf16.msra.mxu0 %v10401
    %11102 = vmatpush.bf16.msra.mxu0 %v10397
    %11103 = vmatpush.bf16.msra.mxu0 %v10393
    %11104 = vmatpush.bf16.msra.mxu0 %v10389
    %11105 = vmatmul.bf16.gmra.mxu0 %v8611
    %v11106 = vpop.f32.mrf.mxu0
    %v11107 = vadd.f32 %v11094, %v11106
    %v11108 = vpop.f32.mrf.mxu0
    %11109 = vdwg.mxu0
    %11110 = vmatpush.bf16.msra.mxu0 %v10449
    %11111 = vmatpush.bf16.msra.mxu0 %v10445
    %11112 = vmatpush.bf16.msra.mxu0 %v10441
    %11113 = vmatpush.bf16.msra.mxu0 %v10437
    %11114 = vmatpush.bf16.msra.mxu0 %v10433
    %11115 = vmatpush.bf16.msra.mxu0 %v10429
    %11116 = vmatpush.bf16.msra.mxu0 %v10425
    %11117 = vmatpush.bf16.msra.mxu0 %v10421
    %11118 = vmatmul.bf16.gmra.mxu0 %v8612
    %v11119 = vpop.f32.mrf.mxu0
    %v11120 = vadd.f32 %v11107, %v11119
    %v11121 = vpop.f32.mrf.mxu0
    %11122 = vdwg.mxu0
    %11123 = vmatpush.bf16.msra.mxu0 %v10481
    %11124 = vmatpush.bf16.msra.mxu0 %v10477
    %11125 = vmatpush.bf16.msra.mxu0 %v10473
    %11126 = vmatpush.bf16.msra.mxu0 %v10469
    %11127 = vmatpush.bf16.msra.mxu0 %v10465
    %11128 = vmatpush.bf16.msra.mxu0 %v10461
    %11129 = vmatpush.bf16.msra.mxu0 %v10457
    %11130 = vmatpush.bf16.msra.mxu0 %v10453
    %11131 = vmatmul.bf16.gmra.mxu0 %v8613
    %v11132 = vpop.f32.mrf.mxu0
    %v11133 = vadd.f32 %v11120, %v11132
    %v11134 = vpop.f32.mrf.mxu0
    %11135 = vdwg.mxu0
    %11136 = vmatpush.bf16.msra.mxu0 %v10513
    %11137 = vmatpush.bf16.msra.mxu0 %v10509
    %11138 = vmatpush.bf16.msra.mxu0 %v10505
    %11139 = vmatpush.bf16.msra.mxu0 %v10501
    %11140 = vmatpush.bf16.msra.mxu0 %v10497
    %11141 = vmatpush.bf16.msra.mxu0 %v10493
    %11142 = vmatpush.bf16.msra.mxu0 %v10489
    %11143 = vmatpush.bf16.msra.mxu0 %v10485
    %11144 = vmatmul.bf16.gmra.mxu0 %v8614
    %v11145 = vpop.f32.mrf.mxu0
    %v11146 = vadd.f32 %v11133, %v11145
    %v11147 = vpop.f32.mrf.mxu0
    %11148 = vdwg.mxu0
    %11149 = vmatpush.bf16.msra.mxu0 %v10545
    %11150 = vmatpush.bf16.msra.mxu0 %v10541
    %11151 = vmatpush.bf16.msra.mxu0 %v10537
    %11152 = vmatpush.bf16.msra.mxu0 %v10533
    %11153 = vmatpush.bf16.msra.mxu0 %v10529
    %11154 = vmatpush.bf16.msra.mxu0 %v10525
    %11155 = vmatpush.bf16.msra.mxu0 %v10521
    %11156 = vmatpush.bf16.msra.mxu0 %v10517
    %11157 = vmatmul.bf16.gmra.mxu0 %v8615
    %v11158 = vpop.f32.mrf.mxu0
    %v11159 = vadd.f32 %v11146, %v11158
    %v11160 = vpop.f32.mrf.mxu0
    %11161 = vdwg.mxu0
    %11162 = vmatpush.bf16.msra.mxu0 %v10577
    %11163 = vmatpush.bf16.msra.mxu0 %v10573
    %11164 = vmatpush.bf16.msra.mxu0 %v10569
    %11165 = vmatpush.bf16.msra.mxu0 %v10565
    %11166 = vmatpush.bf16.msra.mxu0 %v10561
    %11167 = vmatpush.bf16.msra.mxu0 %v10557
    %11168 = vmatpush.bf16.msra.mxu0 %v10553
    %11169 = vmatpush.bf16.msra.mxu0 %v10549
    %11170 = vmatmul.bf16.gmra.mxu0 %v8616
    %v11171 = vpop.f32.mrf.mxu0
    %v11172 = vadd.f32 %v11159, %v11171
    %v11173 = vpop.f32.mrf.mxu0
    %11174 = vdwg.mxu0
    %11175 = vmatpush.bf16.msra.mxu0 %v10609
    %11176 = vmatpush.bf16.msra.mxu0 %v10605
    %11177 = vmatpush.bf16.msra.mxu0 %v10601
    %11178 = vmatpush.bf16.msra.mxu0 %v10597
    %11179 = vmatpush.bf16.msra.mxu0 %v10593
    %11180 = vmatpush.bf16.msra.mxu0 %v10589
    %11181 = vmatpush.bf16.msra.mxu0 %v10585
    %11182 = vmatpush.bf16.msra.mxu0 %v10581
    %11183 = vmatmul.bf16.gmra.mxu0 %v8617
    %v11184 = vpop.f32.mrf.mxu0
    %v11185 = vadd.f32 %v11172, %v11184
    %v11186 = vpop.f32.mrf.mxu0
    %11187 = vdwg.mxu0
    %11188 = vmatpush.bf16.msra.mxu0 0
    %11189 = vmatpush.bf16.msra.mxu0 0
    %11190 = vmatpush.bf16.msra.mxu0 0
    %11191 = vmatpush.bf16.msra.mxu0 0
    %11192 = vmatpush.bf16.msra.mxu0 %v10625
    %11193 = vmatpush.bf16.msra.mxu0 %v10621
    %11194 = vmatpush.bf16.msra.mxu0 %v10617
    %11195 = vmatpush.bf16.msra.mxu0 %v10613
    %11196 = vmatmul.bf16.gmra.mxu0 %v11030
    %v11197 = vpop.f32.mrf.mxu0
    %v11198 = vadd.f32 %v11185, %v11197
    %v11199 = vpop.f32.mrf.mxu0
    %11200 = vdwg.mxu0
    %11201 = vmatpush.bf16.msra.mxu0 %v10258
    %11202 = vmatpush.bf16.msra.mxu0 %v10254
    %11203 = vmatpush.bf16.msra.mxu0 %v10250
    %11204 = vmatpush.bf16.msra.mxu0 %v10246
    %11205 = vmatpush.bf16.msra.mxu0 %v10242
    %11206 = vmatpush.bf16.msra.mxu0 %v10238
    %11207 = vmatpush.bf16.msra.mxu0 %v10234
    %11208 = vmatpush.bf16.msra.mxu0 %v10230
    %11209 = vmatmul.bf16.gmra.mxu0 %v8606
    %v11210 = vpop.f32.mrf.mxu0
    %v11211 = vadd.f32 %v9022, %v11210
    %v11212 = vpop.f32.mrf.mxu0
    %11213 = vdwg.mxu0
    %11214 = vmatpush.bf16.msra.mxu0 %v10290
    %11215 = vmatpush.bf16.msra.mxu0 %v10286
    %11216 = vmatpush.bf16.msra.mxu0 %v10282
    %11217 = vmatpush.bf16.msra.mxu0 %v10278
    %11218 = vmatpush.bf16.msra.mxu0 %v10274
    %11219 = vmatpush.bf16.msra.mxu0 %v10270
    %11220 = vmatpush.bf16.msra.mxu0 %v10266
    %11221 = vmatpush.bf16.msra.mxu0 %v10262
    %11222 = vmatmul.bf16.gmra.mxu0 %v8607
    %v11223 = vpop.f32.mrf.mxu0
    %v11224 = vadd.f32 %v11211, %v11223
    %v11225 = vpop.f32.mrf.mxu0
    %11226 = vdwg.mxu0
    %11227 = vmatpush.bf16.msra.mxu0 %v10322
    %11228 = vmatpush.bf16.msra.mxu0 %v10318
    %11229 = vmatpush.bf16.msra.mxu0 %v10314
    %11230 = vmatpush.bf16.msra.mxu0 %v10310
    %11231 = vmatpush.bf16.msra.mxu0 %v10306
    %11232 = vmatpush.bf16.msra.mxu0 %v10302
    %11233 = vmatpush.bf16.msra.mxu0 %v10298
    %11234 = vmatpush.bf16.msra.mxu0 %v10294
    %11235 = vmatmul.bf16.gmra.mxu0 %v8608
    %v11236 = vpop.f32.mrf.mxu0
    %v11237 = vadd.f32 %v11224, %v11236
    %v11238 = vpop.f32.mrf.mxu0
    %11239 = vdwg.mxu0
    %11240 = vmatpush.bf16.msra.mxu0 %v10354
    %11241 = vmatpush.bf16.msra.mxu0 %v10350
    %11242 = vmatpush.bf16.msra.mxu0 %v10346
    %11243 = vmatpush.bf16.msra.mxu0 %v10342
    %11244 = vmatpush.bf16.msra.mxu0 %v10338
    %11245 = vmatpush.bf16.msra.mxu0 %v10334
    %11246 = vmatpush.bf16.msra.mxu0 %v10330
    %11247 = vmatpush.bf16.msra.mxu0 %v10326
    %11248 = vmatmul.bf16.gmra.mxu0 %v8609
    %v11249 = vpop.f32.mrf.mxu0
    %v11250 = vadd.f32 %v11237, %v11249
    %v11251 = vpop.f32.mrf.mxu0
    %11252 = vdwg.mxu0
    %11253 = vmatpush.bf16.msra.mxu0 %v10386
    %11254 = vmatpush.bf16.msra.mxu0 %v10382
    %11255 = vmatpush.bf16.msra.mxu0 %v10378
    %11256 = vmatpush.bf16.msra.mxu0 %v10374
    %11257 = vmatpush.bf16.msra.mxu0 %v10370
    %11258 = vmatpush.bf16.msra.mxu0 %v10366
    %11259 = vmatpush.bf16.msra.mxu0 %v10362
    %11260 = vmatpush.bf16.msra.mxu0 %v10358
    %11261 = vmatmul.bf16.gmra.mxu0 %v8610
    %v11262 = vpop.f32.mrf.mxu0
    %v11263 = vadd.f32 %v11250, %v11262
    %v11264 = vpop.f32.mrf.mxu0
    %11265 = vdwg.mxu0
    %11266 = vmatpush.bf16.msra.mxu0 %v10418
    %11267 = vmatpush.bf16.msra.mxu0 %v10414
    %11268 = vmatpush.bf16.msra.mxu0 %v10410
    %11269 = vmatpush.bf16.msra.mxu0 %v10406
    %11270 = vmatpush.bf16.msra.mxu0 %v10402
    %11271 = vmatpush.bf16.msra.mxu0 %v10398
    %11272 = vmatpush.bf16.msra.mxu0 %v10394
    %11273 = vmatpush.bf16.msra.mxu0 %v10390
    %11274 = vmatmul.bf16.gmra.mxu0 %v8611
    %v11275 = vpop.f32.mrf.mxu0
    %v11276 = vadd.f32 %v11263, %v11275
    %v11277 = vpop.f32.mrf.mxu0
    %11278 = vdwg.mxu0
    %11279 = vmatpush.bf16.msra.mxu0 %v10450
    %11280 = vmatpush.bf16.msra.mxu0 %v10446
    %11281 = vmatpush.bf16.msra.mxu0 %v10442
    %11282 = vmatpush.bf16.msra.mxu0 %v10438
    %11283 = vmatpush.bf16.msra.mxu0 %v10434
    %11284 = vmatpush.bf16.msra.mxu0 %v10430
    %11285 = vmatpush.bf16.msra.mxu0 %v10426
    %11286 = vmatpush.bf16.msra.mxu0 %v10422
    %11287 = vmatmul.bf16.gmra.mxu0 %v8612
    %v11288 = vpop.f32.mrf.mxu0
    %v11289 = vadd.f32 %v11276, %v11288
    %v11290 = vpop.f32.mrf.mxu0
    %11291 = vdwg.mxu0
    %11292 = vmatpush.bf16.msra.mxu0 %v10482
    %11293 = vmatpush.bf16.msra.mxu0 %v10478
    %11294 = vmatpush.bf16.msra.mxu0 %v10474
    %11295 = vmatpush.bf16.msra.mxu0 %v10470
    %11296 = vmatpush.bf16.msra.mxu0 %v10466
    %11297 = vmatpush.bf16.msra.mxu0 %v10462
    %11298 = vmatpush.bf16.msra.mxu0 %v10458
    %11299 = vmatpush.bf16.msra.mxu0 %v10454
    %11300 = vmatmul.bf16.gmra.mxu0 %v8613
    %v11301 = vpop.f32.mrf.mxu0
    %v11302 = vadd.f32 %v11289, %v11301
    %v11303 = vpop.f32.mrf.mxu0
    %11304 = vdwg.mxu0
    %11305 = vmatpush.bf16.msra.mxu0 %v10514
    %11306 = vmatpush.bf16.msra.mxu0 %v10510
    %11307 = vmatpush.bf16.msra.mxu0 %v10506
    %11308 = vmatpush.bf16.msra.mxu0 %v10502
    %11309 = vmatpush.bf16.msra.mxu0 %v10498
    %11310 = vmatpush.bf16.msra.mxu0 %v10494
    %11311 = vmatpush.bf16.msra.mxu0 %v10490
    %11312 = vmatpush.bf16.msra.mxu0 %v10486
    %11313 = vmatmul.bf16.gmra.mxu0 %v8614
    %v11314 = vpop.f32.mrf.mxu0
    %v11315 = vadd.f32 %v11302, %v11314
    %v11316 = vpop.f32.mrf.mxu0
    %11317 = vdwg.mxu0
    %11318 = vmatpush.bf16.msra.mxu0 %v10546
    %11319 = vmatpush.bf16.msra.mxu0 %v10542
    %11320 = vmatpush.bf16.msra.mxu0 %v10538
    %11321 = vmatpush.bf16.msra.mxu0 %v10534
    %11322 = vmatpush.bf16.msra.mxu0 %v10530
    %11323 = vmatpush.bf16.msra.mxu0 %v10526
    %11324 = vmatpush.bf16.msra.mxu0 %v10522
    %11325 = vmatpush.bf16.msra.mxu0 %v10518
    %11326 = vmatmul.bf16.gmra.mxu0 %v8615
    %v11327 = vpop.f32.mrf.mxu0
    %v11328 = vadd.f32 %v11315, %v11327
    %v11329 = vpop.f32.mrf.mxu0
    %11330 = vdwg.mxu0
    %11331 = vmatpush.bf16.msra.mxu0 %v10578
    %11332 = vmatpush.bf16.msra.mxu0 %v10574
    %11333 = vmatpush.bf16.msra.mxu0 %v10570
    %11334 = vmatpush.bf16.msra.mxu0 %v10566
    %11335 = vmatpush.bf16.msra.mxu0 %v10562
    %11336 = vmatpush.bf16.msra.mxu0 %v10558
    %11337 = vmatpush.bf16.msra.mxu0 %v10554
    %11338 = vmatpush.bf16.msra.mxu0 %v10550
    %11339 = vmatmul.bf16.gmra.mxu0 %v8616
    %v11340 = vpop.f32.mrf.mxu0
    %v11341 = vadd.f32 %v11328, %v11340
    %v11342 = vpop.f32.mrf.mxu0
    %11343 = vdwg.mxu0
    %11344 = vmatpush.bf16.msra.mxu0 %v10610
    %11345 = vmatpush.bf16.msra.mxu0 %v10606
    %11346 = vmatpush.bf16.msra.mxu0 %v10602
    %11347 = vmatpush.bf16.msra.mxu0 %v10598
    %11348 = vmatpush.bf16.msra.mxu0 %v10594
    %11349 = vmatpush.bf16.msra.mxu0 %v10590
    %11350 = vmatpush.bf16.msra.mxu0 %v10586
    %11351 = vmatpush.bf16.msra.mxu0 %v10582
    %11352 = vmatmul.bf16.gmra.mxu0 %v8617
    %v11353 = vpop.f32.mrf.mxu0
    %v11354 = vadd.f32 %v11341, %v11353
    %v11355 = vpop.f32.mrf.mxu0
    %11356 = vdwg.mxu0
    %11357 = vmatpush.bf16.msra.mxu0 0
    %11358 = vmatpush.bf16.msra.mxu0 0
    %11359 = vmatpush.bf16.msra.mxu0 0
    %11360 = vmatpush.bf16.msra.mxu0 0
    %11361 = vmatpush.bf16.msra.mxu0 %v10626
    %11362 = vmatpush.bf16.msra.mxu0 %v10622
    %11363 = vmatpush.bf16.msra.mxu0 %v10618
    %11364 = vmatpush.bf16.msra.mxu0 %v10614
    %11365 = vmatmul.bf16.gmra.mxu0 %v11030
    %v11366 = vpop.f32.mrf.mxu0
    %v11367 = vadd.f32 %v11354, %v11366
    %v11368 = vpop.f32.mrf.mxu0
    %11369 = vdwg.mxu0
    %11370 = vmatpush.bf16.msra.mxu0 %v10259
    %11371 = vmatpush.bf16.msra.mxu0 %v10255
    %11372 = vmatpush.bf16.msra.mxu0 %v10251
    %11373 = vmatpush.bf16.msra.mxu0 %v10247
    %11374 = vmatpush.bf16.msra.mxu0 %v10243
    %11375 = vmatpush.bf16.msra.mxu0 %v10239
    %11376 = vmatpush.bf16.msra.mxu0 %v10235
    %11377 = vmatpush.bf16.msra.mxu0 %v10231
    %11378 = vmatmul.bf16.gmra.mxu0 %v8606
    %v11379 = vpop.f32.mrf.mxu0
    %v11380 = vadd.f32 %v9023, %v11379
    %v11381 = vpop.f32.mrf.mxu0
    %11382 = vdwg.mxu0
    %11383 = vmatpush.bf16.msra.mxu0 %v10291
    %11384 = vmatpush.bf16.msra.mxu0 %v10287
    %11385 = vmatpush.bf16.msra.mxu0 %v10283
    %11386 = vmatpush.bf16.msra.mxu0 %v10279
    %11387 = vmatpush.bf16.msra.mxu0 %v10275
    %11388 = vmatpush.bf16.msra.mxu0 %v10271
    %11389 = vmatpush.bf16.msra.mxu0 %v10267
    %11390 = vmatpush.bf16.msra.mxu0 %v10263
    %11391 = vmatmul.bf16.gmra.mxu0 %v8607
    %v11392 = vpop.f32.mrf.mxu0
    %v11393 = vadd.f32 %v11380, %v11392
    %v11394 = vpop.f32.mrf.mxu0
    %11395 = vdwg.mxu0
    %11396 = vmatpush.bf16.msra.mxu0 %v10323
    %11397 = vmatpush.bf16.msra.mxu0 %v10319
    %11398 = vmatpush.bf16.msra.mxu0 %v10315
    %11399 = vmatpush.bf16.msra.mxu0 %v10311
    %11400 = vmatpush.bf16.msra.mxu0 %v10307
    %11401 = vmatpush.bf16.msra.mxu0 %v10303
    %11402 = vmatpush.bf16.msra.mxu0 %v10299
    %11403 = vmatpush.bf16.msra.mxu0 %v10295
    %11404 = vmatmul.bf16.gmra.mxu0 %v8608
    %v11405 = vpop.f32.mrf.mxu0
    %v11406 = vadd.f32 %v11393, %v11405
    %v11407 = vpop.f32.mrf.mxu0
    %11408 = vdwg.mxu0
    %11409 = vmatpush.bf16.msra.mxu0 %v10355
    %11410 = vmatpush.bf16.msra.mxu0 %v10351
    %11411 = vmatpush.bf16.msra.mxu0 %v10347
    %11412 = vmatpush.bf16.msra.mxu0 %v10343
    %11413 = vmatpush.bf16.msra.mxu0 %v10339
    %11414 = vmatpush.bf16.msra.mxu0 %v10335
    %11415 = vmatpush.bf16.msra.mxu0 %v10331
    %11416 = vmatpush.bf16.msra.mxu0 %v10327
    %11417 = vmatmul.bf16.gmra.mxu0 %v8609
    %v11418 = vpop.f32.mrf.mxu0
    %v11419 = vadd.f32 %v11406, %v11418
    %v11420 = vpop.f32.mrf.mxu0
    %11421 = vdwg.mxu0
    %11422 = vmatpush.bf16.msra.mxu0 %v10387
    %11423 = vmatpush.bf16.msra.mxu0 %v10383
    %11424 = vmatpush.bf16.msra.mxu0 %v10379
    %11425 = vmatpush.bf16.msra.mxu0 %v10375
    %11426 = vmatpush.bf16.msra.mxu0 %v10371
    %11427 = vmatpush.bf16.msra.mxu0 %v10367
    %11428 = vmatpush.bf16.msra.mxu0 %v10363
    %11429 = vmatpush.bf16.msra.mxu0 %v10359
    %11430 = vmatmul.bf16.gmra.mxu0 %v8610
    %v11431 = vpop.f32.mrf.mxu0
    %v11432 = vadd.f32 %v11419, %v11431
    %v11433 = vpop.f32.mrf.mxu0
    %11434 = vdwg.mxu0
    %11435 = vmatpush.bf16.msra.mxu0 %v10419
    %11436 = vmatpush.bf16.msra.mxu0 %v10415
    %11437 = vmatpush.bf16.msra.mxu0 %v10411
    %11438 = vmatpush.bf16.msra.mxu0 %v10407
    %11439 = vmatpush.bf16.msra.mxu0 %v10403
    %11440 = vmatpush.bf16.msra.mxu0 %v10399
    %11441 = vmatpush.bf16.msra.mxu0 %v10395
    %11442 = vmatpush.bf16.msra.mxu0 %v10391
    %11443 = vmatmul.bf16.gmra.mxu0 %v8611
    %v11444 = vpop.f32.mrf.mxu0
    %v11445 = vadd.f32 %v11432, %v11444
    %v11446 = vpop.f32.mrf.mxu0
    %11447 = vdwg.mxu0
    %11448 = vmatpush.bf16.msra.mxu0 %v10451
    %11449 = vmatpush.bf16.msra.mxu0 %v10447
    %11450 = vmatpush.bf16.msra.mxu0 %v10443
    %11451 = vmatpush.bf16.msra.mxu0 %v10439
    %11452 = vmatpush.bf16.msra.mxu0 %v10435
    %11453 = vmatpush.bf16.msra.mxu0 %v10431
    %11454 = vmatpush.bf16.msra.mxu0 %v10427
    %11455 = vmatpush.bf16.msra.mxu0 %v10423
    %11456 = vmatmul.bf16.gmra.mxu0 %v8612
    %v11457 = vpop.f32.mrf.mxu0
    %v11458 = vadd.f32 %v11445, %v11457
    %v11459 = vpop.f32.mrf.mxu0
    %11460 = vdwg.mxu0
    %11461 = vmatpush.bf16.msra.mxu0 %v10483
    %11462 = vmatpush.bf16.msra.mxu0 %v10479
    %11463 = vmatpush.bf16.msra.mxu0 %v10475
    %11464 = vmatpush.bf16.msra.mxu0 %v10471
    %11465 = vmatpush.bf16.msra.mxu0 %v10467
    %11466 = vmatpush.bf16.msra.mxu0 %v10463
    %11467 = vmatpush.bf16.msra.mxu0 %v10459
    %11468 = vmatpush.bf16.msra.mxu0 %v10455
    %11469 = vmatmul.bf16.gmra.mxu0 %v8613
    %v11470 = vpop.f32.mrf.mxu0
    %v11471 = vadd.f32 %v11458, %v11470
    %v11472 = vpop.f32.mrf.mxu0
    %11473 = vdwg.mxu0
    %11474 = vmatpush.bf16.msra.mxu0 %v10515
    %11475 = vmatpush.bf16.msra.mxu0 %v10511
    %11476 = vmatpush.bf16.msra.mxu0 %v10507
    %11477 = vmatpush.bf16.msra.mxu0 %v10503
    %11478 = vmatpush.bf16.msra.mxu0 %v10499
    %11479 = vmatpush.bf16.msra.mxu0 %v10495
    %11480 = vmatpush.bf16.msra.mxu0 %v10491
    %11481 = vmatpush.bf16.msra.mxu0 %v10487
    %11482 = vmatmul.bf16.gmra.mxu0 %v8614
    %v11483 = vpop.f32.mrf.mxu0
    %v11484 = vadd.f32 %v11471, %v11483
    %v11485 = vpop.f32.mrf.mxu0
    %11486 = vdwg.mxu0
    %11487 = vmatpush.bf16.msra.mxu0 %v10547
    %11488 = vmatpush.bf16.msra.mxu0 %v10543
    %11489 = vmatpush.bf16.msra.mxu0 %v10539
    %11490 = vmatpush.bf16.msra.mxu0 %v10535
    %11491 = vmatpush.bf16.msra.mxu0 %v10531
    %11492 = vmatpush.bf16.msra.mxu0 %v10527
    %11493 = vmatpush.bf16.msra.mxu0 %v10523
    %11494 = vmatpush.bf16.msra.mxu0 %v10519
    %11495 = vmatmul.bf16.gmra.mxu0 %v8615
    %v11496 = vpop.f32.mrf.mxu0
    %v11497 = vadd.f32 %v11484, %v11496
    %v11498 = vpop.f32.mrf.mxu0
    %11499 = vdwg.mxu0
    %11500 = vmatpush.bf16.msra.mxu0 %v10579
    %11501 = vmatpush.bf16.msra.mxu0 %v10575
    %11502 = vmatpush.bf16.msra.mxu0 %v10571
    %11503 = vmatpush.bf16.msra.mxu0 %v10567
    %11504 = vmatpush.bf16.msra.mxu0 %v10563
    %11505 = vmatpush.bf16.msra.mxu0 %v10559
    %11506 = vmatpush.bf16.msra.mxu0 %v10555
    %11507 = vmatpush.bf16.msra.mxu0 %v10551
    %11508 = vmatmul.bf16.gmra.mxu0 %v8616
    %v11509 = vpop.f32.mrf.mxu0
    %v11510 = vadd.f32 %v11497, %v11509
    %v11511 = vpop.f32.mrf.mxu0
    %11512 = vdwg.mxu0
    %11513 = vmatpush.bf16.msra.mxu0 %v10611
    %11514 = vmatpush.bf16.msra.mxu0 %v10607
    %11515 = vmatpush.bf16.msra.mxu0 %v10603
    %11516 = vmatpush.bf16.msra.mxu0 %v10599
    %11517 = vmatpush.bf16.msra.mxu0 %v10595
    %11518 = vmatpush.bf16.msra.mxu0 %v10591
    %11519 = vmatpush.bf16.msra.mxu0 %v10587
    %11520 = vmatpush.bf16.msra.mxu0 %v10583
    %11521 = vmatmul.bf16.gmra.mxu0 %v8617
    %v11522 = vpop.f32.mrf.mxu0
    %v11523 = vadd.f32 %v11510, %v11522
    %v11524 = vpop.f32.mrf.mxu0
    %11525 = vdwg.mxu0
    %11526 = vmatpush.bf16.msra.mxu0 0
    %11527 = vmatpush.bf16.msra.mxu0 0
    %11528 = vmatpush.bf16.msra.mxu0 0
    %11529 = vmatpush.bf16.msra.mxu0 0
    %11530 = vmatpush.bf16.msra.mxu0 %v10627
    %11531 = vmatpush.bf16.msra.mxu0 %v10623
    %11532 = vmatpush.bf16.msra.mxu0 %v10619
    %11533 = vmatpush.bf16.msra.mxu0 %v10615
    %11534 = vmatmul.bf16.gmra.mxu0 %v11030
    %v11535 = vpop.f32.mrf.mxu0
    %v11536 = vadd.f32 %v11523, %v11535
    %v11537 = vpop.f32.mrf.mxu0
    %11538 = vdwg.mxu0
    %11539 = vmatpush.bf16.msra.mxu0 %v10260
    %11540 = vmatpush.bf16.msra.mxu0 %v10256
    %11541 = vmatpush.bf16.msra.mxu0 %v10252
    %11542 = vmatpush.bf16.msra.mxu0 %v10248
    %11543 = vmatpush.bf16.msra.mxu0 %v10244
    %11544 = vmatpush.bf16.msra.mxu0 %v10240
    %11545 = vmatpush.bf16.msra.mxu0 %v10236
    %11546 = vmatpush.bf16.msra.mxu0 %v10232
    %11547 = vmatmul.bf16.gmra.mxu0 %v8606
    %v11548 = vpop.f32.mrf.mxu0
    %v11549 = vadd.f32 %v9024, %v11548
    %v11550 = vpop.f32.mrf.mxu0
    %11551 = vdwg.mxu0
    %11552 = vmatpush.bf16.msra.mxu0 %v10292
    %11553 = vmatpush.bf16.msra.mxu0 %v10288
    %11554 = vmatpush.bf16.msra.mxu0 %v10284
    %11555 = vmatpush.bf16.msra.mxu0 %v10280
    %11556 = vmatpush.bf16.msra.mxu0 %v10276
    %11557 = vmatpush.bf16.msra.mxu0 %v10272
    %11558 = vmatpush.bf16.msra.mxu0 %v10268
    %11559 = vmatpush.bf16.msra.mxu0 %v10264
    %11560 = vmatmul.bf16.gmra.mxu0 %v8607
    %v11561 = vpop.f32.mrf.mxu0
    %v11562 = vadd.f32 %v11549, %v11561
    %v11563 = vpop.f32.mrf.mxu0
    %11564 = vdwg.mxu0
    %11565 = vmatpush.bf16.msra.mxu0 %v10324
    %11566 = vmatpush.bf16.msra.mxu0 %v10320
    %11567 = vmatpush.bf16.msra.mxu0 %v10316
    %11568 = vmatpush.bf16.msra.mxu0 %v10312
    %11569 = vmatpush.bf16.msra.mxu0 %v10308
    %11570 = vmatpush.bf16.msra.mxu0 %v10304
    %11571 = vmatpush.bf16.msra.mxu0 %v10300
    %11572 = vmatpush.bf16.msra.mxu0 %v10296
    %11573 = vmatmul.bf16.gmra.mxu0 %v8608
    %v11574 = vpop.f32.mrf.mxu0
    %v11575 = vadd.f32 %v11562, %v11574
    %v11576 = vpop.f32.mrf.mxu0
    %11577 = vdwg.mxu0
    %11578 = vmatpush.bf16.msra.mxu0 %v10356
    %11579 = vmatpush.bf16.msra.mxu0 %v10352
    %11580 = vmatpush.bf16.msra.mxu0 %v10348
    %11581 = vmatpush.bf16.msra.mxu0 %v10344
    %11582 = vmatpush.bf16.msra.mxu0 %v10340
    %11583 = vmatpush.bf16.msra.mxu0 %v10336
    %11584 = vmatpush.bf16.msra.mxu0 %v10332
    %11585 = vmatpush.bf16.msra.mxu0 %v10328
    %11586 = vmatmul.bf16.gmra.mxu0 %v8609
    %v11587 = vpop.f32.mrf.mxu0
    %v11588 = vadd.f32 %v11575, %v11587
    %v11589 = vpop.f32.mrf.mxu0
    %11590 = vdwg.mxu0
    %11591 = vmatpush.bf16.msra.mxu0 %v10388
    %11592 = vmatpush.bf16.msra.mxu0 %v10384
    %11593 = vmatpush.bf16.msra.mxu0 %v10380
    %11594 = vmatpush.bf16.msra.mxu0 %v10376
    %11595 = vmatpush.bf16.msra.mxu0 %v10372
    %11596 = vmatpush.bf16.msra.mxu0 %v10368
    %11597 = vmatpush.bf16.msra.mxu0 %v10364
    %11598 = vmatpush.bf16.msra.mxu0 %v10360
    %11599 = vmatmul.bf16.gmra.mxu0 %v8610
    %v11600 = vpop.f32.mrf.mxu0
    %v11601 = vadd.f32 %v11588, %v11600
    %v11602 = vpop.f32.mrf.mxu0
    %11603 = vdwg.mxu0
    %11604 = vmatpush.bf16.msra.mxu0 %v10420
    %11605 = vmatpush.bf16.msra.mxu0 %v10416
    %11606 = vmatpush.bf16.msra.mxu0 %v10412
    %11607 = vmatpush.bf16.msra.mxu0 %v10408
    %11608 = vmatpush.bf16.msra.mxu0 %v10404
    %11609 = vmatpush.bf16.msra.mxu0 %v10400
    %11610 = vmatpush.bf16.msra.mxu0 %v10396
    %11611 = vmatpush.bf16.msra.mxu0 %v10392
    %11612 = vmatmul.bf16.gmra.mxu0 %v8611
    %v11613 = vpop.f32.mrf.mxu0
    %v11614 = vadd.f32 %v11601, %v11613
    %v11615 = vpop.f32.mrf.mxu0
    %11616 = vdwg.mxu0
    %11617 = vmatpush.bf16.msra.mxu0 %v10452
    %11618 = vmatpush.bf16.msra.mxu0 %v10448
    %11619 = vmatpush.bf16.msra.mxu0 %v10444
    %11620 = vmatpush.bf16.msra.mxu0 %v10440
    %11621 = vmatpush.bf16.msra.mxu0 %v10436
    %11622 = vmatpush.bf16.msra.mxu0 %v10432
    %11623 = vmatpush.bf16.msra.mxu0 %v10428
    %11624 = vmatpush.bf16.msra.mxu0 %v10424
    %11625 = vmatmul.bf16.gmra.mxu0 %v8612
    %v11626 = vpop.f32.mrf.mxu0
    %v11627 = vadd.f32 %v11614, %v11626
    %v11628 = vpop.f32.mrf.mxu0
    %11629 = vdwg.mxu0
    %11630 = vmatpush.bf16.msra.mxu0 %v10484
    %11631 = vmatpush.bf16.msra.mxu0 %v10480
    %11632 = vmatpush.bf16.msra.mxu0 %v10476
    %11633 = vmatpush.bf16.msra.mxu0 %v10472
    %11634 = vmatpush.bf16.msra.mxu0 %v10468
    %11635 = vmatpush.bf16.msra.mxu0 %v10464
    %11636 = vmatpush.bf16.msra.mxu0 %v10460
    %11637 = vmatpush.bf16.msra.mxu0 %v10456
    %11638 = vmatmul.bf16.gmra.mxu0 %v8613
    %v11639 = vpop.f32.mrf.mxu0
    %v11640 = vadd.f32 %v11627, %v11639
    %v11641 = vpop.f32.mrf.mxu0
    %11642 = vdwg.mxu0
    %11643 = vmatpush.bf16.msra.mxu0 %v10516
    %11644 = vmatpush.bf16.msra.mxu0 %v10512
    %11645 = vmatpush.bf16.msra.mxu0 %v10508
    %11646 = vmatpush.bf16.msra.mxu0 %v10504
    %11647 = vmatpush.bf16.msra.mxu0 %v10500
    %11648 = vmatpush.bf16.msra.mxu0 %v10496
    %11649 = vmatpush.bf16.msra.mxu0 %v10492
    %11650 = vmatpush.bf16.msra.mxu0 %v10488
    %11651 = vmatmul.bf16.gmra.mxu0 %v8614
    %v11652 = vpop.f32.mrf.mxu0
    %v11653 = vadd.f32 %v11640, %v11652
    %v11654 = vpop.f32.mrf.mxu0
    %11655 = vdwg.mxu0
    %11656 = vmatpush.bf16.msra.mxu0 %v10548
    %11657 = vmatpush.bf16.msra.mxu0 %v10544
    %11658 = vmatpush.bf16.msra.mxu0 %v10540
    %11659 = vmatpush.bf16.msra.mxu0 %v10536
    %11660 = vmatpush.bf16.msra.mxu0 %v10532
    %11661 = vmatpush.bf16.msra.mxu0 %v10528
    %11662 = vmatpush.bf16.msra.mxu0 %v10524
    %11663 = vmatpush.bf16.msra.mxu0 %v10520
    %11664 = vmatmul.bf16.gmra.mxu0 %v8615
    %v11665 = vpop.f32.mrf.mxu0
    %v11666 = vadd.f32 %v11653, %v11665
    %v11667 = vpop.f32.mrf.mxu0
    %11668 = vdwg.mxu0
    %11669 = vmatpush.bf16.msra.mxu0 %v10580
    %11670 = vmatpush.bf16.msra.mxu0 %v10576
    %11671 = vmatpush.bf16.msra.mxu0 %v10572
    %11672 = vmatpush.bf16.msra.mxu0 %v10568
    %11673 = vmatpush.bf16.msra.mxu0 %v10564
    %11674 = vmatpush.bf16.msra.mxu0 %v10560
    %11675 = vmatpush.bf16.msra.mxu0 %v10556
    %11676 = vmatpush.bf16.msra.mxu0 %v10552
    %11677 = vmatmul.bf16.gmra.mxu0 %v8616
    %v11678 = vpop.f32.mrf.mxu0
    %v11679 = vadd.f32 %v11666, %v11678
    %v11680 = vpop.f32.mrf.mxu0
    %11681 = vdwg.mxu0
    %11682 = vmatpush.bf16.msra.mxu0 %v10612
    %11683 = vmatpush.bf16.msra.mxu0 %v10608
    %11684 = vmatpush.bf16.msra.mxu0 %v10604
    %11685 = vmatpush.bf16.msra.mxu0 %v10600
    %11686 = vmatpush.bf16.msra.mxu0 %v10596
    %11687 = vmatpush.bf16.msra.mxu0 %v10592
    %11688 = vmatpush.bf16.msra.mxu0 %v10588
    %11689 = vmatpush.bf16.msra.mxu0 %v10584
    %11690 = vmatmul.bf16.gmra.mxu0 %v8617
    %v11691 = vpop.f32.mrf.mxu0
    %v11692 = vadd.f32 %v11679, %v11691
    %v11693 = vpop.f32.mrf.mxu0
    %11694 = vdwg.mxu0
    %11695 = vmatpush.bf16.msra.mxu0 0
    %11696 = vmatpush.bf16.msra.mxu0 0
    %11697 = vmatpush.bf16.msra.mxu0 0
    %11698 = vmatpush.bf16.msra.mxu0 0
    %11699 = vmatpush.bf16.msra.mxu0 %v10628
    %11700 = vmatpush.bf16.msra.mxu0 %v10624
    %11701 = vmatpush.bf16.msra.mxu0 %v10620
    %11702 = vmatpush.bf16.msra.mxu0 %v10616
    %11703 = vmatmul.bf16.gmra.mxu0 %v11030
    %v11704 = vpop.f32.mrf.mxu0
    %v11705 = vadd.f32 %v11692, %v11704
    %v11706 = vpop.f32.mrf.mxu0
    %11707 = vdwg.mxu0
    %v11708 = vmax.f32 %v11198, 0.0
    %v11709 = vmax.f32 %v11367, 0.0
    %v11710 = vmax.f32 %v11536, 0.0
    %v11711 = vmax.f32 %v11705, 0.0
    %v11712 = vpack.c.bf16 %v11708, %v11708
    %v11713 = vpack.c.bf16 %v11709, %v11709
    %v11714 = vpack.c.bf16 %v11710, %v11710
    %v11715 = vpack.c.bf16 %v11711, %v11711
    %v11716 = vld [vmem:[%s7] sm:$0xf]
    %v11717 = vld [vmem:[%s7 + $0x4] sm:$0xf]
    %v11718 = vld [vmem:[%s7 + $0x8] sm:$0xf]
    %v11719 = vld [vmem:[%s7 + $0xc] sm:$0xf]
    %v11720 = vld [vmem:[%s7 + $0x10] sm:$0xf]
    %v11721 = vld [vmem:[%s7 + $0x14] sm:$0xf]
    %v11722 = vld [vmem:[%s7 + $0x18] sm:$0xf]
    %v11723 = vld [vmem:[%s7 + $0x1c] sm:$0xf]
    %v11724 = vld [vmem:[%s7 + $0x20] sm:$0xf]
    %v11725 = vld [vmem:[%s7 + $0x24] sm:$0xf]
    %v11726 = vld [vmem:[%s7 + $0x28] sm:$0xf]
    %v11727 = vld [vmem:[%s7 + $0x2c] sm:$0xf]
    %v11728 = vld [vmem:[%s7 + $0x30] sm:$0xf]
    %v11729 = vld [vmem:[%s7 + $0x34] sm:$0xf]
    %v11730 = vld [vmem:[%s7 + $0x38] sm:$0xf]
    %v11731 = vld [vmem:[%s7 + $0x3c] sm:$0xf]
    %v11732 = vld [vmem:[%s7 + $0x40] sm:$0xf]
    %v11733 = vld [vmem:[%s7 + $0x44] sm:$0xf]
    %v11734 = vld [vmem:[%s7 + $0x48] sm:$0xf]
    %v11735 = vld [vmem:[%s7 + $0x4c] sm:$0xf]
    %v11736 = vld [vmem:[%s7 + $0x50] sm:$0xf]
    %v11737 = vld [vmem:[%s7 + $0x54] sm:$0xf]
    %v11738 = vld [vmem:[%s7 + $0x58] sm:$0xf]
    %v11739 = vld [vmem:[%s7 + $0x5c] sm:$0xf]
    %v11740 = vld [vmem:[%s7 + $0x60] sm:$0xf]
    %v11741 = vld [vmem:[%s7 + $0x64] sm:$0xf]
    %v11742 = vld [vmem:[%s7 + $0x68] sm:$0xf]
    %v11743 = vld [vmem:[%s7 + $0x6c] sm:$0xf]
    %v11744 = vld [vmem:[%s7 + $0x70] sm:$0xf]
    %v11745 = vld [vmem:[%s7 + $0x74] sm:$0xf]
    %v11746 = vld [vmem:[%s7 + $0x78] sm:$0xf]
    %v11747 = vld [vmem:[%s7 + $0x7c] sm:$0xf]
    %v11748 = vld [vmem:[%s7 + $0x80] sm:$0xf]
    %v11749 = vld [vmem:[%s7 + $0x84] sm:$0xf]
    %v11750 = vld [vmem:[%s7 + $0x88] sm:$0xf]
    %v11751 = vld [vmem:[%s7 + $0x8c] sm:$0xf]
    %v11752 = vld [vmem:[%s7 + $0x90] sm:$0xf]
    %v11753 = vld [vmem:[%s7 + $0x94] sm:$0xf]
    %v11754 = vld [vmem:[%s7 + $0x98] sm:$0xf]
    %v11755 = vld [vmem:[%s7 + $0x9c] sm:$0xf]
    %v11756 = vld [vmem:[%s7 + $0xa0] sm:$0xf]
    %v11757 = vld [vmem:[%s7 + $0xa4] sm:$0xf]
    %v11758 = vld [vmem:[%s7 + $0xa8] sm:$0xf]
    %v11759 = vld [vmem:[%s7 + $0xac] sm:$0xf]
    %v11760 = vld [vmem:[%s7 + $0xb0] sm:$0xf]
    %v11761 = vld [vmem:[%s7 + $0xb4] sm:$0xf]
    %v11762 = vld [vmem:[%s7 + $0xb8] sm:$0xf]
    %v11763 = vld [vmem:[%s7 + $0xbc] sm:$0xf]
    %v11764 = vld [vmem:[%s7 + $0xc0] sm:$0xf]
    %v11765 = vld [vmem:[%s7 + $0xc4] sm:$0xf]
    %v11766 = vld [vmem:[%s7 + $0xc8] sm:$0xf]
    %v11767 = vld [vmem:[%s7 + $0xcc] sm:$0xf]
    %v11768 = vld [vmem:[%s7 + $0xd0] sm:$0xf]
    %v11769 = vld [vmem:[%s7 + $0xd4] sm:$0xf]
    %v11770 = vld [vmem:[%s7 + $0xd8] sm:$0xf]
    %v11771 = vld [vmem:[%s7 + $0xdc] sm:$0xf]
    %v11772 = vld [vmem:[%s7 + $0xe0] sm:$0xf]
    %v11773 = vld [vmem:[%s7 + $0xe4] sm:$0xf]
    %v11774 = vld [vmem:[%s7 + $0xe8] sm:$0xf]
    %v11775 = vld [vmem:[%s7 + $0xec] sm:$0xf]
    %v11776 = vld [vmem:[%s7 + $0xf0] sm:$0xf]
    %v11777 = vld [vmem:[%s7 + $0xf4] sm:$0xf]
    %v11778 = vld [vmem:[%s7 + $0xf8] sm:$0x3]
    %v11779 = vld [vmem:[%s8] sm:$0x1]
    %v11781 = vperm.slane %v11779, 0
    %v11846 = vunpack.c.l.b16 %v11716
    %v11847 = vunpack.c.l.b16 %v11717
    %v11848 = vunpack.c.l.b16 %v11718
    %v11849 = vunpack.c.l.b16 %v11719
    %v11850 = vunpack.c.l.b16 %v11720
    %v11851 = vunpack.c.l.b16 %v11721
    %v11852 = vunpack.c.l.b16 %v11722
    %v11853 = vunpack.c.l.b16 %v11723
    %v11854 = vunpack.c.l.b16 %v11724
    %v11855 = vunpack.c.l.b16 %v11725
    %v11856 = vunpack.c.l.b16 %v11726
    %v11857 = vunpack.c.l.b16 %v11727
    %v11858 = vunpack.c.l.b16 %v11728
    %v11859 = vunpack.c.l.b16 %v11729
    %v11860 = vunpack.c.l.b16 %v11730
    %v11861 = vunpack.c.l.b16 %v11731
    %v11862 = vunpack.c.l.b16 %v11732
    %v11863 = vunpack.c.l.b16 %v11733
    %v11864 = vunpack.c.l.b16 %v11734
    %v11865 = vunpack.c.l.b16 %v11735
    %v11866 = vunpack.c.l.b16 %v11736
    %v11867 = vunpack.c.l.b16 %v11737
    %v11868 = vunpack.c.l.b16 %v11738
    %v11869 = vunpack.c.l.b16 %v11739
    %v11870 = vunpack.c.l.b16 %v11740
    %v11871 = vunpack.c.l.b16 %v11741
    %v11872 = vunpack.c.l.b16 %v11742
    %v11873 = vunpack.c.l.b16 %v11743
    %v11874 = vunpack.c.l.b16 %v11744
    %v11875 = vunpack.c.l.b16 %v11745
    %v11876 = vunpack.c.l.b16 %v11746
    %v11877 = vunpack.c.l.b16 %v11747
    %v11878 = vunpack.c.l.b16 %v11748
    %v11879 = vunpack.c.l.b16 %v11749
    %v11880 = vunpack.c.l.b16 %v11750
    %v11881 = vunpack.c.l.b16 %v11751
    %v11882 = vunpack.c.l.b16 %v11752
    %v11883 = vunpack.c.l.b16 %v11753
    %v11884 = vunpack.c.l.b16 %v11754
    %v11885 = vunpack.c.l.b16 %v11755
    %v11886 = vunpack.c.l.b16 %v11756
    %v11887 = vunpack.c.l.b16 %v11757
    %v11888 = vunpack.c.l.b16 %v11758
    %v11889 = vunpack.c.l.b16 %v11759
    %v11890 = vunpack.c.l.b16 %v11760
    %v11891 = vunpack.c.l.b16 %v11761
    %v11892 = vunpack.c.l.b16 %v11762
    %v11893 = vunpack.c.l.b16 %v11763
    %v11894 = vunpack.c.l.b16 %v11764
    %v11895 = vunpack.c.l.b16 %v11765
    %v11896 = vunpack.c.l.b16 %v11766
    %v11897 = vunpack.c.l.b16 %v11767
    %v11898 = vunpack.c.l.b16 %v11768
    %v11899 = vunpack.c.l.b16 %v11769
    %v11900 = vunpack.c.l.b16 %v11770
    %v11901 = vunpack.c.l.b16 %v11771
    %v11902 = vunpack.c.l.b16 %v11772
    %v11903 = vunpack.c.l.b16 %v11773
    %v11904 = vunpack.c.l.b16 %v11774
    %v11905 = vunpack.c.l.b16 %v11775
    %v11906 = vunpack.c.l.b16 %v11776
    %v11907 = vunpack.c.l.b16 %v11777
    %v11908 = vunpack.c.l.b16 %v11778
    %v11909 = vpack.c.b16 %v11847, %v11846
    %v11910 = vpack.c.b16 %v11849, %v11848
    %v11911 = vpack.c.b16 %v11851, %v11850
    %v11912 = vpack.c.b16 %v11853, %v11852
    %v11913 = vpack.c.b16 %v11855, %v11854
    %v11914 = vpack.c.b16 %v11857, %v11856
    %v11915 = vpack.c.b16 %v11859, %v11858
    %v11916 = vpack.c.b16 %v11861, %v11860
    %v11917 = vpack.c.b16 %v11863, %v11862
    %v11918 = vpack.c.b16 %v11865, %v11864
    %v11919 = vpack.c.b16 %v11867, %v11866
    %v11920 = vpack.c.b16 %v11869, %v11868
    %v11921 = vpack.c.b16 %v11871, %v11870
    %v11922 = vpack.c.b16 %v11873, %v11872
    %v11923 = vpack.c.b16 %v11875, %v11874
    %v11924 = vpack.c.b16 %v11877, %v11876
    %v11925 = vpack.c.b16 %v11879, %v11878
    %v11926 = vpack.c.b16 %v11881, %v11880
    %v11927 = vpack.c.b16 %v11883, %v11882
    %v11928 = vpack.c.b16 %v11885, %v11884
    %v11929 = vpack.c.b16 %v11887, %v11886
    %v11930 = vpack.c.b16 %v11889, %v11888
    %v11931 = vpack.c.b16 %v11891, %v11890
    %v11932 = vpack.c.b16 %v11893, %v11892
    %v11933 = vpack.c.b16 %v11895, %v11894
    %v11934 = vpack.c.b16 %v11897, %v11896
    %v11935 = vpack.c.b16 %v11899, %v11898
    %v11936 = vpack.c.b16 %v11901, %v11900
    %v11937 = vpack.c.b16 %v11903, %v11902
    %v11938 = vpack.c.b16 %v11905, %v11904
    %v11939 = vpack.c.b16 %v11907, %v11906
    %v11940 = vpack.c.b16 %v11908, %v11908
    %v11973 = vsel %vm7144, %v11715, 0
    %v11976 = vsel %vm7217, %v11940, 0
    %11978 = vmatpush.bf16.msra.mxu0 %v11916
    %11979 = vmatpush.bf16.msra.mxu0 %v11915
    %11980 = vmatpush.bf16.msra.mxu0 %v11914
    %11981 = vmatpush.bf16.msra.mxu0 %v11913
    %11982 = vmatpush.bf16.msra.mxu0 %v11912
    %11983 = vmatpush.bf16.msra.mxu0 %v11911
    %11984 = vmatpush.bf16.msra.mxu0 %v11910
    %11985 = vmatpush.bf16.msra.mxu0 %v11909
    %11986 = vmatmul.bf16.gmra.mxu0 %v11712
    %v11987 = vpop.f32.mrf.mxu0
    %v11988 = vadd.f32 %v11781, %v11987
    %v11989 = vpop.f32.mrf.mxu0
    %11990 = vdwg.mxu0
    %11991 = vmatpush.bf16.msra.mxu0 %v11924
    %11992 = vmatpush.bf16.msra.mxu0 %v11923
    %11993 = vmatpush.bf16.msra.mxu0 %v11922
    %11994 = vmatpush.bf16.msra.mxu0 %v11921
    %11995 = vmatpush.bf16.msra.mxu0 %v11920
    %11996 = vmatpush.bf16.msra.mxu0 %v11919
    %11997 = vmatpush.bf16.msra.mxu0 %v11918
    %11998 = vmatpush.bf16.msra.mxu0 %v11917
    %11999 = vmatmul.bf16.gmra.mxu0 %v11713
    %v12000 = vpop.f32.mrf.mxu0
    %v12001 = vadd.f32 %v11988, %v12000
    %v12002 = vpop.f32.mrf.mxu0
    %12003 = vdwg.mxu0
    %12004 = vmatpush.bf16.msra.mxu0 %v11932
    %12005 = vmatpush.bf16.msra.mxu0 %v11931
    %12006 = vmatpush.bf16.msra.mxu0 %v11930
    %12007 = vmatpush.bf16.msra.mxu0 %v11929
    %12008 = vmatpush.bf16.msra.mxu0 %v11928
    %12009 = vmatpush.bf16.msra.mxu0 %v11927
    %12010 = vmatpush.bf16.msra.mxu0 %v11926
    %12011 = vmatpush.bf16.msra.mxu0 %v11925
    %12012 = vmatmul.bf16.gmra.mxu0 %v11714
    %v12013 = vpop.f32.mrf.mxu0
    %v12014 = vadd.f32 %v12001, %v12013
    %v12015 = vpop.f32.mrf.mxu0
    %12016 = vdwg.mxu0
    %12017 = vmatpush.bf16.msra.mxu0 %v11976
    %12018 = vmatpush.bf16.msra.mxu0 %v11939
    %12019 = vmatpush.bf16.msra.mxu0 %v11938
    %12020 = vmatpush.bf16.msra.mxu0 %v11937
    %12021 = vmatpush.bf16.msra.mxu0 %v11936
    %12022 = vmatpush.bf16.msra.mxu0 %v11935
    %12023 = vmatpush.bf16.msra.mxu0 %v11934
    %12024 = vmatpush.bf16.msra.mxu0 %v11933
    %12025 = vmatmul.bf16.gmra.mxu0 %v11973
    %v12026 = vpop.f32.mrf.mxu0
    %v12027 = vadd.f32 %v12014, %v12026
    %v12028 = vpop.f32.mrf.mxu0
    %12029 = vdwg.mxu0
    %12030 = vst [vmem:[#allocation2] sm:$0x3] %v12027
    // Predicated region
    $region38: #{dqn_forward.1} parent=1 // pred_check
      _
    $region39: #{dqn_forward.1} parent=1 // pred_check_branch
      %12032 = sbr.rel (0) target = $region41
    $region40: #{dqn_forward.1} parent=1 // pred_region
      %12034 = vsyncadd [#allocation3], 0
      %s12036 = sshll.u32 [#allocation2], 4
      %s12037 = int_to_ptr.vmem [resolvable:$true] %s12036
      %s12038 = sshll.u32 %s9, 4
      %s12039 = int_to_ptr.hbm [resolvable:$true] %s12038
      %12041 = dma.vmem_to_hbm [thread:$0]  %s12037, 32, %s12039, [#allocation3]
    $region41: #{dqn_forward.1} parent=1 // pred_fallthru
      _
    // Predicated region
    $region42: #{dqn_forward.1} parent=1 // pred_check
      _
    $region43: #{dqn_forward.1} parent=1 // pred_check_branch
      %12043 = sbr.rel (0) target = $region45
    $region44: #{dqn_forward.1} parent=1 // pred_region
      %12045 = dma.done [#allocation3], 32
    $region45: #{dqn_forward.1} parent=1 // pred_fallthru
      _
    %12046 = vsyncpa [#allocation3], 1

</llo_original>
